<compile_context>
chip_gen: v6e
topology: v6e:2x2x1
jax: 0.10.0
libtpu: 0.0.40
codegen_flags: <defaults>
</compile_context>

<pallas_src>
import jax
import jax.numpy as jnp
from jax.experimental import pallas as pl
from jax.experimental.pallas import tpu as pltpu


# -----------------------------------------------------------------------------
# Grid-step selection: one step per TensorCore.
# -----------------------------------------------------------------------------
def _detect_grid_steps():
    try:
        kind = jax.devices()[0].device_kind.lower()
    except Exception:
        return 1
    return 2 if ("v7" in kind or "7x" in kind) else 1


_NUM_GRID_STEPS = _detect_grid_steps()


# -----------------------------------------------------------------------------
# Fused kernel.  One grid step = one group of heads of the multihead dueling
# Q net (batched over heads with einsum); the tiny softmax policy net runs
# only on grid step 0.
#   x1 = relu(s @ W1 + b1); x2 = relu(x1 @ W2 + b2)
#   [A | V] = x2 @ Wva + bva ;  Q = V + A - mean(A)
#   log_pi = log_softmax(actor MLP logits); pi = exp(log_pi)
# -----------------------------------------------------------------------------
def _fused_actor_critic_kernel(s_ref, w1_ref, b1_ref, w2_ref, b2_ref,
                               wva_ref, bva_ref,
                               spi_ref, aw1_ref, ab1_ref, aw2_ref, ab2_ref,
                               aw3_ref, ab3_ref,
                               q_ref, pi_ref, logpi_ref):
    f32 = jnp.float32
    bf16 = jnp.bfloat16
    n_actions = wva_ref.shape[-1] - 1

    # ---- multihead dueling Q net (this step's group of heads) ----
    x = jnp.einsum("hbs,hsd->hbd", s_ref[...], w1_ref[...],
                   preferred_element_type=f32) + b1_ref[...]
    x = jnp.maximum(x, 0.0).astype(bf16)
    x = jnp.einsum("hbd,hde->hbe", x, w2_ref[...],
                   preferred_element_type=f32) + b2_ref[...]
    x = jnp.maximum(x, 0.0).astype(bf16)
    # fused advantage/value head: columns [0:A] = advantage, [A] = value
    va = jnp.einsum("hbe,hea->hba", x, wva_ref[...],
                    preferred_element_type=f32) + bva_ref[...]
    adv = va[..., :n_actions]                          # (hps, B, A)
    val = va[..., n_actions:]                          # (hps, B, 1)
    q_ref[...] = val + adv - jnp.mean(adv, axis=-1, keepdims=True)

    # ---- softmax policy net (actor): compute exactly once ----
    @pl.when(pl.program_id(0) == 0)
    def _actor():
        h = jnp.dot(spi_ref[...], aw1_ref[...],
                    preferred_element_type=f32) + ab1_ref[...]
        h = jnp.maximum(h, 0.0).astype(bf16)
        h = jnp.dot(h, aw2_ref[...],
                    preferred_element_type=f32) + ab2_ref[...]
        h = jnp.maximum(h, 0.0).astype(bf16)
        logits = jnp.dot(h, aw3_ref[...],
                         preferred_element_type=f32) + ab3_ref[...]
        z = logits - jnp.max(logits, axis=-1, keepdims=True)
        lse = jnp.log(jnp.sum(jnp.exp(z), axis=-1, keepdims=True))
        log_pi = z - lse
        logpi_ref[0] = log_pi
        pi_ref[0] = jnp.exp(log_pi)        # exactly consistent with log_pi


def _fused_forward(q_params, actor_params, s_all, s_pi):
    """s_all: (2H, B, s_dim) bf16, head-major (heads [0,H) = q, [H,2H) = q_target).
       s_pi : (B, s_dim) bf16.
       Returns q_heads (2H, B, A) f32 (head-major), pi (B, A), log_pi (B, A)."""
    w1, b1, w2, b2, wva, bva = q_params
    aw1, ab1, aw2, ab2, aw3, ab3 = actor_params
    H2, B, s_dim = s_all.shape
    hidden = w1.shape[-1]
    n_actions = wva.shape[-1] - 1

    G = _NUM_GRID_STEPS if (H2 % _NUM_GRID_STEPS == 0) else 1
    hps = H2 // G                         # heads per grid step

    def q_spec(arr):                      # one group of heads per grid step
        return pl.BlockSpec((hps,) + arr.shape[1:], lambda g: (g, 0, 0))

    def full_spec(arr):                   # actor params / s_pi: full block
        return pl.BlockSpec(arr.shape, lambda g: (0, 0))

    # Advisory cost estimate so XLA schedules surrounding ops sensibly.
    flops = (2 * H2 * B * (s_dim * hidden + hidden * hidden
                           + hidden * (n_actions + 1))
             + 2 * B * (s_dim * hidden + hidden * hidden + hidden * n_actions))
    bytes_accessed = int(sum(int(a.size) * a.dtype.itemsize for a in
                             (s_all, w1, b1, w2, b2, wva, bva,
                              s_pi, aw1, ab1, aw2, ab2, aw3, ab3))
                         + 4 * (H2 * B * n_actions + 2 * G * B * n_actions))
    cost = pl.CostEstimate(flops=int(flops),
                           transcendentals=int(B * (n_actions + 1)),
                           bytes_accessed=bytes_accessed)

    q_heads, pi_g, logpi_g = pl.pallas_call(
        _fused_actor_critic_kernel,
        out_shape=(
            jax.ShapeDtypeStruct((H2, B, n_actions), jnp.float32),
            jax.ShapeDtypeStruct((G, B, n_actions), jnp.float32),
            jax.ShapeDtypeStruct((G, B, n_actions), jnp.float32),
        ),
        grid_spec=pltpu.PrefetchScalarGridSpec(
            num_scalar_prefetch=0,
            grid=(G,),
            in_specs=[
                q_spec(s_all), q_spec(w1), q_spec(b1), q_spec(w2), q_spec(b2),
                q_spec(wva), q_spec(bva),
                full_spec(s_pi), full_spec(aw1), full_spec(ab1),
                full_spec(aw2), full_spec(ab2), full_spec(aw3), full_spec(ab3),
            ],
            out_specs=(
                pl.BlockSpec((hps, B, n_actions), lambda g: (g, 0, 0)),
                pl.BlockSpec((1, B, n_actions), lambda g: (g, 0, 0)),
                pl.BlockSpec((1, B, n_actions), lambda g: (g, 0, 0)),
            ),
        ),
        compiler_params=pltpu.CompilerParams(
            dimension_semantics=("parallel",)),
        cost_estimate=cost,
    )(s_all, w1, b1, w2, b2, wva, bva, s_pi, aw1, ab1, aw2, ab2, aw3, ab3)
    return q_heads, pi_g[0], logpi_g[0]


# -----------------------------------------------------------------------------
# Observation packing (hoisted OUT of the jitted forward, per review): head-
# major stack of the per-head observations for q and q_target, cast to bf16.
# Equivalent to torch.stack(s_q, dim=1) up to the head/batch transpose that
# the kernel consumes directly.
# -----------------------------------------------------------------------------
def pack_q_observations(s_q, s_q_target):
    return jnp.stack(list(s_q) + list(s_q_target), axis=0).astype(jnp.bfloat16)


# -----------------------------------------------------------------------------
# Module forward (matches discrete_actor_critic_Net.forward, parallel branch).
# -----------------------------------------------------------------------------
@jax.jit
def discrete_actor_critic_forward(params, s_pi, s_q_packed):
    q_heads, pi, log_pi = _fused_forward(
        params["q_all"], params["actor"], s_q_packed, s_pi.astype(jnp.bfloat16))
    H = q_heads.shape[0] // 2
    q = jnp.transpose(q_heads[:H], (1, 0, 2))          # (B, H, n_actions)
    q_target = jnp.transpose(q_heads[H:], (1, 0, 2))   # (B, H, n_actions)
    log_alpha = params["log_alpha"].reshape(-1, 1)
    return q, q_target, pi, log_pi, log_alpha


# -----------------------------------------------------------------------------
# Parameter construction (deterministic PyTorch-like fan-in uniform init).
# Weights bf16, biases f32.  q_target == q at init (module does update(1.0)).
# -----------------------------------------------------------------------------
def _uniform(key, shape, bound, dtype=jnp.float32):
    return jax.random.uniform(key, shape, jnp.float32, -bound, bound).astype(dtype)


def init_params(key, s_dim, n_actions, n_heads, hidden=256, init_log_alpha=0.0):
    H = n_heads
    ks = jax.random.split(key, 14)
    bs = 1.0 / float(s_dim) ** 0.5
    bh = 1.0 / float(hidden) ** 0.5
    bf16 = jnp.bfloat16

    # per-head dueling Q net
    w1 = _uniform(ks[0], (H, s_dim, hidden), bs, bf16)
    b1 = _uniform(ks[1], (H, 1, hidden), bs)
    w2 = _uniform(ks[2], (H, hidden, hidden), bh, bf16)
    b2 = _uniform(ks[3], (H, 1, hidden), bh)
    wa = _uniform(ks[4], (H, hidden, n_actions), bh, bf16)
    ba = _uniform(ks[5], (H, 1, n_actions), bh)
    wv = _uniform(ks[6], (H, hidden, 1), bh, bf16)
    bv = _uniform(ks[7], (H, 1, 1), bh)
    # fuse advantage/value heads: [A | V]
    wva = jnp.concatenate([wa, wv], axis=-1)           # (H, hidden, A+1)
    bva = jnp.concatenate([ba, bv], axis=-1)           # (H, 1, A+1)
    # pack q and q_target (identical at init) along the head axis -> 2H heads
    q_all = tuple(jnp.concatenate([p, p], axis=0) for p in (w1, b1, w2, b2, wva, bva))

    # actor (softmax policy net)
    aw1 = _uniform(ks[8], (s_dim, hidden), bs, bf16)
    ab1 = _uniform(ks[9], (1, hidden), bs)
    aw2 = _uniform(ks[10], (hidden, hidden), bh, bf16)
    ab2 = _uniform(ks[11], (1, hidden), bh)
    aw3 = _uniform(ks[12], (hidden, n_actions), bh, bf16)
    ab3 = _uniform(ks[13], (1, n_actions), bh)
    actor = (aw1, ab1, aw2, ab2, aw3, ab3)

    log_alpha = jnp.full((1,), init_log_alpha, dtype=jnp.float32)
    return {"q_all": q_all, "actor": actor, "log_alpha": log_alpha}


# -----------------------------------------------------------------------------
# Pure-jnp reference mirroring the kernel's bf16/f32 mixed precision.
# -----------------------------------------------------------------------------
def _reference_forward(params, s_pi, s_q_packed):
    f32, bf16 = jnp.float32, jnp.bfloat16
    w1, b1, w2, b2, wva, bva = params["q_all"]
    aw1, ab1, aw2, ab2, aw3, ab3 = params["actor"]
    H = w1.shape[0] // 2
    n_actions = wva.shape[-1] - 1

    s_all = s_q_packed.astype(f32)
    x = jnp.maximum(jnp.einsum("hbs,hsd->hbd", s_all, w1.astype(f32)) + b1, 0.0)
    x = x.astype(bf16).astype(f32)
    x = jnp.maximum(jnp.einsum("hbd,hde->hbe", x, w2.astype(f32)) + b2, 0.0)
    x = x.astype(bf16).astype(f32)
    va = jnp.einsum("hbe,hea->hba", x, wva.astype(f32)) + bva
    adv, val = va[..., :n_actions], va[..., n_actions:]
    qh = val + adv - jnp.mean(adv, axis=-1, keepdims=True)      # (2H, B, A)
    q = jnp.transpose(qh[:H], (1, 0, 2))
    q_target = jnp.transpose(qh[H:], (1, 0, 2))

    sp = s_pi.astype(bf16).astype(f32)
    h = jnp.maximum(sp @ aw1.astype(f32) + ab1, 0.0).astype(bf16).astype(f32)
    h = jnp.maximum(h @ aw2.astype(f32) + ab2, 0.0).astype(bf16).astype(f32)
    logits = h @ aw3.astype(f32) + ab3
    z = logits - jnp.max(logits, axis=-1, keepdims=True)
    lse = jnp.log(jnp.sum(jnp.exp(z), axis=-1, keepdims=True))
    log_pi = z - lse
    return q, q_target, jnp.exp(log_pi), log_pi


if __name__ == "__main__":
    B, s_dim, n_actions, n_heads = 8, 32, 4, 8
    key = jax.random.PRNGKey(0)
    k_param, k_pi, k_q, k_qt = jax.random.split(key, 4)

    params = init_params(k_param, s_dim, n_actions, n_heads)

    s_pi = jax.random.normal(k_pi, (B, s_dim), jnp.float32)
    s_q = tuple(jax.random.normal(jax.random.fold_in(k_q, h), (B, s_dim), jnp.float32)
                for h in range(n_heads))
    s_q_target = tuple(jax.random.normal(jax.random.fold_in(k_qt, h), (B, s_dim),
                                         jnp.float32)
                       for h in range(n_heads))

    # Packing/cast hoisted out of the jitted forward (done once per batch).
    s_q_packed = pack_q_observations(s_q, s_q_target)

    q, q_target, pi, log_pi, log_alpha = discrete_actor_critic_forward(
        params, s_pi, s_q_packed)
    jax.block_until_ready((q, q_target, pi, log_pi, log_alpha))

    # shape checks
    assert q.shape == (B, n_heads, n_actions)
    assert q_target.shape == (B, n_heads, n_actions)
    assert pi.shape == (B, n_actions) and log_pi.shape == (B, n_actions)
    assert log_alpha.shape == (1, 1)

    # numerical checks vs mixed-precision reference
    q_r, qt_r, pi_r, logpi_r = _reference_forward(params, s_pi, s_q_packed)
    assert jnp.allclose(q, q_r, atol=5e-3, rtol=5e-3)
    assert jnp.allclose(q_target, qt_r, atol=5e-3, rtol=5e-3)
    assert jnp.allclose(log_pi, logpi_r, atol=5e-3, rtol=5e-3)
    assert jnp.allclose(pi, pi_r, atol=5e-3)
    # softmax consistency (pi is exp(log_pi) in-kernel now)
    assert jnp.allclose(jnp.sum(pi, axis=1), 1.0, atol=1e-3)
    assert jnp.allclose(jnp.exp(log_pi), pi, atol=1e-3)

    print("KERNEL_OK")
</pallas_src>

<mosaic_0001>
module attributes {stable_mosaic.version = 11 : i64} {
  func.func @_fused_actor_critic_kernel(%arg0: i32, %arg1: memref<16x8x32xbf16, #tpu.memory_space<vmem>>, %arg2: memref<16x32x256xbf16, #tpu.memory_space<vmem>>, %arg3: memref<16x1x256xf32, #tpu.memory_space<vmem>>, %arg4: memref<16x256x256xbf16, #tpu.memory_space<vmem>>, %arg5: memref<16x1x256xf32, #tpu.memory_space<vmem>>, %arg6: memref<16x256x5xbf16, #tpu.memory_space<vmem>>, %arg7: memref<16x1x5xf32, #tpu.memory_space<vmem>>, %arg8: memref<8x32xbf16, #tpu.memory_space<vmem>>, %arg9: memref<32x256xbf16, #tpu.memory_space<vmem>>, %arg10: memref<1x256xf32, #tpu.memory_space<vmem>>, %arg11: memref<256x256xbf16, #tpu.memory_space<vmem>>, %arg12: memref<1x256xf32, #tpu.memory_space<vmem>>, %arg13: memref<256x4xbf16, #tpu.memory_space<vmem>>, %arg14: memref<1x4xf32, #tpu.memory_space<vmem>>, %arg15: memref<16x8x4xf32, #tpu.memory_space<vmem>>, %arg16: memref<1x8x4xf32, #tpu.memory_space<vmem>>, %arg17: memref<1x8x4xf32, #tpu.memory_space<vmem>>) attributes {dimension_semantics = [#tpu.dimension_semantics<parallel>], iteration_bounds = array<i64: 1>, scalar_prefetch = 0 : i64, scratch_operands = 0 : i64, tpu.core_type = #tpu.core_type<tc>, window_params = [{transform_indices = @transform_0, window_bounds = array<i64: 16, 8, 32>}, {transform_indices = @transform_1, window_bounds = array<i64: 16, 32, 256>}, {transform_indices = @transform_2, window_bounds = array<i64: 16, 1, 256>}, {transform_indices = @transform_3, window_bounds = array<i64: 16, 256, 256>}, {transform_indices = @transform_4, window_bounds = array<i64: 16, 1, 256>}, {transform_indices = @transform_5, window_bounds = array<i64: 16, 256, 5>}, {transform_indices = @transform_6, window_bounds = array<i64: 16, 1, 5>}, {pipeline_mode = #tpu.pipeline_mode<synchronous>, transform_indices = @transform_7, window_bounds = array<i64: 8, 32>}, {pipeline_mode = #tpu.pipeline_mode<synchronous>, transform_indices = @transform_8, window_bounds = array<i64: 32, 256>}, {pipeline_mode = #tpu.pipeline_mode<synchronous>, transform_indices = @transform_9, window_bounds = array<i64: 1, 256>}, {pipeline_mode = #tpu.pipeline_mode<synchronous>, transform_indices = @transform_10, window_bounds = array<i64: 256, 256>}, {pipeline_mode = #tpu.pipeline_mode<synchronous>, transform_indices = @transform_11, window_bounds = array<i64: 1, 256>}, {pipeline_mode = #tpu.pipeline_mode<synchronous>, transform_indices = @transform_12, window_bounds = array<i64: 256, 4>}, {pipeline_mode = #tpu.pipeline_mode<synchronous>, transform_indices = @transform_13, window_bounds = array<i64: 1, 4>}, {transform_indices = @transform_14, window_bounds = array<i64: 16, 8, 4>}, {transform_indices = @transform_15, window_bounds = array<i64: 1, 8, 4>}, {transform_indices = @transform_16, window_bounds = array<i64: 1, 8, 4>}]} {
    %c0 = arith.constant 0 : index
    %c0_0 = arith.constant 0 : index
    %c0_1 = arith.constant 0 : index
    %0 = vector.load %arg1[%c0, %c0_0, %c0_1] : memref<16x8x32xbf16, #tpu.memory_space<vmem>>, vector<16x8x32xbf16>
    %c0_2 = arith.constant 0 : index
    %c0_3 = arith.constant 0 : index
    %c0_4 = arith.constant 0 : index
    %1 = vector.load %arg2[%c0_2, %c0_3, %c0_4] : memref<16x32x256xbf16, #tpu.memory_space<vmem>>, vector<16x32x256xbf16>
    "tpu.trace_start"() <{level = 10 : i32, message = "hbs,hsd->hbd"}> : () -> ()
    %cst = arith.constant dense<0.000000e+00> : vector<16x8x256xf32>
    %2 = tpu.matmul %0, %1, %cst {dimension_numbers = #tpu.dot_dimension_numbers<[2], [1], [1], [2], [0, 0, 0, 1, 1, 2], [0], [0]>} : vector<16x8x32xbf16>, vector<16x32x256xbf16>, vector<16x8x256xf32> -> vector<16x8x256xf32>
    "tpu.trace_stop"() : () -> ()
    %c0_5 = arith.constant 0 : index
    %c0_6 = arith.constant 0 : index
    %c0_7 = arith.constant 0 : index
    %3 = vector.load %arg3[%c0_5, %c0_6, %c0_7] : memref<16x1x256xf32, #tpu.memory_space<vmem>>, vector<16x1x256xf32>
    %4 = vector.broadcast %3 : vector<16x1x256xf32> to vector<16x8x256xf32>
    %5 = arith.addf %2, %4 : vector<16x8x256xf32>
    %cst_8 = arith.constant 0.000000e+00 : f32
    %6 = vector.broadcast %cst_8 : f32 to vector<16x8x256xf32>
    %7 = arith.maximumf %5, %6 : vector<16x8x256xf32>
    %8 = arith.truncf %7 : vector<16x8x256xf32> to vector<16x8x256xbf16>
    %c0_9 = arith.constant 0 : index
    %c0_10 = arith.constant 0 : index
    %c0_11 = arith.constant 0 : index
    %9 = vector.load %arg4[%c0_9, %c0_10, %c0_11] : memref<16x256x256xbf16, #tpu.memory_space<vmem>>, vector<16x256x256xbf16>
    "tpu.trace_start"() <{level = 10 : i32, message = "hbd,hde->hbe"}> : () -> ()
    %cst_12 = arith.constant dense<0.000000e+00> : vector<16x8x256xf32>
    %10 = tpu.matmul %8, %9, %cst_12 {dimension_numbers = #tpu.dot_dimension_numbers<[2], [1], [1], [2], [0, 0, 0, 1, 1, 2], [0], [0]>} : vector<16x8x256xbf16>, vector<16x256x256xbf16>, vector<16x8x256xf32> -> vector<16x8x256xf32>
    "tpu.trace_stop"() : () -> ()
    %c0_13 = arith.constant 0 : index
    %c0_14 = arith.constant 0 : index
    %c0_15 = arith.constant 0 : index
    %11 = vector.load %arg5[%c0_13, %c0_14, %c0_15] : memref<16x1x256xf32, #tpu.memory_space<vmem>>, vector<16x1x256xf32>
    %12 = vector.broadcast %11 : vector<16x1x256xf32> to vector<16x8x256xf32>
    %13 = arith.addf %10, %12 : vector<16x8x256xf32>
    %cst_16 = arith.constant 0.000000e+00 : f32
    %14 = vector.broadcast %cst_16 : f32 to vector<16x8x256xf32>
    %15 = arith.maximumf %13, %14 : vector<16x8x256xf32>
    %16 = arith.truncf %15 : vector<16x8x256xf32> to vector<16x8x256xbf16>
    %c0_17 = arith.constant 0 : index
    %c0_18 = arith.constant 0 : index
    %c0_19 = arith.constant 0 : index
    %17 = vector.load %arg6[%c0_17, %c0_18, %c0_19] : memref<16x256x5xbf16, #tpu.memory_space<vmem>>, vector<16x256x5xbf16>
    "tpu.trace_start"() <{level = 10 : i32, message = "hbe,hea->hba"}> : () -> ()
    %cst_20 = arith.constant dense<0.000000e+00> : vector<16x8x5xf32>
    %18 = tpu.matmul %16, %17, %cst_20 {dimension_numbers = #tpu.dot_dimension_numbers<[2], [1], [1], [2], [0, 0, 0, 1, 1, 2], [0], [0]>} : vector<16x8x256xbf16>, vector<16x256x5xbf16>, vector<16x8x5xf32> -> vector<16x8x5xf32>
    "tpu.trace_stop"() : () -> ()
    %c0_21 = arith.constant 0 : index
    %c0_22 = arith.constant 0 : index
    %c0_23 = arith.constant 0 : index
    %19 = vector.load %arg7[%c0_21, %c0_22, %c0_23] : memref<16x1x5xf32, #tpu.memory_space<vmem>>, vector<16x1x5xf32>
    %20 = vector.broadcast %19 : vector<16x1x5xf32> to vector<16x8x5xf32>
    %21 = arith.addf %18, %20 : vector<16x8x5xf32>
    %22 = vector.extract_strided_slice %21 {offsets = [0, 0, 0], sizes = [16, 8, 4], strides = [1, 1, 1]} : vector<16x8x5xf32> to vector<16x8x4xf32>
    %23 = vector.extract_strided_slice %21 {offsets = [0, 0, 4], sizes = [16, 8, 1], strides = [1, 1, 1]} : vector<16x8x5xf32> to vector<16x8x1xf32>
    %24 = vector.broadcast %23 : vector<16x8x1xf32> to vector<16x8x4xf32>
    %25 = arith.addf %24, %22 : vector<16x8x4xf32>
    %cst_24 = arith.constant dense<0.000000e+00> : vector<16x8xf32>
    %26 = vector.multi_reduction <add>, %22, %cst_24 [2] : vector<16x8x4xf32> to vector<16x8xf32>
    %27 = vector.shape_cast %26 : vector<16x8xf32> to vector<16x8x1xf32>
    %cst_25 = arith.constant 4.000000e+00 : f32
    %28 = vector.broadcast %cst_25 : f32 to vector<16x8x1xf32>
    %29 = arith.divf %27, %28 : vector<16x8x1xf32>
    %30 = vector.broadcast %29 : vector<16x8x1xf32> to vector<16x8x4xf32>
    %31 = arith.subf %25, %30 : vector<16x8x4xf32>
    %c0_26 = arith.constant 0 : index
    %c0_27 = arith.constant 0 : index
    %c0_28 = arith.constant 0 : index
    %32 = vector.load %arg15[%c0_26, %c0_27, %c0_28] : memref<16x8x4xf32, #tpu.memory_space<vmem>>, vector<16x8x4xf32>
    tpu.vector_store %arg15[%c0_26, %c0_27, %c0_28], %31 {strides = array<i32>} : memref<16x8x4xf32, #tpu.memory_space<vmem>>, vector<16x8x4xf32>,
    %c0_i32 = arith.constant 0 : i32
    %33 = arith.cmpi eq, %arg0, %c0_i32 : i32
    %34 = arith.extui %33 : i1 to i32
    %c0_i32_29 = arith.constant 0 : i32
    %35 = arith.cmpi ne, %34, %c0_i32_29 : i32
    scf.if %35 {
      %c0_30 = arith.constant 0 : index
      %c0_31 = arith.constant 0 : index
      %36 = vector.load %arg8[%c0_30, %c0_31] : memref<8x32xbf16, #tpu.memory_space<vmem>>, vector<8x32xbf16>
      %c0_32 = arith.constant 0 : index
      %c0_33 = arith.constant 0 : index
      %37 = vector.load %arg9[%c0_32, %c0_33] : memref<32x256xbf16, #tpu.memory_space<vmem>>, vector<32x256xbf16>
      %cst_34 = arith.constant dense<0.000000e+00> : vector<8x256xf32>
      %38 = tpu.matmul %36, %37, %cst_34 {dimension_numbers = #tpu.dot_dimension_numbers<[1], [0], [0], [1], [0, 0, 1, 1], [], []>} : vector<8x32xbf16>, vector<32x256xbf16>, vector<8x256xf32> -> vector<8x256xf32>
      %c0_35 = arith.constant 0 : index
      %c0_36 = arith.constant 0 : index
      %39 = vector.load %arg10[%c0_35, %c0_36] : memref<1x256xf32, #tpu.memory_space<vmem>>, vector<1x256xf32>
      %40 = vector.broadcast %39 : vector<1x256xf32> to vector<8x256xf32>
      %41 = arith.addf %38, %40 : vector<8x256xf32>
      %cst_37 = arith.constant 0.000000e+00 : f32
      %42 = vector.broadcast %cst_37 : f32 to vector<8x256xf32>
      %43 = arith.maximumf %41, %42 : vector<8x256xf32>
      %44 = arith.truncf %43 : vector<8x256xf32> to vector<8x256xbf16>
      %c0_38 = arith.constant 0 : index
      %c0_39 = arith.constant 0 : index
      %45 = vector.load %arg11[%c0_38, %c0_39] : memref<256x256xbf16, #tpu.memory_space<vmem>>, vector<256x256xbf16>
      %cst_40 = arith.constant dense<0.000000e+00> : vector<8x256xf32>
      %46 = tpu.matmul %44, %45, %cst_40 {dimension_numbers = #tpu.dot_dimension_numbers<[1], [0], [0], [1], [0, 0, 1, 1], [], []>} : vector<8x256xbf16>, vector<256x256xbf16>, vector<8x256xf32> -> vector<8x256xf32>
      %c0_41 = arith.constant 0 : index
      %c0_42 = arith.constant 0 : index
      %47 = vector.load %arg12[%c0_41, %c0_42] : memref<1x256xf32, #tpu.memory_space<vmem>>, vector<1x256xf32>
      %48 = vector.broadcast %47 : vector<1x256xf32> to vector<8x256xf32>
      %49 = arith.addf %46, %48 : vector<8x256xf32>
      %cst_43 = arith.constant 0.000000e+00 : f32
      %50 = vector.broadcast %cst_43 : f32 to vector<8x256xf32>
      %51 = arith.maximumf %49, %50 : vector<8x256xf32>
      %52 = arith.truncf %51 : vector<8x256xf32> to vector<8x256xbf16>
      %c0_44 = arith.constant 0 : index
      %c0_45 = arith.constant 0 : index
      %53 = vector.load %arg13[%c0_44, %c0_45] : memref<256x4xbf16, #tpu.memory_space<vmem>>, vector<256x4xbf16>
      %cst_46 = arith.constant dense<0.000000e+00> : vector<8x4xf32>
      %54 = tpu.matmul %52, %53, %cst_46 {dimension_numbers = #tpu.dot_dimension_numbers<[1], [0], [0], [1], [0, 0, 1, 1], [], []>} : vector<8x256xbf16>, vector<256x4xbf16>, vector<8x4xf32> -> vector<8x4xf32>
      %c0_47 = arith.constant 0 : index
      %c0_48 = arith.constant 0 : index
      %55 = vector.load %arg14[%c0_47, %c0_48] : memref<1x4xf32, #tpu.memory_space<vmem>>, vector<1x4xf32>
      %56 = vector.broadcast %55 : vector<1x4xf32> to vector<8x4xf32>
      %57 = arith.addf %54, %56 : vector<8x4xf32>
      %cst_49 = arith.constant dense<0xFF800000> : vector<8xf32>
      %58 = vector.multi_reduction <maximumf>, %57, %cst_49 [1] : vector<8x4xf32> to vector<8xf32>
      %59 = vector.shape_cast %58 : vector<8xf32> to vector<8x1xf32>
      %60 = vector.broadcast %59 : vector<8x1xf32> to vector<8x4xf32>
      %61 = arith.subf %57, %60 : vector<8x4xf32>
      %62 = math.exp %61 : vector<8x4xf32>
      %cst_50 = arith.constant dense<0.000000e+00> : vector<8xf32>
      %63 = vector.multi_reduction <add>, %62, %cst_50 [1] : vector<8x4xf32> to vector<8xf32>
      %64 = vector.shape_cast %63 : vector<8xf32> to vector<8x1xf32>
      %65 = math.log %64 : vector<8x1xf32>
      %66 = vector.broadcast %65 : vector<8x1xf32> to vector<8x4xf32>
      %67 = arith.subf %61, %66 : vector<8x4xf32>
      %c0_51 = arith.constant 0 : index
      %c0_52 = arith.constant 0 : index
      %c0_53 = arith.constant 0 : index
      %68 = vector.load %arg17[%c0_51, %c0_52, %c0_53] : memref<1x8x4xf32, #tpu.memory_space<vmem>>, vector<1x8x4xf32>
      %69 = vector.shape_cast %68 : vector<1x8x4xf32> to vector<8x4xf32>
      %70 = vector.shape_cast %67 : vector<8x4xf32> to vector<1x8x4xf32>
      tpu.vector_store %arg17[%c0_51, %c0_52, %c0_53], %70 {strides = array<i32>} : memref<1x8x4xf32, #tpu.memory_space<vmem>>, vector<1x8x4xf32>,
      %71 = math.exp %67 : vector<8x4xf32>
      %c0_54 = arith.constant 0 : index
      %c0_55 = arith.constant 0 : index
      %c0_56 = arith.constant 0 : index
      %72 = vector.load %arg16[%c0_54, %c0_55, %c0_56] : memref<1x8x4xf32, #tpu.memory_space<vmem>>, vector<1x8x4xf32>
      %73 = vector.shape_cast %72 : vector<1x8x4xf32> to vector<8x4xf32>
      %74 = vector.shape_cast %71 : vector<8x4xf32> to vector<1x8x4xf32>
      tpu.vector_store %arg16[%c0_54, %c0_55, %c0_56], %74 {strides = array<i32>} : memref<1x8x4xf32, #tpu.memory_space<vmem>>, vector<1x8x4xf32>,
    } else {
    }
    return
  }
  func.func @transform_0(%arg0: i32) -> (i32, i32, i32) {
    %c0_i32 = arith.constant 0 : i32
    %c0_i32_0 = arith.constant 0 : i32
    %c0_i32_1 = arith.constant 0 : i32
    return %arg0, %c0_i32, %c0_i32_0 : i32, i32, i32
  }
  func.func @transform_1(%arg0: i32) -> (i32, i32, i32) {
    %c0_i32 = arith.constant 0 : i32
    %c0_i32_0 = arith.constant 0 : i32
    %c0_i32_1 = arith.constant 0 : i32
    return %arg0, %c0_i32, %c0_i32_0 : i32, i32, i32
  }
  func.func @transform_2(%arg0: i32) -> (i32, i32, i32) {
    %c0_i32 = arith.constant 0 : i32
    %c0_i32_0 = arith.constant 0 : i32
    %c0_i32_1 = arith.constant 0 : i32
    return %arg0, %c0_i32, %c0_i32_0 : i32, i32, i32
  }
  func.func @transform_3(%arg0: i32) -> (i32, i32, i32) {
    %c0_i32 = arith.constant 0 : i32
    %c0_i32_0 = arith.constant 0 : i32
    %c0_i32_1 = arith.constant 0 : i32
    return %arg0, %c0_i32, %c0_i32_0 : i32, i32, i32
  }
  func.func @transform_4(%arg0: i32) -> (i32, i32, i32) {
    %c0_i32 = arith.constant 0 : i32
    %c0_i32_0 = arith.constant 0 : i32
    %c0_i32_1 = arith.constant 0 : i32
    return %arg0, %c0_i32, %c0_i32_0 : i32, i32, i32
  }
  func.func @transform_5(%arg0: i32) -> (i32, i32, i32) {
    %c0_i32 = arith.constant 0 : i32
    %c0_i32_0 = arith.constant 0 : i32
    %c0_i32_1 = arith.constant 0 : i32
    return %arg0, %c0_i32, %c0_i32_0 : i32, i32, i32
  }
  func.func @transform_6(%arg0: i32) -> (i32, i32, i32) {
    %c0_i32 = arith.constant 0 : i32
    %c0_i32_0 = arith.constant 0 : i32
    %c0_i32_1 = arith.constant 0 : i32
    return %arg0, %c0_i32, %c0_i32_0 : i32, i32, i32
  }
  func.func @transform_7(%arg0: i32) -> (i32, i32) {
    %c0_i32 = arith.constant 0 : i32
    %c0_i32_0 = arith.constant 0 : i32
    %c0_i32_1 = arith.constant 0 : i32
    return %c0_i32, %c0_i32_0 : i32, i32
  }
  func.func @transform_8(%arg0: i32) -> (i32, i32) {
    %c0_i32 = arith.constant 0 : i32
    %c0_i32_0 = arith.constant 0 : i32
    %c0_i32_1 = arith.constant 0 : i32
    return %c0_i32, %c0_i32_0 : i32, i32
  }
  func.func @transform_9(%arg0: i32) -> (i32, i32) {
    %c0_i32 = arith.constant 0 : i32
    %c0_i32_0 = arith.constant 0 : i32
    %c0_i32_1 = arith.constant 0 : i32
    return %c0_i32, %c0_i32_0 : i32, i32
  }
  func.func @transform_10(%arg0: i32) -> (i32, i32) {
    %c0_i32 = arith.constant 0 : i32
    %c0_i32_0 = arith.constant 0 : i32
    %c0_i32_1 = arith.constant 0 : i32
    return %c0_i32, %c0_i32_0 : i32, i32
  }
  func.func @transform_11(%arg0: i32) -> (i32, i32) {
    %c0_i32 = arith.constant 0 : i32
    %c0_i32_0 = arith.constant 0 : i32
    %c0_i32_1 = arith.constant 0 : i32
    return %c0_i32, %c0_i32_0 : i32, i32
  }
  func.func @transform_12(%arg0: i32) -> (i32, i32) {
    %c0_i32 = arith.constant 0 : i32
    %c0_i32_0 = arith.constant 0 : i32
    %c0_i32_1 = arith.constant 0 : i32
    return %c0_i32, %c0_i32_0 : i32, i32
  }
  func.func @transform_13(%arg0: i32) -> (i32, i32) {
    %c0_i32 = arith.constant 0 : i32
    %c0_i32_0 = arith.constant 0 : i32
    %c0_i32_1 = arith.constant 0 : i32
    return %c0_i32, %c0_i32_0 : i32, i32
  }
  func.func @transform_14(%arg0: i32) -> (i32, i32, i32) {
    %c0_i32 = arith.constant 0 : i32
    %c0_i32_0 = arith.constant 0 : i32
    %c0_i32_1 = arith.constant 0 : i32
    return %arg0, %c0_i32, %c0_i32_0 : i32, i32, i32
  }
  func.func @transform_15(%arg0: i32) -> (i32, i32, i32) {
    %c0_i32 = arith.constant 0 : i32
    %c0_i32_0 = arith.constant 0 : i32
    %c0_i32_1 = arith.constant 0 : i32
    return %arg0, %c0_i32, %c0_i32_0 : i32, i32, i32
  }
  func.func @transform_16(%arg0: i32) -> (i32, i32, i32) {
    %c0_i32 = arith.constant 0 : i32
    %c0_i32_0 = arith.constant 0 : i32
    %c0_i32_1 = arith.constant 0 : i32
    return %arg0, %c0_i32, %c0_i32_0 : i32, i32, i32
  }
}

</mosaic_0001>

<llo_original>
// kernel: discrete_actor_critic_forward.1
$region0: #{discrete_actor_critic_forward.1}
  #allocation0 [shape = 'u32[]', space=smem, size = 0x4, offset = 0x4, fixed_abs, tag = 'smem constant byte address 0x4 - core index']
  #allocation1 [shape = 'u32[144,128]{1,0:T(1,128)}', space=vmem, size = 0x12000, scoped, tag = 'internal scratch']
  %s0 = inlined_call_operand.hbm [shape: bf16[16,8,32], index: 0, kind: input, shape index: {}]
  %s1 = inlined_call_operand.hbm [shape: bf16[16,32,256], index: 1, kind: input, shape index: {}]
  %s2 = inlined_call_operand.hbm [shape: f32[16,1,256], index: 2, kind: input, shape index: {}]
  %s3 = inlined_call_operand.hbm [shape: bf16[16,256,256], index: 3, kind: input, shape index: {}]
  %s4 = inlined_call_operand.hbm [shape: f32[16,1,256], index: 4, kind: input, shape index: {}]
  %s5 = inlined_call_operand.vmem [shape: bf16[16,256,5], index: 5, kind: input, shape index: {}]
  %s6 = inlined_call_operand.vmem [shape: f32[16,1,5], index: 6, kind: input, shape index: {}]
  %s7 = inlined_call_operand.vmem [shape: bf16[8,32], index: 7, kind: input, shape index: {}]
  %s8 = inlined_call_operand.hbm [shape: bf16[32,256], index: 8, kind: input, shape index: {}]
  %s9 = inlined_call_operand.hbm [shape: f32[1,256], index: 9, kind: input, shape index: {}]
  %s10 = inlined_call_operand.hbm [shape: bf16[256,256], index: 10, kind: input, shape index: {}]
  %s11 = inlined_call_operand.hbm [shape: f32[1,256], index: 11, kind: input, shape index: {}]
  %s12 = inlined_call_operand.vmem [shape: bf16[256,4], index: 12, kind: input, shape index: {}]
  %s13 = inlined_call_operand.hbm [shape: f32[1,4], index: 13, kind: input, shape index: {}]
  %s14 = inlined_call_operand.vmem [shape: f32[16,8,4], index: 14, kind: output, shape index: {0}]
  %s15 = inlined_call_operand.vmem [shape: f32[1,8,4], index: 15, kind: output, shape index: {1}]
  %s16 = inlined_call_operand.vmem [shape: f32[1,8,4], index: 16, kind: output, shape index: {2}]
  %17 = xla_tuple %s14, %s15, %s16
  %s18 = sld [smem:[#allocation0]]
  $region126: #{discrete_actor_critic_forward.1} parent=0
    _
  %s20 = ssub.s32 1, %s18
  %s21 = scalar_select 0, %s20, %s18
  $region1: #{discrete_actor_critic_forward.1} parent=0
    #allocation2 [shape = 'u8[32768]{0}', space=vmem, size = 0x8000, scoped, tag = 'input window, operand 0, single buffered']
    #allocation3 [shape = 's32[1]{0}', space=sflag, size = 0x4, scoped, tag = 'scoped memory for discrete_actor_critic_forward.1']
    #allocation4 [shape = 'u8[262144]{0}', space=vmem, size = 0x40000, scoped, tag = 'input window, operand 1, single buffered']
    #allocation5 [shape = 's32[1]{0}', space=sflag, size = 0x4, scoped, tag = 'scoped memory for discrete_actor_critic_forward.1']
    #allocation6 [shape = 'u8[16384]{0}', space=vmem, size = 0x4000, scoped, tag = 'input window, operand 2, single buffered']
    #allocation7 [shape = 'u8[2097152]{0}', space=vmem, size = 0x200000, scoped, tag = 'input window, operand 3, single buffered']
    #allocation8 [shape = 's32[1]{0}', space=sflag, size = 0x4, scoped, tag = 'scoped memory for discrete_actor_critic_forward.1']
    #allocation9 [shape = 'u8[16384]{0}', space=vmem, size = 0x4000, scoped, tag = 'input window, operand 4, single buffered']
    #allocation10 [shape = 'u8[16384]{0}', space=vmem, size = 0x4000, scoped, tag = 'input window, operand 8, single buffered']
    #allocation11 [shape = 's32[1]{0}', space=sflag, size = 0x4, scoped, tag = 'scoped memory for discrete_actor_critic_forward.1']
    #allocation12 [shape = 'u8[1024]{0}', space=vmem, size = 0x400, scoped, tag = 'input window, operand 9, single buffered']
    #allocation13 [shape = 'u8[131072]{0}', space=vmem, size = 0x20000, scoped, tag = 'input window, operand 10, single buffered']
    #allocation14 [shape = 's32[1]{0}', space=sflag, size = 0x4, scoped, tag = 'scoped memory for discrete_actor_critic_forward.1']
    #allocation15 [shape = 'u8[1024]{0}', space=vmem, size = 0x400, scoped, tag = 'input window, operand 11, single buffered']
    #allocation16 [shape = 'u8[512]{0}', space=vmem, size = 0x400, scoped, tag = 'input window, operand 13, single buffered']
    #allocation17 [shape = 's32[1]{0}', space=sflag, size = 0x4, scoped, tag = 'scoped memory for discrete_actor_critic_forward.1']
    %22 = vsyncpa [#allocation3], 0
    %23 = vsyncpa [#allocation5], 0
    %24 = vsyncpa [#allocation8], 0
    %25 = vsyncpa [#allocation11], 0
    %26 = vsyncpa [#allocation14], 0
    %27 = vsyncpa [#allocation17], 0
    // Predicated region
    $region2: #{discrete_actor_critic_forward.1} parent=1 // pred_check
      _
    $region3: #{discrete_actor_critic_forward.1} parent=1 // pred_check_branch
      %29 = sbr.rel (0) target = $region5
    $region4: #{discrete_actor_critic_forward.1} parent=1 // pred_region
      %s31 = ssub.s32 1024, 1024
      %32 = vsyncadd [#allocation3], %s31
      %s33 = sshll.u32 [#allocation2], 4
      %s34 = int_to_ptr.vmem [resolvable:$true] %s33
      %39 = dma.hbm_to_vmem [thread:$0]  %s0, 1024, %s34, [#allocation3], 64, 64, 4
    $region5: #{discrete_actor_critic_forward.1} parent=1 // pred_fallthru
      _
    // Predicated region
    $region6: #{discrete_actor_critic_forward.1} parent=1 // pred_check
      _
    $region7: #{discrete_actor_critic_forward.1} parent=1 // pred_check_branch
      %41 = sbr.rel (0) target = $region9
    $region8: #{discrete_actor_critic_forward.1} parent=1 // pred_region
      %s43 = ssub.s32 8192, 8192
      %44 = vsyncadd [#allocation5], %s43
      %s45 = sshll.u32 [#allocation4], 4
      %s46 = int_to_ptr.vmem [resolvable:$true] %s45
      %51 = dma.hbm_to_vmem [thread:$0]  %s1, 8192, %s46, [#allocation5], 128, 128, 8
    $region9: #{discrete_actor_critic_forward.1} parent=1 // pred_fallthru
      _
    // Predicated region
    $region10: #{discrete_actor_critic_forward.1} parent=1 // pred_check
      _
    $region11: #{discrete_actor_critic_forward.1} parent=1 // pred_check_branch
      %53 = sbr.rel (0) target = $region13
    $region12: #{discrete_actor_critic_forward.1} parent=1 // pred_region
      %s55 = ssub.s32 512, 512
      %56 = vsyncadd [#allocation5], %s55
      %s57 = sshll.u32 [#allocation6], 4
      %s58 = int_to_ptr.vmem [resolvable:$true] %s57
      %63 = dma.hbm_to_vmem [thread:$0]  %s2, 512, %s58, [#allocation5], 32, 32, 2
    $region13: #{discrete_actor_critic_forward.1} parent=1 // pred_fallthru
      _
    // Predicated region
    $region14: #{discrete_actor_critic_forward.1} parent=1 // pred_check
      _
    $region15: #{discrete_actor_critic_forward.1} parent=1 // pred_check_branch
      %65 = sbr.rel (0) target = $region17
    $region16: #{discrete_actor_critic_forward.1} parent=1 // pred_region
      %s67 = ssub.s32 65536, 65536
      %68 = vsyncadd [#allocation8], %s67
      %s69 = sshll.u32 [#allocation7], 4
      %s70 = int_to_ptr.vmem [resolvable:$true] %s69
      %75 = dma.hbm_to_vmem [thread:$0]  %s3, 65536, %s70, [#allocation8], 128, 128, 8
    $region17: #{discrete_actor_critic_forward.1} parent=1 // pred_fallthru
      _
    // Predicated region
    $region18: #{discrete_actor_critic_forward.1} parent=1 // pred_check
      _
    $region19: #{discrete_actor_critic_forward.1} parent=1 // pred_check_branch
      %77 = sbr.rel (0) target = $region21
    $region20: #{discrete_actor_critic_forward.1} parent=1 // pred_region
      %s79 = ssub.s32 512, 512
      %80 = vsyncadd [#allocation8], %s79
      %s81 = sshll.u32 [#allocation9], 4
      %s82 = int_to_ptr.vmem [resolvable:$true] %s81
      %87 = dma.hbm_to_vmem [thread:$0]  %s4, 512, %s82, [#allocation8], 32, 32, 2
    $region21: #{discrete_actor_critic_forward.1} parent=1 // pred_fallthru
      _
    // Predicated region
    $region22: #{discrete_actor_critic_forward.1} parent=1 // pred_check
      _
    $region23: #{discrete_actor_critic_forward.1} parent=1 // pred_check_branch
      %89 = sbr.rel (0) target = $region25
    $region24: #{discrete_actor_critic_forward.1} parent=1 // pred_region
      _
    $region25: #{discrete_actor_critic_forward.1} parent=1 // pred_fallthru
      _
    // Predicated region
    $region26: #{discrete_actor_critic_forward.1} parent=1 // pred_check
      _
    $region27: #{discrete_actor_critic_forward.1} parent=1 // pred_check_branch
      %91 = sbr.rel (0) target = $region29
    $region28: #{discrete_actor_critic_forward.1} parent=1 // pred_region
      _
    $region29: #{discrete_actor_critic_forward.1} parent=1 // pred_fallthru
      _
    // Predicated region
    $region30: #{discrete_actor_critic_forward.1} parent=1 // pred_check
      _
    $region31: #{discrete_actor_critic_forward.1} parent=1 // pred_check_branch
      %93 = sbr.rel (0) target = $region33
    $region32: #{discrete_actor_critic_forward.1} parent=1 // pred_region
      _
    $region33: #{discrete_actor_critic_forward.1} parent=1 // pred_fallthru
      _
    // Predicated region
    $region34: #{discrete_actor_critic_forward.1} parent=1 // pred_check
      _
    $region35: #{discrete_actor_critic_forward.1} parent=1 // pred_check_branch
      %95 = sbr.rel (0) target = $region37
    $region36: #{discrete_actor_critic_forward.1} parent=1 // pred_region
      %s97 = ssub.s32 512, 512
      %98 = vsyncadd [#allocation11], %s97
      %s99 = sshll.u32 [#allocation10], 4
      %s100 = int_to_ptr.vmem [resolvable:$true] %s99
      %105 = dma.hbm_to_vmem [thread:$0]  %s8, 512, %s100, [#allocation11], 128, 128, 8
    $region37: #{discrete_actor_critic_forward.1} parent=1 // pred_fallthru
      _
    // Predicated region
    $region38: #{discrete_actor_critic_forward.1} parent=1 // pred_check
      _
    $region39: #{discrete_actor_critic_forward.1} parent=1 // pred_check_branch
      %107 = sbr.rel (0) target = $region41
    $region40: #{discrete_actor_critic_forward.1} parent=1 // pred_region
      %s109 = ssub.s32 32, 32
      %110 = vsyncadd [#allocation11], %s109
      %s112 = sshll.u32 [#allocation12], 4
      %s113 = int_to_ptr.vmem [resolvable:$true] %s112
      %115 = dma.hbm_to_vmem [thread:$0]  %s9, 32, %s113, [#allocation11]
    $region41: #{discrete_actor_critic_forward.1} parent=1 // pred_fallthru
      _
    // Predicated region
    $region42: #{discrete_actor_critic_forward.1} parent=1 // pred_check
      _
    $region43: #{discrete_actor_critic_forward.1} parent=1 // pred_check_branch
      %117 = sbr.rel (0) target = $region45
    $region44: #{discrete_actor_critic_forward.1} parent=1 // pred_region
      %s119 = ssub.s32 4096, 4096
      %120 = vsyncadd [#allocation14], %s119
      %s121 = sshll.u32 [#allocation13], 4
      %s122 = int_to_ptr.vmem [resolvable:$true] %s121
      %127 = dma.hbm_to_vmem [thread:$0]  %s10, 4096, %s122, [#allocation14], 128, 128, 8
    $region45: #{discrete_actor_critic_forward.1} parent=1 // pred_fallthru
      _
    // Predicated region
    $region46: #{discrete_actor_critic_forward.1} parent=1 // pred_check
      _
    $region47: #{discrete_actor_critic_forward.1} parent=1 // pred_check_branch
      %129 = sbr.rel (0) target = $region49
    $region48: #{discrete_actor_critic_forward.1} parent=1 // pred_region
      %s131 = ssub.s32 32, 32
      %132 = vsyncadd [#allocation14], %s131
      %s134 = sshll.u32 [#allocation15], 4
      %s135 = int_to_ptr.vmem [resolvable:$true] %s134
      %137 = dma.hbm_to_vmem [thread:$0]  %s11, 32, %s135, [#allocation14]
    $region49: #{discrete_actor_critic_forward.1} parent=1 // pred_fallthru
      _
    // Predicated region
    $region50: #{discrete_actor_critic_forward.1} parent=1 // pred_check
      _
    $region51: #{discrete_actor_critic_forward.1} parent=1 // pred_check_branch
      %139 = sbr.rel (0) target = $region53
    $region52: #{discrete_actor_critic_forward.1} parent=1 // pred_region
      _
    $region53: #{discrete_actor_critic_forward.1} parent=1 // pred_fallthru
      _
    // Predicated region
    $region54: #{discrete_actor_critic_forward.1} parent=1 // pred_check
      _
    $region55: #{discrete_actor_critic_forward.1} parent=1 // pred_check_branch
      %141 = sbr.rel (0) target = $region57
    $region56: #{discrete_actor_critic_forward.1} parent=1 // pred_region
      %s143 = ssub.s32 16, 16
      %144 = vsyncadd [#allocation17], %s143
      %s146 = sshll.u32 [#allocation16], 4
      %s147 = int_to_ptr.vmem [resolvable:$true] %s146
      %149 = dma.hbm_to_vmem [thread:$0]  %s13, 16, %s147, [#allocation17]
    $region57: #{discrete_actor_critic_forward.1} parent=1 // pred_fallthru
      _
    // Predicated region
    $region58: #{discrete_actor_critic_forward.1} parent=1 // pred_check
      _
    $region59: #{discrete_actor_critic_forward.1} parent=1 // pred_check_branch
      %151 = sbr.rel (0) target = $region61
    $region60: #{discrete_actor_critic_forward.1} parent=1 // pred_region
      %152 = dma.done [#allocation3], 1024
    $region61: #{discrete_actor_critic_forward.1} parent=1 // pred_fallthru
      _
    // Predicated region
    $region62: #{discrete_actor_critic_forward.1} parent=1 // pred_check
      _
    $region63: #{discrete_actor_critic_forward.1} parent=1 // pred_check_branch
      %154 = sbr.rel (0) target = $region65
    $region64: #{discrete_actor_critic_forward.1} parent=1 // pred_region
      %155 = dma.done [#allocation5], 8192
    $region65: #{discrete_actor_critic_forward.1} parent=1 // pred_fallthru
      _
    // Predicated region
    $region66: #{discrete_actor_critic_forward.1} parent=1 // pred_check
      _
    $region67: #{discrete_actor_critic_forward.1} parent=1 // pred_check_branch
      %157 = sbr.rel (0) target = $region69
    $region68: #{discrete_actor_critic_forward.1} parent=1 // pred_region
      %158 = dma.done [#allocation5], 512
    $region69: #{discrete_actor_critic_forward.1} parent=1 // pred_fallthru
      _
    // Predicated region
    $region70: #{discrete_actor_critic_forward.1} parent=1 // pred_check
      _
    $region71: #{discrete_actor_critic_forward.1} parent=1 // pred_check_branch
      %160 = sbr.rel (0) target = $region73
    $region72: #{discrete_actor_critic_forward.1} parent=1 // pred_region
      %161 = dma.done [#allocation8], 65536
    $region73: #{discrete_actor_critic_forward.1} parent=1 // pred_fallthru
      _
    // Predicated region
    $region74: #{discrete_actor_critic_forward.1} parent=1 // pred_check
      _
    $region75: #{discrete_actor_critic_forward.1} parent=1 // pred_check_branch
      %163 = sbr.rel (0) target = $region77
    $region76: #{discrete_actor_critic_forward.1} parent=1 // pred_region
      %164 = dma.done [#allocation8], 512
    $region77: #{discrete_actor_critic_forward.1} parent=1 // pred_fallthru
      _
    // Predicated region
    $region78: #{discrete_actor_critic_forward.1} parent=1 // pred_check
      _
    $region79: #{discrete_actor_critic_forward.1} parent=1 // pred_check_branch
      %166 = sbr.rel (0) target = $region81
    $region80: #{discrete_actor_critic_forward.1} parent=1 // pred_region
      %167 = dma.done [#allocation11], 512
    $region81: #{discrete_actor_critic_forward.1} parent=1 // pred_fallthru
      _
    // Predicated region
    $region82: #{discrete_actor_critic_forward.1} parent=1 // pred_check
      _
    $region83: #{discrete_actor_critic_forward.1} parent=1 // pred_check_branch
      %169 = sbr.rel (0) target = $region85
    $region84: #{discrete_actor_critic_forward.1} parent=1 // pred_region
      %170 = dma.done [#allocation11], 32
    $region85: #{discrete_actor_critic_forward.1} parent=1 // pred_fallthru
      _
    // Predicated region
    $region86: #{discrete_actor_critic_forward.1} parent=1 // pred_check
      _
    $region87: #{discrete_actor_critic_forward.1} parent=1 // pred_check_branch
      %172 = sbr.rel (0) target = $region89
    $region88: #{discrete_actor_critic_forward.1} parent=1 // pred_region
      %173 = dma.done [#allocation14], 4096
    $region89: #{discrete_actor_critic_forward.1} parent=1 // pred_fallthru
      _
    // Predicated region
    $region90: #{discrete_actor_critic_forward.1} parent=1 // pred_check
      _
    $region91: #{discrete_actor_critic_forward.1} parent=1 // pred_check_branch
      %175 = sbr.rel (0) target = $region93
    $region92: #{discrete_actor_critic_forward.1} parent=1 // pred_region
      %176 = dma.done [#allocation14], 32
    $region93: #{discrete_actor_critic_forward.1} parent=1 // pred_fallthru
      _
    // Predicated region
    $region94: #{discrete_actor_critic_forward.1} parent=1 // pred_check
      _
    $region95: #{discrete_actor_critic_forward.1} parent=1 // pred_check_branch
      %178 = sbr.rel (0) target = $region97
    $region96: #{discrete_actor_critic_forward.1} parent=1 // pred_region
      %179 = dma.done [#allocation17], 16
    $region97: #{discrete_actor_critic_forward.1} parent=1 // pred_fallthru
      _
    %v181 = vld [vmem:[#allocation2] sm:$0xf]
    %v182 = vld [vmem:[#allocation2 + $0x4] sm:$0xf]
    %v183 = vld [vmem:[#allocation2 + $0x8] sm:$0xf]
    %v184 = vld [vmem:[#allocation2 + $0xc] sm:$0xf]
    %v185 = vld [vmem:[#allocation2 + $0x10] sm:$0xf]
    %v186 = vld [vmem:[#allocation2 + $0x14] sm:$0xf]
    %v187 = vld [vmem:[#allocation2 + $0x18] sm:$0xf]
    %v188 = vld [vmem:[#allocation2 + $0x1c] sm:$0xf]
    %v189 = vld [vmem:[#allocation2 + $0x20] sm:$0xf]
    %v190 = vld [vmem:[#allocation2 + $0x24] sm:$0xf]
    %v191 = vld [vmem:[#allocation2 + $0x28] sm:$0xf]
    %v192 = vld [vmem:[#allocation2 + $0x2c] sm:$0xf]
    %v193 = vld [vmem:[#allocation2 + $0x30] sm:$0xf]
    %v194 = vld [vmem:[#allocation2 + $0x34] sm:$0xf]
    %v195 = vld [vmem:[#allocation2 + $0x38] sm:$0xf]
    %v196 = vld [vmem:[#allocation2 + $0x3c] sm:$0xf]
    %v197 = vld [vmem:[#allocation4] sm:$0xff]
    %v198 = vld [vmem:[#allocation4 + $0x8] sm:$0xff]
    %v199 = vld [vmem:[#allocation4 + $0x10] sm:$0xff]
    %v200 = vld [vmem:[#allocation4 + $0x18] sm:$0xff]
    %v201 = vld [vmem:[#allocation4 + $0x20] sm:$0xff]
    %v202 = vld [vmem:[#allocation4 + $0x28] sm:$0xff]
    %v203 = vld [vmem:[#allocation4 + $0x30] sm:$0xff]
    %v204 = vld [vmem:[#allocation4 + $0x38] sm:$0xff]
    %v205 = vld [vmem:[#allocation4 + $0x40] sm:$0xff]
    %v206 = vld [vmem:[#allocation4 + $0x48] sm:$0xff]
    %v207 = vld [vmem:[#allocation4 + $0x50] sm:$0xff]
    %v208 = vld [vmem:[#allocation4 + $0x58] sm:$0xff]
    %v209 = vld [vmem:[#allocation4 + $0x60] sm:$0xff]
    %v210 = vld [vmem:[#allocation4 + $0x68] sm:$0xff]
    %v211 = vld [vmem:[#allocation4 + $0x70] sm:$0xff]
    %v212 = vld [vmem:[#allocation4 + $0x78] sm:$0xff]
    %v213 = vld [vmem:[#allocation4 + $0x80] sm:$0xff]
    %v214 = vld [vmem:[#allocation4 + $0x88] sm:$0xff]
    %v215 = vld [vmem:[#allocation4 + $0x90] sm:$0xff]
    %v216 = vld [vmem:[#allocation4 + $0x98] sm:$0xff]
    %v217 = vld [vmem:[#allocation4 + $0xa0] sm:$0xff]
    %v218 = vld [vmem:[#allocation4 + $0xa8] sm:$0xff]
    %v219 = vld [vmem:[#allocation4 + $0xb0] sm:$0xff]
    %v220 = vld [vmem:[#allocation4 + $0xb8] sm:$0xff]
    %v221 = vld [vmem:[#allocation4 + $0xc0] sm:$0xff]
    %v222 = vld [vmem:[#allocation4 + $0xc8] sm:$0xff]
    %v223 = vld [vmem:[#allocation4 + $0xd0] sm:$0xff]
    %v224 = vld [vmem:[#allocation4 + $0xd8] sm:$0xff]
    %v225 = vld [vmem:[#allocation4 + $0xe0] sm:$0xff]
    %v226 = vld [vmem:[#allocation4 + $0xe8] sm:$0xff]
    %v227 = vld [vmem:[#allocation4 + $0xf0] sm:$0xff]
    %v228 = vld [vmem:[#allocation4 + $0xf8] sm:$0xff]
    %v229 = vld [vmem:[#allocation4 + $0x100] sm:$0xff]
    %v230 = vld [vmem:[#allocation4 + $0x108] sm:$0xff]
    %v231 = vld [vmem:[#allocation4 + $0x110] sm:$0xff]
    %v232 = vld [vmem:[#allocation4 + $0x118] sm:$0xff]
    %v233 = vld [vmem:[#allocation4 + $0x120] sm:$0xff]
    %v234 = vld [vmem:[#allocation4 + $0x128] sm:$0xff]
    %v235 = vld [vmem:[#allocation4 + $0x130] sm:$0xff]
    %v236 = vld [vmem:[#allocation4 + $0x138] sm:$0xff]
    %v237 = vld [vmem:[#allocation4 + $0x140] sm:$0xff]
    %v238 = vld [vmem:[#allocation4 + $0x148] sm:$0xff]
    %v239 = vld [vmem:[#allocation4 + $0x150] sm:$0xff]
    %v240 = vld [vmem:[#allocation4 + $0x158] sm:$0xff]
    %v241 = vld [vmem:[#allocation4 + $0x160] sm:$0xff]
    %v242 = vld [vmem:[#allocation4 + $0x168] sm:$0xff]
    %v243 = vld [vmem:[#allocation4 + $0x170] sm:$0xff]
    %v244 = vld [vmem:[#allocation4 + $0x178] sm:$0xff]
    %v245 = vld [vmem:[#allocation4 + $0x180] sm:$0xff]
    %v246 = vld [vmem:[#allocation4 + $0x188] sm:$0xff]
    %v247 = vld [vmem:[#allocation4 + $0x190] sm:$0xff]
    %v248 = vld [vmem:[#allocation4 + $0x198] sm:$0xff]
    %v249 = vld [vmem:[#allocation4 + $0x1a0] sm:$0xff]
    %v250 = vld [vmem:[#allocation4 + $0x1a8] sm:$0xff]
    %v251 = vld [vmem:[#allocation4 + $0x1b0] sm:$0xff]
    %v252 = vld [vmem:[#allocation4 + $0x1b8] sm:$0xff]
    %v253 = vld [vmem:[#allocation4 + $0x1c0] sm:$0xff]
    %v254 = vld [vmem:[#allocation4 + $0x1c8] sm:$0xff]
    %v255 = vld [vmem:[#allocation4 + $0x1d0] sm:$0xff]
    %v256 = vld [vmem:[#allocation4 + $0x1d8] sm:$0xff]
    %v257 = vld [vmem:[#allocation4 + $0x1e0] sm:$0xff]
    %v258 = vld [vmem:[#allocation4 + $0x1e8] sm:$0xff]
    %v259 = vld [vmem:[#allocation4 + $0x1f0] sm:$0xff]
    %v260 = vld [vmem:[#allocation4 + $0x1f8] sm:$0xff]
    %v261 = vld [vmem:[#allocation6] sm:$0x3]
    %v262 = vld [vmem:[#allocation6 + $0x2] sm:$0x3]
    %v263 = vld [vmem:[#allocation6 + $0x4] sm:$0x3]
    %v264 = vld [vmem:[#allocation6 + $0x6] sm:$0x3]
    %v265 = vld [vmem:[#allocation6 + $0x8] sm:$0x3]
    %v266 = vld [vmem:[#allocation6 + $0xa] sm:$0x3]
    %v267 = vld [vmem:[#allocation6 + $0xc] sm:$0x3]
    %v268 = vld [vmem:[#allocation6 + $0xe] sm:$0x3]
    %v269 = vld [vmem:[#allocation6 + $0x10] sm:$0x3]
    %v270 = vld [vmem:[#allocation6 + $0x12] sm:$0x3]
    %v271 = vld [vmem:[#allocation6 + $0x14] sm:$0x3]
    %v272 = vld [vmem:[#allocation6 + $0x16] sm:$0x3]
    %v273 = vld [vmem:[#allocation6 + $0x18] sm:$0x3]
    %v274 = vld [vmem:[#allocation6 + $0x1a] sm:$0x3]
    %v275 = vld [vmem:[#allocation6 + $0x1c] sm:$0x3]
    %v276 = vld [vmem:[#allocation6 + $0x1e] sm:$0x3]
    %v293 = vlaneseq
    %v294 = vshrl.u32 %v293, 7
    %v295 = vsub.s32 0, %v294
    %v296 = vrot.slane %v261, %v295
    %v297 = vlaneseq
    %v298 = vshrl.u32 %v297, 7
    %v299 = vsub.s32 1, %v298
    %v300 = vrot.slane %v261, %v299
    %v301 = vlaneseq
    %v302 = vshrl.u32 %v301, 7
    %v303 = vsub.s32 0, %v302
    %v304 = vrot.slane %v262, %v303
    %v305 = vlaneseq
    %v306 = vshrl.u32 %v305, 7
    %v307 = vsub.s32 1, %v306
    %v308 = vrot.slane %v262, %v307
    %v309 = vlaneseq
    %v310 = vshrl.u32 %v309, 7
    %v311 = vsub.s32 0, %v310
    %v312 = vrot.slane %v263, %v311
    %v313 = vlaneseq
    %v314 = vshrl.u32 %v313, 7
    %v315 = vsub.s32 1, %v314
    %v316 = vrot.slane %v263, %v315
    %v317 = vlaneseq
    %v318 = vshrl.u32 %v317, 7
    %v319 = vsub.s32 0, %v318
    %v320 = vrot.slane %v264, %v319
    %v321 = vlaneseq
    %v322 = vshrl.u32 %v321, 7
    %v323 = vsub.s32 1, %v322
    %v324 = vrot.slane %v264, %v323
    %v325 = vlaneseq
    %v326 = vshrl.u32 %v325, 7
    %v327 = vsub.s32 0, %v326
    %v328 = vrot.slane %v265, %v327
    %v329 = vlaneseq
    %v330 = vshrl.u32 %v329, 7
    %v331 = vsub.s32 1, %v330
    %v332 = vrot.slane %v265, %v331
    %v333 = vlaneseq
    %v334 = vshrl.u32 %v333, 7
    %v335 = vsub.s32 0, %v334
    %v336 = vrot.slane %v266, %v335
    %v337 = vlaneseq
    %v338 = vshrl.u32 %v337, 7
    %v339 = vsub.s32 1, %v338
    %v340 = vrot.slane %v266, %v339
    %v341 = vlaneseq
    %v342 = vshrl.u32 %v341, 7
    %v343 = vsub.s32 0, %v342
    %v344 = vrot.slane %v267, %v343
    %v345 = vlaneseq
    %v346 = vshrl.u32 %v345, 7
    %v347 = vsub.s32 1, %v346
    %v348 = vrot.slane %v267, %v347
    %v349 = vlaneseq
    %v350 = vshrl.u32 %v349, 7
    %v351 = vsub.s32 0, %v350
    %v352 = vrot.slane %v268, %v351
    %v353 = vlaneseq
    %v354 = vshrl.u32 %v353, 7
    %v355 = vsub.s32 1, %v354
    %v356 = vrot.slane %v268, %v355
    %v357 = vlaneseq
    %v358 = vshrl.u32 %v357, 7
    %v359 = vsub.s32 0, %v358
    %v360 = vrot.slane %v269, %v359
    %v361 = vlaneseq
    %v362 = vshrl.u32 %v361, 7
    %v363 = vsub.s32 1, %v362
    %v364 = vrot.slane %v269, %v363
    %v365 = vlaneseq
    %v366 = vshrl.u32 %v365, 7
    %v367 = vsub.s32 0, %v366
    %v368 = vrot.slane %v270, %v367
    %v369 = vlaneseq
    %v370 = vshrl.u32 %v369, 7
    %v371 = vsub.s32 1, %v370
    %v372 = vrot.slane %v270, %v371
    %v373 = vlaneseq
    %v374 = vshrl.u32 %v373, 7
    %v375 = vsub.s32 0, %v374
    %v376 = vrot.slane %v271, %v375
    %v377 = vlaneseq
    %v378 = vshrl.u32 %v377, 7
    %v379 = vsub.s32 1, %v378
    %v380 = vrot.slane %v271, %v379
    %v381 = vlaneseq
    %v382 = vshrl.u32 %v381, 7
    %v383 = vsub.s32 0, %v382
    %v384 = vrot.slane %v272, %v383
    %v385 = vlaneseq
    %v386 = vshrl.u32 %v385, 7
    %v387 = vsub.s32 1, %v386
    %v388 = vrot.slane %v272, %v387
    %v389 = vlaneseq
    %v390 = vshrl.u32 %v389, 7
    %v391 = vsub.s32 0, %v390
    %v392 = vrot.slane %v273, %v391
    %v393 = vlaneseq
    %v394 = vshrl.u32 %v393, 7
    %v395 = vsub.s32 1, %v394
    %v396 = vrot.slane %v273, %v395
    %v397 = vlaneseq
    %v398 = vshrl.u32 %v397, 7
    %v399 = vsub.s32 0, %v398
    %v400 = vrot.slane %v274, %v399
    %v401 = vlaneseq
    %v402 = vshrl.u32 %v401, 7
    %v403 = vsub.s32 1, %v402
    %v404 = vrot.slane %v274, %v403
    %v405 = vlaneseq
    %v406 = vshrl.u32 %v405, 7
    %v407 = vsub.s32 0, %v406
    %v408 = vrot.slane %v275, %v407
    %v409 = vlaneseq
    %v410 = vshrl.u32 %v409, 7
    %v411 = vsub.s32 1, %v410
    %v412 = vrot.slane %v275, %v411
    %v413 = vlaneseq
    %v414 = vshrl.u32 %v413, 7
    %v415 = vsub.s32 0, %v414
    %v416 = vrot.slane %v276, %v415
    %v417 = vlaneseq
    %v418 = vshrl.u32 %v417, 7
    %v419 = vsub.s32 1, %v418
    %v420 = vrot.slane %v276, %v419
    %v457 = vunpack.c.l.b16 %v197
    %v458 = vunpack.c.h.b16 %v197
    %v459 = vunpack.c.l.b16 %v198
    %v460 = vunpack.c.h.b16 %v198
    %v461 = vunpack.c.l.b16 %v199
    %v462 = vunpack.c.h.b16 %v199
    %v463 = vunpack.c.l.b16 %v200
    %v464 = vunpack.c.h.b16 %v200
    %v465 = vpack.c.b16 %v459, %v457
    %v466 = vpack.c.b16 %v460, %v458
    %v467 = vpack.c.b16 %v463, %v461
    %v468 = vpack.c.b16 %v464, %v462
    %vm473 = vcmask 261120
    %v475 = vsel %vm473, %v181, 0
    %477 = vmatprep.subr.bf16.mxu0 0
    %478 = vmatpush1.bf16.msra.mxu0 0
    %479 = vmatprep.subr.bf16.mxu0 0
    %480 = vmatpush1.bf16.msra.mxu0 0
    %481 = vmatprep.subr.bf16.mxu0 0
    %482 = vmatpush1.bf16.msra.mxu0 0
    %483 = vmatprep.subr.bf16.mxu0 0
    %484 = vmatpush1.bf16.msra.mxu0 0
    %485 = vmatprep.subr.bf16.mxu0 0
    %486 = vmatpush1.bf16.msra.mxu0 0
    %487 = vmatprep.subr.bf16.mxu0 0
    %488 = vmatpush1.bf16.msra.mxu0 0
    %489 = vmatprep.subr.bf16.mxu0 %v468
    %490 = vmatpush1.bf16.msra.mxu0 %v467
    %491 = vmatprep.subr.bf16.mxu0 %v466
    %492 = vmatpush1.bf16.msra.mxu0 %v465
    %493 = vmatprep.subr.bf16.mxu0 0
    %494 = vmatpush2.bf16.msra.mxu0 0
    %495 = vmatprep.subr.bf16.mxu0 0
    %496 = vmatpush2.bf16.msra.mxu0 0
    %497 = vmatprep.subr.bf16.mxu0 0
    %498 = vmatpush2.bf16.msra.mxu0 0
    %499 = vmatprep.subr.bf16.mxu0 0
    %500 = vmatpush2.bf16.msra.mxu0 0
    %501 = vmatprep.subr.bf16.mxu0 0
    %502 = vmatpush2.bf16.msra.mxu0 0
    %503 = vmatprep.subr.bf16.mxu0 0
    %504 = vmatpush2.bf16.msra.mxu0 0
    %505 = vmatprep.subr.bf16.mxu0 0
    %506 = vmatpush2.bf16.msra.mxu0 0
    %507 = vmatprep.subr.bf16.mxu0 0
    %508 = vmatpush2.bf16.msra.mxu0 0
    %509 = vmatprep.mubr.bf16.mxu0 0
    %510 = vmatmul.mubr.bf16.gmra.mxu0 %v475
    %v511 = vpop.f32.mrf.mxu0
    %v512 = vadd.f32 %v296, %v511
    %v513 = vpop.f32.mrf.mxu0
    %v514 = vadd.f32 %v300, %v513
    %v515 = vpop.f32.mrf.mxu0
    %v516 = vpop.f32.mrf.mxu0
    %517 = vdwg.mxu0
    %v522 = vunpack.c.l.b16 %v201
    %v523 = vunpack.c.h.b16 %v201
    %v524 = vunpack.c.l.b16 %v202
    %v525 = vunpack.c.h.b16 %v202
    %v526 = vunpack.c.l.b16 %v203
    %v527 = vunpack.c.h.b16 %v203
    %v528 = vunpack.c.l.b16 %v204
    %v529 = vunpack.c.h.b16 %v204
    %v530 = vpack.c.b16 %v524, %v522
    %v531 = vpack.c.b16 %v525, %v523
    %v532 = vpack.c.b16 %v528, %v526
    %v533 = vpack.c.b16 %v529, %v527
    %v539 = vsel %vm473, %v182, 0
    %541 = vmatprep.subr.bf16.mxu0 0
    %542 = vmatpush1.bf16.msra.mxu0 0
    %543 = vmatprep.subr.bf16.mxu0 0
    %544 = vmatpush1.bf16.msra.mxu0 0
    %545 = vmatprep.subr.bf16.mxu0 0
    %546 = vmatpush1.bf16.msra.mxu0 0
    %547 = vmatprep.subr.bf16.mxu0 0
    %548 = vmatpush1.bf16.msra.mxu0 0
    %549 = vmatprep.subr.bf16.mxu0 0
    %550 = vmatpush1.bf16.msra.mxu0 0
    %551 = vmatprep.subr.bf16.mxu0 0
    %552 = vmatpush1.bf16.msra.mxu0 0
    %553 = vmatprep.subr.bf16.mxu0 %v533
    %554 = vmatpush1.bf16.msra.mxu0 %v532
    %555 = vmatprep.subr.bf16.mxu0 %v531
    %556 = vmatpush1.bf16.msra.mxu0 %v530
    %557 = vmatprep.subr.bf16.mxu0 0
    %558 = vmatpush2.bf16.msra.mxu0 0
    %559 = vmatprep.subr.bf16.mxu0 0
    %560 = vmatpush2.bf16.msra.mxu0 0
    %561 = vmatprep.subr.bf16.mxu0 0
    %562 = vmatpush2.bf16.msra.mxu0 0
    %563 = vmatprep.subr.bf16.mxu0 0
    %564 = vmatpush2.bf16.msra.mxu0 0
    %565 = vmatprep.subr.bf16.mxu0 0
    %566 = vmatpush2.bf16.msra.mxu0 0
    %567 = vmatprep.subr.bf16.mxu0 0
    %568 = vmatpush2.bf16.msra.mxu0 0
    %569 = vmatprep.subr.bf16.mxu0 0
    %570 = vmatpush2.bf16.msra.mxu0 0
    %571 = vmatprep.subr.bf16.mxu0 0
    %572 = vmatpush2.bf16.msra.mxu0 0
    %573 = vmatprep.mubr.bf16.mxu0 0
    %574 = vmatmul.mubr.bf16.gmra.mxu0 %v539
    %v575 = vpop.f32.mrf.mxu0
    %v576 = vadd.f32 %v304, %v575
    %v577 = vpop.f32.mrf.mxu0
    %v578 = vadd.f32 %v308, %v577
    %v579 = vpop.f32.mrf.mxu0
    %v580 = vpop.f32.mrf.mxu0
    %581 = vdwg.mxu0
    %v586 = vunpack.c.l.b16 %v205
    %v587 = vunpack.c.h.b16 %v205
    %v588 = vunpack.c.l.b16 %v206
    %v589 = vunpack.c.h.b16 %v206
    %v590 = vunpack.c.l.b16 %v207
    %v591 = vunpack.c.h.b16 %v207
    %v592 = vunpack.c.l.b16 %v208
    %v593 = vunpack.c.h.b16 %v208
    %v594 = vpack.c.b16 %v588, %v586
    %v595 = vpack.c.b16 %v589, %v587
    %v596 = vpack.c.b16 %v592, %v590
    %v597 = vpack.c.b16 %v593, %v591
    %v603 = vsel %vm473, %v183, 0
    %605 = vmatprep.subr.bf16.mxu0 0
    %606 = vmatpush1.bf16.msra.mxu0 0
    %607 = vmatprep.subr.bf16.mxu0 0
    %608 = vmatpush1.bf16.msra.mxu0 0
    %609 = vmatprep.subr.bf16.mxu0 0
    %610 = vmatpush1.bf16.msra.mxu0 0
    %611 = vmatprep.subr.bf16.mxu0 0
    %612 = vmatpush1.bf16.msra.mxu0 0
    %613 = vmatprep.subr.bf16.mxu0 0
    %614 = vmatpush1.bf16.msra.mxu0 0
    %615 = vmatprep.subr.bf16.mxu0 0
    %616 = vmatpush1.bf16.msra.mxu0 0
    %617 = vmatprep.subr.bf16.mxu0 %v597
    %618 = vmatpush1.bf16.msra.mxu0 %v596
    %619 = vmatprep.subr.bf16.mxu0 %v595
    %620 = vmatpush1.bf16.msra.mxu0 %v594
    %621 = vmatprep.subr.bf16.mxu0 0
    %622 = vmatpush2.bf16.msra.mxu0 0
    %623 = vmatprep.subr.bf16.mxu0 0
    %624 = vmatpush2.bf16.msra.mxu0 0
    %625 = vmatprep.subr.bf16.mxu0 0
    %626 = vmatpush2.bf16.msra.mxu0 0
    %627 = vmatprep.subr.bf16.mxu0 0
    %628 = vmatpush2.bf16.msra.mxu0 0
    %629 = vmatprep.subr.bf16.mxu0 0
    %630 = vmatpush2.bf16.msra.mxu0 0
    %631 = vmatprep.subr.bf16.mxu0 0
    %632 = vmatpush2.bf16.msra.mxu0 0
    %633 = vmatprep.subr.bf16.mxu0 0
    %634 = vmatpush2.bf16.msra.mxu0 0
    %635 = vmatprep.subr.bf16.mxu0 0
    %636 = vmatpush2.bf16.msra.mxu0 0
    %637 = vmatprep.mubr.bf16.mxu0 0
    %638 = vmatmul.mubr.bf16.gmra.mxu0 %v603
    %v639 = vpop.f32.mrf.mxu0
    %v640 = vadd.f32 %v312, %v639
    %v641 = vpop.f32.mrf.mxu0
    %v642 = vadd.f32 %v316, %v641
    %v643 = vpop.f32.mrf.mxu0
    %v644 = vpop.f32.mrf.mxu0
    %645 = vdwg.mxu0
    %v650 = vunpack.c.l.b16 %v209
    %v651 = vunpack.c.h.b16 %v209
    %v652 = vunpack.c.l.b16 %v210
    %v653 = vunpack.c.h.b16 %v210
    %v654 = vunpack.c.l.b16 %v211
    %v655 = vunpack.c.h.b16 %v211
    %v656 = vunpack.c.l.b16 %v212
    %v657 = vunpack.c.h.b16 %v212
    %v658 = vpack.c.b16 %v652, %v650
    %v659 = vpack.c.b16 %v653, %v651
    %v660 = vpack.c.b16 %v656, %v654
    %v661 = vpack.c.b16 %v657, %v655
    %v667 = vsel %vm473, %v184, 0
    %669 = vmatprep.subr.bf16.mxu0 0
    %670 = vmatpush1.bf16.msra.mxu0 0
    %671 = vmatprep.subr.bf16.mxu0 0
    %672 = vmatpush1.bf16.msra.mxu0 0
    %673 = vmatprep.subr.bf16.mxu0 0
    %674 = vmatpush1.bf16.msra.mxu0 0
    %675 = vmatprep.subr.bf16.mxu0 0
    %676 = vmatpush1.bf16.msra.mxu0 0
    %677 = vmatprep.subr.bf16.mxu0 0
    %678 = vmatpush1.bf16.msra.mxu0 0
    %679 = vmatprep.subr.bf16.mxu0 0
    %680 = vmatpush1.bf16.msra.mxu0 0
    %681 = vmatprep.subr.bf16.mxu0 %v661
    %682 = vmatpush1.bf16.msra.mxu0 %v660
    %683 = vmatprep.subr.bf16.mxu0 %v659
    %684 = vmatpush1.bf16.msra.mxu0 %v658
    %685 = vmatprep.subr.bf16.mxu0 0
    %686 = vmatpush2.bf16.msra.mxu0 0
    %687 = vmatprep.subr.bf16.mxu0 0
    %688 = vmatpush2.bf16.msra.mxu0 0
    %689 = vmatprep.subr.bf16.mxu0 0
    %690 = vmatpush2.bf16.msra.mxu0 0
    %691 = vmatprep.subr.bf16.mxu0 0
    %692 = vmatpush2.bf16.msra.mxu0 0
    %693 = vmatprep.subr.bf16.mxu0 0
    %694 = vmatpush2.bf16.msra.mxu0 0
    %695 = vmatprep.subr.bf16.mxu0 0
    %696 = vmatpush2.bf16.msra.mxu0 0
    %697 = vmatprep.subr.bf16.mxu0 0
    %698 = vmatpush2.bf16.msra.mxu0 0
    %699 = vmatprep.subr.bf16.mxu0 0
    %700 = vmatpush2.bf16.msra.mxu0 0
    %701 = vmatprep.mubr.bf16.mxu0 0
    %702 = vmatmul.mubr.bf16.gmra.mxu0 %v667
    %v703 = vpop.f32.mrf.mxu0
    %v704 = vadd.f32 %v320, %v703
    %v705 = vpop.f32.mrf.mxu0
    %v706 = vadd.f32 %v324, %v705
    %v707 = vpop.f32.mrf.mxu0
    %v708 = vpop.f32.mrf.mxu0
    %709 = vdwg.mxu0
    %v714 = vunpack.c.l.b16 %v213
    %v715 = vunpack.c.h.b16 %v213
    %v716 = vunpack.c.l.b16 %v214
    %v717 = vunpack.c.h.b16 %v214
    %v718 = vunpack.c.l.b16 %v215
    %v719 = vunpack.c.h.b16 %v215
    %v720 = vunpack.c.l.b16 %v216
    %v721 = vunpack.c.h.b16 %v216
    %v722 = vpack.c.b16 %v716, %v714
    %v723 = vpack.c.b16 %v717, %v715
    %v724 = vpack.c.b16 %v720, %v718
    %v725 = vpack.c.b16 %v721, %v719
    %v731 = vsel %vm473, %v185, 0
    %733 = vmatprep.subr.bf16.mxu0 0
    %734 = vmatpush1.bf16.msra.mxu0 0
    %735 = vmatprep.subr.bf16.mxu0 0
    %736 = vmatpush1.bf16.msra.mxu0 0
    %737 = vmatprep.subr.bf16.mxu0 0
    %738 = vmatpush1.bf16.msra.mxu0 0
    %739 = vmatprep.subr.bf16.mxu0 0
    %740 = vmatpush1.bf16.msra.mxu0 0
    %741 = vmatprep.subr.bf16.mxu0 0
    %742 = vmatpush1.bf16.msra.mxu0 0
    %743 = vmatprep.subr.bf16.mxu0 0
    %744 = vmatpush1.bf16.msra.mxu0 0
    %745 = vmatprep.subr.bf16.mxu0 %v725
    %746 = vmatpush1.bf16.msra.mxu0 %v724
    %747 = vmatprep.subr.bf16.mxu0 %v723
    %748 = vmatpush1.bf16.msra.mxu0 %v722
    %749 = vmatprep.subr.bf16.mxu0 0
    %750 = vmatpush2.bf16.msra.mxu0 0
    %751 = vmatprep.subr.bf16.mxu0 0
    %752 = vmatpush2.bf16.msra.mxu0 0
    %753 = vmatprep.subr.bf16.mxu0 0
    %754 = vmatpush2.bf16.msra.mxu0 0
    %755 = vmatprep.subr.bf16.mxu0 0
    %756 = vmatpush2.bf16.msra.mxu0 0
    %757 = vmatprep.subr.bf16.mxu0 0
    %758 = vmatpush2.bf16.msra.mxu0 0
    %759 = vmatprep.subr.bf16.mxu0 0
    %760 = vmatpush2.bf16.msra.mxu0 0
    %761 = vmatprep.subr.bf16.mxu0 0
    %762 = vmatpush2.bf16.msra.mxu0 0
    %763 = vmatprep.subr.bf16.mxu0 0
    %764 = vmatpush2.bf16.msra.mxu0 0
    %765 = vmatprep.mubr.bf16.mxu0 0
    %766 = vmatmul.mubr.bf16.gmra.mxu0 %v731
    %v767 = vpop.f32.mrf.mxu0
    %v768 = vadd.f32 %v328, %v767
    %v769 = vpop.f32.mrf.mxu0
    %v770 = vadd.f32 %v332, %v769
    %v771 = vpop.f32.mrf.mxu0
    %v772 = vpop.f32.mrf.mxu0
    %773 = vdwg.mxu0
    %v778 = vunpack.c.l.b16 %v217
    %v779 = vunpack.c.h.b16 %v217
    %v780 = vunpack.c.l.b16 %v218
    %v781 = vunpack.c.h.b16 %v218
    %v782 = vunpack.c.l.b16 %v219
    %v783 = vunpack.c.h.b16 %v219
    %v784 = vunpack.c.l.b16 %v220
    %v785 = vunpack.c.h.b16 %v220
    %v786 = vpack.c.b16 %v780, %v778
    %v787 = vpack.c.b16 %v781, %v779
    %v788 = vpack.c.b16 %v784, %v782
    %v789 = vpack.c.b16 %v785, %v783
    %v795 = vsel %vm473, %v186, 0
    %797 = vmatprep.subr.bf16.mxu0 0
    %798 = vmatpush1.bf16.msra.mxu0 0
    %799 = vmatprep.subr.bf16.mxu0 0
    %800 = vmatpush1.bf16.msra.mxu0 0
    %801 = vmatprep.subr.bf16.mxu0 0
    %802 = vmatpush1.bf16.msra.mxu0 0
    %803 = vmatprep.subr.bf16.mxu0 0
    %804 = vmatpush1.bf16.msra.mxu0 0
    %805 = vmatprep.subr.bf16.mxu0 0
    %806 = vmatpush1.bf16.msra.mxu0 0
    %807 = vmatprep.subr.bf16.mxu0 0
    %808 = vmatpush1.bf16.msra.mxu0 0
    %809 = vmatprep.subr.bf16.mxu0 %v789
    %810 = vmatpush1.bf16.msra.mxu0 %v788
    %811 = vmatprep.subr.bf16.mxu0 %v787
    %812 = vmatpush1.bf16.msra.mxu0 %v786
    %813 = vmatprep.subr.bf16.mxu0 0
    %814 = vmatpush2.bf16.msra.mxu0 0
    %815 = vmatprep.subr.bf16.mxu0 0
    %816 = vmatpush2.bf16.msra.mxu0 0
    %817 = vmatprep.subr.bf16.mxu0 0
    %818 = vmatpush2.bf16.msra.mxu0 0
    %819 = vmatprep.subr.bf16.mxu0 0
    %820 = vmatpush2.bf16.msra.mxu0 0
    %821 = vmatprep.subr.bf16.mxu0 0
    %822 = vmatpush2.bf16.msra.mxu0 0
    %823 = vmatprep.subr.bf16.mxu0 0
    %824 = vmatpush2.bf16.msra.mxu0 0
    %825 = vmatprep.subr.bf16.mxu0 0
    %826 = vmatpush2.bf16.msra.mxu0 0
    %827 = vmatprep.subr.bf16.mxu0 0
    %828 = vmatpush2.bf16.msra.mxu0 0
    %829 = vmatprep.mubr.bf16.mxu0 0
    %830 = vmatmul.mubr.bf16.gmra.mxu0 %v795
    %v831 = vpop.f32.mrf.mxu0
    %v832 = vadd.f32 %v336, %v831
    %v833 = vpop.f32.mrf.mxu0
    %v834 = vadd.f32 %v340, %v833
    %v835 = vpop.f32.mrf.mxu0
    %v836 = vpop.f32.mrf.mxu0
    %837 = vdwg.mxu0
    %v842 = vunpack.c.l.b16 %v221
    %v843 = vunpack.c.h.b16 %v221
    %v844 = vunpack.c.l.b16 %v222
    %v845 = vunpack.c.h.b16 %v222
    %v846 = vunpack.c.l.b16 %v223
    %v847 = vunpack.c.h.b16 %v223
    %v848 = vunpack.c.l.b16 %v224
    %v849 = vunpack.c.h.b16 %v224
    %v850 = vpack.c.b16 %v844, %v842
    %v851 = vpack.c.b16 %v845, %v843
    %v852 = vpack.c.b16 %v848, %v846
    %v853 = vpack.c.b16 %v849, %v847
    %v859 = vsel %vm473, %v187, 0
    %861 = vmatprep.subr.bf16.mxu0 0
    %862 = vmatpush1.bf16.msra.mxu0 0
    %863 = vmatprep.subr.bf16.mxu0 0
    %864 = vmatpush1.bf16.msra.mxu0 0
    %865 = vmatprep.subr.bf16.mxu0 0
    %866 = vmatpush1.bf16.msra.mxu0 0
    %867 = vmatprep.subr.bf16.mxu0 0
    %868 = vmatpush1.bf16.msra.mxu0 0
    %869 = vmatprep.subr.bf16.mxu0 0
    %870 = vmatpush1.bf16.msra.mxu0 0
    %871 = vmatprep.subr.bf16.mxu0 0
    %872 = vmatpush1.bf16.msra.mxu0 0
    %873 = vmatprep.subr.bf16.mxu0 %v853
    %874 = vmatpush1.bf16.msra.mxu0 %v852
    %875 = vmatprep.subr.bf16.mxu0 %v851
    %876 = vmatpush1.bf16.msra.mxu0 %v850
    %877 = vmatprep.subr.bf16.mxu0 0
    %878 = vmatpush2.bf16.msra.mxu0 0
    %879 = vmatprep.subr.bf16.mxu0 0
    %880 = vmatpush2.bf16.msra.mxu0 0
    %881 = vmatprep.subr.bf16.mxu0 0
    %882 = vmatpush2.bf16.msra.mxu0 0
    %883 = vmatprep.subr.bf16.mxu0 0
    %884 = vmatpush2.bf16.msra.mxu0 0
    %885 = vmatprep.subr.bf16.mxu0 0
    %886 = vmatpush2.bf16.msra.mxu0 0
    %887 = vmatprep.subr.bf16.mxu0 0
    %888 = vmatpush2.bf16.msra.mxu0 0
    %889 = vmatprep.subr.bf16.mxu0 0
    %890 = vmatpush2.bf16.msra.mxu0 0
    %891 = vmatprep.subr.bf16.mxu0 0
    %892 = vmatpush2.bf16.msra.mxu0 0
    %893 = vmatprep.mubr.bf16.mxu0 0
    %894 = vmatmul.mubr.bf16.gmra.mxu0 %v859
    %v895 = vpop.f32.mrf.mxu0
    %v896 = vadd.f32 %v344, %v895
    %v897 = vpop.f32.mrf.mxu0
    %v898 = vadd.f32 %v348, %v897
    %v899 = vpop.f32.mrf.mxu0
    %v900 = vpop.f32.mrf.mxu0
    %901 = vdwg.mxu0
    %v906 = vunpack.c.l.b16 %v225
    %v907 = vunpack.c.h.b16 %v225
    %v908 = vunpack.c.l.b16 %v226
    %v909 = vunpack.c.h.b16 %v226
    %v910 = vunpack.c.l.b16 %v227
    %v911 = vunpack.c.h.b16 %v227
    %v912 = vunpack.c.l.b16 %v228
    %v913 = vunpack.c.h.b16 %v228
    %v914 = vpack.c.b16 %v908, %v906
    %v915 = vpack.c.b16 %v909, %v907
    %v916 = vpack.c.b16 %v912, %v910
    %v917 = vpack.c.b16 %v913, %v911
    %v923 = vsel %vm473, %v188, 0
    %925 = vmatprep.subr.bf16.mxu0 0
    %926 = vmatpush1.bf16.msra.mxu0 0
    %927 = vmatprep.subr.bf16.mxu0 0
    %928 = vmatpush1.bf16.msra.mxu0 0
    %929 = vmatprep.subr.bf16.mxu0 0
    %930 = vmatpush1.bf16.msra.mxu0 0
    %931 = vmatprep.subr.bf16.mxu0 0
    %932 = vmatpush1.bf16.msra.mxu0 0
    %933 = vmatprep.subr.bf16.mxu0 0
    %934 = vmatpush1.bf16.msra.mxu0 0
    %935 = vmatprep.subr.bf16.mxu0 0
    %936 = vmatpush1.bf16.msra.mxu0 0
    %937 = vmatprep.subr.bf16.mxu0 %v917
    %938 = vmatpush1.bf16.msra.mxu0 %v916
    %939 = vmatprep.subr.bf16.mxu0 %v915
    %940 = vmatpush1.bf16.msra.mxu0 %v914
    %941 = vmatprep.subr.bf16.mxu0 0
    %942 = vmatpush2.bf16.msra.mxu0 0
    %943 = vmatprep.subr.bf16.mxu0 0
    %944 = vmatpush2.bf16.msra.mxu0 0
    %945 = vmatprep.subr.bf16.mxu0 0
    %946 = vmatpush2.bf16.msra.mxu0 0
    %947 = vmatprep.subr.bf16.mxu0 0
    %948 = vmatpush2.bf16.msra.mxu0 0
    %949 = vmatprep.subr.bf16.mxu0 0
    %950 = vmatpush2.bf16.msra.mxu0 0
    %951 = vmatprep.subr.bf16.mxu0 0
    %952 = vmatpush2.bf16.msra.mxu0 0
    %953 = vmatprep.subr.bf16.mxu0 0
    %954 = vmatpush2.bf16.msra.mxu0 0
    %955 = vmatprep.subr.bf16.mxu0 0
    %956 = vmatpush2.bf16.msra.mxu0 0
    %957 = vmatprep.mubr.bf16.mxu0 0
    %958 = vmatmul.mubr.bf16.gmra.mxu0 %v923
    %v959 = vpop.f32.mrf.mxu0
    %v960 = vadd.f32 %v352, %v959
    %v961 = vpop.f32.mrf.mxu0
    %v962 = vadd.f32 %v356, %v961
    %v963 = vpop.f32.mrf.mxu0
    %v964 = vpop.f32.mrf.mxu0
    %965 = vdwg.mxu0
    %v970 = vunpack.c.l.b16 %v229
    %v971 = vunpack.c.h.b16 %v229
    %v972 = vunpack.c.l.b16 %v230
    %v973 = vunpack.c.h.b16 %v230
    %v974 = vunpack.c.l.b16 %v231
    %v975 = vunpack.c.h.b16 %v231
    %v976 = vunpack.c.l.b16 %v232
    %v977 = vunpack.c.h.b16 %v232
    %v978 = vpack.c.b16 %v972, %v970
    %v979 = vpack.c.b16 %v973, %v971
    %v980 = vpack.c.b16 %v976, %v974
    %v981 = vpack.c.b16 %v977, %v975
    %v987 = vsel %vm473, %v189, 0
    %989 = vmatprep.subr.bf16.mxu0 0
    %990 = vmatpush1.bf16.msra.mxu0 0
    %991 = vmatprep.subr.bf16.mxu0 0
    %992 = vmatpush1.bf16.msra.mxu0 0
    %993 = vmatprep.subr.bf16.mxu0 0
    %994 = vmatpush1.bf16.msra.mxu0 0
    %995 = vmatprep.subr.bf16.mxu0 0
    %996 = vmatpush1.bf16.msra.mxu0 0
    %997 = vmatprep.subr.bf16.mxu0 0
    %998 = vmatpush1.bf16.msra.mxu0 0
    %999 = vmatprep.subr.bf16.mxu0 0
    %1000 = vmatpush1.bf16.msra.mxu0 0
    %1001 = vmatprep.subr.bf16.mxu0 %v981
    %1002 = vmatpush1.bf16.msra.mxu0 %v980
    %1003 = vmatprep.subr.bf16.mxu0 %v979
    %1004 = vmatpush1.bf16.msra.mxu0 %v978
    %1005 = vmatprep.subr.bf16.mxu0 0
    %1006 = vmatpush2.bf16.msra.mxu0 0
    %1007 = vmatprep.subr.bf16.mxu0 0
    %1008 = vmatpush2.bf16.msra.mxu0 0
    %1009 = vmatprep.subr.bf16.mxu0 0
    %1010 = vmatpush2.bf16.msra.mxu0 0
    %1011 = vmatprep.subr.bf16.mxu0 0
    %1012 = vmatpush2.bf16.msra.mxu0 0
    %1013 = vmatprep.subr.bf16.mxu0 0
    %1014 = vmatpush2.bf16.msra.mxu0 0
    %1015 = vmatprep.subr.bf16.mxu0 0
    %1016 = vmatpush2.bf16.msra.mxu0 0
    %1017 = vmatprep.subr.bf16.mxu0 0
    %1018 = vmatpush2.bf16.msra.mxu0 0
    %1019 = vmatprep.subr.bf16.mxu0 0
    %1020 = vmatpush2.bf16.msra.mxu0 0
    %1021 = vmatprep.mubr.bf16.mxu0 0
    %1022 = vmatmul.mubr.bf16.gmra.mxu0 %v987
    %v1023 = vpop.f32.mrf.mxu0
    %v1024 = vadd.f32 %v360, %v1023
    %v1025 = vpop.f32.mrf.mxu0
    %v1026 = vadd.f32 %v364, %v1025
    %v1027 = vpop.f32.mrf.mxu0
    %v1028 = vpop.f32.mrf.mxu0
    %1029 = vdwg.mxu0
    %v1034 = vunpack.c.l.b16 %v233
    %v1035 = vunpack.c.h.b16 %v233
    %v1036 = vunpack.c.l.b16 %v234
    %v1037 = vunpack.c.h.b16 %v234
    %v1038 = vunpack.c.l.b16 %v235
    %v1039 = vunpack.c.h.b16 %v235
    %v1040 = vunpack.c.l.b16 %v236
    %v1041 = vunpack.c.h.b16 %v236
    %v1042 = vpack.c.b16 %v1036, %v1034
    %v1043 = vpack.c.b16 %v1037, %v1035
    %v1044 = vpack.c.b16 %v1040, %v1038
    %v1045 = vpack.c.b16 %v1041, %v1039
    %v1051 = vsel %vm473, %v190, 0
    %1053 = vmatprep.subr.bf16.mxu0 0
    %1054 = vmatpush1.bf16.msra.mxu0 0
    %1055 = vmatprep.subr.bf16.mxu0 0
    %1056 = vmatpush1.bf16.msra.mxu0 0
    %1057 = vmatprep.subr.bf16.mxu0 0
    %1058 = vmatpush1.bf16.msra.mxu0 0
    %1059 = vmatprep.subr.bf16.mxu0 0
    %1060 = vmatpush1.bf16.msra.mxu0 0
    %1061 = vmatprep.subr.bf16.mxu0 0
    %1062 = vmatpush1.bf16.msra.mxu0 0
    %1063 = vmatprep.subr.bf16.mxu0 0
    %1064 = vmatpush1.bf16.msra.mxu0 0
    %1065 = vmatprep.subr.bf16.mxu0 %v1045
    %1066 = vmatpush1.bf16.msra.mxu0 %v1044
    %1067 = vmatprep.subr.bf16.mxu0 %v1043
    %1068 = vmatpush1.bf16.msra.mxu0 %v1042
    %1069 = vmatprep.subr.bf16.mxu0 0
    %1070 = vmatpush2.bf16.msra.mxu0 0
    %1071 = vmatprep.subr.bf16.mxu0 0
    %1072 = vmatpush2.bf16.msra.mxu0 0
    %1073 = vmatprep.subr.bf16.mxu0 0
    %1074 = vmatpush2.bf16.msra.mxu0 0
    %1075 = vmatprep.subr.bf16.mxu0 0
    %1076 = vmatpush2.bf16.msra.mxu0 0
    %1077 = vmatprep.subr.bf16.mxu0 0
    %1078 = vmatpush2.bf16.msra.mxu0 0
    %1079 = vmatprep.subr.bf16.mxu0 0
    %1080 = vmatpush2.bf16.msra.mxu0 0
    %1081 = vmatprep.subr.bf16.mxu0 0
    %1082 = vmatpush2.bf16.msra.mxu0 0
    %1083 = vmatprep.subr.bf16.mxu0 0
    %1084 = vmatpush2.bf16.msra.mxu0 0
    %1085 = vmatprep.mubr.bf16.mxu0 0
    %1086 = vmatmul.mubr.bf16.gmra.mxu0 %v1051
    %v1087 = vpop.f32.mrf.mxu0
    %v1088 = vadd.f32 %v368, %v1087
    %v1089 = vpop.f32.mrf.mxu0
    %v1090 = vadd.f32 %v372, %v1089
    %v1091 = vpop.f32.mrf.mxu0
    %v1092 = vpop.f32.mrf.mxu0
    %1093 = vdwg.mxu0
    %v1098 = vunpack.c.l.b16 %v237
    %v1099 = vunpack.c.h.b16 %v237
    %v1100 = vunpack.c.l.b16 %v238
    %v1101 = vunpack.c.h.b16 %v238
    %v1102 = vunpack.c.l.b16 %v239
    %v1103 = vunpack.c.h.b16 %v239
    %v1104 = vunpack.c.l.b16 %v240
    %v1105 = vunpack.c.h.b16 %v240
    %v1106 = vpack.c.b16 %v1100, %v1098
    %v1107 = vpack.c.b16 %v1101, %v1099
    %v1108 = vpack.c.b16 %v1104, %v1102
    %v1109 = vpack.c.b16 %v1105, %v1103
    %v1115 = vsel %vm473, %v191, 0
    %1117 = vmatprep.subr.bf16.mxu0 0
    %1118 = vmatpush1.bf16.msra.mxu0 0
    %1119 = vmatprep.subr.bf16.mxu0 0
    %1120 = vmatpush1.bf16.msra.mxu0 0
    %1121 = vmatprep.subr.bf16.mxu0 0
    %1122 = vmatpush1.bf16.msra.mxu0 0
    %1123 = vmatprep.subr.bf16.mxu0 0
    %1124 = vmatpush1.bf16.msra.mxu0 0
    %1125 = vmatprep.subr.bf16.mxu0 0
    %1126 = vmatpush1.bf16.msra.mxu0 0
    %1127 = vmatprep.subr.bf16.mxu0 0
    %1128 = vmatpush1.bf16.msra.mxu0 0
    %1129 = vmatprep.subr.bf16.mxu0 %v1109
    %1130 = vmatpush1.bf16.msra.mxu0 %v1108
    %1131 = vmatprep.subr.bf16.mxu0 %v1107
    %1132 = vmatpush1.bf16.msra.mxu0 %v1106
    %1133 = vmatprep.subr.bf16.mxu0 0
    %1134 = vmatpush2.bf16.msra.mxu0 0
    %1135 = vmatprep.subr.bf16.mxu0 0
    %1136 = vmatpush2.bf16.msra.mxu0 0
    %1137 = vmatprep.subr.bf16.mxu0 0
    %1138 = vmatpush2.bf16.msra.mxu0 0
    %1139 = vmatprep.subr.bf16.mxu0 0
    %1140 = vmatpush2.bf16.msra.mxu0 0
    %1141 = vmatprep.subr.bf16.mxu0 0
    %1142 = vmatpush2.bf16.msra.mxu0 0
    %1143 = vmatprep.subr.bf16.mxu0 0
    %1144 = vmatpush2.bf16.msra.mxu0 0
    %1145 = vmatprep.subr.bf16.mxu0 0
    %1146 = vmatpush2.bf16.msra.mxu0 0
    %1147 = vmatprep.subr.bf16.mxu0 0
    %1148 = vmatpush2.bf16.msra.mxu0 0
    %1149 = vmatprep.mubr.bf16.mxu0 0
    %1150 = vmatmul.mubr.bf16.gmra.mxu0 %v1115
    %v1151 = vpop.f32.mrf.mxu0
    %v1152 = vadd.f32 %v376, %v1151
    %v1153 = vpop.f32.mrf.mxu0
    %v1154 = vadd.f32 %v380, %v1153
    %v1155 = vpop.f32.mrf.mxu0
    %v1156 = vpop.f32.mrf.mxu0
    %1157 = vdwg.mxu0
    %v1162 = vunpack.c.l.b16 %v241
    %v1163 = vunpack.c.h.b16 %v241
    %v1164 = vunpack.c.l.b16 %v242
    %v1165 = vunpack.c.h.b16 %v242
    %v1166 = vunpack.c.l.b16 %v243
    %v1167 = vunpack.c.h.b16 %v243
    %v1168 = vunpack.c.l.b16 %v244
    %v1169 = vunpack.c.h.b16 %v244
    %v1170 = vpack.c.b16 %v1164, %v1162
    %v1171 = vpack.c.b16 %v1165, %v1163
    %v1172 = vpack.c.b16 %v1168, %v1166
    %v1173 = vpack.c.b16 %v1169, %v1167
    %v1179 = vsel %vm473, %v192, 0
    %1181 = vmatprep.subr.bf16.mxu0 0
    %1182 = vmatpush1.bf16.msra.mxu0 0
    %1183 = vmatprep.subr.bf16.mxu0 0
    %1184 = vmatpush1.bf16.msra.mxu0 0
    %1185 = vmatprep.subr.bf16.mxu0 0
    %1186 = vmatpush1.bf16.msra.mxu0 0
    %1187 = vmatprep.subr.bf16.mxu0 0
    %1188 = vmatpush1.bf16.msra.mxu0 0
    %1189 = vmatprep.subr.bf16.mxu0 0
    %1190 = vmatpush1.bf16.msra.mxu0 0
    %1191 = vmatprep.subr.bf16.mxu0 0
    %1192 = vmatpush1.bf16.msra.mxu0 0
    %1193 = vmatprep.subr.bf16.mxu0 %v1173
    %1194 = vmatpush1.bf16.msra.mxu0 %v1172
    %1195 = vmatprep.subr.bf16.mxu0 %v1171
    %1196 = vmatpush1.bf16.msra.mxu0 %v1170
    %1197 = vmatprep.subr.bf16.mxu0 0
    %1198 = vmatpush2.bf16.msra.mxu0 0
    %1199 = vmatprep.subr.bf16.mxu0 0
    %1200 = vmatpush2.bf16.msra.mxu0 0
    %1201 = vmatprep.subr.bf16.mxu0 0
    %1202 = vmatpush2.bf16.msra.mxu0 0
    %1203 = vmatprep.subr.bf16.mxu0 0
    %1204 = vmatpush2.bf16.msra.mxu0 0
    %1205 = vmatprep.subr.bf16.mxu0 0
    %1206 = vmatpush2.bf16.msra.mxu0 0
    %1207 = vmatprep.subr.bf16.mxu0 0
    %1208 = vmatpush2.bf16.msra.mxu0 0
    %1209 = vmatprep.subr.bf16.mxu0 0
    %1210 = vmatpush2.bf16.msra.mxu0 0
    %1211 = vmatprep.subr.bf16.mxu0 0
    %1212 = vmatpush2.bf16.msra.mxu0 0
    %1213 = vmatprep.mubr.bf16.mxu0 0
    %1214 = vmatmul.mubr.bf16.gmra.mxu0 %v1179
    %v1215 = vpop.f32.mrf.mxu0
    %v1216 = vadd.f32 %v384, %v1215
    %v1217 = vpop.f32.mrf.mxu0
    %v1218 = vadd.f32 %v388, %v1217
    %v1219 = vpop.f32.mrf.mxu0
    %v1220 = vpop.f32.mrf.mxu0
    %1221 = vdwg.mxu0
    %v1226 = vunpack.c.l.b16 %v245
    %v1227 = vunpack.c.h.b16 %v245
    %v1228 = vunpack.c.l.b16 %v246
    %v1229 = vunpack.c.h.b16 %v246
    %v1230 = vunpack.c.l.b16 %v247
    %v1231 = vunpack.c.h.b16 %v247
    %v1232 = vunpack.c.l.b16 %v248
    %v1233 = vunpack.c.h.b16 %v248
    %v1234 = vpack.c.b16 %v1228, %v1226
    %v1235 = vpack.c.b16 %v1229, %v1227
    %v1236 = vpack.c.b16 %v1232, %v1230
    %v1237 = vpack.c.b16 %v1233, %v1231
    %v1243 = vsel %vm473, %v193, 0
    %1245 = vmatprep.subr.bf16.mxu0 0
    %1246 = vmatpush1.bf16.msra.mxu0 0
    %1247 = vmatprep.subr.bf16.mxu0 0
    %1248 = vmatpush1.bf16.msra.mxu0 0
    %1249 = vmatprep.subr.bf16.mxu0 0
    %1250 = vmatpush1.bf16.msra.mxu0 0
    %1251 = vmatprep.subr.bf16.mxu0 0
    %1252 = vmatpush1.bf16.msra.mxu0 0
    %1253 = vmatprep.subr.bf16.mxu0 0
    %1254 = vmatpush1.bf16.msra.mxu0 0
    %1255 = vmatprep.subr.bf16.mxu0 0
    %1256 = vmatpush1.bf16.msra.mxu0 0
    %1257 = vmatprep.subr.bf16.mxu0 %v1237
    %1258 = vmatpush1.bf16.msra.mxu0 %v1236
    %1259 = vmatprep.subr.bf16.mxu0 %v1235
    %1260 = vmatpush1.bf16.msra.mxu0 %v1234
    %1261 = vmatprep.subr.bf16.mxu0 0
    %1262 = vmatpush2.bf16.msra.mxu0 0
    %1263 = vmatprep.subr.bf16.mxu0 0
    %1264 = vmatpush2.bf16.msra.mxu0 0
    %1265 = vmatprep.subr.bf16.mxu0 0
    %1266 = vmatpush2.bf16.msra.mxu0 0
    %1267 = vmatprep.subr.bf16.mxu0 0
    %1268 = vmatpush2.bf16.msra.mxu0 0
    %1269 = vmatprep.subr.bf16.mxu0 0
    %1270 = vmatpush2.bf16.msra.mxu0 0
    %1271 = vmatprep.subr.bf16.mxu0 0
    %1272 = vmatpush2.bf16.msra.mxu0 0
    %1273 = vmatprep.subr.bf16.mxu0 0
    %1274 = vmatpush2.bf16.msra.mxu0 0
    %1275 = vmatprep.subr.bf16.mxu0 0
    %1276 = vmatpush2.bf16.msra.mxu0 0
    %1277 = vmatprep.mubr.bf16.mxu0 0
    %1278 = vmatmul.mubr.bf16.gmra.mxu0 %v1243
    %v1279 = vpop.f32.mrf.mxu0
    %v1280 = vadd.f32 %v392, %v1279
    %v1281 = vpop.f32.mrf.mxu0
    %v1282 = vadd.f32 %v396, %v1281
    %v1283 = vpop.f32.mrf.mxu0
    %v1284 = vpop.f32.mrf.mxu0
    %1285 = vdwg.mxu0
    %v1290 = vunpack.c.l.b16 %v249
    %v1291 = vunpack.c.h.b16 %v249
    %v1292 = vunpack.c.l.b16 %v250
    %v1293 = vunpack.c.h.b16 %v250
    %v1294 = vunpack.c.l.b16 %v251
    %v1295 = vunpack.c.h.b16 %v251
    %v1296 = vunpack.c.l.b16 %v252
    %v1297 = vunpack.c.h.b16 %v252
    %v1298 = vpack.c.b16 %v1292, %v1290
    %v1299 = vpack.c.b16 %v1293, %v1291
    %v1300 = vpack.c.b16 %v1296, %v1294
    %v1301 = vpack.c.b16 %v1297, %v1295
    %v1307 = vsel %vm473, %v194, 0
    %1309 = vmatprep.subr.bf16.mxu0 0
    %1310 = vmatpush1.bf16.msra.mxu0 0
    %1311 = vmatprep.subr.bf16.mxu0 0
    %1312 = vmatpush1.bf16.msra.mxu0 0
    %1313 = vmatprep.subr.bf16.mxu0 0
    %1314 = vmatpush1.bf16.msra.mxu0 0
    %1315 = vmatprep.subr.bf16.mxu0 0
    %1316 = vmatpush1.bf16.msra.mxu0 0
    %1317 = vmatprep.subr.bf16.mxu0 0
    %1318 = vmatpush1.bf16.msra.mxu0 0
    %1319 = vmatprep.subr.bf16.mxu0 0
    %1320 = vmatpush1.bf16.msra.mxu0 0
    %1321 = vmatprep.subr.bf16.mxu0 %v1301
    %1322 = vmatpush1.bf16.msra.mxu0 %v1300
    %1323 = vmatprep.subr.bf16.mxu0 %v1299
    %1324 = vmatpush1.bf16.msra.mxu0 %v1298
    %1325 = vmatprep.subr.bf16.mxu0 0
    %1326 = vmatpush2.bf16.msra.mxu0 0
    %1327 = vmatprep.subr.bf16.mxu0 0
    %1328 = vmatpush2.bf16.msra.mxu0 0
    %1329 = vmatprep.subr.bf16.mxu0 0
    %1330 = vmatpush2.bf16.msra.mxu0 0
    %1331 = vmatprep.subr.bf16.mxu0 0
    %1332 = vmatpush2.bf16.msra.mxu0 0
    %1333 = vmatprep.subr.bf16.mxu0 0
    %1334 = vmatpush2.bf16.msra.mxu0 0
    %1335 = vmatprep.subr.bf16.mxu0 0
    %1336 = vmatpush2.bf16.msra.mxu0 0
    %1337 = vmatprep.subr.bf16.mxu0 0
    %1338 = vmatpush2.bf16.msra.mxu0 0
    %1339 = vmatprep.subr.bf16.mxu0 0
    %1340 = vmatpush2.bf16.msra.mxu0 0
    %1341 = vmatprep.mubr.bf16.mxu0 0
    %1342 = vmatmul.mubr.bf16.gmra.mxu0 %v1307
    %v1343 = vpop.f32.mrf.mxu0
    %v1344 = vadd.f32 %v400, %v1343
    %v1345 = vpop.f32.mrf.mxu0
    %v1346 = vadd.f32 %v404, %v1345
    %v1347 = vpop.f32.mrf.mxu0
    %v1348 = vpop.f32.mrf.mxu0
    %1349 = vdwg.mxu0
    %v1354 = vunpack.c.l.b16 %v253
    %v1355 = vunpack.c.h.b16 %v253
    %v1356 = vunpack.c.l.b16 %v254
    %v1357 = vunpack.c.h.b16 %v254
    %v1358 = vunpack.c.l.b16 %v255
    %v1359 = vunpack.c.h.b16 %v255
    %v1360 = vunpack.c.l.b16 %v256
    %v1361 = vunpack.c.h.b16 %v256
    %v1362 = vpack.c.b16 %v1356, %v1354
    %v1363 = vpack.c.b16 %v1357, %v1355
    %v1364 = vpack.c.b16 %v1360, %v1358
    %v1365 = vpack.c.b16 %v1361, %v1359
    %v1371 = vsel %vm473, %v195, 0
    %1373 = vmatprep.subr.bf16.mxu0 0
    %1374 = vmatpush1.bf16.msra.mxu0 0
    %1375 = vmatprep.subr.bf16.mxu0 0
    %1376 = vmatpush1.bf16.msra.mxu0 0
    %1377 = vmatprep.subr.bf16.mxu0 0
    %1378 = vmatpush1.bf16.msra.mxu0 0
    %1379 = vmatprep.subr.bf16.mxu0 0
    %1380 = vmatpush1.bf16.msra.mxu0 0
    %1381 = vmatprep.subr.bf16.mxu0 0
    %1382 = vmatpush1.bf16.msra.mxu0 0
    %1383 = vmatprep.subr.bf16.mxu0 0
    %1384 = vmatpush1.bf16.msra.mxu0 0
    %1385 = vmatprep.subr.bf16.mxu0 %v1365
    %1386 = vmatpush1.bf16.msra.mxu0 %v1364
    %1387 = vmatprep.subr.bf16.mxu0 %v1363
    %1388 = vmatpush1.bf16.msra.mxu0 %v1362
    %1389 = vmatprep.subr.bf16.mxu0 0
    %1390 = vmatpush2.bf16.msra.mxu0 0
    %1391 = vmatprep.subr.bf16.mxu0 0
    %1392 = vmatpush2.bf16.msra.mxu0 0
    %1393 = vmatprep.subr.bf16.mxu0 0
    %1394 = vmatpush2.bf16.msra.mxu0 0
    %1395 = vmatprep.subr.bf16.mxu0 0
    %1396 = vmatpush2.bf16.msra.mxu0 0
    %1397 = vmatprep.subr.bf16.mxu0 0
    %1398 = vmatpush2.bf16.msra.mxu0 0
    %1399 = vmatprep.subr.bf16.mxu0 0
    %1400 = vmatpush2.bf16.msra.mxu0 0
    %1401 = vmatprep.subr.bf16.mxu0 0
    %1402 = vmatpush2.bf16.msra.mxu0 0
    %1403 = vmatprep.subr.bf16.mxu0 0
    %1404 = vmatpush2.bf16.msra.mxu0 0
    %1405 = vmatprep.mubr.bf16.mxu0 0
    %1406 = vmatmul.mubr.bf16.gmra.mxu0 %v1371
    %v1407 = vpop.f32.mrf.mxu0
    %v1408 = vadd.f32 %v408, %v1407
    %v1409 = vpop.f32.mrf.mxu0
    %v1410 = vadd.f32 %v412, %v1409
    %v1411 = vpop.f32.mrf.mxu0
    %v1412 = vpop.f32.mrf.mxu0
    %1413 = vdwg.mxu0
    %v1418 = vunpack.c.l.b16 %v257
    %v1419 = vunpack.c.h.b16 %v257
    %v1420 = vunpack.c.l.b16 %v258
    %v1421 = vunpack.c.h.b16 %v258
    %v1422 = vunpack.c.l.b16 %v259
    %v1423 = vunpack.c.h.b16 %v259
    %v1424 = vunpack.c.l.b16 %v260
    %v1425 = vunpack.c.h.b16 %v260
    %v1426 = vpack.c.b16 %v1420, %v1418
    %v1427 = vpack.c.b16 %v1421, %v1419
    %v1428 = vpack.c.b16 %v1424, %v1422
    %v1429 = vpack.c.b16 %v1425, %v1423
    %v1435 = vsel %vm473, %v196, 0
    %1437 = vmatprep.subr.bf16.mxu0 0
    %1438 = vmatpush1.bf16.msra.mxu0 0
    %1439 = vmatprep.subr.bf16.mxu0 0
    %1440 = vmatpush1.bf16.msra.mxu0 0
    %1441 = vmatprep.subr.bf16.mxu0 0
    %1442 = vmatpush1.bf16.msra.mxu0 0
    %1443 = vmatprep.subr.bf16.mxu0 0
    %1444 = vmatpush1.bf16.msra.mxu0 0
    %1445 = vmatprep.subr.bf16.mxu0 0
    %1446 = vmatpush1.bf16.msra.mxu0 0
    %1447 = vmatprep.subr.bf16.mxu0 0
    %1448 = vmatpush1.bf16.msra.mxu0 0
    %1449 = vmatprep.subr.bf16.mxu0 %v1429
    %1450 = vmatpush1.bf16.msra.mxu0 %v1428
    %1451 = vmatprep.subr.bf16.mxu0 %v1427
    %1452 = vmatpush1.bf16.msra.mxu0 %v1426
    %1453 = vmatprep.subr.bf16.mxu0 0
    %1454 = vmatpush2.bf16.msra.mxu0 0
    %1455 = vmatprep.subr.bf16.mxu0 0
    %1456 = vmatpush2.bf16.msra.mxu0 0
    %1457 = vmatprep.subr.bf16.mxu0 0
    %1458 = vmatpush2.bf16.msra.mxu0 0
    %1459 = vmatprep.subr.bf16.mxu0 0
    %1460 = vmatpush2.bf16.msra.mxu0 0
    %1461 = vmatprep.subr.bf16.mxu0 0
    %1462 = vmatpush2.bf16.msra.mxu0 0
    %1463 = vmatprep.subr.bf16.mxu0 0
    %1464 = vmatpush2.bf16.msra.mxu0 0
    %1465 = vmatprep.subr.bf16.mxu0 0
    %1466 = vmatpush2.bf16.msra.mxu0 0
    %1467 = vmatprep.subr.bf16.mxu0 0
    %1468 = vmatpush2.bf16.msra.mxu0 0
    %1469 = vmatprep.mubr.bf16.mxu0 0
    %1470 = vmatmul.mubr.bf16.gmra.mxu0 %v1435
    %v1471 = vpop.f32.mrf.mxu0
    %v1472 = vadd.f32 %v416, %v1471
    %v1473 = vpop.f32.mrf.mxu0
    %v1474 = vadd.f32 %v420, %v1473
    %v1475 = vpop.f32.mrf.mxu0
    %v1476 = vpop.f32.mrf.mxu0
    %1477 = vdwg.mxu0
    %v1478 = vmax.f32 %v512, 0.0
    %v1479 = vmax.f32 %v514, 0.0
    %v1480 = vmax.f32 %v576, 0.0
    %v1481 = vmax.f32 %v578, 0.0
    %v1482 = vmax.f32 %v640, 0.0
    %v1483 = vmax.f32 %v642, 0.0
    %v1484 = vmax.f32 %v704, 0.0
    %v1485 = vmax.f32 %v706, 0.0
    %v1486 = vmax.f32 %v768, 0.0
    %v1487 = vmax.f32 %v770, 0.0
    %v1488 = vmax.f32 %v832, 0.0
    %v1489 = vmax.f32 %v834, 0.0
    %v1490 = vmax.f32 %v896, 0.0
    %v1491 = vmax.f32 %v898, 0.0
    %v1492 = vmax.f32 %v960, 0.0
    %v1493 = vmax.f32 %v962, 0.0
    %v1494 = vmax.f32 %v1024, 0.0
    %v1495 = vmax.f32 %v1026, 0.0
    %v1496 = vmax.f32 %v1088, 0.0
    %v1497 = vmax.f32 %v1090, 0.0
    %v1498 = vmax.f32 %v1152, 0.0
    %v1499 = vmax.f32 %v1154, 0.0
    %v1500 = vmax.f32 %v1216, 0.0
    %v1501 = vmax.f32 %v1218, 0.0
    %v1502 = vmax.f32 %v1280, 0.0
    %v1503 = vmax.f32 %v1282, 0.0
    %v1504 = vmax.f32 %v1344, 0.0
    %v1505 = vmax.f32 %v1346, 0.0
    %v1506 = vmax.f32 %v1408, 0.0
    %v1507 = vmax.f32 %v1410, 0.0
    %v1508 = vmax.f32 %v1472, 0.0
    %v1509 = vmax.f32 %v1474, 0.0
    %v1510 = vpack.c.bf16 %v1478, %v1478
    %v1511 = vpack.c.bf16 %v1479, %v1479
    %v1512 = vpack.c.bf16 %v1480, %v1480
    %v1513 = vpack.c.bf16 %v1481, %v1481
    %v1514 = vpack.c.bf16 %v1482, %v1482
    %v1515 = vpack.c.bf16 %v1483, %v1483
    %v1516 = vpack.c.bf16 %v1484, %v1484
    %v1517 = vpack.c.bf16 %v1485, %v1485
    %v1518 = vpack.c.bf16 %v1486, %v1486
    %v1519 = vpack.c.bf16 %v1487, %v1487
    %v1520 = vpack.c.bf16 %v1488, %v1488
    %v1521 = vpack.c.bf16 %v1489, %v1489
    %v1522 = vpack.c.bf16 %v1490, %v1490
    %v1523 = vpack.c.bf16 %v1491, %v1491
    %v1524 = vpack.c.bf16 %v1492, %v1492
    %v1525 = vpack.c.bf16 %v1493, %v1493
    %v1526 = vpack.c.bf16 %v1494, %v1494
    %v1527 = vpack.c.bf16 %v1495, %v1495
    %v1528 = vpack.c.bf16 %v1496, %v1496
    %v1529 = vpack.c.bf16 %v1497, %v1497
    %v1530 = vpack.c.bf16 %v1498, %v1498
    %v1531 = vpack.c.bf16 %v1499, %v1499
    %v1532 = vpack.c.bf16 %v1500, %v1500
    %v1533 = vpack.c.bf16 %v1501, %v1501
    %v1534 = vpack.c.bf16 %v1502, %v1502
    %v1535 = vpack.c.bf16 %v1503, %v1503
    %v1536 = vpack.c.bf16 %v1504, %v1504
    %v1537 = vpack.c.bf16 %v1505, %v1505
    %v1538 = vpack.c.bf16 %v1506, %v1506
    %v1539 = vpack.c.bf16 %v1507, %v1507
    %v1540 = vpack.c.bf16 %v1508, %v1508
    %v1541 = vpack.c.bf16 %v1509, %v1509
    %v1542 = vld [vmem:[#allocation7] sm:$0xff]
    %v1543 = vld [vmem:[#allocation7 + $0x8] sm:$0xff]
    %v1544 = vld [vmem:[#allocation7 + $0x10] sm:$0xff]
    %v1545 = vld [vmem:[#allocation7 + $0x18] sm:$0xff]
    %v1546 = vld [vmem:[#allocation7 + $0x20] sm:$0xff]
    %v1547 = vld [vmem:[#allocation7 + $0x28] sm:$0xff]
    %v1548 = vld [vmem:[#allocation7 + $0x30] sm:$0xff]
    %v1549 = vld [vmem:[#allocation7 + $0x38] sm:$0xff]
    %v1550 = vld [vmem:[#allocation7 + $0x40] sm:$0xff]
    %v1551 = vld [vmem:[#allocation7 + $0x48] sm:$0xff]
    %v1552 = vld [vmem:[#allocation7 + $0x50] sm:$0xff]
    %v1553 = vld [vmem:[#allocation7 + $0x58] sm:$0xff]
    %v1554 = vld [vmem:[#allocation7 + $0x60] sm:$0xff]
    %v1555 = vld [vmem:[#allocation7 + $0x68] sm:$0xff]
    %v1556 = vld [vmem:[#allocation7 + $0x70] sm:$0xff]
    %v1557 = vld [vmem:[#allocation7 + $0x78] sm:$0xff]
    %v1558 = vld [vmem:[#allocation7 + $0x80] sm:$0xff]
    %v1559 = vld [vmem:[#allocation7 + $0x88] sm:$0xff]
    %v1560 = vld [vmem:[#allocation7 + $0x90] sm:$0xff]
    %v1561 = vld [vmem:[#allocation7 + $0x98] sm:$0xff]
    %v1562 = vld [vmem:[#allocation7 + $0xa0] sm:$0xff]
    %v1563 = vld [vmem:[#allocation7 + $0xa8] sm:$0xff]
    %v1564 = vld [vmem:[#allocation7 + $0xb0] sm:$0xff]
    %v1565 = vld [vmem:[#allocation7 + $0xb8] sm:$0xff]
    %v1566 = vld [vmem:[#allocation7 + $0xc0] sm:$0xff]
    %v1567 = vld [vmem:[#allocation7 + $0xc8] sm:$0xff]
    %v1568 = vld [vmem:[#allocation7 + $0xd0] sm:$0xff]
    %v1569 = vld [vmem:[#allocation7 + $0xd8] sm:$0xff]
    %v1570 = vld [vmem:[#allocation7 + $0xe0] sm:$0xff]
    %v1571 = vld [vmem:[#allocation7 + $0xe8] sm:$0xff]
    %v1572 = vld [vmem:[#allocation7 + $0xf0] sm:$0xff]
    %v1573 = vld [vmem:[#allocation7 + $0xf8] sm:$0xff]
    %v1574 = vld [vmem:[#allocation7 + $0x100] sm:$0xff]
    %v1575 = vld [vmem:[#allocation7 + $0x108] sm:$0xff]
    %v1576 = vld [vmem:[#allocation7 + $0x110] sm:$0xff]
    %v1577 = vld [vmem:[#allocation7 + $0x118] sm:$0xff]
    %v1578 = vld [vmem:[#allocation7 + $0x120] sm:$0xff]
    %v1579 = vld [vmem:[#allocation7 + $0x128] sm:$0xff]
    %v1580 = vld [vmem:[#allocation7 + $0x130] sm:$0xff]
    %v1581 = vld [vmem:[#allocation7 + $0x138] sm:$0xff]
    %v1582 = vld [vmem:[#allocation7 + $0x140] sm:$0xff]
    %v1583 = vld [vmem:[#allocation7 + $0x148] sm:$0xff]
    %v1584 = vld [vmem:[#allocation7 + $0x150] sm:$0xff]
    %v1585 = vld [vmem:[#allocation7 + $0x158] sm:$0xff]
    %v1586 = vld [vmem:[#allocation7 + $0x160] sm:$0xff]
    %v1587 = vld [vmem:[#allocation7 + $0x168] sm:$0xff]
    %v1588 = vld [vmem:[#allocation7 + $0x170] sm:$0xff]
    %v1589 = vld [vmem:[#allocation7 + $0x178] sm:$0xff]
    %v1590 = vld [vmem:[#allocation7 + $0x180] sm:$0xff]
    %v1591 = vld [vmem:[#allocation7 + $0x188] sm:$0xff]
    %v1592 = vld [vmem:[#allocation7 + $0x190] sm:$0xff]
    %v1593 = vld [vmem:[#allocation7 + $0x198] sm:$0xff]
    %v1594 = vld [vmem:[#allocation7 + $0x1a0] sm:$0xff]
    %v1595 = vld [vmem:[#allocation7 + $0x1a8] sm:$0xff]
    %v1596 = vld [vmem:[#allocation7 + $0x1b0] sm:$0xff]
    %v1597 = vld [vmem:[#allocation7 + $0x1b8] sm:$0xff]
    %v1598 = vld [vmem:[#allocation7 + $0x1c0] sm:$0xff]
    %v1599 = vld [vmem:[#allocation7 + $0x1c8] sm:$0xff]
    %v1600 = vld [vmem:[#allocation7 + $0x1d0] sm:$0xff]
    %v1601 = vld [vmem:[#allocation7 + $0x1d8] sm:$0xff]
    %v1602 = vld [vmem:[#allocation7 + $0x1e0] sm:$0xff]
    %v1603 = vld [vmem:[#allocation7 + $0x1e8] sm:$0xff]
    %v1604 = vld [vmem:[#allocation7 + $0x1f0] sm:$0xff]
    %v1605 = vld [vmem:[#allocation7 + $0x1f8] sm:$0xff]
    %v1606 = vld [vmem:[#allocation7 + $0x200] sm:$0xff]
    %v1607 = vld [vmem:[#allocation7 + $0x208] sm:$0xff]
    %v1608 = vld [vmem:[#allocation7 + $0x210] sm:$0xff]
    %v1609 = vld [vmem:[#allocation7 + $0x218] sm:$0xff]
    %v1610 = vld [vmem:[#allocation7 + $0x220] sm:$0xff]
    %v1611 = vld [vmem:[#allocation7 + $0x228] sm:$0xff]
    %v1612 = vld [vmem:[#allocation7 + $0x230] sm:$0xff]
    %v1613 = vld [vmem:[#allocation7 + $0x238] sm:$0xff]
    %v1614 = vld [vmem:[#allocation7 + $0x240] sm:$0xff]
    %v1615 = vld [vmem:[#allocation7 + $0x248] sm:$0xff]
    %v1616 = vld [vmem:[#allocation7 + $0x250] sm:$0xff]
    %v1617 = vld [vmem:[#allocation7 + $0x258] sm:$0xff]
    %v1618 = vld [vmem:[#allocation7 + $0x260] sm:$0xff]
    %v1619 = vld [vmem:[#allocation7 + $0x268] sm:$0xff]
    %v1620 = vld [vmem:[#allocation7 + $0x270] sm:$0xff]
    %v1621 = vld [vmem:[#allocation7 + $0x278] sm:$0xff]
    %v1622 = vld [vmem:[#allocation7 + $0x280] sm:$0xff]
    %v1623 = vld [vmem:[#allocation7 + $0x288] sm:$0xff]
    %v1624 = vld [vmem:[#allocation7 + $0x290] sm:$0xff]
    %v1625 = vld [vmem:[#allocation7 + $0x298] sm:$0xff]
    %v1626 = vld [vmem:[#allocation7 + $0x2a0] sm:$0xff]
    %v1627 = vld [vmem:[#allocation7 + $0x2a8] sm:$0xff]
    %v1628 = vld [vmem:[#allocation7 + $0x2b0] sm:$0xff]
    %v1629 = vld [vmem:[#allocation7 + $0x2b8] sm:$0xff]
    %v1630 = vld [vmem:[#allocation7 + $0x2c0] sm:$0xff]
    %v1631 = vld [vmem:[#allocation7 + $0x2c8] sm:$0xff]
    %v1632 = vld [vmem:[#allocation7 + $0x2d0] sm:$0xff]
    %v1633 = vld [vmem:[#allocation7 + $0x2d8] sm:$0xff]
    %v1634 = vld [vmem:[#allocation7 + $0x2e0] sm:$0xff]
    %v1635 = vld [vmem:[#allocation7 + $0x2e8] sm:$0xff]
    %v1636 = vld [vmem:[#allocation7 + $0x2f0] sm:$0xff]
    %v1637 = vld [vmem:[#allocation7 + $0x2f8] sm:$0xff]
    %v1638 = vld [vmem:[#allocation7 + $0x300] sm:$0xff]
    %v1639 = vld [vmem:[#allocation7 + $0x308] sm:$0xff]
    %v1640 = vld [vmem:[#allocation7 + $0x310] sm:$0xff]
    %v1641 = vld [vmem:[#allocation7 + $0x318] sm:$0xff]
    %v1642 = vld [vmem:[#allocation7 + $0x320] sm:$0xff]
    %v1643 = vld [vmem:[#allocation7 + $0x328] sm:$0xff]
    %v1644 = vld [vmem:[#allocation7 + $0x330] sm:$0xff]
    %v1645 = vld [vmem:[#allocation7 + $0x338] sm:$0xff]
    %v1646 = vld [vmem:[#allocation7 + $0x340] sm:$0xff]
    %v1647 = vld [vmem:[#allocation7 + $0x348] sm:$0xff]
    %v1648 = vld [vmem:[#allocation7 + $0x350] sm:$0xff]
    %v1649 = vld [vmem:[#allocation7 + $0x358] sm:$0xff]
    %v1650 = vld [vmem:[#allocation7 + $0x360] sm:$0xff]
    %v1651 = vld [vmem:[#allocation7 + $0x368] sm:$0xff]
    %v1652 = vld [vmem:[#allocation7 + $0x370] sm:$0xff]
    %v1653 = vld [vmem:[#allocation7 + $0x378] sm:$0xff]
    %v1654 = vld [vmem:[#allocation7 + $0x380] sm:$0xff]
    %v1655 = vld [vmem:[#allocation7 + $0x388] sm:$0xff]
    %v1656 = vld [vmem:[#allocation7 + $0x390] sm:$0xff]
    %v1657 = vld [vmem:[#allocation7 + $0x398] sm:$0xff]
    %v1658 = vld [vmem:[#allocation7 + $0x3a0] sm:$0xff]
    %v1659 = vld [vmem:[#allocation7 + $0x3a8] sm:$0xff]
    %v1660 = vld [vmem:[#allocation7 + $0x3b0] sm:$0xff]
    %v1661 = vld [vmem:[#allocation7 + $0x3b8] sm:$0xff]
    %v1662 = vld [vmem:[#allocation7 + $0x3c0] sm:$0xff]
    %v1663 = vld [vmem:[#allocation7 + $0x3c8] sm:$0xff]
    %v1664 = vld [vmem:[#allocation7 + $0x3d0] sm:$0xff]
    %v1665 = vld [vmem:[#allocation7 + $0x3d8] sm:$0xff]
    %v1666 = vld [vmem:[#allocation7 + $0x3e0] sm:$0xff]
    %v1667 = vld [vmem:[#allocation7 + $0x3e8] sm:$0xff]
    %v1668 = vld [vmem:[#allocation7 + $0x3f0] sm:$0xff]
    %v1669 = vld [vmem:[#allocation7 + $0x3f8] sm:$0xff]
    %v1670 = vld [vmem:[#allocation7 + $0x400] sm:$0xff]
    %v1671 = vld [vmem:[#allocation7 + $0x408] sm:$0xff]
    %v1672 = vld [vmem:[#allocation7 + $0x410] sm:$0xff]
    %v1673 = vld [vmem:[#allocation7 + $0x418] sm:$0xff]
    %v1674 = vld [vmem:[#allocation7 + $0x420] sm:$0xff]
    %v1675 = vld [vmem:[#allocation7 + $0x428] sm:$0xff]
    %v1676 = vld [vmem:[#allocation7 + $0x430] sm:$0xff]
    %v1677 = vld [vmem:[#allocation7 + $0x438] sm:$0xff]
    %v1678 = vld [vmem:[#allocation7 + $0x440] sm:$0xff]
    %v1679 = vld [vmem:[#allocation7 + $0x448] sm:$0xff]
    %v1680 = vld [vmem:[#allocation7 + $0x450] sm:$0xff]
    %v1681 = vld [vmem:[#allocation7 + $0x458] sm:$0xff]
    %v1682 = vld [vmem:[#allocation7 + $0x460] sm:$0xff]
    %v1683 = vld [vmem:[#allocation7 + $0x468] sm:$0xff]
    %v1684 = vld [vmem:[#allocation7 + $0x470] sm:$0xff]
    %v1685 = vld [vmem:[#allocation7 + $0x478] sm:$0xff]
    %v1686 = vld [vmem:[#allocation7 + $0x480] sm:$0xff]
    %v1687 = vld [vmem:[#allocation7 + $0x488] sm:$0xff]
    %v1688 = vld [vmem:[#allocation7 + $0x490] sm:$0xff]
    %v1689 = vld [vmem:[#allocation7 + $0x498] sm:$0xff]
    %v1690 = vld [vmem:[#allocation7 + $0x4a0] sm:$0xff]
    %v1691 = vld [vmem:[#allocation7 + $0x4a8] sm:$0xff]
    %v1692 = vld [vmem:[#allocation7 + $0x4b0] sm:$0xff]
    %v1693 = vld [vmem:[#allocation7 + $0x4b8] sm:$0xff]
    %v1694 = vld [vmem:[#allocation7 + $0x4c0] sm:$0xff]
    %v1695 = vld [vmem:[#allocation7 + $0x4c8] sm:$0xff]
    %v1696 = vld [vmem:[#allocation7 + $0x4d0] sm:$0xff]
    %v1697 = vld [vmem:[#allocation7 + $0x4d8] sm:$0xff]
    %v1698 = vld [vmem:[#allocation7 + $0x4e0] sm:$0xff]
    %v1699 = vld [vmem:[#allocation7 + $0x4e8] sm:$0xff]
    %v1700 = vld [vmem:[#allocation7 + $0x4f0] sm:$0xff]
    %v1701 = vld [vmem:[#allocation7 + $0x4f8] sm:$0xff]
    %v1702 = vld [vmem:[#allocation7 + $0x500] sm:$0xff]
    %v1703 = vld [vmem:[#allocation7 + $0x508] sm:$0xff]
    %v1704 = vld [vmem:[#allocation7 + $0x510] sm:$0xff]
    %v1705 = vld [vmem:[#allocation7 + $0x518] sm:$0xff]
    %v1706 = vld [vmem:[#allocation7 + $0x520] sm:$0xff]
    %v1707 = vld [vmem:[#allocation7 + $0x528] sm:$0xff]
    %v1708 = vld [vmem:[#allocation7 + $0x530] sm:$0xff]
    %v1709 = vld [vmem:[#allocation7 + $0x538] sm:$0xff]
    %v1710 = vld [vmem:[#allocation7 + $0x540] sm:$0xff]
    %v1711 = vld [vmem:[#allocation7 + $0x548] sm:$0xff]
    %v1712 = vld [vmem:[#allocation7 + $0x550] sm:$0xff]
    %v1713 = vld [vmem:[#allocation7 + $0x558] sm:$0xff]
    %v1714 = vld [vmem:[#allocation7 + $0x560] sm:$0xff]
    %v1715 = vld [vmem:[#allocation7 + $0x568] sm:$0xff]
    %v1716 = vld [vmem:[#allocation7 + $0x570] sm:$0xff]
    %v1717 = vld [vmem:[#allocation7 + $0x578] sm:$0xff]
    %v1718 = vld [vmem:[#allocation7 + $0x580] sm:$0xff]
    %v1719 = vld [vmem:[#allocation7 + $0x588] sm:$0xff]
    %v1720 = vld [vmem:[#allocation7 + $0x590] sm:$0xff]
    %v1721 = vld [vmem:[#allocation7 + $0x598] sm:$0xff]
    %v1722 = vld [vmem:[#allocation7 + $0x5a0] sm:$0xff]
    %v1723 = vld [vmem:[#allocation7 + $0x5a8] sm:$0xff]
    %v1724 = vld [vmem:[#allocation7 + $0x5b0] sm:$0xff]
    %v1725 = vld [vmem:[#allocation7 + $0x5b8] sm:$0xff]
    %v1726 = vld [vmem:[#allocation7 + $0x5c0] sm:$0xff]
    %v1727 = vld [vmem:[#allocation7 + $0x5c8] sm:$0xff]
    %v1728 = vld [vmem:[#allocation7 + $0x5d0] sm:$0xff]
    %v1729 = vld [vmem:[#allocation7 + $0x5d8] sm:$0xff]
    %v1730 = vld [vmem:[#allocation7 + $0x5e0] sm:$0xff]
    %v1731 = vld [vmem:[#allocation7 + $0x5e8] sm:$0xff]
    %v1732 = vld [vmem:[#allocation7 + $0x5f0] sm:$0xff]
    %v1733 = vld [vmem:[#allocation7 + $0x5f8] sm:$0xff]
    %v1734 = vld [vmem:[#allocation7 + $0x600] sm:$0xff]
    %v1735 = vld [vmem:[#allocation7 + $0x608] sm:$0xff]
    %v1736 = vld [vmem:[#allocation7 + $0x610] sm:$0xff]
    %v1737 = vld [vmem:[#allocation7 + $0x618] sm:$0xff]
    %v1738 = vld [vmem:[#allocation7 + $0x620] sm:$0xff]
    %v1739 = vld [vmem:[#allocation7 + $0x628] sm:$0xff]
    %v1740 = vld [vmem:[#allocation7 + $0x630] sm:$0xff]
    %v1741 = vld [vmem:[#allocation7 + $0x638] sm:$0xff]
    %v1742 = vld [vmem:[#allocation7 + $0x640] sm:$0xff]
    %v1743 = vld [vmem:[#allocation7 + $0x648] sm:$0xff]
    %v1744 = vld [vmem:[#allocation7 + $0x650] sm:$0xff]
    %v1745 = vld [vmem:[#allocation7 + $0x658] sm:$0xff]
    %v1746 = vld [vmem:[#allocation7 + $0x660] sm:$0xff]
    %v1747 = vld [vmem:[#allocation7 + $0x668] sm:$0xff]
    %v1748 = vld [vmem:[#allocation7 + $0x670] sm:$0xff]
    %v1749 = vld [vmem:[#allocation7 + $0x678] sm:$0xff]
    %v1750 = vld [vmem:[#allocation7 + $0x680] sm:$0xff]
    %v1751 = vld [vmem:[#allocation7 + $0x688] sm:$0xff]
    %v1752 = vld [vmem:[#allocation7 + $0x690] sm:$0xff]
    %v1753 = vld [vmem:[#allocation7 + $0x698] sm:$0xff]
    %v1754 = vld [vmem:[#allocation7 + $0x6a0] sm:$0xff]
    %v1755 = vld [vmem:[#allocation7 + $0x6a8] sm:$0xff]
    %v1756 = vld [vmem:[#allocation7 + $0x6b0] sm:$0xff]
    %v1757 = vld [vmem:[#allocation7 + $0x6b8] sm:$0xff]
    %v1758 = vld [vmem:[#allocation7 + $0x6c0] sm:$0xff]
    %v1759 = vld [vmem:[#allocation7 + $0x6c8] sm:$0xff]
    %v1760 = vld [vmem:[#allocation7 + $0x6d0] sm:$0xff]
    %v1761 = vld [vmem:[#allocation7 + $0x6d8] sm:$0xff]
    %v1762 = vld [vmem:[#allocation7 + $0x6e0] sm:$0xff]
    %v1763 = vld [vmem:[#allocation7 + $0x6e8] sm:$0xff]
    %v1764 = vld [vmem:[#allocation7 + $0x6f0] sm:$0xff]
    %v1765 = vld [vmem:[#allocation7 + $0x6f8] sm:$0xff]
    %v1766 = vld [vmem:[#allocation7 + $0x700] sm:$0xff]
    %v1767 = vld [vmem:[#allocation7 + $0x708] sm:$0xff]
    %v1768 = vld [vmem:[#allocation7 + $0x710] sm:$0xff]
    %v1769 = vld [vmem:[#allocation7 + $0x718] sm:$0xff]
    %v1770 = vld [vmem:[#allocation7 + $0x720] sm:$0xff]
    %v1771 = vld [vmem:[#allocation7 + $0x728] sm:$0xff]
    %v1772 = vld [vmem:[#allocation7 + $0x730] sm:$0xff]
    %v1773 = vld [vmem:[#allocation7 + $0x738] sm:$0xff]
    %v1774 = vld [vmem:[#allocation7 + $0x740] sm:$0xff]
    %v1775 = vld [vmem:[#allocation7 + $0x748] sm:$0xff]
    %v1776 = vld [vmem:[#allocation7 + $0x750] sm:$0xff]
    %v1777 = vld [vmem:[#allocation7 + $0x758] sm:$0xff]
    %v1778 = vld [vmem:[#allocation7 + $0x760] sm:$0xff]
    %v1779 = vld [vmem:[#allocation7 + $0x768] sm:$0xff]
    %v1780 = vld [vmem:[#allocation7 + $0x770] sm:$0xff]
    %v1781 = vld [vmem:[#allocation7 + $0x778] sm:$0xff]
    %v1782 = vld [vmem:[#allocation7 + $0x780] sm:$0xff]
    %v1783 = vld [vmem:[#allocation7 + $0x788] sm:$0xff]
    %v1784 = vld [vmem:[#allocation7 + $0x790] sm:$0xff]
    %v1785 = vld [vmem:[#allocation7 + $0x798] sm:$0xff]
    %v1786 = vld [vmem:[#allocation7 + $0x7a0] sm:$0xff]
    %v1787 = vld [vmem:[#allocation7 + $0x7a8] sm:$0xff]
    %v1788 = vld [vmem:[#allocation7 + $0x7b0] sm:$0xff]
    %v1789 = vld [vmem:[#allocation7 + $0x7b8] sm:$0xff]
    %v1790 = vld [vmem:[#allocation7 + $0x7c0] sm:$0xff]
    %v1791 = vld [vmem:[#allocation7 + $0x7c8] sm:$0xff]
    %v1792 = vld [vmem:[#allocation7 + $0x7d0] sm:$0xff]
    %v1793 = vld [vmem:[#allocation7 + $0x7d8] sm:$0xff]
    %v1794 = vld [vmem:[#allocation7 + $0x7e0] sm:$0xff]
    %v1795 = vld [vmem:[#allocation7 + $0x7e8] sm:$0xff]
    %v1796 = vld [vmem:[#allocation7 + $0x7f0] sm:$0xff]
    %v1797 = vld [vmem:[#allocation7 + $0x7f8] sm:$0xff]
    %v1798 = vld [vmem:[#allocation7 + $0x800] sm:$0xff]
    %v1799 = vld [vmem:[#allocation7 + $0x808] sm:$0xff]
    %v1800 = vld [vmem:[#allocation7 + $0x810] sm:$0xff]
    %v1801 = vld [vmem:[#allocation7 + $0x818] sm:$0xff]
    %v1802 = vld [vmem:[#allocation7 + $0x820] sm:$0xff]
    %v1803 = vld [vmem:[#allocation7 + $0x828] sm:$0xff]
    %v1804 = vld [vmem:[#allocation7 + $0x830] sm:$0xff]
    %v1805 = vld [vmem:[#allocation7 + $0x838] sm:$0xff]
    %v1806 = vld [vmem:[#allocation7 + $0x840] sm:$0xff]
    %v1807 = vld [vmem:[#allocation7 + $0x848] sm:$0xff]
    %v1808 = vld [vmem:[#allocation7 + $0x850] sm:$0xff]
    %v1809 = vld [vmem:[#allocation7 + $0x858] sm:$0xff]
    %v1810 = vld [vmem:[#allocation7 + $0x860] sm:$0xff]
    %v1811 = vld [vmem:[#allocation7 + $0x868] sm:$0xff]
    %v1812 = vld [vmem:[#allocation7 + $0x870] sm:$0xff]
    %v1813 = vld [vmem:[#allocation7 + $0x878] sm:$0xff]
    %v1814 = vld [vmem:[#allocation7 + $0x880] sm:$0xff]
    %v1815 = vld [vmem:[#allocation7 + $0x888] sm:$0xff]
    %v1816 = vld [vmem:[#allocation7 + $0x890] sm:$0xff]
    %v1817 = vld [vmem:[#allocation7 + $0x898] sm:$0xff]
    %v1818 = vld [vmem:[#allocation7 + $0x8a0] sm:$0xff]
    %v1819 = vld [vmem:[#allocation7 + $0x8a8] sm:$0xff]
    %v1820 = vld [vmem:[#allocation7 + $0x8b0] sm:$0xff]
    %v1821 = vld [vmem:[#allocation7 + $0x8b8] sm:$0xff]
    %v1822 = vld [vmem:[#allocation7 + $0x8c0] sm:$0xff]
    %v1823 = vld [vmem:[#allocation7 + $0x8c8] sm:$0xff]
    %v1824 = vld [vmem:[#allocation7 + $0x8d0] sm:$0xff]
    %v1825 = vld [vmem:[#allocation7 + $0x8d8] sm:$0xff]
    %v1826 = vld [vmem:[#allocation7 + $0x8e0] sm:$0xff]
    %v1827 = vld [vmem:[#allocation7 + $0x8e8] sm:$0xff]
    %v1828 = vld [vmem:[#allocation7 + $0x8f0] sm:$0xff]
    %v1829 = vld [vmem:[#allocation7 + $0x8f8] sm:$0xff]
    %v1830 = vld [vmem:[#allocation7 + $0x900] sm:$0xff]
    %v1831 = vld [vmem:[#allocation7 + $0x908] sm:$0xff]
    %v1832 = vld [vmem:[#allocation7 + $0x910] sm:$0xff]
    %v1833 = vld [vmem:[#allocation7 + $0x918] sm:$0xff]
    %v1834 = vld [vmem:[#allocation7 + $0x920] sm:$0xff]
    %v1835 = vld [vmem:[#allocation7 + $0x928] sm:$0xff]
    %v1836 = vld [vmem:[#allocation7 + $0x930] sm:$0xff]
    %v1837 = vld [vmem:[#allocation7 + $0x938] sm:$0xff]
    %v1838 = vld [vmem:[#allocation7 + $0x940] sm:$0xff]
    %v1839 = vld [vmem:[#allocation7 + $0x948] sm:$0xff]
    %v1840 = vld [vmem:[#allocation7 + $0x950] sm:$0xff]
    %v1841 = vld [vmem:[#allocation7 + $0x958] sm:$0xff]
    %v1842 = vld [vmem:[#allocation7 + $0x960] sm:$0xff]
    %v1843 = vld [vmem:[#allocation7 + $0x968] sm:$0xff]
    %v1844 = vld [vmem:[#allocation7 + $0x970] sm:$0xff]
    %v1845 = vld [vmem:[#allocation7 + $0x978] sm:$0xff]
    %v1846 = vld [vmem:[#allocation7 + $0x980] sm:$0xff]
    %v1847 = vld [vmem:[#allocation7 + $0x988] sm:$0xff]
    %v1848 = vld [vmem:[#allocation7 + $0x990] sm:$0xff]
    %v1849 = vld [vmem:[#allocation7 + $0x998] sm:$0xff]
    %v1850 = vld [vmem:[#allocation7 + $0x9a0] sm:$0xff]
    %v1851 = vld [vmem:[#allocation7 + $0x9a8] sm:$0xff]
    %v1852 = vld [vmem:[#allocation7 + $0x9b0] sm:$0xff]
    %v1853 = vld [vmem:[#allocation7 + $0x9b8] sm:$0xff]
    %v1854 = vld [vmem:[#allocation7 + $0x9c0] sm:$0xff]
    %v1855 = vld [vmem:[#allocation7 + $0x9c8] sm:$0xff]
    %v1856 = vld [vmem:[#allocation7 + $0x9d0] sm:$0xff]
    %v1857 = vld [vmem:[#allocation7 + $0x9d8] sm:$0xff]
    %v1858 = vld [vmem:[#allocation7 + $0x9e0] sm:$0xff]
    %v1859 = vld [vmem:[#allocation7 + $0x9e8] sm:$0xff]
    %v1860 = vld [vmem:[#allocation7 + $0x9f0] sm:$0xff]
    %v1861 = vld [vmem:[#allocation7 + $0x9f8] sm:$0xff]
    %v1862 = vld [vmem:[#allocation7 + $0xa00] sm:$0xff]
    %v1863 = vld [vmem:[#allocation7 + $0xa08] sm:$0xff]
    %v1864 = vld [vmem:[#allocation7 + $0xa10] sm:$0xff]
    %v1865 = vld [vmem:[#allocation7 + $0xa18] sm:$0xff]
    %v1866 = vld [vmem:[#allocation7 + $0xa20] sm:$0xff]
    %v1867 = vld [vmem:[#allocation7 + $0xa28] sm:$0xff]
    %v1868 = vld [vmem:[#allocation7 + $0xa30] sm:$0xff]
    %v1869 = vld [vmem:[#allocation7 + $0xa38] sm:$0xff]
    %v1870 = vld [vmem:[#allocation7 + $0xa40] sm:$0xff]
    %v1871 = vld [vmem:[#allocation7 + $0xa48] sm:$0xff]
    %v1872 = vld [vmem:[#allocation7 + $0xa50] sm:$0xff]
    %v1873 = vld [vmem:[#allocation7 + $0xa58] sm:$0xff]
    %v1874 = vld [vmem:[#allocation7 + $0xa60] sm:$0xff]
    %v1875 = vld [vmem:[#allocation7 + $0xa68] sm:$0xff]
    %v1876 = vld [vmem:[#allocation7 + $0xa70] sm:$0xff]
    %v1877 = vld [vmem:[#allocation7 + $0xa78] sm:$0xff]
    %v1878 = vld [vmem:[#allocation7 + $0xa80] sm:$0xff]
    %v1879 = vld [vmem:[#allocation7 + $0xa88] sm:$0xff]
    %v1880 = vld [vmem:[#allocation7 + $0xa90] sm:$0xff]
    %v1881 = vld [vmem:[#allocation7 + $0xa98] sm:$0xff]
    %v1882 = vld [vmem:[#allocation7 + $0xaa0] sm:$0xff]
    %v1883 = vld [vmem:[#allocation7 + $0xaa8] sm:$0xff]
    %v1884 = vld [vmem:[#allocation7 + $0xab0] sm:$0xff]
    %v1885 = vld [vmem:[#allocation7 + $0xab8] sm:$0xff]
    %v1886 = vld [vmem:[#allocation7 + $0xac0] sm:$0xff]
    %v1887 = vld [vmem:[#allocation7 + $0xac8] sm:$0xff]
    %v1888 = vld [vmem:[#allocation7 + $0xad0] sm:$0xff]
    %v1889 = vld [vmem:[#allocation7 + $0xad8] sm:$0xff]
    %v1890 = vld [vmem:[#allocation7 + $0xae0] sm:$0xff]
    %v1891 = vld [vmem:[#allocation7 + $0xae8] sm:$0xff]
    %v1892 = vld [vmem:[#allocation7 + $0xaf0] sm:$0xff]
    %v1893 = vld [vmem:[#allocation7 + $0xaf8] sm:$0xff]
    %v1894 = vld [vmem:[#allocation7 + $0xb00] sm:$0xff]
    %v1895 = vld [vmem:[#allocation7 + $0xb08] sm:$0xff]
    %v1896 = vld [vmem:[#allocation7 + $0xb10] sm:$0xff]
    %v1897 = vld [vmem:[#allocation7 + $0xb18] sm:$0xff]
    %v1898 = vld [vmem:[#allocation7 + $0xb20] sm:$0xff]
    %v1899 = vld [vmem:[#allocation7 + $0xb28] sm:$0xff]
    %v1900 = vld [vmem:[#allocation7 + $0xb30] sm:$0xff]
    %v1901 = vld [vmem:[#allocation7 + $0xb38] sm:$0xff]
    %v1902 = vld [vmem:[#allocation7 + $0xb40] sm:$0xff]
    %v1903 = vld [vmem:[#allocation7 + $0xb48] sm:$0xff]
    %v1904 = vld [vmem:[#allocation7 + $0xb50] sm:$0xff]
    %v1905 = vld [vmem:[#allocation7 + $0xb58] sm:$0xff]
    %v1906 = vld [vmem:[#allocation7 + $0xb60] sm:$0xff]
    %v1907 = vld [vmem:[#allocation7 + $0xb68] sm:$0xff]
    %v1908 = vld [vmem:[#allocation7 + $0xb70] sm:$0xff]
    %v1909 = vld [vmem:[#allocation7 + $0xb78] sm:$0xff]
    %v1910 = vld [vmem:[#allocation7 + $0xb80] sm:$0xff]
    %v1911 = vld [vmem:[#allocation7 + $0xb88] sm:$0xff]
    %v1912 = vld [vmem:[#allocation7 + $0xb90] sm:$0xff]
    %v1913 = vld [vmem:[#allocation7 + $0xb98] sm:$0xff]
    %v1914 = vld [vmem:[#allocation7 + $0xba0] sm:$0xff]
    %v1915 = vld [vmem:[#allocation7 + $0xba8] sm:$0xff]
    %v1916 = vld [vmem:[#allocation7 + $0xbb0] sm:$0xff]
    %v1917 = vld [vmem:[#allocation7 + $0xbb8] sm:$0xff]
    %v1918 = vld [vmem:[#allocation7 + $0xbc0] sm:$0xff]
    %v1919 = vld [vmem:[#allocation7 + $0xbc8] sm:$0xff]
    %v1920 = vld [vmem:[#allocation7 + $0xbd0] sm:$0xff]
    %v1921 = vld [vmem:[#allocation7 + $0xbd8] sm:$0xff]
    %v1922 = vld [vmem:[#allocation7 + $0xbe0] sm:$0xff]
    %v1923 = vld [vmem:[#allocation7 + $0xbe8] sm:$0xff]
    %v1924 = vld [vmem:[#allocation7 + $0xbf0] sm:$0xff]
    %v1925 = vld [vmem:[#allocation7 + $0xbf8] sm:$0xff]
    %v1926 = vld [vmem:[#allocation7 + $0xc00] sm:$0xff]
    %v1927 = vld [vmem:[#allocation7 + $0xc08] sm:$0xff]
    %v1928 = vld [vmem:[#allocation7 + $0xc10] sm:$0xff]
    %v1929 = vld [vmem:[#allocation7 + $0xc18] sm:$0xff]
    %v1930 = vld [vmem:[#allocation7 + $0xc20] sm:$0xff]
    %v1931 = vld [vmem:[#allocation7 + $0xc28] sm:$0xff]
    %v1932 = vld [vmem:[#allocation7 + $0xc30] sm:$0xff]
    %v1933 = vld [vmem:[#allocation7 + $0xc38] sm:$0xff]
    %v1934 = vld [vmem:[#allocation7 + $0xc40] sm:$0xff]
    %v1935 = vld [vmem:[#allocation7 + $0xc48] sm:$0xff]
    %v1936 = vld [vmem:[#allocation7 + $0xc50] sm:$0xff]
    %v1937 = vld [vmem:[#allocation7 + $0xc58] sm:$0xff]
    %v1938 = vld [vmem:[#allocation7 + $0xc60] sm:$0xff]
    %v1939 = vld [vmem:[#allocation7 + $0xc68] sm:$0xff]
    %v1940 = vld [vmem:[#allocation7 + $0xc70] sm:$0xff]
    %v1941 = vld [vmem:[#allocation7 + $0xc78] sm:$0xff]
    %v1942 = vld [vmem:[#allocation7 + $0xc80] sm:$0xff]
    %v1943 = vld [vmem:[#allocation7 + $0xc88] sm:$0xff]
    %v1944 = vld [vmem:[#allocation7 + $0xc90] sm:$0xff]
    %v1945 = vld [vmem:[#allocation7 + $0xc98] sm:$0xff]
    %v1946 = vld [vmem:[#allocation7 + $0xca0] sm:$0xff]
    %v1947 = vld [vmem:[#allocation7 + $0xca8] sm:$0xff]
    %v1948 = vld [vmem:[#allocation7 + $0xcb0] sm:$0xff]
    %v1949 = vld [vmem:[#allocation7 + $0xcb8] sm:$0xff]
    %v1950 = vld [vmem:[#allocation7 + $0xcc0] sm:$0xff]
    %v1951 = vld [vmem:[#allocation7 + $0xcc8] sm:$0xff]
    %v1952 = vld [vmem:[#allocation7 + $0xcd0] sm:$0xff]
    %v1953 = vld [vmem:[#allocation7 + $0xcd8] sm:$0xff]
    %v1954 = vld [vmem:[#allocation7 + $0xce0] sm:$0xff]
    %v1955 = vld [vmem:[#allocation7 + $0xce8] sm:$0xff]
    %v1956 = vld [vmem:[#allocation7 + $0xcf0] sm:$0xff]
    %v1957 = vld [vmem:[#allocation7 + $0xcf8] sm:$0xff]
    %v1958 = vld [vmem:[#allocation7 + $0xd00] sm:$0xff]
    %v1959 = vld [vmem:[#allocation7 + $0xd08] sm:$0xff]
    %v1960 = vld [vmem:[#allocation7 + $0xd10] sm:$0xff]
    %v1961 = vld [vmem:[#allocation7 + $0xd18] sm:$0xff]
    %v1962 = vld [vmem:[#allocation7 + $0xd20] sm:$0xff]
    %v1963 = vld [vmem:[#allocation7 + $0xd28] sm:$0xff]
    %v1964 = vld [vmem:[#allocation7 + $0xd30] sm:$0xff]
    %v1965 = vld [vmem:[#allocation7 + $0xd38] sm:$0xff]
    %v1966 = vld [vmem:[#allocation7 + $0xd40] sm:$0xff]
    %v1967 = vld [vmem:[#allocation7 + $0xd48] sm:$0xff]
    %v1968 = vld [vmem:[#allocation7 + $0xd50] sm:$0xff]
    %v1969 = vld [vmem:[#allocation7 + $0xd58] sm:$0xff]
    %v1970 = vld [vmem:[#allocation7 + $0xd60] sm:$0xff]
    %v1971 = vld [vmem:[#allocation7 + $0xd68] sm:$0xff]
    %v1972 = vld [vmem:[#allocation7 + $0xd70] sm:$0xff]
    %v1973 = vld [vmem:[#allocation7 + $0xd78] sm:$0xff]
    %v1974 = vld [vmem:[#allocation7 + $0xd80] sm:$0xff]
    %v1975 = vld [vmem:[#allocation7 + $0xd88] sm:$0xff]
    %v1976 = vld [vmem:[#allocation7 + $0xd90] sm:$0xff]
    %v1977 = vld [vmem:[#allocation7 + $0xd98] sm:$0xff]
    %v1978 = vld [vmem:[#allocation7 + $0xda0] sm:$0xff]
    %v1979 = vld [vmem:[#allocation7 + $0xda8] sm:$0xff]
    %v1980 = vld [vmem:[#allocation7 + $0xdb0] sm:$0xff]
    %v1981 = vld [vmem:[#allocation7 + $0xdb8] sm:$0xff]
    %v1982 = vld [vmem:[#allocation7 + $0xdc0] sm:$0xff]
    %v1983 = vld [vmem:[#allocation7 + $0xdc8] sm:$0xff]
    %v1984 = vld [vmem:[#allocation7 + $0xdd0] sm:$0xff]
    %v1985 = vld [vmem:[#allocation7 + $0xdd8] sm:$0xff]
    %v1986 = vld [vmem:[#allocation7 + $0xde0] sm:$0xff]
    %v1987 = vld [vmem:[#allocation7 + $0xde8] sm:$0xff]
    %v1988 = vld [vmem:[#allocation7 + $0xdf0] sm:$0xff]
    %v1989 = vld [vmem:[#allocation7 + $0xdf8] sm:$0xff]
    %v1990 = vld [vmem:[#allocation7 + $0xe00] sm:$0xff]
    %v1991 = vld [vmem:[#allocation7 + $0xe08] sm:$0xff]
    %v1992 = vld [vmem:[#allocation7 + $0xe10] sm:$0xff]
    %v1993 = vld [vmem:[#allocation7 + $0xe18] sm:$0xff]
    %v1994 = vld [vmem:[#allocation7 + $0xe20] sm:$0xff]
    %v1995 = vld [vmem:[#allocation7 + $0xe28] sm:$0xff]
    %v1996 = vld [vmem:[#allocation7 + $0xe30] sm:$0xff]
    %v1997 = vld [vmem:[#allocation7 + $0xe38] sm:$0xff]
    %v1998 = vld [vmem:[#allocation7 + $0xe40] sm:$0xff]
    %v1999 = vld [vmem:[#allocation7 + $0xe48] sm:$0xff]
    %v2000 = vld [vmem:[#allocation7 + $0xe50] sm:$0xff]
    %v2001 = vld [vmem:[#allocation7 + $0xe58] sm:$0xff]
    %v2002 = vld [vmem:[#allocation7 + $0xe60] sm:$0xff]
    %v2003 = vld [vmem:[#allocation7 + $0xe68] sm:$0xff]
    %v2004 = vld [vmem:[#allocation7 + $0xe70] sm:$0xff]
    %v2005 = vld [vmem:[#allocation7 + $0xe78] sm:$0xff]
    %v2006 = vld [vmem:[#allocation7 + $0xe80] sm:$0xff]
    %v2007 = vld [vmem:[#allocation7 + $0xe88] sm:$0xff]
    %v2008 = vld [vmem:[#allocation7 + $0xe90] sm:$0xff]
    %v2009 = vld [vmem:[#allocation7 + $0xe98] sm:$0xff]
    %v2010 = vld [vmem:[#allocation7 + $0xea0] sm:$0xff]
    %v2011 = vld [vmem:[#allocation7 + $0xea8] sm:$0xff]
    %v2012 = vld [vmem:[#allocation7 + $0xeb0] sm:$0xff]
    %v2013 = vld [vmem:[#allocation7 + $0xeb8] sm:$0xff]
    %v2014 = vld [vmem:[#allocation7 + $0xec0] sm:$0xff]
    %v2015 = vld [vmem:[#allocation7 + $0xec8] sm:$0xff]
    %v2016 = vld [vmem:[#allocation7 + $0xed0] sm:$0xff]
    %v2017 = vld [vmem:[#allocation7 + $0xed8] sm:$0xff]
    %v2018 = vld [vmem:[#allocation7 + $0xee0] sm:$0xff]
    %v2019 = vld [vmem:[#allocation7 + $0xee8] sm:$0xff]
    %v2020 = vld [vmem:[#allocation7 + $0xef0] sm:$0xff]
    %v2021 = vld [vmem:[#allocation7 + $0xef8] sm:$0xff]
    %v2022 = vld [vmem:[#allocation7 + $0xf00] sm:$0xff]
    %v2023 = vld [vmem:[#allocation7 + $0xf08] sm:$0xff]
    %v2024 = vld [vmem:[#allocation7 + $0xf10] sm:$0xff]
    %v2025 = vld [vmem:[#allocation7 + $0xf18] sm:$0xff]
    %v2026 = vld [vmem:[#allocation7 + $0xf20] sm:$0xff]
    %v2027 = vld [vmem:[#allocation7 + $0xf28] sm:$0xff]
    %v2028 = vld [vmem:[#allocation7 + $0xf30] sm:$0xff]
    %v2029 = vld [vmem:[#allocation7 + $0xf38] sm:$0xff]
    %v2030 = vld [vmem:[#allocation7 + $0xf40] sm:$0xff]
    %v2031 = vld [vmem:[#allocation7 + $0xf48] sm:$0xff]
    %v2032 = vld [vmem:[#allocation7 + $0xf50] sm:$0xff]
    %v2033 = vld [vmem:[#allocation7 + $0xf58] sm:$0xff]
    %v2034 = vld [vmem:[#allocation7 + $0xf60] sm:$0xff]
    %v2035 = vld [vmem:[#allocation7 + $0xf68] sm:$0xff]
    %v2036 = vld [vmem:[#allocation7 + $0xf70] sm:$0xff]
    %v2037 = vld [vmem:[#allocation7 + $0xf78] sm:$0xff]
    %v2038 = vld [vmem:[#allocation7 + $0xf80] sm:$0xff]
    %v2039 = vld [vmem:[#allocation7 + $0xf88] sm:$0xff]
    %v2040 = vld [vmem:[#allocation7 + $0xf90] sm:$0xff]
    %v2041 = vld [vmem:[#allocation7 + $0xf98] sm:$0xff]
    %v2042 = vld [vmem:[#allocation7 + $0xfa0] sm:$0xff]
    %v2043 = vld [vmem:[#allocation7 + $0xfa8] sm:$0xff]
    %v2044 = vld [vmem:[#allocation7 + $0xfb0] sm:$0xff]
    %v2045 = vld [vmem:[#allocation7 + $0xfb8] sm:$0xff]
    %v2046 = vld [vmem:[#allocation7 + $0xfc0] sm:$0xff]
    %v2047 = vld [vmem:[#allocation7 + $0xfc8] sm:$0xff]
    %v2048 = vld [vmem:[#allocation7 + $0xfd0] sm:$0xff]
    %v2049 = vld [vmem:[#allocation7 + $0xfd8] sm:$0xff]
    %v2050 = vld [vmem:[#allocation7 + $0xfe0] sm:$0xff]
    %v2051 = vld [vmem:[#allocation7 + $0xfe8] sm:$0xff]
    %v2052 = vld [vmem:[#allocation7 + $0xff0] sm:$0xff]
    %v2053 = vld [vmem:[#allocation7 + $0xff8] sm:$0xff]
    %v2054 = vld [vmem:[#allocation9] sm:$0x3]
    %v2055 = vld [vmem:[#allocation9 + $0x2] sm:$0x3]
    %v2056 = vld [vmem:[#allocation9 + $0x4] sm:$0x3]
    %v2057 = vld [vmem:[#allocation9 + $0x6] sm:$0x3]
    %v2058 = vld [vmem:[#allocation9 + $0x8] sm:$0x3]
    %v2059 = vld [vmem:[#allocation9 + $0xa] sm:$0x3]
    %v2060 = vld [vmem:[#allocation9 + $0xc] sm:$0x3]
    %v2061 = vld [vmem:[#allocation9 + $0xe] sm:$0x3]
    %v2062 = vld [vmem:[#allocation9 + $0x10] sm:$0x3]
    %v2063 = vld [vmem:[#allocation9 + $0x12] sm:$0x3]
    %v2064 = vld [vmem:[#allocation9 + $0x14] sm:$0x3]
    %v2065 = vld [vmem:[#allocation9 + $0x16] sm:$0x3]
    %v2066 = vld [vmem:[#allocation9 + $0x18] sm:$0x3]
    %v2067 = vld [vmem:[#allocation9 + $0x1a] sm:$0x3]
    %v2068 = vld [vmem:[#allocation9 + $0x1c] sm:$0x3]
    %v2069 = vld [vmem:[#allocation9 + $0x1e] sm:$0x3]
    %v2086 = vlaneseq
    %v2087 = vshrl.u32 %v2086, 7
    %v2088 = vsub.s32 0, %v2087
    %v2089 = vrot.slane %v2054, %v2088
    %v2090 = vlaneseq
    %v2091 = vshrl.u32 %v2090, 7
    %v2092 = vsub.s32 1, %v2091
    %v2093 = vrot.slane %v2054, %v2092
    %v2094 = vlaneseq
    %v2095 = vshrl.u32 %v2094, 7
    %v2096 = vsub.s32 0, %v2095
    %v2097 = vrot.slane %v2055, %v2096
    %v2098 = vlaneseq
    %v2099 = vshrl.u32 %v2098, 7
    %v2100 = vsub.s32 1, %v2099
    %v2101 = vrot.slane %v2055, %v2100
    %v2102 = vlaneseq
    %v2103 = vshrl.u32 %v2102, 7
    %v2104 = vsub.s32 0, %v2103
    %v2105 = vrot.slane %v2056, %v2104
    %v2106 = vlaneseq
    %v2107 = vshrl.u32 %v2106, 7
    %v2108 = vsub.s32 1, %v2107
    %v2109 = vrot.slane %v2056, %v2108
    %v2110 = vlaneseq
    %v2111 = vshrl.u32 %v2110, 7
    %v2112 = vsub.s32 0, %v2111
    %v2113 = vrot.slane %v2057, %v2112
    %v2114 = vlaneseq
    %v2115 = vshrl.u32 %v2114, 7
    %v2116 = vsub.s32 1, %v2115
    %v2117 = vrot.slane %v2057, %v2116
    %v2118 = vlaneseq
    %v2119 = vshrl.u32 %v2118, 7
    %v2120 = vsub.s32 0, %v2119
    %v2121 = vrot.slane %v2058, %v2120
    %v2122 = vlaneseq
    %v2123 = vshrl.u32 %v2122, 7
    %v2124 = vsub.s32 1, %v2123
    %v2125 = vrot.slane %v2058, %v2124
    %v2126 = vlaneseq
    %v2127 = vshrl.u32 %v2126, 7
    %v2128 = vsub.s32 0, %v2127
    %v2129 = vrot.slane %v2059, %v2128
    %v2130 = vlaneseq
    %v2131 = vshrl.u32 %v2130, 7
    %v2132 = vsub.s32 1, %v2131
    %v2133 = vrot.slane %v2059, %v2132
    %v2134 = vlaneseq
    %v2135 = vshrl.u32 %v2134, 7
    %v2136 = vsub.s32 0, %v2135
    %v2137 = vrot.slane %v2060, %v2136
    %v2138 = vlaneseq
    %v2139 = vshrl.u32 %v2138, 7
    %v2140 = vsub.s32 1, %v2139
    %v2141 = vrot.slane %v2060, %v2140
    %v2142 = vlaneseq
    %v2143 = vshrl.u32 %v2142, 7
    %v2144 = vsub.s32 0, %v2143
    %v2145 = vrot.slane %v2061, %v2144
    %v2146 = vlaneseq
    %v2147 = vshrl.u32 %v2146, 7
    %v2148 = vsub.s32 1, %v2147
    %v2149 = vrot.slane %v2061, %v2148
    %v2150 = vlaneseq
    %v2151 = vshrl.u32 %v2150, 7
    %v2152 = vsub.s32 0, %v2151
    %v2153 = vrot.slane %v2062, %v2152
    %v2154 = vlaneseq
    %v2155 = vshrl.u32 %v2154, 7
    %v2156 = vsub.s32 1, %v2155
    %v2157 = vrot.slane %v2062, %v2156
    %v2158 = vlaneseq
    %v2159 = vshrl.u32 %v2158, 7
    %v2160 = vsub.s32 0, %v2159
    %v2161 = vrot.slane %v2063, %v2160
    %v2162 = vlaneseq
    %v2163 = vshrl.u32 %v2162, 7
    %v2164 = vsub.s32 1, %v2163
    %v2165 = vrot.slane %v2063, %v2164
    %v2166 = vlaneseq
    %v2167 = vshrl.u32 %v2166, 7
    %v2168 = vsub.s32 0, %v2167
    %v2169 = vrot.slane %v2064, %v2168
    %v2170 = vlaneseq
    %v2171 = vshrl.u32 %v2170, 7
    %v2172 = vsub.s32 1, %v2171
    %v2173 = vrot.slane %v2064, %v2172
    %v2174 = vlaneseq
    %v2175 = vshrl.u32 %v2174, 7
    %v2176 = vsub.s32 0, %v2175
    %v2177 = vrot.slane %v2065, %v2176
    %v2178 = vlaneseq
    %v2179 = vshrl.u32 %v2178, 7
    %v2180 = vsub.s32 1, %v2179
    %v2181 = vrot.slane %v2065, %v2180
    %v2182 = vlaneseq
    %v2183 = vshrl.u32 %v2182, 7
    %v2184 = vsub.s32 0, %v2183
    %v2185 = vrot.slane %v2066, %v2184
    %v2186 = vlaneseq
    %v2187 = vshrl.u32 %v2186, 7
    %v2188 = vsub.s32 1, %v2187
    %v2189 = vrot.slane %v2066, %v2188
    %v2190 = vlaneseq
    %v2191 = vshrl.u32 %v2190, 7
    %v2192 = vsub.s32 0, %v2191
    %v2193 = vrot.slane %v2067, %v2192
    %v2194 = vlaneseq
    %v2195 = vshrl.u32 %v2194, 7
    %v2196 = vsub.s32 1, %v2195
    %v2197 = vrot.slane %v2067, %v2196
    %v2198 = vlaneseq
    %v2199 = vshrl.u32 %v2198, 7
    %v2200 = vsub.s32 0, %v2199
    %v2201 = vrot.slane %v2068, %v2200
    %v2202 = vlaneseq
    %v2203 = vshrl.u32 %v2202, 7
    %v2204 = vsub.s32 1, %v2203
    %v2205 = vrot.slane %v2068, %v2204
    %v2206 = vlaneseq
    %v2207 = vshrl.u32 %v2206, 7
    %v2208 = vsub.s32 0, %v2207
    %v2209 = vrot.slane %v2069, %v2208
    %v2210 = vlaneseq
    %v2211 = vshrl.u32 %v2210, 7
    %v2212 = vsub.s32 1, %v2211
    %v2213 = vrot.slane %v2069, %v2212
    %v2278 = vunpack.c.l.b16 %v1542
    %v2279 = vunpack.c.h.b16 %v1542
    %v2280 = vunpack.c.l.b16 %v1543
    %v2281 = vunpack.c.h.b16 %v1543
    %v2282 = vunpack.c.l.b16 %v1544
    %v2283 = vunpack.c.h.b16 %v1544
    %v2284 = vunpack.c.l.b16 %v1545
    %v2285 = vunpack.c.h.b16 %v1545
    %v2286 = vunpack.c.l.b16 %v1546
    %v2287 = vunpack.c.h.b16 %v1546
    %v2288 = vunpack.c.l.b16 %v1547
    %v2289 = vunpack.c.h.b16 %v1547
    %v2290 = vunpack.c.l.b16 %v1548
    %v2291 = vunpack.c.h.b16 %v1548
    %v2292 = vunpack.c.l.b16 %v1549
    %v2293 = vunpack.c.h.b16 %v1549
    %v2294 = vunpack.c.l.b16 %v1550
    %v2295 = vunpack.c.h.b16 %v1550
    %v2296 = vunpack.c.l.b16 %v1551
    %v2297 = vunpack.c.h.b16 %v1551
    %v2298 = vunpack.c.l.b16 %v1552
    %v2299 = vunpack.c.h.b16 %v1552
    %v2300 = vunpack.c.l.b16 %v1553
    %v2301 = vunpack.c.h.b16 %v1553
    %v2302 = vunpack.c.l.b16 %v1554
    %v2303 = vunpack.c.h.b16 %v1554
    %v2304 = vunpack.c.l.b16 %v1555
    %v2305 = vunpack.c.h.b16 %v1555
    %v2306 = vunpack.c.l.b16 %v1556
    %v2307 = vunpack.c.h.b16 %v1556
    %v2308 = vunpack.c.l.b16 %v1557
    %v2309 = vunpack.c.h.b16 %v1557
    %v2310 = vunpack.c.l.b16 %v1558
    %v2311 = vunpack.c.h.b16 %v1558
    %v2312 = vunpack.c.l.b16 %v1559
    %v2313 = vunpack.c.h.b16 %v1559
    %v2314 = vunpack.c.l.b16 %v1560
    %v2315 = vunpack.c.h.b16 %v1560
    %v2316 = vunpack.c.l.b16 %v1561
    %v2317 = vunpack.c.h.b16 %v1561
    %v2318 = vunpack.c.l.b16 %v1562
    %v2319 = vunpack.c.h.b16 %v1562
    %v2320 = vunpack.c.l.b16 %v1563
    %v2321 = vunpack.c.h.b16 %v1563
    %v2322 = vunpack.c.l.b16 %v1564
    %v2323 = vunpack.c.h.b16 %v1564
    %v2324 = vunpack.c.l.b16 %v1565
    %v2325 = vunpack.c.h.b16 %v1565
    %v2326 = vunpack.c.l.b16 %v1566
    %v2327 = vunpack.c.h.b16 %v1566
    %v2328 = vunpack.c.l.b16 %v1567
    %v2329 = vunpack.c.h.b16 %v1567
    %v2330 = vunpack.c.l.b16 %v1568
    %v2331 = vunpack.c.h.b16 %v1568
    %v2332 = vunpack.c.l.b16 %v1569
    %v2333 = vunpack.c.h.b16 %v1569
    %v2334 = vunpack.c.l.b16 %v1570
    %v2335 = vunpack.c.h.b16 %v1570
    %v2336 = vunpack.c.l.b16 %v1571
    %v2337 = vunpack.c.h.b16 %v1571
    %v2338 = vunpack.c.l.b16 %v1572
    %v2339 = vunpack.c.h.b16 %v1572
    %v2340 = vunpack.c.l.b16 %v1573
    %v2341 = vunpack.c.h.b16 %v1573
    %v2342 = vpack.c.b16 %v2280, %v2278
    %v2343 = vpack.c.b16 %v2281, %v2279
    %v2344 = vpack.c.b16 %v2284, %v2282
    %v2345 = vpack.c.b16 %v2285, %v2283
    %v2346 = vpack.c.b16 %v2288, %v2286
    %v2347 = vpack.c.b16 %v2289, %v2287
    %v2348 = vpack.c.b16 %v2292, %v2290
    %v2349 = vpack.c.b16 %v2293, %v2291
    %v2350 = vpack.c.b16 %v2296, %v2294
    %v2351 = vpack.c.b16 %v2297, %v2295
    %v2352 = vpack.c.b16 %v2300, %v2298
    %v2353 = vpack.c.b16 %v2301, %v2299
    %v2354 = vpack.c.b16 %v2304, %v2302
    %v2355 = vpack.c.b16 %v2305, %v2303
    %v2356 = vpack.c.b16 %v2308, %v2306
    %v2357 = vpack.c.b16 %v2309, %v2307
    %v2358 = vpack.c.b16 %v2312, %v2310
    %v2359 = vpack.c.b16 %v2313, %v2311
    %v2360 = vpack.c.b16 %v2316, %v2314
    %v2361 = vpack.c.b16 %v2317, %v2315
    %v2362 = vpack.c.b16 %v2320, %v2318
    %v2363 = vpack.c.b16 %v2321, %v2319
    %v2364 = vpack.c.b16 %v2324, %v2322
    %v2365 = vpack.c.b16 %v2325, %v2323
    %v2366 = vpack.c.b16 %v2328, %v2326
    %v2367 = vpack.c.b16 %v2329, %v2327
    %v2368 = vpack.c.b16 %v2332, %v2330
    %v2369 = vpack.c.b16 %v2333, %v2331
    %v2370 = vpack.c.b16 %v2336, %v2334
    %v2371 = vpack.c.b16 %v2337, %v2335
    %v2372 = vpack.c.b16 %v2340, %v2338
    %v2373 = vpack.c.b16 %v2341, %v2339
    %2406 = vmatprep.subr.bf16.mxu0 %v2357
    %2407 = vmatpush1.bf16.msra.mxu0 %v2356
    %2408 = vmatprep.subr.bf16.mxu0 %v2355
    %2409 = vmatpush1.bf16.msra.mxu0 %v2354
    %2410 = vmatprep.subr.bf16.mxu0 %v2353
    %2411 = vmatpush1.bf16.msra.mxu0 %v2352
    %2412 = vmatprep.subr.bf16.mxu0 %v2351
    %2413 = vmatpush1.bf16.msra.mxu0 %v2350
    %2414 = vmatprep.subr.bf16.mxu0 %v2349
    %2415 = vmatpush1.bf16.msra.mxu0 %v2348
    %2416 = vmatprep.subr.bf16.mxu0 %v2347
    %2417 = vmatpush1.bf16.msra.mxu0 %v2346
    %2418 = vmatprep.subr.bf16.mxu0 %v2345
    %2419 = vmatpush1.bf16.msra.mxu0 %v2344
    %2420 = vmatprep.subr.bf16.mxu0 %v2343
    %2421 = vmatpush1.bf16.msra.mxu0 %v2342
    %2422 = vmatprep.subr.bf16.mxu0 %v2373
    %2423 = vmatpush2.bf16.msra.mxu0 %v2372
    %2424 = vmatprep.subr.bf16.mxu0 %v2371
    %2425 = vmatpush2.bf16.msra.mxu0 %v2370
    %2426 = vmatprep.subr.bf16.mxu0 %v2369
    %2427 = vmatpush2.bf16.msra.mxu0 %v2368
    %2428 = vmatprep.subr.bf16.mxu0 %v2367
    %2429 = vmatpush2.bf16.msra.mxu0 %v2366
    %2430 = vmatprep.subr.bf16.mxu0 %v2365
    %2431 = vmatpush2.bf16.msra.mxu0 %v2364
    %2432 = vmatprep.subr.bf16.mxu0 %v2363
    %2433 = vmatpush2.bf16.msra.mxu0 %v2362
    %2434 = vmatprep.subr.bf16.mxu0 %v2361
    %2435 = vmatpush2.bf16.msra.mxu0 %v2360
    %2436 = vmatprep.subr.bf16.mxu0 %v2359
    %2437 = vmatpush2.bf16.msra.mxu0 %v2358
    %2438 = vmatprep.mubr.bf16.mxu0 %v1511
    %2439 = vmatmul.mubr.bf16.gmra.mxu0 %v1510
    %v2440 = vpop.f32.mrf.mxu0
    %v2441 = vadd.f32 %v2089, %v2440
    %v2442 = vpop.f32.mrf.mxu0
    %v2443 = vadd.f32 %v2093, %v2442
    %v2444 = vpop.f32.mrf.mxu0
    %v2445 = vpop.f32.mrf.mxu0
    %2446 = vdwg.mxu0
    %v2479 = vunpack.c.l.b16 %v1574
    %v2480 = vunpack.c.h.b16 %v1574
    %v2481 = vunpack.c.l.b16 %v1575
    %v2482 = vunpack.c.h.b16 %v1575
    %v2483 = vunpack.c.l.b16 %v1576
    %v2484 = vunpack.c.h.b16 %v1576
    %v2485 = vunpack.c.l.b16 %v1577
    %v2486 = vunpack.c.h.b16 %v1577
    %v2487 = vunpack.c.l.b16 %v1578
    %v2488 = vunpack.c.h.b16 %v1578
    %v2489 = vunpack.c.l.b16 %v1579
    %v2490 = vunpack.c.h.b16 %v1579
    %v2491 = vunpack.c.l.b16 %v1580
    %v2492 = vunpack.c.h.b16 %v1580
    %v2493 = vunpack.c.l.b16 %v1581
    %v2494 = vunpack.c.h.b16 %v1581
    %v2495 = vunpack.c.l.b16 %v1582
    %v2496 = vunpack.c.h.b16 %v1582
    %v2497 = vunpack.c.l.b16 %v1583
    %v2498 = vunpack.c.h.b16 %v1583
    %v2499 = vunpack.c.l.b16 %v1584
    %v2500 = vunpack.c.h.b16 %v1584
    %v2501 = vunpack.c.l.b16 %v1585
    %v2502 = vunpack.c.h.b16 %v1585
    %v2503 = vunpack.c.l.b16 %v1586
    %v2504 = vunpack.c.h.b16 %v1586
    %v2505 = vunpack.c.l.b16 %v1587
    %v2506 = vunpack.c.h.b16 %v1587
    %v2507 = vunpack.c.l.b16 %v1588
    %v2508 = vunpack.c.h.b16 %v1588
    %v2509 = vunpack.c.l.b16 %v1589
    %v2510 = vunpack.c.h.b16 %v1589
    %v2511 = vunpack.c.l.b16 %v1590
    %v2512 = vunpack.c.h.b16 %v1590
    %v2513 = vunpack.c.l.b16 %v1591
    %v2514 = vunpack.c.h.b16 %v1591
    %v2515 = vunpack.c.l.b16 %v1592
    %v2516 = vunpack.c.h.b16 %v1592
    %v2517 = vunpack.c.l.b16 %v1593
    %v2518 = vunpack.c.h.b16 %v1593
    %v2519 = vunpack.c.l.b16 %v1594
    %v2520 = vunpack.c.h.b16 %v1594
    %v2521 = vunpack.c.l.b16 %v1595
    %v2522 = vunpack.c.h.b16 %v1595
    %v2523 = vunpack.c.l.b16 %v1596
    %v2524 = vunpack.c.h.b16 %v1596
    %v2525 = vunpack.c.l.b16 %v1597
    %v2526 = vunpack.c.h.b16 %v1597
    %v2527 = vunpack.c.l.b16 %v1598
    %v2528 = vunpack.c.h.b16 %v1598
    %v2529 = vunpack.c.l.b16 %v1599
    %v2530 = vunpack.c.h.b16 %v1599
    %v2531 = vunpack.c.l.b16 %v1600
    %v2532 = vunpack.c.h.b16 %v1600
    %v2533 = vunpack.c.l.b16 %v1601
    %v2534 = vunpack.c.h.b16 %v1601
    %v2535 = vunpack.c.l.b16 %v1602
    %v2536 = vunpack.c.h.b16 %v1602
    %v2537 = vunpack.c.l.b16 %v1603
    %v2538 = vunpack.c.h.b16 %v1603
    %v2539 = vunpack.c.l.b16 %v1604
    %v2540 = vunpack.c.h.b16 %v1604
    %v2541 = vunpack.c.l.b16 %v1605
    %v2542 = vunpack.c.h.b16 %v1605
    %v2543 = vpack.c.b16 %v2481, %v2479
    %v2544 = vpack.c.b16 %v2482, %v2480
    %v2545 = vpack.c.b16 %v2485, %v2483
    %v2546 = vpack.c.b16 %v2486, %v2484
    %v2547 = vpack.c.b16 %v2489, %v2487
    %v2548 = vpack.c.b16 %v2490, %v2488
    %v2549 = vpack.c.b16 %v2493, %v2491
    %v2550 = vpack.c.b16 %v2494, %v2492
    %v2551 = vpack.c.b16 %v2497, %v2495
    %v2552 = vpack.c.b16 %v2498, %v2496
    %v2553 = vpack.c.b16 %v2501, %v2499
    %v2554 = vpack.c.b16 %v2502, %v2500
    %v2555 = vpack.c.b16 %v2505, %v2503
    %v2556 = vpack.c.b16 %v2506, %v2504
    %v2557 = vpack.c.b16 %v2509, %v2507
    %v2558 = vpack.c.b16 %v2510, %v2508
    %v2559 = vpack.c.b16 %v2513, %v2511
    %v2560 = vpack.c.b16 %v2514, %v2512
    %v2561 = vpack.c.b16 %v2517, %v2515
    %v2562 = vpack.c.b16 %v2518, %v2516
    %v2563 = vpack.c.b16 %v2521, %v2519
    %v2564 = vpack.c.b16 %v2522, %v2520
    %v2565 = vpack.c.b16 %v2525, %v2523
    %v2566 = vpack.c.b16 %v2526, %v2524
    %v2567 = vpack.c.b16 %v2529, %v2527
    %v2568 = vpack.c.b16 %v2530, %v2528
    %v2569 = vpack.c.b16 %v2533, %v2531
    %v2570 = vpack.c.b16 %v2534, %v2532
    %v2571 = vpack.c.b16 %v2537, %v2535
    %v2572 = vpack.c.b16 %v2538, %v2536
    %v2573 = vpack.c.b16 %v2541, %v2539
    %v2574 = vpack.c.b16 %v2542, %v2540
    %2607 = vmatprep.subr.bf16.mxu0 %v2558
    %2608 = vmatpush1.bf16.msra.mxu0 %v2557
    %2609 = vmatprep.subr.bf16.mxu0 %v2556
    %2610 = vmatpush1.bf16.msra.mxu0 %v2555
    %2611 = vmatprep.subr.bf16.mxu0 %v2554
    %2612 = vmatpush1.bf16.msra.mxu0 %v2553
    %2613 = vmatprep.subr.bf16.mxu0 %v2552
    %2614 = vmatpush1.bf16.msra.mxu0 %v2551
    %2615 = vmatprep.subr.bf16.mxu0 %v2550
    %2616 = vmatpush1.bf16.msra.mxu0 %v2549
    %2617 = vmatprep.subr.bf16.mxu0 %v2548
    %2618 = vmatpush1.bf16.msra.mxu0 %v2547
    %2619 = vmatprep.subr.bf16.mxu0 %v2546
    %2620 = vmatpush1.bf16.msra.mxu0 %v2545
    %2621 = vmatprep.subr.bf16.mxu0 %v2544
    %2622 = vmatpush1.bf16.msra.mxu0 %v2543
    %2623 = vmatprep.subr.bf16.mxu0 %v2574
    %2624 = vmatpush2.bf16.msra.mxu0 %v2573
    %2625 = vmatprep.subr.bf16.mxu0 %v2572
    %2626 = vmatpush2.bf16.msra.mxu0 %v2571
    %2627 = vmatprep.subr.bf16.mxu0 %v2570
    %2628 = vmatpush2.bf16.msra.mxu0 %v2569
    %2629 = vmatprep.subr.bf16.mxu0 %v2568
    %2630 = vmatpush2.bf16.msra.mxu0 %v2567
    %2631 = vmatprep.subr.bf16.mxu0 %v2566
    %2632 = vmatpush2.bf16.msra.mxu0 %v2565
    %2633 = vmatprep.subr.bf16.mxu0 %v2564
    %2634 = vmatpush2.bf16.msra.mxu0 %v2563
    %2635 = vmatprep.subr.bf16.mxu0 %v2562
    %2636 = vmatpush2.bf16.msra.mxu0 %v2561
    %2637 = vmatprep.subr.bf16.mxu0 %v2560
    %2638 = vmatpush2.bf16.msra.mxu0 %v2559
    %2639 = vmatprep.mubr.bf16.mxu0 %v1513
    %2640 = vmatmul.mubr.bf16.gmra.mxu0 %v1512
    %v2641 = vpop.f32.mrf.mxu0
    %v2642 = vadd.f32 %v2097, %v2641
    %v2643 = vpop.f32.mrf.mxu0
    %v2644 = vadd.f32 %v2101, %v2643
    %v2645 = vpop.f32.mrf.mxu0
    %v2646 = vpop.f32.mrf.mxu0
    %2647 = vdwg.mxu0
    %v2680 = vunpack.c.l.b16 %v1606
    %v2681 = vunpack.c.h.b16 %v1606
    %v2682 = vunpack.c.l.b16 %v1607
    %v2683 = vunpack.c.h.b16 %v1607
    %v2684 = vunpack.c.l.b16 %v1608
    %v2685 = vunpack.c.h.b16 %v1608
    %v2686 = vunpack.c.l.b16 %v1609
    %v2687 = vunpack.c.h.b16 %v1609
    %v2688 = vunpack.c.l.b16 %v1610
    %v2689 = vunpack.c.h.b16 %v1610
    %v2690 = vunpack.c.l.b16 %v1611
    %v2691 = vunpack.c.h.b16 %v1611
    %v2692 = vunpack.c.l.b16 %v1612
    %v2693 = vunpack.c.h.b16 %v1612
    %v2694 = vunpack.c.l.b16 %v1613
    %v2695 = vunpack.c.h.b16 %v1613
    %v2696 = vunpack.c.l.b16 %v1614
    %v2697 = vunpack.c.h.b16 %v1614
    %v2698 = vunpack.c.l.b16 %v1615
    %v2699 = vunpack.c.h.b16 %v1615
    %v2700 = vunpack.c.l.b16 %v1616
    %v2701 = vunpack.c.h.b16 %v1616
    %v2702 = vunpack.c.l.b16 %v1617
    %v2703 = vunpack.c.h.b16 %v1617
    %v2704 = vunpack.c.l.b16 %v1618
    %v2705 = vunpack.c.h.b16 %v1618
    %v2706 = vunpack.c.l.b16 %v1619
    %v2707 = vunpack.c.h.b16 %v1619
    %v2708 = vunpack.c.l.b16 %v1620
    %v2709 = vunpack.c.h.b16 %v1620
    %v2710 = vunpack.c.l.b16 %v1621
    %v2711 = vunpack.c.h.b16 %v1621
    %v2712 = vunpack.c.l.b16 %v1622
    %v2713 = vunpack.c.h.b16 %v1622
    %v2714 = vunpack.c.l.b16 %v1623
    %v2715 = vunpack.c.h.b16 %v1623
    %v2716 = vunpack.c.l.b16 %v1624
    %v2717 = vunpack.c.h.b16 %v1624
    %v2718 = vunpack.c.l.b16 %v1625
    %v2719 = vunpack.c.h.b16 %v1625
    %v2720 = vunpack.c.l.b16 %v1626
    %v2721 = vunpack.c.h.b16 %v1626
    %v2722 = vunpack.c.l.b16 %v1627
    %v2723 = vunpack.c.h.b16 %v1627
    %v2724 = vunpack.c.l.b16 %v1628
    %v2725 = vunpack.c.h.b16 %v1628
    %v2726 = vunpack.c.l.b16 %v1629
    %v2727 = vunpack.c.h.b16 %v1629
    %v2728 = vunpack.c.l.b16 %v1630
    %v2729 = vunpack.c.h.b16 %v1630
    %v2730 = vunpack.c.l.b16 %v1631
    %v2731 = vunpack.c.h.b16 %v1631
    %v2732 = vunpack.c.l.b16 %v1632
    %v2733 = vunpack.c.h.b16 %v1632
    %v2734 = vunpack.c.l.b16 %v1633
    %v2735 = vunpack.c.h.b16 %v1633
    %v2736 = vunpack.c.l.b16 %v1634
    %v2737 = vunpack.c.h.b16 %v1634
    %v2738 = vunpack.c.l.b16 %v1635
    %v2739 = vunpack.c.h.b16 %v1635
    %v2740 = vunpack.c.l.b16 %v1636
    %v2741 = vunpack.c.h.b16 %v1636
    %v2742 = vunpack.c.l.b16 %v1637
    %v2743 = vunpack.c.h.b16 %v1637
    %v2744 = vpack.c.b16 %v2682, %v2680
    %v2745 = vpack.c.b16 %v2683, %v2681
    %v2746 = vpack.c.b16 %v2686, %v2684
    %v2747 = vpack.c.b16 %v2687, %v2685
    %v2748 = vpack.c.b16 %v2690, %v2688
    %v2749 = vpack.c.b16 %v2691, %v2689
    %v2750 = vpack.c.b16 %v2694, %v2692
    %v2751 = vpack.c.b16 %v2695, %v2693
    %v2752 = vpack.c.b16 %v2698, %v2696
    %v2753 = vpack.c.b16 %v2699, %v2697
    %v2754 = vpack.c.b16 %v2702, %v2700
    %v2755 = vpack.c.b16 %v2703, %v2701
    %v2756 = vpack.c.b16 %v2706, %v2704
    %v2757 = vpack.c.b16 %v2707, %v2705
    %v2758 = vpack.c.b16 %v2710, %v2708
    %v2759 = vpack.c.b16 %v2711, %v2709
    %v2760 = vpack.c.b16 %v2714, %v2712
    %v2761 = vpack.c.b16 %v2715, %v2713
    %v2762 = vpack.c.b16 %v2718, %v2716
    %v2763 = vpack.c.b16 %v2719, %v2717
    %v2764 = vpack.c.b16 %v2722, %v2720
    %v2765 = vpack.c.b16 %v2723, %v2721
    %v2766 = vpack.c.b16 %v2726, %v2724
    %v2767 = vpack.c.b16 %v2727, %v2725
    %v2768 = vpack.c.b16 %v2730, %v2728
    %v2769 = vpack.c.b16 %v2731, %v2729
    %v2770 = vpack.c.b16 %v2734, %v2732
    %v2771 = vpack.c.b16 %v2735, %v2733
    %v2772 = vpack.c.b16 %v2738, %v2736
    %v2773 = vpack.c.b16 %v2739, %v2737
    %v2774 = vpack.c.b16 %v2742, %v2740
    %v2775 = vpack.c.b16 %v2743, %v2741
    %2808 = vmatprep.subr.bf16.mxu0 %v2759
    %2809 = vmatpush1.bf16.msra.mxu0 %v2758
    %2810 = vmatprep.subr.bf16.mxu0 %v2757
    %2811 = vmatpush1.bf16.msra.mxu0 %v2756
    %2812 = vmatprep.subr.bf16.mxu0 %v2755
    %2813 = vmatpush1.bf16.msra.mxu0 %v2754
    %2814 = vmatprep.subr.bf16.mxu0 %v2753
    %2815 = vmatpush1.bf16.msra.mxu0 %v2752
    %2816 = vmatprep.subr.bf16.mxu0 %v2751
    %2817 = vmatpush1.bf16.msra.mxu0 %v2750
    %2818 = vmatprep.subr.bf16.mxu0 %v2749
    %2819 = vmatpush1.bf16.msra.mxu0 %v2748
    %2820 = vmatprep.subr.bf16.mxu0 %v2747
    %2821 = vmatpush1.bf16.msra.mxu0 %v2746
    %2822 = vmatprep.subr.bf16.mxu0 %v2745
    %2823 = vmatpush1.bf16.msra.mxu0 %v2744
    %2824 = vmatprep.subr.bf16.mxu0 %v2775
    %2825 = vmatpush2.bf16.msra.mxu0 %v2774
    %2826 = vmatprep.subr.bf16.mxu0 %v2773
    %2827 = vmatpush2.bf16.msra.mxu0 %v2772
    %2828 = vmatprep.subr.bf16.mxu0 %v2771
    %2829 = vmatpush2.bf16.msra.mxu0 %v2770
    %2830 = vmatprep.subr.bf16.mxu0 %v2769
    %2831 = vmatpush2.bf16.msra.mxu0 %v2768
    %2832 = vmatprep.subr.bf16.mxu0 %v2767
    %2833 = vmatpush2.bf16.msra.mxu0 %v2766
    %2834 = vmatprep.subr.bf16.mxu0 %v2765
    %2835 = vmatpush2.bf16.msra.mxu0 %v2764
    %2836 = vmatprep.subr.bf16.mxu0 %v2763
    %2837 = vmatpush2.bf16.msra.mxu0 %v2762
    %2838 = vmatprep.subr.bf16.mxu0 %v2761
    %2839 = vmatpush2.bf16.msra.mxu0 %v2760
    %2840 = vmatprep.mubr.bf16.mxu0 %v1515
    %2841 = vmatmul.mubr.bf16.gmra.mxu0 %v1514
    %v2842 = vpop.f32.mrf.mxu0
    %v2843 = vadd.f32 %v2105, %v2842
    %v2844 = vpop.f32.mrf.mxu0
    %v2845 = vadd.f32 %v2109, %v2844
    %v2846 = vpop.f32.mrf.mxu0
    %v2847 = vpop.f32.mrf.mxu0
    %2848 = vdwg.mxu0
    %v2881 = vunpack.c.l.b16 %v1638
    %v2882 = vunpack.c.h.b16 %v1638
    %v2883 = vunpack.c.l.b16 %v1639
    %v2884 = vunpack.c.h.b16 %v1639
    %v2885 = vunpack.c.l.b16 %v1640
    %v2886 = vunpack.c.h.b16 %v1640
    %v2887 = vunpack.c.l.b16 %v1641
    %v2888 = vunpack.c.h.b16 %v1641
    %v2889 = vunpack.c.l.b16 %v1642
    %v2890 = vunpack.c.h.b16 %v1642
    %v2891 = vunpack.c.l.b16 %v1643
    %v2892 = vunpack.c.h.b16 %v1643
    %v2893 = vunpack.c.l.b16 %v1644
    %v2894 = vunpack.c.h.b16 %v1644
    %v2895 = vunpack.c.l.b16 %v1645
    %v2896 = vunpack.c.h.b16 %v1645
    %v2897 = vunpack.c.l.b16 %v1646
    %v2898 = vunpack.c.h.b16 %v1646
    %v2899 = vunpack.c.l.b16 %v1647
    %v2900 = vunpack.c.h.b16 %v1647
    %v2901 = vunpack.c.l.b16 %v1648
    %v2902 = vunpack.c.h.b16 %v1648
    %v2903 = vunpack.c.l.b16 %v1649
    %v2904 = vunpack.c.h.b16 %v1649
    %v2905 = vunpack.c.l.b16 %v1650
    %v2906 = vunpack.c.h.b16 %v1650
    %v2907 = vunpack.c.l.b16 %v1651
    %v2908 = vunpack.c.h.b16 %v1651
    %v2909 = vunpack.c.l.b16 %v1652
    %v2910 = vunpack.c.h.b16 %v1652
    %v2911 = vunpack.c.l.b16 %v1653
    %v2912 = vunpack.c.h.b16 %v1653
    %v2913 = vunpack.c.l.b16 %v1654
    %v2914 = vunpack.c.h.b16 %v1654
    %v2915 = vunpack.c.l.b16 %v1655
    %v2916 = vunpack.c.h.b16 %v1655
    %v2917 = vunpack.c.l.b16 %v1656
    %v2918 = vunpack.c.h.b16 %v1656
    %v2919 = vunpack.c.l.b16 %v1657
    %v2920 = vunpack.c.h.b16 %v1657
    %v2921 = vunpack.c.l.b16 %v1658
    %v2922 = vunpack.c.h.b16 %v1658
    %v2923 = vunpack.c.l.b16 %v1659
    %v2924 = vunpack.c.h.b16 %v1659
    %v2925 = vunpack.c.l.b16 %v1660
    %v2926 = vunpack.c.h.b16 %v1660
    %v2927 = vunpack.c.l.b16 %v1661
    %v2928 = vunpack.c.h.b16 %v1661
    %v2929 = vunpack.c.l.b16 %v1662
    %v2930 = vunpack.c.h.b16 %v1662
    %v2931 = vunpack.c.l.b16 %v1663
    %v2932 = vunpack.c.h.b16 %v1663
    %v2933 = vunpack.c.l.b16 %v1664
    %v2934 = vunpack.c.h.b16 %v1664
    %v2935 = vunpack.c.l.b16 %v1665
    %v2936 = vunpack.c.h.b16 %v1665
    %v2937 = vunpack.c.l.b16 %v1666
    %v2938 = vunpack.c.h.b16 %v1666
    %v2939 = vunpack.c.l.b16 %v1667
    %v2940 = vunpack.c.h.b16 %v1667
    %v2941 = vunpack.c.l.b16 %v1668
    %v2942 = vunpack.c.h.b16 %v1668
    %v2943 = vunpack.c.l.b16 %v1669
    %v2944 = vunpack.c.h.b16 %v1669
    %v2945 = vpack.c.b16 %v2883, %v2881
    %v2946 = vpack.c.b16 %v2884, %v2882
    %v2947 = vpack.c.b16 %v2887, %v2885
    %v2948 = vpack.c.b16 %v2888, %v2886
    %v2949 = vpack.c.b16 %v2891, %v2889
    %v2950 = vpack.c.b16 %v2892, %v2890
    %v2951 = vpack.c.b16 %v2895, %v2893
    %v2952 = vpack.c.b16 %v2896, %v2894
    %v2953 = vpack.c.b16 %v2899, %v2897
    %v2954 = vpack.c.b16 %v2900, %v2898
    %v2955 = vpack.c.b16 %v2903, %v2901
    %v2956 = vpack.c.b16 %v2904, %v2902
    %v2957 = vpack.c.b16 %v2907, %v2905
    %v2958 = vpack.c.b16 %v2908, %v2906
    %v2959 = vpack.c.b16 %v2911, %v2909
    %v2960 = vpack.c.b16 %v2912, %v2910
    %v2961 = vpack.c.b16 %v2915, %v2913
    %v2962 = vpack.c.b16 %v2916, %v2914
    %v2963 = vpack.c.b16 %v2919, %v2917
    %v2964 = vpack.c.b16 %v2920, %v2918
    %v2965 = vpack.c.b16 %v2923, %v2921
    %v2966 = vpack.c.b16 %v2924, %v2922
    %v2967 = vpack.c.b16 %v2927, %v2925
    %v2968 = vpack.c.b16 %v2928, %v2926
    %v2969 = vpack.c.b16 %v2931, %v2929
    %v2970 = vpack.c.b16 %v2932, %v2930
    %v2971 = vpack.c.b16 %v2935, %v2933
    %v2972 = vpack.c.b16 %v2936, %v2934
    %v2973 = vpack.c.b16 %v2939, %v2937
    %v2974 = vpack.c.b16 %v2940, %v2938
    %v2975 = vpack.c.b16 %v2943, %v2941
    %v2976 = vpack.c.b16 %v2944, %v2942
    %3009 = vmatprep.subr.bf16.mxu0 %v2960
    %3010 = vmatpush1.bf16.msra.mxu0 %v2959
    %3011 = vmatprep.subr.bf16.mxu0 %v2958
    %3012 = vmatpush1.bf16.msra.mxu0 %v2957
    %3013 = vmatprep.subr.bf16.mxu0 %v2956
    %3014 = vmatpush1.bf16.msra.mxu0 %v2955
    %3015 = vmatprep.subr.bf16.mxu0 %v2954
    %3016 = vmatpush1.bf16.msra.mxu0 %v2953
    %3017 = vmatprep.subr.bf16.mxu0 %v2952
    %3018 = vmatpush1.bf16.msra.mxu0 %v2951
    %3019 = vmatprep.subr.bf16.mxu0 %v2950
    %3020 = vmatpush1.bf16.msra.mxu0 %v2949
    %3021 = vmatprep.subr.bf16.mxu0 %v2948
    %3022 = vmatpush1.bf16.msra.mxu0 %v2947
    %3023 = vmatprep.subr.bf16.mxu0 %v2946
    %3024 = vmatpush1.bf16.msra.mxu0 %v2945
    %3025 = vmatprep.subr.bf16.mxu0 %v2976
    %3026 = vmatpush2.bf16.msra.mxu0 %v2975
    %3027 = vmatprep.subr.bf16.mxu0 %v2974
    %3028 = vmatpush2.bf16.msra.mxu0 %v2973
    %3029 = vmatprep.subr.bf16.mxu0 %v2972
    %3030 = vmatpush2.bf16.msra.mxu0 %v2971
    %3031 = vmatprep.subr.bf16.mxu0 %v2970
    %3032 = vmatpush2.bf16.msra.mxu0 %v2969
    %3033 = vmatprep.subr.bf16.mxu0 %v2968
    %3034 = vmatpush2.bf16.msra.mxu0 %v2967
    %3035 = vmatprep.subr.bf16.mxu0 %v2966
    %3036 = vmatpush2.bf16.msra.mxu0 %v2965
    %3037 = vmatprep.subr.bf16.mxu0 %v2964
    %3038 = vmatpush2.bf16.msra.mxu0 %v2963
    %3039 = vmatprep.subr.bf16.mxu0 %v2962
    %3040 = vmatpush2.bf16.msra.mxu0 %v2961
    %3041 = vmatprep.mubr.bf16.mxu0 %v1517
    %3042 = vmatmul.mubr.bf16.gmra.mxu0 %v1516
    %v3043 = vpop.f32.mrf.mxu0
    %v3044 = vadd.f32 %v2113, %v3043
    %v3045 = vpop.f32.mrf.mxu0
    %v3046 = vadd.f32 %v2117, %v3045
    %v3047 = vpop.f32.mrf.mxu0
    %v3048 = vpop.f32.mrf.mxu0
    %3049 = vdwg.mxu0
    %v3082 = vunpack.c.l.b16 %v1670
    %v3083 = vunpack.c.h.b16 %v1670
    %v3084 = vunpack.c.l.b16 %v1671
    %v3085 = vunpack.c.h.b16 %v1671
    %v3086 = vunpack.c.l.b16 %v1672
    %v3087 = vunpack.c.h.b16 %v1672
    %v3088 = vunpack.c.l.b16 %v1673
    %v3089 = vunpack.c.h.b16 %v1673
    %v3090 = vunpack.c.l.b16 %v1674
    %v3091 = vunpack.c.h.b16 %v1674
    %v3092 = vunpack.c.l.b16 %v1675
    %v3093 = vunpack.c.h.b16 %v1675
    %v3094 = vunpack.c.l.b16 %v1676
    %v3095 = vunpack.c.h.b16 %v1676
    %v3096 = vunpack.c.l.b16 %v1677
    %v3097 = vunpack.c.h.b16 %v1677
    %v3098 = vunpack.c.l.b16 %v1678
    %v3099 = vunpack.c.h.b16 %v1678
    %v3100 = vunpack.c.l.b16 %v1679
    %v3101 = vunpack.c.h.b16 %v1679
    %v3102 = vunpack.c.l.b16 %v1680
    %v3103 = vunpack.c.h.b16 %v1680
    %v3104 = vunpack.c.l.b16 %v1681
    %v3105 = vunpack.c.h.b16 %v1681
    %v3106 = vunpack.c.l.b16 %v1682
    %v3107 = vunpack.c.h.b16 %v1682
    %v3108 = vunpack.c.l.b16 %v1683
    %v3109 = vunpack.c.h.b16 %v1683
    %v3110 = vunpack.c.l.b16 %v1684
    %v3111 = vunpack.c.h.b16 %v1684
    %v3112 = vunpack.c.l.b16 %v1685
    %v3113 = vunpack.c.h.b16 %v1685
    %v3114 = vunpack.c.l.b16 %v1686
    %v3115 = vunpack.c.h.b16 %v1686
    %v3116 = vunpack.c.l.b16 %v1687
    %v3117 = vunpack.c.h.b16 %v1687
    %v3118 = vunpack.c.l.b16 %v1688
    %v3119 = vunpack.c.h.b16 %v1688
    %v3120 = vunpack.c.l.b16 %v1689
    %v3121 = vunpack.c.h.b16 %v1689
    %v3122 = vunpack.c.l.b16 %v1690
    %v3123 = vunpack.c.h.b16 %v1690
    %v3124 = vunpack.c.l.b16 %v1691
    %v3125 = vunpack.c.h.b16 %v1691
    %v3126 = vunpack.c.l.b16 %v1692
    %v3127 = vunpack.c.h.b16 %v1692
    %v3128 = vunpack.c.l.b16 %v1693
    %v3129 = vunpack.c.h.b16 %v1693
    %v3130 = vunpack.c.l.b16 %v1694
    %v3131 = vunpack.c.h.b16 %v1694
    %v3132 = vunpack.c.l.b16 %v1695
    %v3133 = vunpack.c.h.b16 %v1695
    %v3134 = vunpack.c.l.b16 %v1696
    %v3135 = vunpack.c.h.b16 %v1696
    %v3136 = vunpack.c.l.b16 %v1697
    %v3137 = vunpack.c.h.b16 %v1697
    %v3138 = vunpack.c.l.b16 %v1698
    %v3139 = vunpack.c.h.b16 %v1698
    %v3140 = vunpack.c.l.b16 %v1699
    %v3141 = vunpack.c.h.b16 %v1699
    %v3142 = vunpack.c.l.b16 %v1700
    %v3143 = vunpack.c.h.b16 %v1700
    %v3144 = vunpack.c.l.b16 %v1701
    %v3145 = vunpack.c.h.b16 %v1701
    %v3146 = vpack.c.b16 %v3084, %v3082
    %v3147 = vpack.c.b16 %v3085, %v3083
    %v3148 = vpack.c.b16 %v3088, %v3086
    %v3149 = vpack.c.b16 %v3089, %v3087
    %v3150 = vpack.c.b16 %v3092, %v3090
    %v3151 = vpack.c.b16 %v3093, %v3091
    %v3152 = vpack.c.b16 %v3096, %v3094
    %v3153 = vpack.c.b16 %v3097, %v3095
    %v3154 = vpack.c.b16 %v3100, %v3098
    %v3155 = vpack.c.b16 %v3101, %v3099
    %v3156 = vpack.c.b16 %v3104, %v3102
    %v3157 = vpack.c.b16 %v3105, %v3103
    %v3158 = vpack.c.b16 %v3108, %v3106
    %v3159 = vpack.c.b16 %v3109, %v3107
    %v3160 = vpack.c.b16 %v3112, %v3110
    %v3161 = vpack.c.b16 %v3113, %v3111
    %v3162 = vpack.c.b16 %v3116, %v3114
    %v3163 = vpack.c.b16 %v3117, %v3115
    %v3164 = vpack.c.b16 %v3120, %v3118
    %v3165 = vpack.c.b16 %v3121, %v3119
    %v3166 = vpack.c.b16 %v3124, %v3122
    %v3167 = vpack.c.b16 %v3125, %v3123
    %v3168 = vpack.c.b16 %v3128, %v3126
    %v3169 = vpack.c.b16 %v3129, %v3127
    %v3170 = vpack.c.b16 %v3132, %v3130
    %v3171 = vpack.c.b16 %v3133, %v3131
    %v3172 = vpack.c.b16 %v3136, %v3134
    %v3173 = vpack.c.b16 %v3137, %v3135
    %v3174 = vpack.c.b16 %v3140, %v3138
    %v3175 = vpack.c.b16 %v3141, %v3139
    %v3176 = vpack.c.b16 %v3144, %v3142
    %v3177 = vpack.c.b16 %v3145, %v3143
    %3210 = vmatprep.subr.bf16.mxu0 %v3161
    %3211 = vmatpush1.bf16.msra.mxu0 %v3160
    %3212 = vmatprep.subr.bf16.mxu0 %v3159
    %3213 = vmatpush1.bf16.msra.mxu0 %v3158
    %3214 = vmatprep.subr.bf16.mxu0 %v3157
    %3215 = vmatpush1.bf16.msra.mxu0 %v3156
    %3216 = vmatprep.subr.bf16.mxu0 %v3155
    %3217 = vmatpush1.bf16.msra.mxu0 %v3154
    %3218 = vmatprep.subr.bf16.mxu0 %v3153
    %3219 = vmatpush1.bf16.msra.mxu0 %v3152
    %3220 = vmatprep.subr.bf16.mxu0 %v3151
    %3221 = vmatpush1.bf16.msra.mxu0 %v3150
    %3222 = vmatprep.subr.bf16.mxu0 %v3149
    %3223 = vmatpush1.bf16.msra.mxu0 %v3148
    %3224 = vmatprep.subr.bf16.mxu0 %v3147
    %3225 = vmatpush1.bf16.msra.mxu0 %v3146
    %3226 = vmatprep.subr.bf16.mxu0 %v3177
    %3227 = vmatpush2.bf16.msra.mxu0 %v3176
    %3228 = vmatprep.subr.bf16.mxu0 %v3175
    %3229 = vmatpush2.bf16.msra.mxu0 %v3174
    %3230 = vmatprep.subr.bf16.mxu0 %v3173
    %3231 = vmatpush2.bf16.msra.mxu0 %v3172
    %3232 = vmatprep.subr.bf16.mxu0 %v3171
    %3233 = vmatpush2.bf16.msra.mxu0 %v3170
    %3234 = vmatprep.subr.bf16.mxu0 %v3169
    %3235 = vmatpush2.bf16.msra.mxu0 %v3168
    %3236 = vmatprep.subr.bf16.mxu0 %v3167
    %3237 = vmatpush2.bf16.msra.mxu0 %v3166
    %3238 = vmatprep.subr.bf16.mxu0 %v3165
    %3239 = vmatpush2.bf16.msra.mxu0 %v3164
    %3240 = vmatprep.subr.bf16.mxu0 %v3163
    %3241 = vmatpush2.bf16.msra.mxu0 %v3162
    %3242 = vmatprep.mubr.bf16.mxu0 %v1519
    %3243 = vmatmul.mubr.bf16.gmra.mxu0 %v1518
    %v3244 = vpop.f32.mrf.mxu0
    %v3245 = vadd.f32 %v2121, %v3244
    %v3246 = vpop.f32.mrf.mxu0
    %v3247 = vadd.f32 %v2125, %v3246
    %v3248 = vpop.f32.mrf.mxu0
    %v3249 = vpop.f32.mrf.mxu0
    %3250 = vdwg.mxu0
    %v3283 = vunpack.c.l.b16 %v1702
    %v3284 = vunpack.c.h.b16 %v1702
    %v3285 = vunpack.c.l.b16 %v1703
    %v3286 = vunpack.c.h.b16 %v1703
    %v3287 = vunpack.c.l.b16 %v1704
    %v3288 = vunpack.c.h.b16 %v1704
    %v3289 = vunpack.c.l.b16 %v1705
    %v3290 = vunpack.c.h.b16 %v1705
    %v3291 = vunpack.c.l.b16 %v1706
    %v3292 = vunpack.c.h.b16 %v1706
    %v3293 = vunpack.c.l.b16 %v1707
    %v3294 = vunpack.c.h.b16 %v1707
    %v3295 = vunpack.c.l.b16 %v1708
    %v3296 = vunpack.c.h.b16 %v1708
    %v3297 = vunpack.c.l.b16 %v1709
    %v3298 = vunpack.c.h.b16 %v1709
    %v3299 = vunpack.c.l.b16 %v1710
    %v3300 = vunpack.c.h.b16 %v1710
    %v3301 = vunpack.c.l.b16 %v1711
    %v3302 = vunpack.c.h.b16 %v1711
    %v3303 = vunpack.c.l.b16 %v1712
    %v3304 = vunpack.c.h.b16 %v1712
    %v3305 = vunpack.c.l.b16 %v1713
    %v3306 = vunpack.c.h.b16 %v1713
    %v3307 = vunpack.c.l.b16 %v1714
    %v3308 = vunpack.c.h.b16 %v1714
    %v3309 = vunpack.c.l.b16 %v1715
    %v3310 = vunpack.c.h.b16 %v1715
    %v3311 = vunpack.c.l.b16 %v1716
    %v3312 = vunpack.c.h.b16 %v1716
    %v3313 = vunpack.c.l.b16 %v1717
    %v3314 = vunpack.c.h.b16 %v1717
    %v3315 = vunpack.c.l.b16 %v1718
    %v3316 = vunpack.c.h.b16 %v1718
    %v3317 = vunpack.c.l.b16 %v1719
    %v3318 = vunpack.c.h.b16 %v1719
    %v3319 = vunpack.c.l.b16 %v1720
    %v3320 = vunpack.c.h.b16 %v1720
    %v3321 = vunpack.c.l.b16 %v1721
    %v3322 = vunpack.c.h.b16 %v1721
    %v3323 = vunpack.c.l.b16 %v1722
    %v3324 = vunpack.c.h.b16 %v1722
    %v3325 = vunpack.c.l.b16 %v1723
    %v3326 = vunpack.c.h.b16 %v1723
    %v3327 = vunpack.c.l.b16 %v1724
    %v3328 = vunpack.c.h.b16 %v1724
    %v3329 = vunpack.c.l.b16 %v1725
    %v3330 = vunpack.c.h.b16 %v1725
    %v3331 = vunpack.c.l.b16 %v1726
    %v3332 = vunpack.c.h.b16 %v1726
    %v3333 = vunpack.c.l.b16 %v1727
    %v3334 = vunpack.c.h.b16 %v1727
    %v3335 = vunpack.c.l.b16 %v1728
    %v3336 = vunpack.c.h.b16 %v1728
    %v3337 = vunpack.c.l.b16 %v1729
    %v3338 = vunpack.c.h.b16 %v1729
    %v3339 = vunpack.c.l.b16 %v1730
    %v3340 = vunpack.c.h.b16 %v1730
    %v3341 = vunpack.c.l.b16 %v1731
    %v3342 = vunpack.c.h.b16 %v1731
    %v3343 = vunpack.c.l.b16 %v1732
    %v3344 = vunpack.c.h.b16 %v1732
    %v3345 = vunpack.c.l.b16 %v1733
    %v3346 = vunpack.c.h.b16 %v1733
    %v3347 = vpack.c.b16 %v3285, %v3283
    %v3348 = vpack.c.b16 %v3286, %v3284
    %v3349 = vpack.c.b16 %v3289, %v3287
    %v3350 = vpack.c.b16 %v3290, %v3288
    %v3351 = vpack.c.b16 %v3293, %v3291
    %v3352 = vpack.c.b16 %v3294, %v3292
    %v3353 = vpack.c.b16 %v3297, %v3295
    %v3354 = vpack.c.b16 %v3298, %v3296
    %v3355 = vpack.c.b16 %v3301, %v3299
    %v3356 = vpack.c.b16 %v3302, %v3300
    %v3357 = vpack.c.b16 %v3305, %v3303
    %v3358 = vpack.c.b16 %v3306, %v3304
    %v3359 = vpack.c.b16 %v3309, %v3307
    %v3360 = vpack.c.b16 %v3310, %v3308
    %v3361 = vpack.c.b16 %v3313, %v3311
    %v3362 = vpack.c.b16 %v3314, %v3312
    %v3363 = vpack.c.b16 %v3317, %v3315
    %v3364 = vpack.c.b16 %v3318, %v3316
    %v3365 = vpack.c.b16 %v3321, %v3319
    %v3366 = vpack.c.b16 %v3322, %v3320
    %v3367 = vpack.c.b16 %v3325, %v3323
    %v3368 = vpack.c.b16 %v3326, %v3324
    %v3369 = vpack.c.b16 %v3329, %v3327
    %v3370 = vpack.c.b16 %v3330, %v3328
    %v3371 = vpack.c.b16 %v3333, %v3331
    %v3372 = vpack.c.b16 %v3334, %v3332
    %v3373 = vpack.c.b16 %v3337, %v3335
    %v3374 = vpack.c.b16 %v3338, %v3336
    %v3375 = vpack.c.b16 %v3341, %v3339
    %v3376 = vpack.c.b16 %v3342, %v3340
    %v3377 = vpack.c.b16 %v3345, %v3343
    %v3378 = vpack.c.b16 %v3346, %v3344
    %3411 = vmatprep.subr.bf16.mxu0 %v3362
    %3412 = vmatpush1.bf16.msra.mxu0 %v3361
    %3413 = vmatprep.subr.bf16.mxu0 %v3360
    %3414 = vmatpush1.bf16.msra.mxu0 %v3359
    %3415 = vmatprep.subr.bf16.mxu0 %v3358
    %3416 = vmatpush1.bf16.msra.mxu0 %v3357
    %3417 = vmatprep.subr.bf16.mxu0 %v3356
    %3418 = vmatpush1.bf16.msra.mxu0 %v3355
    %3419 = vmatprep.subr.bf16.mxu0 %v3354
    %3420 = vmatpush1.bf16.msra.mxu0 %v3353
    %3421 = vmatprep.subr.bf16.mxu0 %v3352
    %3422 = vmatpush1.bf16.msra.mxu0 %v3351
    %3423 = vmatprep.subr.bf16.mxu0 %v3350
    %3424 = vmatpush1.bf16.msra.mxu0 %v3349
    %3425 = vmatprep.subr.bf16.mxu0 %v3348
    %3426 = vmatpush1.bf16.msra.mxu0 %v3347
    %3427 = vmatprep.subr.bf16.mxu0 %v3378
    %3428 = vmatpush2.bf16.msra.mxu0 %v3377
    %3429 = vmatprep.subr.bf16.mxu0 %v3376
    %3430 = vmatpush2.bf16.msra.mxu0 %v3375
    %3431 = vmatprep.subr.bf16.mxu0 %v3374
    %3432 = vmatpush2.bf16.msra.mxu0 %v3373
    %3433 = vmatprep.subr.bf16.mxu0 %v3372
    %3434 = vmatpush2.bf16.msra.mxu0 %v3371
    %3435 = vmatprep.subr.bf16.mxu0 %v3370
    %3436 = vmatpush2.bf16.msra.mxu0 %v3369
    %3437 = vmatprep.subr.bf16.mxu0 %v3368
    %3438 = vmatpush2.bf16.msra.mxu0 %v3367
    %3439 = vmatprep.subr.bf16.mxu0 %v3366
    %3440 = vmatpush2.bf16.msra.mxu0 %v3365
    %3441 = vmatprep.subr.bf16.mxu0 %v3364
    %3442 = vmatpush2.bf16.msra.mxu0 %v3363
    %3443 = vmatprep.mubr.bf16.mxu0 %v1521
    %3444 = vmatmul.mubr.bf16.gmra.mxu0 %v1520
    %v3445 = vpop.f32.mrf.mxu0
    %v3446 = vadd.f32 %v2129, %v3445
    %v3447 = vpop.f32.mrf.mxu0
    %v3448 = vadd.f32 %v2133, %v3447
    %v3449 = vpop.f32.mrf.mxu0
    %v3450 = vpop.f32.mrf.mxu0
    %3451 = vdwg.mxu0
    %v3484 = vunpack.c.l.b16 %v1734
    %v3485 = vunpack.c.h.b16 %v1734
    %v3486 = vunpack.c.l.b16 %v1735
    %v3487 = vunpack.c.h.b16 %v1735
    %v3488 = vunpack.c.l.b16 %v1736
    %v3489 = vunpack.c.h.b16 %v1736
    %v3490 = vunpack.c.l.b16 %v1737
    %v3491 = vunpack.c.h.b16 %v1737
    %v3492 = vunpack.c.l.b16 %v1738
    %v3493 = vunpack.c.h.b16 %v1738
    %v3494 = vunpack.c.l.b16 %v1739
    %v3495 = vunpack.c.h.b16 %v1739
    %v3496 = vunpack.c.l.b16 %v1740
    %v3497 = vunpack.c.h.b16 %v1740
    %v3498 = vunpack.c.l.b16 %v1741
    %v3499 = vunpack.c.h.b16 %v1741
    %v3500 = vunpack.c.l.b16 %v1742
    %v3501 = vunpack.c.h.b16 %v1742
    %v3502 = vunpack.c.l.b16 %v1743
    %v3503 = vunpack.c.h.b16 %v1743
    %v3504 = vunpack.c.l.b16 %v1744
    %v3505 = vunpack.c.h.b16 %v1744
    %v3506 = vunpack.c.l.b16 %v1745
    %v3507 = vunpack.c.h.b16 %v1745
    %v3508 = vunpack.c.l.b16 %v1746
    %v3509 = vunpack.c.h.b16 %v1746
    %v3510 = vunpack.c.l.b16 %v1747
    %v3511 = vunpack.c.h.b16 %v1747
    %v3512 = vunpack.c.l.b16 %v1748
    %v3513 = vunpack.c.h.b16 %v1748
    %v3514 = vunpack.c.l.b16 %v1749
    %v3515 = vunpack.c.h.b16 %v1749
    %v3516 = vunpack.c.l.b16 %v1750
    %v3517 = vunpack.c.h.b16 %v1750
    %v3518 = vunpack.c.l.b16 %v1751
    %v3519 = vunpack.c.h.b16 %v1751
    %v3520 = vunpack.c.l.b16 %v1752
    %v3521 = vunpack.c.h.b16 %v1752
    %v3522 = vunpack.c.l.b16 %v1753
    %v3523 = vunpack.c.h.b16 %v1753
    %v3524 = vunpack.c.l.b16 %v1754
    %v3525 = vunpack.c.h.b16 %v1754
    %v3526 = vunpack.c.l.b16 %v1755
    %v3527 = vunpack.c.h.b16 %v1755
    %v3528 = vunpack.c.l.b16 %v1756
    %v3529 = vunpack.c.h.b16 %v1756
    %v3530 = vunpack.c.l.b16 %v1757
    %v3531 = vunpack.c.h.b16 %v1757
    %v3532 = vunpack.c.l.b16 %v1758
    %v3533 = vunpack.c.h.b16 %v1758
    %v3534 = vunpack.c.l.b16 %v1759
    %v3535 = vunpack.c.h.b16 %v1759
    %v3536 = vunpack.c.l.b16 %v1760
    %v3537 = vunpack.c.h.b16 %v1760
    %v3538 = vunpack.c.l.b16 %v1761
    %v3539 = vunpack.c.h.b16 %v1761
    %v3540 = vunpack.c.l.b16 %v1762
    %v3541 = vunpack.c.h.b16 %v1762
    %v3542 = vunpack.c.l.b16 %v1763
    %v3543 = vunpack.c.h.b16 %v1763
    %v3544 = vunpack.c.l.b16 %v1764
    %v3545 = vunpack.c.h.b16 %v1764
    %v3546 = vunpack.c.l.b16 %v1765
    %v3547 = vunpack.c.h.b16 %v1765
    %v3548 = vpack.c.b16 %v3486, %v3484
    %v3549 = vpack.c.b16 %v3487, %v3485
    %v3550 = vpack.c.b16 %v3490, %v3488
    %v3551 = vpack.c.b16 %v3491, %v3489
    %v3552 = vpack.c.b16 %v3494, %v3492
    %v3553 = vpack.c.b16 %v3495, %v3493
    %v3554 = vpack.c.b16 %v3498, %v3496
    %v3555 = vpack.c.b16 %v3499, %v3497
    %v3556 = vpack.c.b16 %v3502, %v3500
    %v3557 = vpack.c.b16 %v3503, %v3501
    %v3558 = vpack.c.b16 %v3506, %v3504
    %v3559 = vpack.c.b16 %v3507, %v3505
    %v3560 = vpack.c.b16 %v3510, %v3508
    %v3561 = vpack.c.b16 %v3511, %v3509
    %v3562 = vpack.c.b16 %v3514, %v3512
    %v3563 = vpack.c.b16 %v3515, %v3513
    %v3564 = vpack.c.b16 %v3518, %v3516
    %v3565 = vpack.c.b16 %v3519, %v3517
    %v3566 = vpack.c.b16 %v3522, %v3520
    %v3567 = vpack.c.b16 %v3523, %v3521
    %v3568 = vpack.c.b16 %v3526, %v3524
    %v3569 = vpack.c.b16 %v3527, %v3525
    %v3570 = vpack.c.b16 %v3530, %v3528
    %v3571 = vpack.c.b16 %v3531, %v3529
    %v3572 = vpack.c.b16 %v3534, %v3532
    %v3573 = vpack.c.b16 %v3535, %v3533
    %v3574 = vpack.c.b16 %v3538, %v3536
    %v3575 = vpack.c.b16 %v3539, %v3537
    %v3576 = vpack.c.b16 %v3542, %v3540
    %v3577 = vpack.c.b16 %v3543, %v3541
    %v3578 = vpack.c.b16 %v3546, %v3544
    %v3579 = vpack.c.b16 %v3547, %v3545
    %3612 = vmatprep.subr.bf16.mxu0 %v3563
    %3613 = vmatpush1.bf16.msra.mxu0 %v3562
    %3614 = vmatprep.subr.bf16.mxu0 %v3561
    %3615 = vmatpush1.bf16.msra.mxu0 %v3560
    %3616 = vmatprep.subr.bf16.mxu0 %v3559
    %3617 = vmatpush1.bf16.msra.mxu0 %v3558
    %3618 = vmatprep.subr.bf16.mxu0 %v3557
    %3619 = vmatpush1.bf16.msra.mxu0 %v3556
    %3620 = vmatprep.subr.bf16.mxu0 %v3555
    %3621 = vmatpush1.bf16.msra.mxu0 %v3554
    %3622 = vmatprep.subr.bf16.mxu0 %v3553
    %3623 = vmatpush1.bf16.msra.mxu0 %v3552
    %3624 = vmatprep.subr.bf16.mxu0 %v3551
    %3625 = vmatpush1.bf16.msra.mxu0 %v3550
    %3626 = vmatprep.subr.bf16.mxu0 %v3549
    %3627 = vmatpush1.bf16.msra.mxu0 %v3548
    %3628 = vmatprep.subr.bf16.mxu0 %v3579
    %3629 = vmatpush2.bf16.msra.mxu0 %v3578
    %3630 = vmatprep.subr.bf16.mxu0 %v3577
    %3631 = vmatpush2.bf16.msra.mxu0 %v3576
    %3632 = vmatprep.subr.bf16.mxu0 %v3575
    %3633 = vmatpush2.bf16.msra.mxu0 %v3574
    %3634 = vmatprep.subr.bf16.mxu0 %v3573
    %3635 = vmatpush2.bf16.msra.mxu0 %v3572
    %3636 = vmatprep.subr.bf16.mxu0 %v3571
    %3637 = vmatpush2.bf16.msra.mxu0 %v3570
    %3638 = vmatprep.subr.bf16.mxu0 %v3569
    %3639 = vmatpush2.bf16.msra.mxu0 %v3568
    %3640 = vmatprep.subr.bf16.mxu0 %v3567
    %3641 = vmatpush2.bf16.msra.mxu0 %v3566
    %3642 = vmatprep.subr.bf16.mxu0 %v3565
    %3643 = vmatpush2.bf16.msra.mxu0 %v3564
    %3644 = vmatprep.mubr.bf16.mxu0 %v1523
    %3645 = vmatmul.mubr.bf16.gmra.mxu0 %v1522
    %v3646 = vpop.f32.mrf.mxu0
    %v3647 = vadd.f32 %v2137, %v3646
    %v3648 = vpop.f32.mrf.mxu0
    %v3649 = vadd.f32 %v2141, %v3648
    %v3650 = vpop.f32.mrf.mxu0
    %v3651 = vpop.f32.mrf.mxu0
    %3652 = vdwg.mxu0
    %v3685 = vunpack.c.l.b16 %v1766
    %v3686 = vunpack.c.h.b16 %v1766
    %v3687 = vunpack.c.l.b16 %v1767
    %v3688 = vunpack.c.h.b16 %v1767
    %v3689 = vunpack.c.l.b16 %v1768
    %v3690 = vunpack.c.h.b16 %v1768
    %v3691 = vunpack.c.l.b16 %v1769
    %v3692 = vunpack.c.h.b16 %v1769
    %v3693 = vunpack.c.l.b16 %v1770
    %v3694 = vunpack.c.h.b16 %v1770
    %v3695 = vunpack.c.l.b16 %v1771
    %v3696 = vunpack.c.h.b16 %v1771
    %v3697 = vunpack.c.l.b16 %v1772
    %v3698 = vunpack.c.h.b16 %v1772
    %v3699 = vunpack.c.l.b16 %v1773
    %v3700 = vunpack.c.h.b16 %v1773
    %v3701 = vunpack.c.l.b16 %v1774
    %v3702 = vunpack.c.h.b16 %v1774
    %v3703 = vunpack.c.l.b16 %v1775
    %v3704 = vunpack.c.h.b16 %v1775
    %v3705 = vunpack.c.l.b16 %v1776
    %v3706 = vunpack.c.h.b16 %v1776
    %v3707 = vunpack.c.l.b16 %v1777
    %v3708 = vunpack.c.h.b16 %v1777
    %v3709 = vunpack.c.l.b16 %v1778
    %v3710 = vunpack.c.h.b16 %v1778
    %v3711 = vunpack.c.l.b16 %v1779
    %v3712 = vunpack.c.h.b16 %v1779
    %v3713 = vunpack.c.l.b16 %v1780
    %v3714 = vunpack.c.h.b16 %v1780
    %v3715 = vunpack.c.l.b16 %v1781
    %v3716 = vunpack.c.h.b16 %v1781
    %v3717 = vunpack.c.l.b16 %v1782
    %v3718 = vunpack.c.h.b16 %v1782
    %v3719 = vunpack.c.l.b16 %v1783
    %v3720 = vunpack.c.h.b16 %v1783
    %v3721 = vunpack.c.l.b16 %v1784
    %v3722 = vunpack.c.h.b16 %v1784
    %v3723 = vunpack.c.l.b16 %v1785
    %v3724 = vunpack.c.h.b16 %v1785
    %v3725 = vunpack.c.l.b16 %v1786
    %v3726 = vunpack.c.h.b16 %v1786
    %v3727 = vunpack.c.l.b16 %v1787
    %v3728 = vunpack.c.h.b16 %v1787
    %v3729 = vunpack.c.l.b16 %v1788
    %v3730 = vunpack.c.h.b16 %v1788
    %v3731 = vunpack.c.l.b16 %v1789
    %v3732 = vunpack.c.h.b16 %v1789
    %v3733 = vunpack.c.l.b16 %v1790
    %v3734 = vunpack.c.h.b16 %v1790
    %v3735 = vunpack.c.l.b16 %v1791
    %v3736 = vunpack.c.h.b16 %v1791
    %v3737 = vunpack.c.l.b16 %v1792
    %v3738 = vunpack.c.h.b16 %v1792
    %v3739 = vunpack.c.l.b16 %v1793
    %v3740 = vunpack.c.h.b16 %v1793
    %v3741 = vunpack.c.l.b16 %v1794
    %v3742 = vunpack.c.h.b16 %v1794
    %v3743 = vunpack.c.l.b16 %v1795
    %v3744 = vunpack.c.h.b16 %v1795
    %v3745 = vunpack.c.l.b16 %v1796
    %v3746 = vunpack.c.h.b16 %v1796
    %v3747 = vunpack.c.l.b16 %v1797
    %v3748 = vunpack.c.h.b16 %v1797
    %v3749 = vpack.c.b16 %v3687, %v3685
    %v3750 = vpack.c.b16 %v3688, %v3686
    %v3751 = vpack.c.b16 %v3691, %v3689
    %v3752 = vpack.c.b16 %v3692, %v3690
    %v3753 = vpack.c.b16 %v3695, %v3693
    %v3754 = vpack.c.b16 %v3696, %v3694
    %v3755 = vpack.c.b16 %v3699, %v3697
    %v3756 = vpack.c.b16 %v3700, %v3698
    %v3757 = vpack.c.b16 %v3703, %v3701
    %v3758 = vpack.c.b16 %v3704, %v3702
    %v3759 = vpack.c.b16 %v3707, %v3705
    %v3760 = vpack.c.b16 %v3708, %v3706
    %v3761 = vpack.c.b16 %v3711, %v3709
    %v3762 = vpack.c.b16 %v3712, %v3710
    %v3763 = vpack.c.b16 %v3715, %v3713
    %v3764 = vpack.c.b16 %v3716, %v3714
    %v3765 = vpack.c.b16 %v3719, %v3717
    %v3766 = vpack.c.b16 %v3720, %v3718
    %v3767 = vpack.c.b16 %v3723, %v3721
    %v3768 = vpack.c.b16 %v3724, %v3722
    %v3769 = vpack.c.b16 %v3727, %v3725
    %v3770 = vpack.c.b16 %v3728, %v3726
    %v3771 = vpack.c.b16 %v3731, %v3729
    %v3772 = vpack.c.b16 %v3732, %v3730
    %v3773 = vpack.c.b16 %v3735, %v3733
    %v3774 = vpack.c.b16 %v3736, %v3734
    %v3775 = vpack.c.b16 %v3739, %v3737
    %v3776 = vpack.c.b16 %v3740, %v3738
    %v3777 = vpack.c.b16 %v3743, %v3741
    %v3778 = vpack.c.b16 %v3744, %v3742
    %v3779 = vpack.c.b16 %v3747, %v3745
    %v3780 = vpack.c.b16 %v3748, %v3746
    %3813 = vmatprep.subr.bf16.mxu0 %v3764
    %3814 = vmatpush1.bf16.msra.mxu0 %v3763
    %3815 = vmatprep.subr.bf16.mxu0 %v3762
    %3816 = vmatpush1.bf16.msra.mxu0 %v3761
    %3817 = vmatprep.subr.bf16.mxu0 %v3760
    %3818 = vmatpush1.bf16.msra.mxu0 %v3759
    %3819 = vmatprep.subr.bf16.mxu0 %v3758
    %3820 = vmatpush1.bf16.msra.mxu0 %v3757
    %3821 = vmatprep.subr.bf16.mxu0 %v3756
    %3822 = vmatpush1.bf16.msra.mxu0 %v3755
    %3823 = vmatprep.subr.bf16.mxu0 %v3754
    %3824 = vmatpush1.bf16.msra.mxu0 %v3753
    %3825 = vmatprep.subr.bf16.mxu0 %v3752
    %3826 = vmatpush1.bf16.msra.mxu0 %v3751
    %3827 = vmatprep.subr.bf16.mxu0 %v3750
    %3828 = vmatpush1.bf16.msra.mxu0 %v3749
    %3829 = vmatprep.subr.bf16.mxu0 %v3780
    %3830 = vmatpush2.bf16.msra.mxu0 %v3779
    %3831 = vmatprep.subr.bf16.mxu0 %v3778
    %3832 = vmatpush2.bf16.msra.mxu0 %v3777
    %3833 = vmatprep.subr.bf16.mxu0 %v3776
    %3834 = vmatpush2.bf16.msra.mxu0 %v3775
    %3835 = vmatprep.subr.bf16.mxu0 %v3774
    %3836 = vmatpush2.bf16.msra.mxu0 %v3773
    %3837 = vmatprep.subr.bf16.mxu0 %v3772
    %3838 = vmatpush2.bf16.msra.mxu0 %v3771
    %3839 = vmatprep.subr.bf16.mxu0 %v3770
    %3840 = vmatpush2.bf16.msra.mxu0 %v3769
    %3841 = vmatprep.subr.bf16.mxu0 %v3768
    %3842 = vmatpush2.bf16.msra.mxu0 %v3767
    %3843 = vmatprep.subr.bf16.mxu0 %v3766
    %3844 = vmatpush2.bf16.msra.mxu0 %v3765
    %3845 = vmatprep.mubr.bf16.mxu0 %v1525
    %3846 = vmatmul.mubr.bf16.gmra.mxu0 %v1524
    %v3847 = vpop.f32.mrf.mxu0
    %v3848 = vadd.f32 %v2145, %v3847
    %v3849 = vpop.f32.mrf.mxu0
    %v3850 = vadd.f32 %v2149, %v3849
    %v3851 = vpop.f32.mrf.mxu0
    %v3852 = vpop.f32.mrf.mxu0
    %3853 = vdwg.mxu0
    %v3886 = vunpack.c.l.b16 %v1798
    %v3887 = vunpack.c.h.b16 %v1798
    %v3888 = vunpack.c.l.b16 %v1799
    %v3889 = vunpack.c.h.b16 %v1799
    %v3890 = vunpack.c.l.b16 %v1800
    %v3891 = vunpack.c.h.b16 %v1800
    %v3892 = vunpack.c.l.b16 %v1801
    %v3893 = vunpack.c.h.b16 %v1801
    %v3894 = vunpack.c.l.b16 %v1802
    %v3895 = vunpack.c.h.b16 %v1802
    %v3896 = vunpack.c.l.b16 %v1803
    %v3897 = vunpack.c.h.b16 %v1803
    %v3898 = vunpack.c.l.b16 %v1804
    %v3899 = vunpack.c.h.b16 %v1804
    %v3900 = vunpack.c.l.b16 %v1805
    %v3901 = vunpack.c.h.b16 %v1805
    %v3902 = vunpack.c.l.b16 %v1806
    %v3903 = vunpack.c.h.b16 %v1806
    %v3904 = vunpack.c.l.b16 %v1807
    %v3905 = vunpack.c.h.b16 %v1807
    %v3906 = vunpack.c.l.b16 %v1808
    %v3907 = vunpack.c.h.b16 %v1808
    %v3908 = vunpack.c.l.b16 %v1809
    %v3909 = vunpack.c.h.b16 %v1809
    %v3910 = vunpack.c.l.b16 %v1810
    %v3911 = vunpack.c.h.b16 %v1810
    %v3912 = vunpack.c.l.b16 %v1811
    %v3913 = vunpack.c.h.b16 %v1811
    %v3914 = vunpack.c.l.b16 %v1812
    %v3915 = vunpack.c.h.b16 %v1812
    %v3916 = vunpack.c.l.b16 %v1813
    %v3917 = vunpack.c.h.b16 %v1813
    %v3918 = vunpack.c.l.b16 %v1814
    %v3919 = vunpack.c.h.b16 %v1814
    %v3920 = vunpack.c.l.b16 %v1815
    %v3921 = vunpack.c.h.b16 %v1815
    %v3922 = vunpack.c.l.b16 %v1816
    %v3923 = vunpack.c.h.b16 %v1816
    %v3924 = vunpack.c.l.b16 %v1817
    %v3925 = vunpack.c.h.b16 %v1817
    %v3926 = vunpack.c.l.b16 %v1818
    %v3927 = vunpack.c.h.b16 %v1818
    %v3928 = vunpack.c.l.b16 %v1819
    %v3929 = vunpack.c.h.b16 %v1819
    %v3930 = vunpack.c.l.b16 %v1820
    %v3931 = vunpack.c.h.b16 %v1820
    %v3932 = vunpack.c.l.b16 %v1821
    %v3933 = vunpack.c.h.b16 %v1821
    %v3934 = vunpack.c.l.b16 %v1822
    %v3935 = vunpack.c.h.b16 %v1822
    %v3936 = vunpack.c.l.b16 %v1823
    %v3937 = vunpack.c.h.b16 %v1823
    %v3938 = vunpack.c.l.b16 %v1824
    %v3939 = vunpack.c.h.b16 %v1824
    %v3940 = vunpack.c.l.b16 %v1825
    %v3941 = vunpack.c.h.b16 %v1825
    %v3942 = vunpack.c.l.b16 %v1826
    %v3943 = vunpack.c.h.b16 %v1826
    %v3944 = vunpack.c.l.b16 %v1827
    %v3945 = vunpack.c.h.b16 %v1827
    %v3946 = vunpack.c.l.b16 %v1828
    %v3947 = vunpack.c.h.b16 %v1828
    %v3948 = vunpack.c.l.b16 %v1829
    %v3949 = vunpack.c.h.b16 %v1829
    %v3950 = vpack.c.b16 %v3888, %v3886
    %v3951 = vpack.c.b16 %v3889, %v3887
    %v3952 = vpack.c.b16 %v3892, %v3890
    %v3953 = vpack.c.b16 %v3893, %v3891
    %v3954 = vpack.c.b16 %v3896, %v3894
    %v3955 = vpack.c.b16 %v3897, %v3895
    %v3956 = vpack.c.b16 %v3900, %v3898
    %v3957 = vpack.c.b16 %v3901, %v3899
    %v3958 = vpack.c.b16 %v3904, %v3902
    %v3959 = vpack.c.b16 %v3905, %v3903
    %v3960 = vpack.c.b16 %v3908, %v3906
    %v3961 = vpack.c.b16 %v3909, %v3907
    %v3962 = vpack.c.b16 %v3912, %v3910
    %v3963 = vpack.c.b16 %v3913, %v3911
    %v3964 = vpack.c.b16 %v3916, %v3914
    %v3965 = vpack.c.b16 %v3917, %v3915
    %v3966 = vpack.c.b16 %v3920, %v3918
    %v3967 = vpack.c.b16 %v3921, %v3919
    %v3968 = vpack.c.b16 %v3924, %v3922
    %v3969 = vpack.c.b16 %v3925, %v3923
    %v3970 = vpack.c.b16 %v3928, %v3926
    %v3971 = vpack.c.b16 %v3929, %v3927
    %v3972 = vpack.c.b16 %v3932, %v3930
    %v3973 = vpack.c.b16 %v3933, %v3931
    %v3974 = vpack.c.b16 %v3936, %v3934
    %v3975 = vpack.c.b16 %v3937, %v3935
    %v3976 = vpack.c.b16 %v3940, %v3938
    %v3977 = vpack.c.b16 %v3941, %v3939
    %v3978 = vpack.c.b16 %v3944, %v3942
    %v3979 = vpack.c.b16 %v3945, %v3943
    %v3980 = vpack.c.b16 %v3948, %v3946
    %v3981 = vpack.c.b16 %v3949, %v3947
    %4014 = vmatprep.subr.bf16.mxu0 %v3965
    %4015 = vmatpush1.bf16.msra.mxu0 %v3964
    %4016 = vmatprep.subr.bf16.mxu0 %v3963
    %4017 = vmatpush1.bf16.msra.mxu0 %v3962
    %4018 = vmatprep.subr.bf16.mxu0 %v3961
    %4019 = vmatpush1.bf16.msra.mxu0 %v3960
    %4020 = vmatprep.subr.bf16.mxu0 %v3959
    %4021 = vmatpush1.bf16.msra.mxu0 %v3958
    %4022 = vmatprep.subr.bf16.mxu0 %v3957
    %4023 = vmatpush1.bf16.msra.mxu0 %v3956
    %4024 = vmatprep.subr.bf16.mxu0 %v3955
    %4025 = vmatpush1.bf16.msra.mxu0 %v3954
    %4026 = vmatprep.subr.bf16.mxu0 %v3953
    %4027 = vmatpush1.bf16.msra.mxu0 %v3952
    %4028 = vmatprep.subr.bf16.mxu0 %v3951
    %4029 = vmatpush1.bf16.msra.mxu0 %v3950
    %4030 = vmatprep.subr.bf16.mxu0 %v3981
    %4031 = vmatpush2.bf16.msra.mxu0 %v3980
    %4032 = vmatprep.subr.bf16.mxu0 %v3979
    %4033 = vmatpush2.bf16.msra.mxu0 %v3978
    %4034 = vmatprep.subr.bf16.mxu0 %v3977
    %4035 = vmatpush2.bf16.msra.mxu0 %v3976
    %4036 = vmatprep.subr.bf16.mxu0 %v3975
    %4037 = vmatpush2.bf16.msra.mxu0 %v3974
    %4038 = vmatprep.subr.bf16.mxu0 %v3973
    %4039 = vmatpush2.bf16.msra.mxu0 %v3972
    %4040 = vmatprep.subr.bf16.mxu0 %v3971
    %4041 = vmatpush2.bf16.msra.mxu0 %v3970
    %4042 = vmatprep.subr.bf16.mxu0 %v3969
    %4043 = vmatpush2.bf16.msra.mxu0 %v3968
    %4044 = vmatprep.subr.bf16.mxu0 %v3967
    %4045 = vmatpush2.bf16.msra.mxu0 %v3966
    %4046 = vmatprep.mubr.bf16.mxu0 %v1527
    %4047 = vmatmul.mubr.bf16.gmra.mxu0 %v1526
    %v4048 = vpop.f32.mrf.mxu0
    %v4049 = vadd.f32 %v2153, %v4048
    %v4050 = vpop.f32.mrf.mxu0
    %v4051 = vadd.f32 %v2157, %v4050
    %v4052 = vpop.f32.mrf.mxu0
    %v4053 = vpop.f32.mrf.mxu0
    %4054 = vdwg.mxu0
    %v4087 = vunpack.c.l.b16 %v1830
    %v4088 = vunpack.c.h.b16 %v1830
    %v4089 = vunpack.c.l.b16 %v1831
    %v4090 = vunpack.c.h.b16 %v1831
    %v4091 = vunpack.c.l.b16 %v1832
    %v4092 = vunpack.c.h.b16 %v1832
    %v4093 = vunpack.c.l.b16 %v1833
    %v4094 = vunpack.c.h.b16 %v1833
    %v4095 = vunpack.c.l.b16 %v1834
    %v4096 = vunpack.c.h.b16 %v1834
    %v4097 = vunpack.c.l.b16 %v1835
    %v4098 = vunpack.c.h.b16 %v1835
    %v4099 = vunpack.c.l.b16 %v1836
    %v4100 = vunpack.c.h.b16 %v1836
    %v4101 = vunpack.c.l.b16 %v1837
    %v4102 = vunpack.c.h.b16 %v1837
    %v4103 = vunpack.c.l.b16 %v1838
    %v4104 = vunpack.c.h.b16 %v1838
    %v4105 = vunpack.c.l.b16 %v1839
    %v4106 = vunpack.c.h.b16 %v1839
    %v4107 = vunpack.c.l.b16 %v1840
    %v4108 = vunpack.c.h.b16 %v1840
    %v4109 = vunpack.c.l.b16 %v1841
    %v4110 = vunpack.c.h.b16 %v1841
    %v4111 = vunpack.c.l.b16 %v1842
    %v4112 = vunpack.c.h.b16 %v1842
    %v4113 = vunpack.c.l.b16 %v1843
    %v4114 = vunpack.c.h.b16 %v1843
    %v4115 = vunpack.c.l.b16 %v1844
    %v4116 = vunpack.c.h.b16 %v1844
    %v4117 = vunpack.c.l.b16 %v1845
    %v4118 = vunpack.c.h.b16 %v1845
    %v4119 = vunpack.c.l.b16 %v1846
    %v4120 = vunpack.c.h.b16 %v1846
    %v4121 = vunpack.c.l.b16 %v1847
    %v4122 = vunpack.c.h.b16 %v1847
    %v4123 = vunpack.c.l.b16 %v1848
    %v4124 = vunpack.c.h.b16 %v1848
    %v4125 = vunpack.c.l.b16 %v1849
    %v4126 = vunpack.c.h.b16 %v1849
    %v4127 = vunpack.c.l.b16 %v1850
    %v4128 = vunpack.c.h.b16 %v1850
    %v4129 = vunpack.c.l.b16 %v1851
    %v4130 = vunpack.c.h.b16 %v1851
    %v4131 = vunpack.c.l.b16 %v1852
    %v4132 = vunpack.c.h.b16 %v1852
    %v4133 = vunpack.c.l.b16 %v1853
    %v4134 = vunpack.c.h.b16 %v1853
    %v4135 = vunpack.c.l.b16 %v1854
    %v4136 = vunpack.c.h.b16 %v1854
    %v4137 = vunpack.c.l.b16 %v1855
    %v4138 = vunpack.c.h.b16 %v1855
    %v4139 = vunpack.c.l.b16 %v1856
    %v4140 = vunpack.c.h.b16 %v1856
    %v4141 = vunpack.c.l.b16 %v1857
    %v4142 = vunpack.c.h.b16 %v1857
    %v4143 = vunpack.c.l.b16 %v1858
    %v4144 = vunpack.c.h.b16 %v1858
    %v4145 = vunpack.c.l.b16 %v1859
    %v4146 = vunpack.c.h.b16 %v1859
    %v4147 = vunpack.c.l.b16 %v1860
    %v4148 = vunpack.c.h.b16 %v1860
    %v4149 = vunpack.c.l.b16 %v1861
    %v4150 = vunpack.c.h.b16 %v1861
    %v4151 = vpack.c.b16 %v4089, %v4087
    %v4152 = vpack.c.b16 %v4090, %v4088
    %v4153 = vpack.c.b16 %v4093, %v4091
    %v4154 = vpack.c.b16 %v4094, %v4092
    %v4155 = vpack.c.b16 %v4097, %v4095
    %v4156 = vpack.c.b16 %v4098, %v4096
    %v4157 = vpack.c.b16 %v4101, %v4099
    %v4158 = vpack.c.b16 %v4102, %v4100
    %v4159 = vpack.c.b16 %v4105, %v4103
    %v4160 = vpack.c.b16 %v4106, %v4104
    %v4161 = vpack.c.b16 %v4109, %v4107
    %v4162 = vpack.c.b16 %v4110, %v4108
    %v4163 = vpack.c.b16 %v4113, %v4111
    %v4164 = vpack.c.b16 %v4114, %v4112
    %v4165 = vpack.c.b16 %v4117, %v4115
    %v4166 = vpack.c.b16 %v4118, %v4116
    %v4167 = vpack.c.b16 %v4121, %v4119
    %v4168 = vpack.c.b16 %v4122, %v4120
    %v4169 = vpack.c.b16 %v4125, %v4123
    %v4170 = vpack.c.b16 %v4126, %v4124
    %v4171 = vpack.c.b16 %v4129, %v4127
    %v4172 = vpack.c.b16 %v4130, %v4128
    %v4173 = vpack.c.b16 %v4133, %v4131
    %v4174 = vpack.c.b16 %v4134, %v4132
    %v4175 = vpack.c.b16 %v4137, %v4135
    %v4176 = vpack.c.b16 %v4138, %v4136
    %v4177 = vpack.c.b16 %v4141, %v4139
    %v4178 = vpack.c.b16 %v4142, %v4140
    %v4179 = vpack.c.b16 %v4145, %v4143
    %v4180 = vpack.c.b16 %v4146, %v4144
    %v4181 = vpack.c.b16 %v4149, %v4147
    %v4182 = vpack.c.b16 %v4150, %v4148
    %4215 = vmatprep.subr.bf16.mxu0 %v4166
    %4216 = vmatpush1.bf16.msra.mxu0 %v4165
    %4217 = vmatprep.subr.bf16.mxu0 %v4164
    %4218 = vmatpush1.bf16.msra.mxu0 %v4163
    %4219 = vmatprep.subr.bf16.mxu0 %v4162
    %4220 = vmatpush1.bf16.msra.mxu0 %v4161
    %4221 = vmatprep.subr.bf16.mxu0 %v4160
    %4222 = vmatpush1.bf16.msra.mxu0 %v4159
    %4223 = vmatprep.subr.bf16.mxu0 %v4158
    %4224 = vmatpush1.bf16.msra.mxu0 %v4157
    %4225 = vmatprep.subr.bf16.mxu0 %v4156
    %4226 = vmatpush1.bf16.msra.mxu0 %v4155
    %4227 = vmatprep.subr.bf16.mxu0 %v4154
    %4228 = vmatpush1.bf16.msra.mxu0 %v4153
    %4229 = vmatprep.subr.bf16.mxu0 %v4152
    %4230 = vmatpush1.bf16.msra.mxu0 %v4151
    %4231 = vmatprep.subr.bf16.mxu0 %v4182
    %4232 = vmatpush2.bf16.msra.mxu0 %v4181
    %4233 = vmatprep.subr.bf16.mxu0 %v4180
    %4234 = vmatpush2.bf16.msra.mxu0 %v4179
    %4235 = vmatprep.subr.bf16.mxu0 %v4178
    %4236 = vmatpush2.bf16.msra.mxu0 %v4177
    %4237 = vmatprep.subr.bf16.mxu0 %v4176
    %4238 = vmatpush2.bf16.msra.mxu0 %v4175
    %4239 = vmatprep.subr.bf16.mxu0 %v4174
    %4240 = vmatpush2.bf16.msra.mxu0 %v4173
    %4241 = vmatprep.subr.bf16.mxu0 %v4172
    %4242 = vmatpush2.bf16.msra.mxu0 %v4171
    %4243 = vmatprep.subr.bf16.mxu0 %v4170
    %4244 = vmatpush2.bf16.msra.mxu0 %v4169
    %4245 = vmatprep.subr.bf16.mxu0 %v4168
    %4246 = vmatpush2.bf16.msra.mxu0 %v4167
    %4247 = vmatprep.mubr.bf16.mxu0 %v1529
    %4248 = vmatmul.mubr.bf16.gmra.mxu0 %v1528
    %v4249 = vpop.f32.mrf.mxu0
    %v4250 = vadd.f32 %v2161, %v4249
    %v4251 = vpop.f32.mrf.mxu0
    %v4252 = vadd.f32 %v2165, %v4251
    %v4253 = vpop.f32.mrf.mxu0
    %v4254 = vpop.f32.mrf.mxu0
    %4255 = vdwg.mxu0
    %v4288 = vunpack.c.l.b16 %v1862
    %v4289 = vunpack.c.h.b16 %v1862
    %v4290 = vunpack.c.l.b16 %v1863
    %v4291 = vunpack.c.h.b16 %v1863
    %v4292 = vunpack.c.l.b16 %v1864
    %v4293 = vunpack.c.h.b16 %v1864
    %v4294 = vunpack.c.l.b16 %v1865
    %v4295 = vunpack.c.h.b16 %v1865
    %v4296 = vunpack.c.l.b16 %v1866
    %v4297 = vunpack.c.h.b16 %v1866
    %v4298 = vunpack.c.l.b16 %v1867
    %v4299 = vunpack.c.h.b16 %v1867
    %v4300 = vunpack.c.l.b16 %v1868
    %v4301 = vunpack.c.h.b16 %v1868
    %v4302 = vunpack.c.l.b16 %v1869
    %v4303 = vunpack.c.h.b16 %v1869
    %v4304 = vunpack.c.l.b16 %v1870
    %v4305 = vunpack.c.h.b16 %v1870
    %v4306 = vunpack.c.l.b16 %v1871
    %v4307 = vunpack.c.h.b16 %v1871
    %v4308 = vunpack.c.l.b16 %v1872
    %v4309 = vunpack.c.h.b16 %v1872
    %v4310 = vunpack.c.l.b16 %v1873
    %v4311 = vunpack.c.h.b16 %v1873
    %v4312 = vunpack.c.l.b16 %v1874
    %v4313 = vunpack.c.h.b16 %v1874
    %v4314 = vunpack.c.l.b16 %v1875
    %v4315 = vunpack.c.h.b16 %v1875
    %v4316 = vunpack.c.l.b16 %v1876
    %v4317 = vunpack.c.h.b16 %v1876
    %v4318 = vunpack.c.l.b16 %v1877
    %v4319 = vunpack.c.h.b16 %v1877
    %v4320 = vunpack.c.l.b16 %v1878
    %v4321 = vunpack.c.h.b16 %v1878
    %v4322 = vunpack.c.l.b16 %v1879
    %v4323 = vunpack.c.h.b16 %v1879
    %v4324 = vunpack.c.l.b16 %v1880
    %v4325 = vunpack.c.h.b16 %v1880
    %v4326 = vunpack.c.l.b16 %v1881
    %v4327 = vunpack.c.h.b16 %v1881
    %v4328 = vunpack.c.l.b16 %v1882
    %v4329 = vunpack.c.h.b16 %v1882
    %v4330 = vunpack.c.l.b16 %v1883
    %v4331 = vunpack.c.h.b16 %v1883
    %v4332 = vunpack.c.l.b16 %v1884
    %v4333 = vunpack.c.h.b16 %v1884
    %v4334 = vunpack.c.l.b16 %v1885
    %v4335 = vunpack.c.h.b16 %v1885
    %v4336 = vunpack.c.l.b16 %v1886
    %v4337 = vunpack.c.h.b16 %v1886
    %v4338 = vunpack.c.l.b16 %v1887
    %v4339 = vunpack.c.h.b16 %v1887
    %v4340 = vunpack.c.l.b16 %v1888
    %v4341 = vunpack.c.h.b16 %v1888
    %v4342 = vunpack.c.l.b16 %v1889
    %v4343 = vunpack.c.h.b16 %v1889
    %v4344 = vunpack.c.l.b16 %v1890
    %v4345 = vunpack.c.h.b16 %v1890
    %v4346 = vunpack.c.l.b16 %v1891
    %v4347 = vunpack.c.h.b16 %v1891
    %v4348 = vunpack.c.l.b16 %v1892
    %v4349 = vunpack.c.h.b16 %v1892
    %v4350 = vunpack.c.l.b16 %v1893
    %v4351 = vunpack.c.h.b16 %v1893
    %v4352 = vpack.c.b16 %v4290, %v4288
    %v4353 = vpack.c.b16 %v4291, %v4289
    %v4354 = vpack.c.b16 %v4294, %v4292
    %v4355 = vpack.c.b16 %v4295, %v4293
    %v4356 = vpack.c.b16 %v4298, %v4296
    %v4357 = vpack.c.b16 %v4299, %v4297
    %v4358 = vpack.c.b16 %v4302, %v4300
    %v4359 = vpack.c.b16 %v4303, %v4301
    %v4360 = vpack.c.b16 %v4306, %v4304
    %v4361 = vpack.c.b16 %v4307, %v4305
    %v4362 = vpack.c.b16 %v4310, %v4308
    %v4363 = vpack.c.b16 %v4311, %v4309
    %v4364 = vpack.c.b16 %v4314, %v4312
    %v4365 = vpack.c.b16 %v4315, %v4313
    %v4366 = vpack.c.b16 %v4318, %v4316
    %v4367 = vpack.c.b16 %v4319, %v4317
    %v4368 = vpack.c.b16 %v4322, %v4320
    %v4369 = vpack.c.b16 %v4323, %v4321
    %v4370 = vpack.c.b16 %v4326, %v4324
    %v4371 = vpack.c.b16 %v4327, %v4325
    %v4372 = vpack.c.b16 %v4330, %v4328
    %v4373 = vpack.c.b16 %v4331, %v4329
    %v4374 = vpack.c.b16 %v4334, %v4332
    %v4375 = vpack.c.b16 %v4335, %v4333
    %v4376 = vpack.c.b16 %v4338, %v4336
    %v4377 = vpack.c.b16 %v4339, %v4337
    %v4378 = vpack.c.b16 %v4342, %v4340
    %v4379 = vpack.c.b16 %v4343, %v4341
    %v4380 = vpack.c.b16 %v4346, %v4344
    %v4381 = vpack.c.b16 %v4347, %v4345
    %v4382 = vpack.c.b16 %v4350, %v4348
    %v4383 = vpack.c.b16 %v4351, %v4349
    %4416 = vmatprep.subr.bf16.mxu0 %v4367
    %4417 = vmatpush1.bf16.msra.mxu0 %v4366
    %4418 = vmatprep.subr.bf16.mxu0 %v4365
    %4419 = vmatpush1.bf16.msra.mxu0 %v4364
    %4420 = vmatprep.subr.bf16.mxu0 %v4363
    %4421 = vmatpush1.bf16.msra.mxu0 %v4362
    %4422 = vmatprep.subr.bf16.mxu0 %v4361
    %4423 = vmatpush1.bf16.msra.mxu0 %v4360
    %4424 = vmatprep.subr.bf16.mxu0 %v4359
    %4425 = vmatpush1.bf16.msra.mxu0 %v4358
    %4426 = vmatprep.subr.bf16.mxu0 %v4357
    %4427 = vmatpush1.bf16.msra.mxu0 %v4356
    %4428 = vmatprep.subr.bf16.mxu0 %v4355
    %4429 = vmatpush1.bf16.msra.mxu0 %v4354
    %4430 = vmatprep.subr.bf16.mxu0 %v4353
    %4431 = vmatpush1.bf16.msra.mxu0 %v4352
    %4432 = vmatprep.subr.bf16.mxu0 %v4383
    %4433 = vmatpush2.bf16.msra.mxu0 %v4382
    %4434 = vmatprep.subr.bf16.mxu0 %v4381
    %4435 = vmatpush2.bf16.msra.mxu0 %v4380
    %4436 = vmatprep.subr.bf16.mxu0 %v4379
    %4437 = vmatpush2.bf16.msra.mxu0 %v4378
    %4438 = vmatprep.subr.bf16.mxu0 %v4377
    %4439 = vmatpush2.bf16.msra.mxu0 %v4376
    %4440 = vmatprep.subr.bf16.mxu0 %v4375
    %4441 = vmatpush2.bf16.msra.mxu0 %v4374
    %4442 = vmatprep.subr.bf16.mxu0 %v4373
    %4443 = vmatpush2.bf16.msra.mxu0 %v4372
    %4444 = vmatprep.subr.bf16.mxu0 %v4371
    %4445 = vmatpush2.bf16.msra.mxu0 %v4370
    %4446 = vmatprep.subr.bf16.mxu0 %v4369
    %4447 = vmatpush2.bf16.msra.mxu0 %v4368
    %4448 = vmatprep.mubr.bf16.mxu0 %v1531
    %4449 = vmatmul.mubr.bf16.gmra.mxu0 %v1530
    %v4450 = vpop.f32.mrf.mxu0
    %v4451 = vadd.f32 %v2169, %v4450
    %v4452 = vpop.f32.mrf.mxu0
    %v4453 = vadd.f32 %v2173, %v4452
    %v4454 = vpop.f32.mrf.mxu0
    %v4455 = vpop.f32.mrf.mxu0
    %4456 = vdwg.mxu0
    %v4489 = vunpack.c.l.b16 %v1894
    %v4490 = vunpack.c.h.b16 %v1894
    %v4491 = vunpack.c.l.b16 %v1895
    %v4492 = vunpack.c.h.b16 %v1895
    %v4493 = vunpack.c.l.b16 %v1896
    %v4494 = vunpack.c.h.b16 %v1896
    %v4495 = vunpack.c.l.b16 %v1897
    %v4496 = vunpack.c.h.b16 %v1897
    %v4497 = vunpack.c.l.b16 %v1898
    %v4498 = vunpack.c.h.b16 %v1898
    %v4499 = vunpack.c.l.b16 %v1899
    %v4500 = vunpack.c.h.b16 %v1899
    %v4501 = vunpack.c.l.b16 %v1900
    %v4502 = vunpack.c.h.b16 %v1900
    %v4503 = vunpack.c.l.b16 %v1901
    %v4504 = vunpack.c.h.b16 %v1901
    %v4505 = vunpack.c.l.b16 %v1902
    %v4506 = vunpack.c.h.b16 %v1902
    %v4507 = vunpack.c.l.b16 %v1903
    %v4508 = vunpack.c.h.b16 %v1903
    %v4509 = vunpack.c.l.b16 %v1904
    %v4510 = vunpack.c.h.b16 %v1904
    %v4511 = vunpack.c.l.b16 %v1905
    %v4512 = vunpack.c.h.b16 %v1905
    %v4513 = vunpack.c.l.b16 %v1906
    %v4514 = vunpack.c.h.b16 %v1906
    %v4515 = vunpack.c.l.b16 %v1907
    %v4516 = vunpack.c.h.b16 %v1907
    %v4517 = vunpack.c.l.b16 %v1908
    %v4518 = vunpack.c.h.b16 %v1908
    %v4519 = vunpack.c.l.b16 %v1909
    %v4520 = vunpack.c.h.b16 %v1909
    %v4521 = vunpack.c.l.b16 %v1910
    %v4522 = vunpack.c.h.b16 %v1910
    %v4523 = vunpack.c.l.b16 %v1911
    %v4524 = vunpack.c.h.b16 %v1911
    %v4525 = vunpack.c.l.b16 %v1912
    %v4526 = vunpack.c.h.b16 %v1912
    %v4527 = vunpack.c.l.b16 %v1913
    %v4528 = vunpack.c.h.b16 %v1913
    %v4529 = vunpack.c.l.b16 %v1914
    %v4530 = vunpack.c.h.b16 %v1914
    %v4531 = vunpack.c.l.b16 %v1915
    %v4532 = vunpack.c.h.b16 %v1915
    %v4533 = vunpack.c.l.b16 %v1916
    %v4534 = vunpack.c.h.b16 %v1916
    %v4535 = vunpack.c.l.b16 %v1917
    %v4536 = vunpack.c.h.b16 %v1917
    %v4537 = vunpack.c.l.b16 %v1918
    %v4538 = vunpack.c.h.b16 %v1918
    %v4539 = vunpack.c.l.b16 %v1919
    %v4540 = vunpack.c.h.b16 %v1919
    %v4541 = vunpack.c.l.b16 %v1920
    %v4542 = vunpack.c.h.b16 %v1920
    %v4543 = vunpack.c.l.b16 %v1921
    %v4544 = vunpack.c.h.b16 %v1921
    %v4545 = vunpack.c.l.b16 %v1922
    %v4546 = vunpack.c.h.b16 %v1922
    %v4547 = vunpack.c.l.b16 %v1923
    %v4548 = vunpack.c.h.b16 %v1923
    %v4549 = vunpack.c.l.b16 %v1924
    %v4550 = vunpack.c.h.b16 %v1924
    %v4551 = vunpack.c.l.b16 %v1925
    %v4552 = vunpack.c.h.b16 %v1925
    %v4553 = vpack.c.b16 %v4491, %v4489
    %v4554 = vpack.c.b16 %v4492, %v4490
    %v4555 = vpack.c.b16 %v4495, %v4493
    %v4556 = vpack.c.b16 %v4496, %v4494
    %v4557 = vpack.c.b16 %v4499, %v4497
    %v4558 = vpack.c.b16 %v4500, %v4498
    %v4559 = vpack.c.b16 %v4503, %v4501
    %v4560 = vpack.c.b16 %v4504, %v4502
    %v4561 = vpack.c.b16 %v4507, %v4505
    %v4562 = vpack.c.b16 %v4508, %v4506
    %v4563 = vpack.c.b16 %v4511, %v4509
    %v4564 = vpack.c.b16 %v4512, %v4510
    %v4565 = vpack.c.b16 %v4515, %v4513
    %v4566 = vpack.c.b16 %v4516, %v4514
    %v4567 = vpack.c.b16 %v4519, %v4517
    %v4568 = vpack.c.b16 %v4520, %v4518
    %v4569 = vpack.c.b16 %v4523, %v4521
    %v4570 = vpack.c.b16 %v4524, %v4522
    %v4571 = vpack.c.b16 %v4527, %v4525
    %v4572 = vpack.c.b16 %v4528, %v4526
    %v4573 = vpack.c.b16 %v4531, %v4529
    %v4574 = vpack.c.b16 %v4532, %v4530
    %v4575 = vpack.c.b16 %v4535, %v4533
    %v4576 = vpack.c.b16 %v4536, %v4534
    %v4577 = vpack.c.b16 %v4539, %v4537
    %v4578 = vpack.c.b16 %v4540, %v4538
    %v4579 = vpack.c.b16 %v4543, %v4541
    %v4580 = vpack.c.b16 %v4544, %v4542
    %v4581 = vpack.c.b16 %v4547, %v4545
    %v4582 = vpack.c.b16 %v4548, %v4546
    %v4583 = vpack.c.b16 %v4551, %v4549
    %v4584 = vpack.c.b16 %v4552, %v4550
    %4617 = vmatprep.subr.bf16.mxu0 %v4568
    %4618 = vmatpush1.bf16.msra.mxu0 %v4567
    %4619 = vmatprep.subr.bf16.mxu0 %v4566
    %4620 = vmatpush1.bf16.msra.mxu0 %v4565
    %4621 = vmatprep.subr.bf16.mxu0 %v4564
    %4622 = vmatpush1.bf16.msra.mxu0 %v4563
    %4623 = vmatprep.subr.bf16.mxu0 %v4562
    %4624 = vmatpush1.bf16.msra.mxu0 %v4561
    %4625 = vmatprep.subr.bf16.mxu0 %v4560
    %4626 = vmatpush1.bf16.msra.mxu0 %v4559
    %4627 = vmatprep.subr.bf16.mxu0 %v4558
    %4628 = vmatpush1.bf16.msra.mxu0 %v4557
    %4629 = vmatprep.subr.bf16.mxu0 %v4556
    %4630 = vmatpush1.bf16.msra.mxu0 %v4555
    %4631 = vmatprep.subr.bf16.mxu0 %v4554
    %4632 = vmatpush1.bf16.msra.mxu0 %v4553
    %4633 = vmatprep.subr.bf16.mxu0 %v4584
    %4634 = vmatpush2.bf16.msra.mxu0 %v4583
    %4635 = vmatprep.subr.bf16.mxu0 %v4582
    %4636 = vmatpush2.bf16.msra.mxu0 %v4581
    %4637 = vmatprep.subr.bf16.mxu0 %v4580
    %4638 = vmatpush2.bf16.msra.mxu0 %v4579
    %4639 = vmatprep.subr.bf16.mxu0 %v4578
    %4640 = vmatpush2.bf16.msra.mxu0 %v4577
    %4641 = vmatprep.subr.bf16.mxu0 %v4576
    %4642 = vmatpush2.bf16.msra.mxu0 %v4575
    %4643 = vmatprep.subr.bf16.mxu0 %v4574
    %4644 = vmatpush2.bf16.msra.mxu0 %v4573
    %4645 = vmatprep.subr.bf16.mxu0 %v4572
    %4646 = vmatpush2.bf16.msra.mxu0 %v4571
    %4647 = vmatprep.subr.bf16.mxu0 %v4570
    %4648 = vmatpush2.bf16.msra.mxu0 %v4569
    %4649 = vmatprep.mubr.bf16.mxu0 %v1533
    %4650 = vmatmul.mubr.bf16.gmra.mxu0 %v1532
    %v4651 = vpop.f32.mrf.mxu0
    %v4652 = vadd.f32 %v2177, %v4651
    %v4653 = vpop.f32.mrf.mxu0
    %v4654 = vadd.f32 %v2181, %v4653
    %v4655 = vpop.f32.mrf.mxu0
    %v4656 = vpop.f32.mrf.mxu0
    %4657 = vdwg.mxu0
    %v4690 = vunpack.c.l.b16 %v1926
    %v4691 = vunpack.c.h.b16 %v1926
    %v4692 = vunpack.c.l.b16 %v1927
    %v4693 = vunpack.c.h.b16 %v1927
    %v4694 = vunpack.c.l.b16 %v1928
    %v4695 = vunpack.c.h.b16 %v1928
    %v4696 = vunpack.c.l.b16 %v1929
    %v4697 = vunpack.c.h.b16 %v1929
    %v4698 = vunpack.c.l.b16 %v1930
    %v4699 = vunpack.c.h.b16 %v1930
    %v4700 = vunpack.c.l.b16 %v1931
    %v4701 = vunpack.c.h.b16 %v1931
    %v4702 = vunpack.c.l.b16 %v1932
    %v4703 = vunpack.c.h.b16 %v1932
    %v4704 = vunpack.c.l.b16 %v1933
    %v4705 = vunpack.c.h.b16 %v1933
    %v4706 = vunpack.c.l.b16 %v1934
    %v4707 = vunpack.c.h.b16 %v1934
    %v4708 = vunpack.c.l.b16 %v1935
    %v4709 = vunpack.c.h.b16 %v1935
    %v4710 = vunpack.c.l.b16 %v1936
    %v4711 = vunpack.c.h.b16 %v1936
    %v4712 = vunpack.c.l.b16 %v1937
    %v4713 = vunpack.c.h.b16 %v1937
    %v4714 = vunpack.c.l.b16 %v1938
    %v4715 = vunpack.c.h.b16 %v1938
    %v4716 = vunpack.c.l.b16 %v1939
    %v4717 = vunpack.c.h.b16 %v1939
    %v4718 = vunpack.c.l.b16 %v1940
    %v4719 = vunpack.c.h.b16 %v1940
    %v4720 = vunpack.c.l.b16 %v1941
    %v4721 = vunpack.c.h.b16 %v1941
    %v4722 = vunpack.c.l.b16 %v1942
    %v4723 = vunpack.c.h.b16 %v1942
    %v4724 = vunpack.c.l.b16 %v1943
    %v4725 = vunpack.c.h.b16 %v1943
    %v4726 = vunpack.c.l.b16 %v1944
    %v4727 = vunpack.c.h.b16 %v1944
    %v4728 = vunpack.c.l.b16 %v1945
    %v4729 = vunpack.c.h.b16 %v1945
    %v4730 = vunpack.c.l.b16 %v1946
    %v4731 = vunpack.c.h.b16 %v1946
    %v4732 = vunpack.c.l.b16 %v1947
    %v4733 = vunpack.c.h.b16 %v1947
    %v4734 = vunpack.c.l.b16 %v1948
    %v4735 = vunpack.c.h.b16 %v1948
    %v4736 = vunpack.c.l.b16 %v1949
    %v4737 = vunpack.c.h.b16 %v1949
    %v4738 = vunpack.c.l.b16 %v1950
    %v4739 = vunpack.c.h.b16 %v1950
    %v4740 = vunpack.c.l.b16 %v1951
    %v4741 = vunpack.c.h.b16 %v1951
    %v4742 = vunpack.c.l.b16 %v1952
    %v4743 = vunpack.c.h.b16 %v1952
    %v4744 = vunpack.c.l.b16 %v1953
    %v4745 = vunpack.c.h.b16 %v1953
    %v4746 = vunpack.c.l.b16 %v1954
    %v4747 = vunpack.c.h.b16 %v1954
    %v4748 = vunpack.c.l.b16 %v1955
    %v4749 = vunpack.c.h.b16 %v1955
    %v4750 = vunpack.c.l.b16 %v1956
    %v4751 = vunpack.c.h.b16 %v1956
    %v4752 = vunpack.c.l.b16 %v1957
    %v4753 = vunpack.c.h.b16 %v1957
    %v4754 = vpack.c.b16 %v4692, %v4690
    %v4755 = vpack.c.b16 %v4693, %v4691
    %v4756 = vpack.c.b16 %v4696, %v4694
    %v4757 = vpack.c.b16 %v4697, %v4695
    %v4758 = vpack.c.b16 %v4700, %v4698
    %v4759 = vpack.c.b16 %v4701, %v4699
    %v4760 = vpack.c.b16 %v4704, %v4702
    %v4761 = vpack.c.b16 %v4705, %v4703
    %v4762 = vpack.c.b16 %v4708, %v4706
    %v4763 = vpack.c.b16 %v4709, %v4707
    %v4764 = vpack.c.b16 %v4712, %v4710
    %v4765 = vpack.c.b16 %v4713, %v4711
    %v4766 = vpack.c.b16 %v4716, %v4714
    %v4767 = vpack.c.b16 %v4717, %v4715
    %v4768 = vpack.c.b16 %v4720, %v4718
    %v4769 = vpack.c.b16 %v4721, %v4719
    %v4770 = vpack.c.b16 %v4724, %v4722
    %v4771 = vpack.c.b16 %v4725, %v4723
    %v4772 = vpack.c.b16 %v4728, %v4726
    %v4773 = vpack.c.b16 %v4729, %v4727
    %v4774 = vpack.c.b16 %v4732, %v4730
    %v4775 = vpack.c.b16 %v4733, %v4731
    %v4776 = vpack.c.b16 %v4736, %v4734
    %v4777 = vpack.c.b16 %v4737, %v4735
    %v4778 = vpack.c.b16 %v4740, %v4738
    %v4779 = vpack.c.b16 %v4741, %v4739
    %v4780 = vpack.c.b16 %v4744, %v4742
    %v4781 = vpack.c.b16 %v4745, %v4743
    %v4782 = vpack.c.b16 %v4748, %v4746
    %v4783 = vpack.c.b16 %v4749, %v4747
    %v4784 = vpack.c.b16 %v4752, %v4750
    %v4785 = vpack.c.b16 %v4753, %v4751
    %4818 = vmatprep.subr.bf16.mxu0 %v4769
    %4819 = vmatpush1.bf16.msra.mxu0 %v4768
    %4820 = vmatprep.subr.bf16.mxu0 %v4767
    %4821 = vmatpush1.bf16.msra.mxu0 %v4766
    %4822 = vmatprep.subr.bf16.mxu0 %v4765
    %4823 = vmatpush1.bf16.msra.mxu0 %v4764
    %4824 = vmatprep.subr.bf16.mxu0 %v4763
    %4825 = vmatpush1.bf16.msra.mxu0 %v4762
    %4826 = vmatprep.subr.bf16.mxu0 %v4761
    %4827 = vmatpush1.bf16.msra.mxu0 %v4760
    %4828 = vmatprep.subr.bf16.mxu0 %v4759
    %4829 = vmatpush1.bf16.msra.mxu0 %v4758
    %4830 = vmatprep.subr.bf16.mxu0 %v4757
    %4831 = vmatpush1.bf16.msra.mxu0 %v4756
    %4832 = vmatprep.subr.bf16.mxu0 %v4755
    %4833 = vmatpush1.bf16.msra.mxu0 %v4754
    %4834 = vmatprep.subr.bf16.mxu0 %v4785
    %4835 = vmatpush2.bf16.msra.mxu0 %v4784
    %4836 = vmatprep.subr.bf16.mxu0 %v4783
    %4837 = vmatpush2.bf16.msra.mxu0 %v4782
    %4838 = vmatprep.subr.bf16.mxu0 %v4781
    %4839 = vmatpush2.bf16.msra.mxu0 %v4780
    %4840 = vmatprep.subr.bf16.mxu0 %v4779
    %4841 = vmatpush2.bf16.msra.mxu0 %v4778
    %4842 = vmatprep.subr.bf16.mxu0 %v4777
    %4843 = vmatpush2.bf16.msra.mxu0 %v4776
    %4844 = vmatprep.subr.bf16.mxu0 %v4775
    %4845 = vmatpush2.bf16.msra.mxu0 %v4774
    %4846 = vmatprep.subr.bf16.mxu0 %v4773
    %4847 = vmatpush2.bf16.msra.mxu0 %v4772
    %4848 = vmatprep.subr.bf16.mxu0 %v4771
    %4849 = vmatpush2.bf16.msra.mxu0 %v4770
    %4850 = vmatprep.mubr.bf16.mxu0 %v1535
    %4851 = vmatmul.mubr.bf16.gmra.mxu0 %v1534
    %v4852 = vpop.f32.mrf.mxu0
    %v4853 = vadd.f32 %v2185, %v4852
    %v4854 = vpop.f32.mrf.mxu0
    %v4855 = vadd.f32 %v2189, %v4854
    %v4856 = vpop.f32.mrf.mxu0
    %v4857 = vpop.f32.mrf.mxu0
    %4858 = vdwg.mxu0
    %v4891 = vunpack.c.l.b16 %v1958
    %v4892 = vunpack.c.h.b16 %v1958
    %v4893 = vunpack.c.l.b16 %v1959
    %v4894 = vunpack.c.h.b16 %v1959
    %v4895 = vunpack.c.l.b16 %v1960
    %v4896 = vunpack.c.h.b16 %v1960
    %v4897 = vunpack.c.l.b16 %v1961
    %v4898 = vunpack.c.h.b16 %v1961
    %v4899 = vunpack.c.l.b16 %v1962
    %v4900 = vunpack.c.h.b16 %v1962
    %v4901 = vunpack.c.l.b16 %v1963
    %v4902 = vunpack.c.h.b16 %v1963
    %v4903 = vunpack.c.l.b16 %v1964
    %v4904 = vunpack.c.h.b16 %v1964
    %v4905 = vunpack.c.l.b16 %v1965
    %v4906 = vunpack.c.h.b16 %v1965
    %v4907 = vunpack.c.l.b16 %v1966
    %v4908 = vunpack.c.h.b16 %v1966
    %v4909 = vunpack.c.l.b16 %v1967
    %v4910 = vunpack.c.h.b16 %v1967
    %v4911 = vunpack.c.l.b16 %v1968
    %v4912 = vunpack.c.h.b16 %v1968
    %v4913 = vunpack.c.l.b16 %v1969
    %v4914 = vunpack.c.h.b16 %v1969
    %v4915 = vunpack.c.l.b16 %v1970
    %v4916 = vunpack.c.h.b16 %v1970
    %v4917 = vunpack.c.l.b16 %v1971
    %v4918 = vunpack.c.h.b16 %v1971
    %v4919 = vunpack.c.l.b16 %v1972
    %v4920 = vunpack.c.h.b16 %v1972
    %v4921 = vunpack.c.l.b16 %v1973
    %v4922 = vunpack.c.h.b16 %v1973
    %v4923 = vunpack.c.l.b16 %v1974
    %v4924 = vunpack.c.h.b16 %v1974
    %v4925 = vunpack.c.l.b16 %v1975
    %v4926 = vunpack.c.h.b16 %v1975
    %v4927 = vunpack.c.l.b16 %v1976
    %v4928 = vunpack.c.h.b16 %v1976
    %v4929 = vunpack.c.l.b16 %v1977
    %v4930 = vunpack.c.h.b16 %v1977
    %v4931 = vunpack.c.l.b16 %v1978
    %v4932 = vunpack.c.h.b16 %v1978
    %v4933 = vunpack.c.l.b16 %v1979
    %v4934 = vunpack.c.h.b16 %v1979
    %v4935 = vunpack.c.l.b16 %v1980
    %v4936 = vunpack.c.h.b16 %v1980
    %v4937 = vunpack.c.l.b16 %v1981
    %v4938 = vunpack.c.h.b16 %v1981
    %v4939 = vunpack.c.l.b16 %v1982
    %v4940 = vunpack.c.h.b16 %v1982
    %v4941 = vunpack.c.l.b16 %v1983
    %v4942 = vunpack.c.h.b16 %v1983
    %v4943 = vunpack.c.l.b16 %v1984
    %v4944 = vunpack.c.h.b16 %v1984
    %v4945 = vunpack.c.l.b16 %v1985
    %v4946 = vunpack.c.h.b16 %v1985
    %v4947 = vunpack.c.l.b16 %v1986
    %v4948 = vunpack.c.h.b16 %v1986
    %v4949 = vunpack.c.l.b16 %v1987
    %v4950 = vunpack.c.h.b16 %v1987
    %v4951 = vunpack.c.l.b16 %v1988
    %v4952 = vunpack.c.h.b16 %v1988
    %v4953 = vunpack.c.l.b16 %v1989
    %v4954 = vunpack.c.h.b16 %v1989
    %v4955 = vpack.c.b16 %v4893, %v4891
    %v4956 = vpack.c.b16 %v4894, %v4892
    %v4957 = vpack.c.b16 %v4897, %v4895
    %v4958 = vpack.c.b16 %v4898, %v4896
    %v4959 = vpack.c.b16 %v4901, %v4899
    %v4960 = vpack.c.b16 %v4902, %v4900
    %v4961 = vpack.c.b16 %v4905, %v4903
    %v4962 = vpack.c.b16 %v4906, %v4904
    %v4963 = vpack.c.b16 %v4909, %v4907
    %v4964 = vpack.c.b16 %v4910, %v4908
    %v4965 = vpack.c.b16 %v4913, %v4911
    %v4966 = vpack.c.b16 %v4914, %v4912
    %v4967 = vpack.c.b16 %v4917, %v4915
    %v4968 = vpack.c.b16 %v4918, %v4916
    %v4969 = vpack.c.b16 %v4921, %v4919
    %v4970 = vpack.c.b16 %v4922, %v4920
    %v4971 = vpack.c.b16 %v4925, %v4923
    %v4972 = vpack.c.b16 %v4926, %v4924
    %v4973 = vpack.c.b16 %v4929, %v4927
    %v4974 = vpack.c.b16 %v4930, %v4928
    %v4975 = vpack.c.b16 %v4933, %v4931
    %v4976 = vpack.c.b16 %v4934, %v4932
    %v4977 = vpack.c.b16 %v4937, %v4935
    %v4978 = vpack.c.b16 %v4938, %v4936
    %v4979 = vpack.c.b16 %v4941, %v4939
    %v4980 = vpack.c.b16 %v4942, %v4940
    %v4981 = vpack.c.b16 %v4945, %v4943
    %v4982 = vpack.c.b16 %v4946, %v4944
    %v4983 = vpack.c.b16 %v4949, %v4947
    %v4984 = vpack.c.b16 %v4950, %v4948
    %v4985 = vpack.c.b16 %v4953, %v4951
    %v4986 = vpack.c.b16 %v4954, %v4952
    %5019 = vmatprep.subr.bf16.mxu0 %v4970
    %5020 = vmatpush1.bf16.msra.mxu0 %v4969
    %5021 = vmatprep.subr.bf16.mxu0 %v4968
    %5022 = vmatpush1.bf16.msra.mxu0 %v4967
    %5023 = vmatprep.subr.bf16.mxu0 %v4966
    %5024 = vmatpush1.bf16.msra.mxu0 %v4965
    %5025 = vmatprep.subr.bf16.mxu0 %v4964
    %5026 = vmatpush1.bf16.msra.mxu0 %v4963
    %5027 = vmatprep.subr.bf16.mxu0 %v4962
    %5028 = vmatpush1.bf16.msra.mxu0 %v4961
    %5029 = vmatprep.subr.bf16.mxu0 %v4960
    %5030 = vmatpush1.bf16.msra.mxu0 %v4959
    %5031 = vmatprep.subr.bf16.mxu0 %v4958
    %5032 = vmatpush1.bf16.msra.mxu0 %v4957
    %5033 = vmatprep.subr.bf16.mxu0 %v4956
    %5034 = vmatpush1.bf16.msra.mxu0 %v4955
    %5035 = vmatprep.subr.bf16.mxu0 %v4986
    %5036 = vmatpush2.bf16.msra.mxu0 %v4985
    %5037 = vmatprep.subr.bf16.mxu0 %v4984
    %5038 = vmatpush2.bf16.msra.mxu0 %v4983
    %5039 = vmatprep.subr.bf16.mxu0 %v4982
    %5040 = vmatpush2.bf16.msra.mxu0 %v4981
    %5041 = vmatprep.subr.bf16.mxu0 %v4980
    %5042 = vmatpush2.bf16.msra.mxu0 %v4979
    %5043 = vmatprep.subr.bf16.mxu0 %v4978
    %5044 = vmatpush2.bf16.msra.mxu0 %v4977
    %5045 = vmatprep.subr.bf16.mxu0 %v4976
    %5046 = vmatpush2.bf16.msra.mxu0 %v4975
    %5047 = vmatprep.subr.bf16.mxu0 %v4974
    %5048 = vmatpush2.bf16.msra.mxu0 %v4973
    %5049 = vmatprep.subr.bf16.mxu0 %v4972
    %5050 = vmatpush2.bf16.msra.mxu0 %v4971
    %5051 = vmatprep.mubr.bf16.mxu0 %v1537
    %5052 = vmatmul.mubr.bf16.gmra.mxu0 %v1536
    %v5053 = vpop.f32.mrf.mxu0
    %v5054 = vadd.f32 %v2193, %v5053
    %v5055 = vpop.f32.mrf.mxu0
    %v5056 = vadd.f32 %v2197, %v5055
    %v5057 = vpop.f32.mrf.mxu0
    %v5058 = vpop.f32.mrf.mxu0
    %5059 = vdwg.mxu0
    %v5092 = vunpack.c.l.b16 %v1990
    %v5093 = vunpack.c.h.b16 %v1990
    %v5094 = vunpack.c.l.b16 %v1991
    %v5095 = vunpack.c.h.b16 %v1991
    %v5096 = vunpack.c.l.b16 %v1992
    %v5097 = vunpack.c.h.b16 %v1992
    %v5098 = vunpack.c.l.b16 %v1993
    %v5099 = vunpack.c.h.b16 %v1993
    %v5100 = vunpack.c.l.b16 %v1994
    %v5101 = vunpack.c.h.b16 %v1994
    %v5102 = vunpack.c.l.b16 %v1995
    %v5103 = vunpack.c.h.b16 %v1995
    %v5104 = vunpack.c.l.b16 %v1996
    %v5105 = vunpack.c.h.b16 %v1996
    %v5106 = vunpack.c.l.b16 %v1997
    %v5107 = vunpack.c.h.b16 %v1997
    %v5108 = vunpack.c.l.b16 %v1998
    %v5109 = vunpack.c.h.b16 %v1998
    %v5110 = vunpack.c.l.b16 %v1999
    %v5111 = vunpack.c.h.b16 %v1999
    %v5112 = vunpack.c.l.b16 %v2000
    %v5113 = vunpack.c.h.b16 %v2000
    %v5114 = vunpack.c.l.b16 %v2001
    %v5115 = vunpack.c.h.b16 %v2001
    %v5116 = vunpack.c.l.b16 %v2002
    %v5117 = vunpack.c.h.b16 %v2002
    %v5118 = vunpack.c.l.b16 %v2003
    %v5119 = vunpack.c.h.b16 %v2003
    %v5120 = vunpack.c.l.b16 %v2004
    %v5121 = vunpack.c.h.b16 %v2004
    %v5122 = vunpack.c.l.b16 %v2005
    %v5123 = vunpack.c.h.b16 %v2005
    %v5124 = vunpack.c.l.b16 %v2006
    %v5125 = vunpack.c.h.b16 %v2006
    %v5126 = vunpack.c.l.b16 %v2007
    %v5127 = vunpack.c.h.b16 %v2007
    %v5128 = vunpack.c.l.b16 %v2008
    %v5129 = vunpack.c.h.b16 %v2008
    %v5130 = vunpack.c.l.b16 %v2009
    %v5131 = vunpack.c.h.b16 %v2009
    %v5132 = vunpack.c.l.b16 %v2010
    %v5133 = vunpack.c.h.b16 %v2010
    %v5134 = vunpack.c.l.b16 %v2011
    %v5135 = vunpack.c.h.b16 %v2011
    %v5136 = vunpack.c.l.b16 %v2012
    %v5137 = vunpack.c.h.b16 %v2012
    %v5138 = vunpack.c.l.b16 %v2013
    %v5139 = vunpack.c.h.b16 %v2013
    %v5140 = vunpack.c.l.b16 %v2014
    %v5141 = vunpack.c.h.b16 %v2014
    %v5142 = vunpack.c.l.b16 %v2015
    %v5143 = vunpack.c.h.b16 %v2015
    %v5144 = vunpack.c.l.b16 %v2016
    %v5145 = vunpack.c.h.b16 %v2016
    %v5146 = vunpack.c.l.b16 %v2017
    %v5147 = vunpack.c.h.b16 %v2017
    %v5148 = vunpack.c.l.b16 %v2018
    %v5149 = vunpack.c.h.b16 %v2018
    %v5150 = vunpack.c.l.b16 %v2019
    %v5151 = vunpack.c.h.b16 %v2019
    %v5152 = vunpack.c.l.b16 %v2020
    %v5153 = vunpack.c.h.b16 %v2020
    %v5154 = vunpack.c.l.b16 %v2021
    %v5155 = vunpack.c.h.b16 %v2021
    %v5156 = vpack.c.b16 %v5094, %v5092
    %v5157 = vpack.c.b16 %v5095, %v5093
    %v5158 = vpack.c.b16 %v5098, %v5096
    %v5159 = vpack.c.b16 %v5099, %v5097
    %v5160 = vpack.c.b16 %v5102, %v5100
    %v5161 = vpack.c.b16 %v5103, %v5101
    %v5162 = vpack.c.b16 %v5106, %v5104
    %v5163 = vpack.c.b16 %v5107, %v5105
    %v5164 = vpack.c.b16 %v5110, %v5108
    %v5165 = vpack.c.b16 %v5111, %v5109
    %v5166 = vpack.c.b16 %v5114, %v5112
    %v5167 = vpack.c.b16 %v5115, %v5113
    %v5168 = vpack.c.b16 %v5118, %v5116
    %v5169 = vpack.c.b16 %v5119, %v5117
    %v5170 = vpack.c.b16 %v5122, %v5120
    %v5171 = vpack.c.b16 %v5123, %v5121
    %v5172 = vpack.c.b16 %v5126, %v5124
    %v5173 = vpack.c.b16 %v5127, %v5125
    %v5174 = vpack.c.b16 %v5130, %v5128
    %v5175 = vpack.c.b16 %v5131, %v5129
    %v5176 = vpack.c.b16 %v5134, %v5132
    %v5177 = vpack.c.b16 %v5135, %v5133
    %v5178 = vpack.c.b16 %v5138, %v5136
    %v5179 = vpack.c.b16 %v5139, %v5137
    %v5180 = vpack.c.b16 %v5142, %v5140
    %v5181 = vpack.c.b16 %v5143, %v5141
    %v5182 = vpack.c.b16 %v5146, %v5144
    %v5183 = vpack.c.b16 %v5147, %v5145
    %v5184 = vpack.c.b16 %v5150, %v5148
    %v5185 = vpack.c.b16 %v5151, %v5149
    %v5186 = vpack.c.b16 %v5154, %v5152
    %v5187 = vpack.c.b16 %v5155, %v5153
    %5220 = vmatprep.subr.bf16.mxu0 %v5171
    %5221 = vmatpush1.bf16.msra.mxu0 %v5170
    %5222 = vmatprep.subr.bf16.mxu0 %v5169
    %5223 = vmatpush1.bf16.msra.mxu0 %v5168
    %5224 = vmatprep.subr.bf16.mxu0 %v5167
    %5225 = vmatpush1.bf16.msra.mxu0 %v5166
    %5226 = vmatprep.subr.bf16.mxu0 %v5165
    %5227 = vmatpush1.bf16.msra.mxu0 %v5164
    %5228 = vmatprep.subr.bf16.mxu0 %v5163
    %5229 = vmatpush1.bf16.msra.mxu0 %v5162
    %5230 = vmatprep.subr.bf16.mxu0 %v5161
    %5231 = vmatpush1.bf16.msra.mxu0 %v5160
    %5232 = vmatprep.subr.bf16.mxu0 %v5159
    %5233 = vmatpush1.bf16.msra.mxu0 %v5158
    %5234 = vmatprep.subr.bf16.mxu0 %v5157
    %5235 = vmatpush1.bf16.msra.mxu0 %v5156
    %5236 = vmatprep.subr.bf16.mxu0 %v5187
    %5237 = vmatpush2.bf16.msra.mxu0 %v5186
    %5238 = vmatprep.subr.bf16.mxu0 %v5185
    %5239 = vmatpush2.bf16.msra.mxu0 %v5184
    %5240 = vmatprep.subr.bf16.mxu0 %v5183
    %5241 = vmatpush2.bf16.msra.mxu0 %v5182
    %5242 = vmatprep.subr.bf16.mxu0 %v5181
    %5243 = vmatpush2.bf16.msra.mxu0 %v5180
    %5244 = vmatprep.subr.bf16.mxu0 %v5179
    %5245 = vmatpush2.bf16.msra.mxu0 %v5178
    %5246 = vmatprep.subr.bf16.mxu0 %v5177
    %5247 = vmatpush2.bf16.msra.mxu0 %v5176
    %5248 = vmatprep.subr.bf16.mxu0 %v5175
    %5249 = vmatpush2.bf16.msra.mxu0 %v5174
    %5250 = vmatprep.subr.bf16.mxu0 %v5173
    %5251 = vmatpush2.bf16.msra.mxu0 %v5172
    %5252 = vmatprep.mubr.bf16.mxu0 %v1539
    %5253 = vmatmul.mubr.bf16.gmra.mxu0 %v1538
    %v5254 = vpop.f32.mrf.mxu0
    %v5255 = vadd.f32 %v2201, %v5254
    %v5256 = vpop.f32.mrf.mxu0
    %v5257 = vadd.f32 %v2205, %v5256
    %v5258 = vpop.f32.mrf.mxu0
    %v5259 = vpop.f32.mrf.mxu0
    %5260 = vdwg.mxu0
    %v5293 = vunpack.c.l.b16 %v2022
    %v5294 = vunpack.c.h.b16 %v2022
    %v5295 = vunpack.c.l.b16 %v2023
    %v5296 = vunpack.c.h.b16 %v2023
    %v5297 = vunpack.c.l.b16 %v2024
    %v5298 = vunpack.c.h.b16 %v2024
    %v5299 = vunpack.c.l.b16 %v2025
    %v5300 = vunpack.c.h.b16 %v2025
    %v5301 = vunpack.c.l.b16 %v2026
    %v5302 = vunpack.c.h.b16 %v2026
    %v5303 = vunpack.c.l.b16 %v2027
    %v5304 = vunpack.c.h.b16 %v2027
    %v5305 = vunpack.c.l.b16 %v2028
    %v5306 = vunpack.c.h.b16 %v2028
    %v5307 = vunpack.c.l.b16 %v2029
    %v5308 = vunpack.c.h.b16 %v2029
    %v5309 = vunpack.c.l.b16 %v2030
    %v5310 = vunpack.c.h.b16 %v2030
    %v5311 = vunpack.c.l.b16 %v2031
    %v5312 = vunpack.c.h.b16 %v2031
    %v5313 = vunpack.c.l.b16 %v2032
    %v5314 = vunpack.c.h.b16 %v2032
    %v5315 = vunpack.c.l.b16 %v2033
    %v5316 = vunpack.c.h.b16 %v2033
    %v5317 = vunpack.c.l.b16 %v2034
    %v5318 = vunpack.c.h.b16 %v2034
    %v5319 = vunpack.c.l.b16 %v2035
    %v5320 = vunpack.c.h.b16 %v2035
    %v5321 = vunpack.c.l.b16 %v2036
    %v5322 = vunpack.c.h.b16 %v2036
    %v5323 = vunpack.c.l.b16 %v2037
    %v5324 = vunpack.c.h.b16 %v2037
    %v5325 = vunpack.c.l.b16 %v2038
    %v5326 = vunpack.c.h.b16 %v2038
    %v5327 = vunpack.c.l.b16 %v2039
    %v5328 = vunpack.c.h.b16 %v2039
    %v5329 = vunpack.c.l.b16 %v2040
    %v5330 = vunpack.c.h.b16 %v2040
    %v5331 = vunpack.c.l.b16 %v2041
    %v5332 = vunpack.c.h.b16 %v2041
    %v5333 = vunpack.c.l.b16 %v2042
    %v5334 = vunpack.c.h.b16 %v2042
    %v5335 = vunpack.c.l.b16 %v2043
    %v5336 = vunpack.c.h.b16 %v2043
    %v5337 = vunpack.c.l.b16 %v2044
    %v5338 = vunpack.c.h.b16 %v2044
    %v5339 = vunpack.c.l.b16 %v2045
    %v5340 = vunpack.c.h.b16 %v2045
    %v5341 = vunpack.c.l.b16 %v2046
    %v5342 = vunpack.c.h.b16 %v2046
    %v5343 = vunpack.c.l.b16 %v2047
    %v5344 = vunpack.c.h.b16 %v2047
    %v5345 = vunpack.c.l.b16 %v2048
    %v5346 = vunpack.c.h.b16 %v2048
    %v5347 = vunpack.c.l.b16 %v2049
    %v5348 = vunpack.c.h.b16 %v2049
    %v5349 = vunpack.c.l.b16 %v2050
    %v5350 = vunpack.c.h.b16 %v2050
    %v5351 = vunpack.c.l.b16 %v2051
    %v5352 = vunpack.c.h.b16 %v2051
    %v5353 = vunpack.c.l.b16 %v2052
    %v5354 = vunpack.c.h.b16 %v2052
    %v5355 = vunpack.c.l.b16 %v2053
    %v5356 = vunpack.c.h.b16 %v2053
    %v5357 = vpack.c.b16 %v5295, %v5293
    %v5358 = vpack.c.b16 %v5296, %v5294
    %v5359 = vpack.c.b16 %v5299, %v5297
    %v5360 = vpack.c.b16 %v5300, %v5298
    %v5361 = vpack.c.b16 %v5303, %v5301
    %v5362 = vpack.c.b16 %v5304, %v5302
    %v5363 = vpack.c.b16 %v5307, %v5305
    %v5364 = vpack.c.b16 %v5308, %v5306
    %v5365 = vpack.c.b16 %v5311, %v5309
    %v5366 = vpack.c.b16 %v5312, %v5310
    %v5367 = vpack.c.b16 %v5315, %v5313
    %v5368 = vpack.c.b16 %v5316, %v5314
    %v5369 = vpack.c.b16 %v5319, %v5317
    %v5370 = vpack.c.b16 %v5320, %v5318
    %v5371 = vpack.c.b16 %v5323, %v5321
    %v5372 = vpack.c.b16 %v5324, %v5322
    %v5373 = vpack.c.b16 %v5327, %v5325
    %v5374 = vpack.c.b16 %v5328, %v5326
    %v5375 = vpack.c.b16 %v5331, %v5329
    %v5376 = vpack.c.b16 %v5332, %v5330
    %v5377 = vpack.c.b16 %v5335, %v5333
    %v5378 = vpack.c.b16 %v5336, %v5334
    %v5379 = vpack.c.b16 %v5339, %v5337
    %v5380 = vpack.c.b16 %v5340, %v5338
    %v5381 = vpack.c.b16 %v5343, %v5341
    %v5382 = vpack.c.b16 %v5344, %v5342
    %v5383 = vpack.c.b16 %v5347, %v5345
    %v5384 = vpack.c.b16 %v5348, %v5346
    %v5385 = vpack.c.b16 %v5351, %v5349
    %v5386 = vpack.c.b16 %v5352, %v5350
    %v5387 = vpack.c.b16 %v5355, %v5353
    %v5388 = vpack.c.b16 %v5356, %v5354
    %5421 = vmatprep.subr.bf16.mxu0 %v5372
    %5422 = vmatpush1.bf16.msra.mxu0 %v5371
    %5423 = vmatprep.subr.bf16.mxu0 %v5370
    %5424 = vmatpush1.bf16.msra.mxu0 %v5369
    %5425 = vmatprep.subr.bf16.mxu0 %v5368
    %5426 = vmatpush1.bf16.msra.mxu0 %v5367
    %5427 = vmatprep.subr.bf16.mxu0 %v5366
    %5428 = vmatpush1.bf16.msra.mxu0 %v5365
    %5429 = vmatprep.subr.bf16.mxu0 %v5364
    %5430 = vmatpush1.bf16.msra.mxu0 %v5363
    %5431 = vmatprep.subr.bf16.mxu0 %v5362
    %5432 = vmatpush1.bf16.msra.mxu0 %v5361
    %5433 = vmatprep.subr.bf16.mxu0 %v5360
    %5434 = vmatpush1.bf16.msra.mxu0 %v5359
    %5435 = vmatprep.subr.bf16.mxu0 %v5358
    %5436 = vmatpush1.bf16.msra.mxu0 %v5357
    %5437 = vmatprep.subr.bf16.mxu0 %v5388
    %5438 = vmatpush2.bf16.msra.mxu0 %v5387
    %5439 = vmatprep.subr.bf16.mxu0 %v5386
    %5440 = vmatpush2.bf16.msra.mxu0 %v5385
    %5441 = vmatprep.subr.bf16.mxu0 %v5384
    %5442 = vmatpush2.bf16.msra.mxu0 %v5383
    %5443 = vmatprep.subr.bf16.mxu0 %v5382
    %5444 = vmatpush2.bf16.msra.mxu0 %v5381
    %5445 = vmatprep.subr.bf16.mxu0 %v5380
    %5446 = vmatpush2.bf16.msra.mxu0 %v5379
    %5447 = vmatprep.subr.bf16.mxu0 %v5378
    %5448 = vmatpush2.bf16.msra.mxu0 %v5377
    %5449 = vmatprep.subr.bf16.mxu0 %v5376
    %5450 = vmatpush2.bf16.msra.mxu0 %v5375
    %5451 = vmatprep.subr.bf16.mxu0 %v5374
    %5452 = vmatpush2.bf16.msra.mxu0 %v5373
    %5453 = vmatprep.mubr.bf16.mxu0 %v1541
    %5454 = vmatmul.mubr.bf16.gmra.mxu0 %v1540
    %v5455 = vpop.f32.mrf.mxu0
    %v5456 = vadd.f32 %v2209, %v5455
    %v5457 = vpop.f32.mrf.mxu0
    %v5458 = vadd.f32 %v2213, %v5457
    %v5459 = vpop.f32.mrf.mxu0
    %v5460 = vpop.f32.mrf.mxu0
    %5461 = vdwg.mxu0
    %v5462 = vmax.f32 %v2441, 0.0
    %v5463 = vmax.f32 %v2443, 0.0
    %v5464 = vmax.f32 %v2642, 0.0
    %v5465 = vmax.f32 %v2644, 0.0
    %v5466 = vmax.f32 %v2843, 0.0
    %v5467 = vmax.f32 %v2845, 0.0
    %v5468 = vmax.f32 %v3044, 0.0
    %v5469 = vmax.f32 %v3046, 0.0
    %v5470 = vmax.f32 %v3245, 0.0
    %v5471 = vmax.f32 %v3247, 0.0
    %v5472 = vmax.f32 %v3446, 0.0
    %v5473 = vmax.f32 %v3448, 0.0
    %v5474 = vmax.f32 %v3647, 0.0
    %v5475 = vmax.f32 %v3649, 0.0
    %v5476 = vmax.f32 %v3848, 0.0
    %v5477 = vmax.f32 %v3850, 0.0
    %v5478 = vmax.f32 %v4049, 0.0
    %v5479 = vmax.f32 %v4051, 0.0
    %v5480 = vmax.f32 %v4250, 0.0
    %v5481 = vmax.f32 %v4252, 0.0
    %v5482 = vmax.f32 %v4451, 0.0
    %v5483 = vmax.f32 %v4453, 0.0
    %v5484 = vmax.f32 %v4652, 0.0
    %v5485 = vmax.f32 %v4654, 0.0
    %v5486 = vmax.f32 %v4853, 0.0
    %v5487 = vmax.f32 %v4855, 0.0
    %v5488 = vmax.f32 %v5054, 0.0
    %v5489 = vmax.f32 %v5056, 0.0
    %v5490 = vmax.f32 %v5255, 0.0
    %v5491 = vmax.f32 %v5257, 0.0
    %v5492 = vmax.f32 %v5456, 0.0
    %v5493 = vmax.f32 %v5458, 0.0
    %v5494 = vpack.c.bf16 %v5462, %v5462
    %v5495 = vpack.c.bf16 %v5463, %v5463
    %v5496 = vpack.c.bf16 %v5464, %v5464
    %v5497 = vpack.c.bf16 %v5465, %v5465
    %v5498 = vpack.c.bf16 %v5466, %v5466
    %v5499 = vpack.c.bf16 %v5467, %v5467
    %v5500 = vpack.c.bf16 %v5468, %v5468
    %v5501 = vpack.c.bf16 %v5469, %v5469
    %v5502 = vpack.c.bf16 %v5470, %v5470
    %v5503 = vpack.c.bf16 %v5471, %v5471
    %v5504 = vpack.c.bf16 %v5472, %v5472
    %v5505 = vpack.c.bf16 %v5473, %v5473
    %v5506 = vpack.c.bf16 %v5474, %v5474
    %v5507 = vpack.c.bf16 %v5475, %v5475
    %v5508 = vpack.c.bf16 %v5476, %v5476
    %v5509 = vpack.c.bf16 %v5477, %v5477
    %v5510 = vpack.c.bf16 %v5478, %v5478
    %v5511 = vpack.c.bf16 %v5479, %v5479
    %v5512 = vpack.c.bf16 %v5480, %v5480
    %v5513 = vpack.c.bf16 %v5481, %v5481
    %v5514 = vpack.c.bf16 %v5482, %v5482
    %v5515 = vpack.c.bf16 %v5483, %v5483
    %v5516 = vpack.c.bf16 %v5484, %v5484
    %v5517 = vpack.c.bf16 %v5485, %v5485
    %v5518 = vpack.c.bf16 %v5486, %v5486
    %v5519 = vpack.c.bf16 %v5487, %v5487
    %v5520 = vpack.c.bf16 %v5488, %v5488
    %v5521 = vpack.c.bf16 %v5489, %v5489
    %v5522 = vpack.c.bf16 %v5490, %v5490
    %v5523 = vpack.c.bf16 %v5491, %v5491
    %v5524 = vpack.c.bf16 %v5492, %v5492
    %v5525 = vpack.c.bf16 %v5493, %v5493
    %v5526 = vld [vmem:[%s5] sm:$0xf]
    %v5527 = vld [vmem:[%s5 + $0x4] sm:$0xf]
    %v5528 = vld [vmem:[%s5 + $0x8] sm:$0xf]
    %v5529 = vld [vmem:[%s5 + $0xc] sm:$0xf]
    %v5530 = vld [vmem:[%s5 + $0x10] sm:$0xf]
    %v5531 = vld [vmem:[%s5 + $0x14] sm:$0xf]
    %v5532 = vld [vmem:[%s5 + $0x18] sm:$0xf]
    %v5533 = vld [vmem:[%s5 + $0x1c] sm:$0xf]
    %v5534 = vld [vmem:[%s5 + $0x20] sm:$0xf]
    %v5535 = vld [vmem:[%s5 + $0x24] sm:$0xf]
    %v5536 = vld [vmem:[%s5 + $0x28] sm:$0xf]
    %v5537 = vld [vmem:[%s5 + $0x2c] sm:$0xf]
    %v5538 = vld [vmem:[%s5 + $0x30] sm:$0xf]
    %v5539 = vld [vmem:[%s5 + $0x34] sm:$0xf]
    %v5540 = vld [vmem:[%s5 + $0x38] sm:$0xf]
    %v5541 = vld [vmem:[%s5 + $0x3c] sm:$0xf]
    %v5542 = vld [vmem:[%s5 + $0x40] sm:$0xf]
    %v5543 = vld [vmem:[%s5 + $0x44] sm:$0xf]
    %v5544 = vld [vmem:[%s5 + $0x48] sm:$0xf]
    %v5545 = vld [vmem:[%s5 + $0x4c] sm:$0xf]
    %v5546 = vld [vmem:[%s5 + $0x50] sm:$0xf]
    %v5547 = vld [vmem:[%s5 + $0x54] sm:$0xf]
    %v5548 = vld [vmem:[%s5 + $0x58] sm:$0xf]
    %v5549 = vld [vmem:[%s5 + $0x5c] sm:$0xf]
    %v5550 = vld [vmem:[%s5 + $0x60] sm:$0xf]
    %v5551 = vld [vmem:[%s5 + $0x64] sm:$0xf]
    %v5552 = vld [vmem:[%s5 + $0x68] sm:$0xf]
    %v5553 = vld [vmem:[%s5 + $0x6c] sm:$0xf]
    %v5554 = vld [vmem:[%s5 + $0x70] sm:$0xf]
    %v5555 = vld [vmem:[%s5 + $0x74] sm:$0xf]
    %v5556 = vld [vmem:[%s5 + $0x78] sm:$0xf]
    %v5557 = vld [vmem:[%s5 + $0x7c] sm:$0xf]
    %v5558 = vld [vmem:[%s5 + $0x80] sm:$0xf]
    %v5559 = vld [vmem:[%s5 + $0x84] sm:$0xf]
    %v5560 = vld [vmem:[%s5 + $0x88] sm:$0xf]
    %v5561 = vld [vmem:[%s5 + $0x8c] sm:$0xf]
    %v5562 = vld [vmem:[%s5 + $0x90] sm:$0xf]
    %v5563 = vld [vmem:[%s5 + $0x94] sm:$0xf]
    %v5564 = vld [vmem:[%s5 + $0x98] sm:$0xf]
    %v5565 = vld [vmem:[%s5 + $0x9c] sm:$0xf]
    %v5566 = vld [vmem:[%s5 + $0xa0] sm:$0xf]
    %v5567 = vld [vmem:[%s5 + $0xa4] sm:$0xf]
    %v5568 = vld [vmem:[%s5 + $0xa8] sm:$0xf]
    %v5569 = vld [vmem:[%s5 + $0xac] sm:$0xf]
    %v5570 = vld [vmem:[%s5 + $0xb0] sm:$0xf]
    %v5571 = vld [vmem:[%s5 + $0xb4] sm:$0xf]
    %v5572 = vld [vmem:[%s5 + $0xb8] sm:$0xf]
    %v5573 = vld [vmem:[%s5 + $0xbc] sm:$0xf]
    %v5574 = vld [vmem:[%s5 + $0xc0] sm:$0xf]
    %v5575 = vld [vmem:[%s5 + $0xc4] sm:$0xf]
    %v5576 = vld [vmem:[%s5 + $0xc8] sm:$0xf]
    %v5577 = vld [vmem:[%s5 + $0xcc] sm:$0xf]
    %v5578 = vld [vmem:[%s5 + $0xd0] sm:$0xf]
    %v5579 = vld [vmem:[%s5 + $0xd4] sm:$0xf]
    %v5580 = vld [vmem:[%s5 + $0xd8] sm:$0xf]
    %v5581 = vld [vmem:[%s5 + $0xdc] sm:$0xf]
    %v5582 = vld [vmem:[%s5 + $0xe0] sm:$0xf]
    %v5583 = vld [vmem:[%s5 + $0xe4] sm:$0xf]
    %v5584 = vld [vmem:[%s5 + $0xe8] sm:$0xf]
    %v5585 = vld [vmem:[%s5 + $0xec] sm:$0xf]
    %v5586 = vld [vmem:[%s5 + $0xf0] sm:$0xf]
    %v5587 = vld [vmem:[%s5 + $0xf4] sm:$0xf]
    %v5588 = vld [vmem:[%s5 + $0xf8] sm:$0xf]
    %v5589 = vld [vmem:[%s5 + $0xfc] sm:$0xf]
    %v5590 = vld [vmem:[%s5 + $0x100] sm:$0xf]
    %v5591 = vld [vmem:[%s5 + $0x104] sm:$0xf]
    %v5592 = vld [vmem:[%s5 + $0x108] sm:$0xf]
    %v5593 = vld [vmem:[%s5 + $0x10c] sm:$0xf]
    %v5594 = vld [vmem:[%s5 + $0x110] sm:$0xf]
    %v5595 = vld [vmem:[%s5 + $0x114] sm:$0xf]
    %v5596 = vld [vmem:[%s5 + $0x118] sm:$0xf]
    %v5597 = vld [vmem:[%s5 + $0x11c] sm:$0xf]
    %v5598 = vld [vmem:[%s5 + $0x120] sm:$0xf]
    %v5599 = vld [vmem:[%s5 + $0x124] sm:$0xf]
    %v5600 = vld [vmem:[%s5 + $0x128] sm:$0xf]
    %v5601 = vld [vmem:[%s5 + $0x12c] sm:$0xf]
    %v5602 = vld [vmem:[%s5 + $0x130] sm:$0xf]
    %v5603 = vld [vmem:[%s5 + $0x134] sm:$0xf]
    %v5604 = vld [vmem:[%s5 + $0x138] sm:$0xf]
    %v5605 = vld [vmem:[%s5 + $0x13c] sm:$0xf]
    %v5606 = vld [vmem:[%s5 + $0x140] sm:$0xf]
    %v5607 = vld [vmem:[%s5 + $0x144] sm:$0xf]
    %v5608 = vld [vmem:[%s5 + $0x148] sm:$0xf]
    %v5609 = vld [vmem:[%s5 + $0x14c] sm:$0xf]
    %v5610 = vld [vmem:[%s5 + $0x150] sm:$0xf]
    %v5611 = vld [vmem:[%s5 + $0x154] sm:$0xf]
    %v5612 = vld [vmem:[%s5 + $0x158] sm:$0xf]
    %v5613 = vld [vmem:[%s5 + $0x15c] sm:$0xf]
    %v5614 = vld [vmem:[%s5 + $0x160] sm:$0xf]
    %v5615 = vld [vmem:[%s5 + $0x164] sm:$0xf]
    %v5616 = vld [vmem:[%s5 + $0x168] sm:$0xf]
    %v5617 = vld [vmem:[%s5 + $0x16c] sm:$0xf]
    %v5618 = vld [vmem:[%s5 + $0x170] sm:$0xf]
    %v5619 = vld [vmem:[%s5 + $0x174] sm:$0xf]
    %v5620 = vld [vmem:[%s5 + $0x178] sm:$0xf]
    %v5621 = vld [vmem:[%s5 + $0x17c] sm:$0xf]
    %v5622 = vld [vmem:[%s5 + $0x180] sm:$0xf]
    %v5623 = vld [vmem:[%s5 + $0x184] sm:$0xf]
    %v5624 = vld [vmem:[%s5 + $0x188] sm:$0xf]
    %v5625 = vld [vmem:[%s5 + $0x18c] sm:$0xf]
    %v5626 = vld [vmem:[%s5 + $0x190] sm:$0xf]
    %v5627 = vld [vmem:[%s5 + $0x194] sm:$0xf]
    %v5628 = vld [vmem:[%s5 + $0x198] sm:$0xf]
    %v5629 = vld [vmem:[%s5 + $0x19c] sm:$0xf]
    %v5630 = vld [vmem:[%s5 + $0x1a0] sm:$0xf]
    %v5631 = vld [vmem:[%s5 + $0x1a4] sm:$0xf]
    %v5632 = vld [vmem:[%s5 + $0x1a8] sm:$0xf]
    %v5633 = vld [vmem:[%s5 + $0x1ac] sm:$0xf]
    %v5634 = vld [vmem:[%s5 + $0x1b0] sm:$0xf]
    %v5635 = vld [vmem:[%s5 + $0x1b4] sm:$0xf]
    %v5636 = vld [vmem:[%s5 + $0x1b8] sm:$0xf]
    %v5637 = vld [vmem:[%s5 + $0x1bc] sm:$0xf]
    %v5638 = vld [vmem:[%s5 + $0x1c0] sm:$0xf]
    %v5639 = vld [vmem:[%s5 + $0x1c4] sm:$0xf]
    %v5640 = vld [vmem:[%s5 + $0x1c8] sm:$0xf]
    %v5641 = vld [vmem:[%s5 + $0x1cc] sm:$0xf]
    %v5642 = vld [vmem:[%s5 + $0x1d0] sm:$0xf]
    %v5643 = vld [vmem:[%s5 + $0x1d4] sm:$0xf]
    %v5644 = vld [vmem:[%s5 + $0x1d8] sm:$0xf]
    %v5645 = vld [vmem:[%s5 + $0x1dc] sm:$0xf]
    %v5646 = vld [vmem:[%s5 + $0x1e0] sm:$0xf]
    %v5647 = vld [vmem:[%s5 + $0x1e4] sm:$0xf]
    %v5648 = vld [vmem:[%s5 + $0x1e8] sm:$0xf]
    %v5649 = vld [vmem:[%s5 + $0x1ec] sm:$0xf]
    %v5650 = vld [vmem:[%s5 + $0x1f0] sm:$0xf]
    %v5651 = vld [vmem:[%s5 + $0x1f4] sm:$0xf]
    %v5652 = vld [vmem:[%s5 + $0x1f8] sm:$0xf]
    %v5653 = vld [vmem:[%s5 + $0x1fc] sm:$0xf]
    %v5654 = vld [vmem:[%s5 + $0x200] sm:$0xf]
    %v5655 = vld [vmem:[%s5 + $0x204] sm:$0xf]
    %v5656 = vld [vmem:[%s5 + $0x208] sm:$0xf]
    %v5657 = vld [vmem:[%s5 + $0x20c] sm:$0xf]
    %v5658 = vld [vmem:[%s5 + $0x210] sm:$0xf]
    %v5659 = vld [vmem:[%s5 + $0x214] sm:$0xf]
    %v5660 = vld [vmem:[%s5 + $0x218] sm:$0xf]
    %v5661 = vld [vmem:[%s5 + $0x21c] sm:$0xf]
    %v5662 = vld [vmem:[%s5 + $0x220] sm:$0xf]
    %v5663 = vld [vmem:[%s5 + $0x224] sm:$0xf]
    %v5664 = vld [vmem:[%s5 + $0x228] sm:$0xf]
    %v5665 = vld [vmem:[%s5 + $0x22c] sm:$0xf]
    %v5666 = vld [vmem:[%s5 + $0x230] sm:$0xf]
    %v5667 = vld [vmem:[%s5 + $0x234] sm:$0xf]
    %v5668 = vld [vmem:[%s5 + $0x238] sm:$0xf]
    %v5669 = vld [vmem:[%s5 + $0x23c] sm:$0xf]
    %v5670 = vld [vmem:[%s5 + $0x240] sm:$0xf]
    %v5671 = vld [vmem:[%s5 + $0x244] sm:$0xf]
    %v5672 = vld [vmem:[%s5 + $0x248] sm:$0xf]
    %v5673 = vld [vmem:[%s5 + $0x24c] sm:$0xf]
    %v5674 = vld [vmem:[%s5 + $0x250] sm:$0xf]
    %v5675 = vld [vmem:[%s5 + $0x254] sm:$0xf]
    %v5676 = vld [vmem:[%s5 + $0x258] sm:$0xf]
    %v5677 = vld [vmem:[%s5 + $0x25c] sm:$0xf]
    %v5678 = vld [vmem:[%s5 + $0x260] sm:$0xf]
    %v5679 = vld [vmem:[%s5 + $0x264] sm:$0xf]
    %v5680 = vld [vmem:[%s5 + $0x268] sm:$0xf]
    %v5681 = vld [vmem:[%s5 + $0x26c] sm:$0xf]
    %v5682 = vld [vmem:[%s5 + $0x270] sm:$0xf]
    %v5683 = vld [vmem:[%s5 + $0x274] sm:$0xf]
    %v5684 = vld [vmem:[%s5 + $0x278] sm:$0xf]
    %v5685 = vld [vmem:[%s5 + $0x27c] sm:$0xf]
    %v5686 = vld [vmem:[%s5 + $0x280] sm:$0xf]
    %v5687 = vld [vmem:[%s5 + $0x284] sm:$0xf]
    %v5688 = vld [vmem:[%s5 + $0x288] sm:$0xf]
    %v5689 = vld [vmem:[%s5 + $0x28c] sm:$0xf]
    %v5690 = vld [vmem:[%s5 + $0x290] sm:$0xf]
    %v5691 = vld [vmem:[%s5 + $0x294] sm:$0xf]
    %v5692 = vld [vmem:[%s5 + $0x298] sm:$0xf]
    %v5693 = vld [vmem:[%s5 + $0x29c] sm:$0xf]
    %v5694 = vld [vmem:[%s5 + $0x2a0] sm:$0xf]
    %v5695 = vld [vmem:[%s5 + $0x2a4] sm:$0xf]
    %v5696 = vld [vmem:[%s5 + $0x2a8] sm:$0xf]
    %v5697 = vld [vmem:[%s5 + $0x2ac] sm:$0xf]
    %v5698 = vld [vmem:[%s5 + $0x2b0] sm:$0xf]
    %v5699 = vld [vmem:[%s5 + $0x2b4] sm:$0xf]
    %v5700 = vld [vmem:[%s5 + $0x2b8] sm:$0xf]
    %v5701 = vld [vmem:[%s5 + $0x2bc] sm:$0xf]
    %v5702 = vld [vmem:[%s5 + $0x2c0] sm:$0xf]
    %v5703 = vld [vmem:[%s5 + $0x2c4] sm:$0xf]
    %v5704 = vld [vmem:[%s5 + $0x2c8] sm:$0xf]
    %v5705 = vld [vmem:[%s5 + $0x2cc] sm:$0xf]
    %v5706 = vld [vmem:[%s5 + $0x2d0] sm:$0xf]
    %v5707 = vld [vmem:[%s5 + $0x2d4] sm:$0xf]
    %v5708 = vld [vmem:[%s5 + $0x2d8] sm:$0xf]
    %v5709 = vld [vmem:[%s5 + $0x2dc] sm:$0xf]
    %v5710 = vld [vmem:[%s5 + $0x2e0] sm:$0xf]
    %v5711 = vld [vmem:[%s5 + $0x2e4] sm:$0xf]
    %v5712 = vld [vmem:[%s5 + $0x2e8] sm:$0xf]
    %v5713 = vld [vmem:[%s5 + $0x2ec] sm:$0xf]
    %v5714 = vld [vmem:[%s5 + $0x2f0] sm:$0xf]
    %v5715 = vld [vmem:[%s5 + $0x2f4] sm:$0xf]
    %v5716 = vld [vmem:[%s5 + $0x2f8] sm:$0xf]
    %v5717 = vld [vmem:[%s5 + $0x2fc] sm:$0xf]
    %v5718 = vld [vmem:[%s5 + $0x300] sm:$0xf]
    %v5719 = vld [vmem:[%s5 + $0x304] sm:$0xf]
    %v5720 = vld [vmem:[%s5 + $0x308] sm:$0xf]
    %v5721 = vld [vmem:[%s5 + $0x30c] sm:$0xf]
    %v5722 = vld [vmem:[%s5 + $0x310] sm:$0xf]
    %v5723 = vld [vmem:[%s5 + $0x314] sm:$0xf]
    %v5724 = vld [vmem:[%s5 + $0x318] sm:$0xf]
    %v5725 = vld [vmem:[%s5 + $0x31c] sm:$0xf]
    %v5726 = vld [vmem:[%s5 + $0x320] sm:$0xf]
    %v5727 = vld [vmem:[%s5 + $0x324] sm:$0xf]
    %v5728 = vld [vmem:[%s5 + $0x328] sm:$0xf]
    %v5729 = vld [vmem:[%s5 + $0x32c] sm:$0xf]
    %v5730 = vld [vmem:[%s5 + $0x330] sm:$0xf]
    %v5731 = vld [vmem:[%s5 + $0x334] sm:$0xf]
    %v5732 = vld [vmem:[%s5 + $0x338] sm:$0xf]
    %v5733 = vld [vmem:[%s5 + $0x33c] sm:$0xf]
    %v5734 = vld [vmem:[%s5 + $0x340] sm:$0xf]
    %v5735 = vld [vmem:[%s5 + $0x344] sm:$0xf]
    %v5736 = vld [vmem:[%s5 + $0x348] sm:$0xf]
    %v5737 = vld [vmem:[%s5 + $0x34c] sm:$0xf]
    %v5738 = vld [vmem:[%s5 + $0x350] sm:$0xf]
    %v5739 = vld [vmem:[%s5 + $0x354] sm:$0xf]
    %v5740 = vld [vmem:[%s5 + $0x358] sm:$0xf]
    %v5741 = vld [vmem:[%s5 + $0x35c] sm:$0xf]
    %v5742 = vld [vmem:[%s5 + $0x360] sm:$0xf]
    %v5743 = vld [vmem:[%s5 + $0x364] sm:$0xf]
    %v5744 = vld [vmem:[%s5 + $0x368] sm:$0xf]
    %v5745 = vld [vmem:[%s5 + $0x36c] sm:$0xf]
    %v5746 = vld [vmem:[%s5 + $0x370] sm:$0xf]
    %v5747 = vld [vmem:[%s5 + $0x374] sm:$0xf]
    %v5748 = vld [vmem:[%s5 + $0x378] sm:$0xf]
    %v5749 = vld [vmem:[%s5 + $0x37c] sm:$0xf]
    %v5750 = vld [vmem:[%s5 + $0x380] sm:$0xf]
    %v5751 = vld [vmem:[%s5 + $0x384] sm:$0xf]
    %v5752 = vld [vmem:[%s5 + $0x388] sm:$0xf]
    %v5753 = vld [vmem:[%s5 + $0x38c] sm:$0xf]
    %v5754 = vld [vmem:[%s5 + $0x390] sm:$0xf]
    %v5755 = vld [vmem:[%s5 + $0x394] sm:$0xf]
    %v5756 = vld [vmem:[%s5 + $0x398] sm:$0xf]
    %v5757 = vld [vmem:[%s5 + $0x39c] sm:$0xf]
    %v5758 = vld [vmem:[%s5 + $0x3a0] sm:$0xf]
    %v5759 = vld [vmem:[%s5 + $0x3a4] sm:$0xf]
    %v5760 = vld [vmem:[%s5 + $0x3a8] sm:$0xf]
    %v5761 = vld [vmem:[%s5 + $0x3ac] sm:$0xf]
    %v5762 = vld [vmem:[%s5 + $0x3b0] sm:$0xf]
    %v5763 = vld [vmem:[%s5 + $0x3b4] sm:$0xf]
    %v5764 = vld [vmem:[%s5 + $0x3b8] sm:$0xf]
    %v5765 = vld [vmem:[%s5 + $0x3bc] sm:$0xf]
    %v5766 = vld [vmem:[%s5 + $0x3c0] sm:$0xf]
    %v5767 = vld [vmem:[%s5 + $0x3c4] sm:$0xf]
    %v5768 = vld [vmem:[%s5 + $0x3c8] sm:$0xf]
    %v5769 = vld [vmem:[%s5 + $0x3cc] sm:$0xf]
    %v5770 = vld [vmem:[%s5 + $0x3d0] sm:$0xf]
    %v5771 = vld [vmem:[%s5 + $0x3d4] sm:$0xf]
    %v5772 = vld [vmem:[%s5 + $0x3d8] sm:$0xf]
    %v5773 = vld [vmem:[%s5 + $0x3dc] sm:$0xf]
    %v5774 = vld [vmem:[%s5 + $0x3e0] sm:$0xf]
    %v5775 = vld [vmem:[%s5 + $0x3e4] sm:$0xf]
    %v5776 = vld [vmem:[%s5 + $0x3e8] sm:$0xf]
    %v5777 = vld [vmem:[%s5 + $0x3ec] sm:$0xf]
    %v5778 = vld [vmem:[%s5 + $0x3f0] sm:$0xf]
    %v5779 = vld [vmem:[%s5 + $0x3f4] sm:$0xf]
    %v5780 = vld [vmem:[%s5 + $0x3f8] sm:$0xf]
    %v5781 = vld [vmem:[%s5 + $0x3fc] sm:$0xf]
    %v5782 = vld [vmem:[%s5 + $0x400] sm:$0xf]
    %v5783 = vld [vmem:[%s5 + $0x404] sm:$0xf]
    %v5784 = vld [vmem:[%s5 + $0x408] sm:$0xf]
    %v5785 = vld [vmem:[%s5 + $0x40c] sm:$0xf]
    %v5786 = vld [vmem:[%s5 + $0x410] sm:$0xf]
    %v5787 = vld [vmem:[%s5 + $0x414] sm:$0xf]
    %v5788 = vld [vmem:[%s5 + $0x418] sm:$0xf]
    %v5789 = vld [vmem:[%s5 + $0x41c] sm:$0xf]
    %v5790 = vld [vmem:[%s5 + $0x420] sm:$0xf]
    %v5791 = vld [vmem:[%s5 + $0x424] sm:$0xf]
    %v5792 = vld [vmem:[%s5 + $0x428] sm:$0xf]
    %v5793 = vld [vmem:[%s5 + $0x42c] sm:$0xf]
    %v5794 = vld [vmem:[%s5 + $0x430] sm:$0xf]
    %v5795 = vld [vmem:[%s5 + $0x434] sm:$0xf]
    %v5796 = vld [vmem:[%s5 + $0x438] sm:$0xf]
    %v5797 = vld [vmem:[%s5 + $0x43c] sm:$0xf]
    %v5798 = vld [vmem:[%s5 + $0x440] sm:$0xf]
    %v5799 = vld [vmem:[%s5 + $0x444] sm:$0xf]
    %v5800 = vld [vmem:[%s5 + $0x448] sm:$0xf]
    %v5801 = vld [vmem:[%s5 + $0x44c] sm:$0xf]
    %v5802 = vld [vmem:[%s5 + $0x450] sm:$0xf]
    %v5803 = vld [vmem:[%s5 + $0x454] sm:$0xf]
    %v5804 = vld [vmem:[%s5 + $0x458] sm:$0xf]
    %v5805 = vld [vmem:[%s5 + $0x45c] sm:$0xf]
    %v5806 = vld [vmem:[%s5 + $0x460] sm:$0xf]
    %v5807 = vld [vmem:[%s5 + $0x464] sm:$0xf]
    %v5808 = vld [vmem:[%s5 + $0x468] sm:$0xf]
    %v5809 = vld [vmem:[%s5 + $0x46c] sm:$0xf]
    %v5810 = vld [vmem:[%s5 + $0x470] sm:$0xf]
    %v5811 = vld [vmem:[%s5 + $0x474] sm:$0xf]
    %v5812 = vld [vmem:[%s5 + $0x478] sm:$0xf]
    %v5813 = vld [vmem:[%s5 + $0x47c] sm:$0xf]
    %v5814 = vld [vmem:[%s5 + $0x480] sm:$0xf]
    %v5815 = vld [vmem:[%s5 + $0x484] sm:$0xf]
    %v5816 = vld [vmem:[%s5 + $0x488] sm:$0xf]
    %v5817 = vld [vmem:[%s5 + $0x48c] sm:$0xf]
    %v5818 = vld [vmem:[%s5 + $0x490] sm:$0xf]
    %v5819 = vld [vmem:[%s5 + $0x494] sm:$0xf]
    %v5820 = vld [vmem:[%s5 + $0x498] sm:$0xf]
    %v5821 = vld [vmem:[%s5 + $0x49c] sm:$0xf]
    %v5822 = vld [vmem:[%s5 + $0x4a0] sm:$0xf]
    %v5823 = vld [vmem:[%s5 + $0x4a4] sm:$0xf]
    %v5824 = vld [vmem:[%s5 + $0x4a8] sm:$0xf]
    %v5825 = vld [vmem:[%s5 + $0x4ac] sm:$0xf]
    %v5826 = vld [vmem:[%s5 + $0x4b0] sm:$0xf]
    %v5827 = vld [vmem:[%s5 + $0x4b4] sm:$0xf]
    %v5828 = vld [vmem:[%s5 + $0x4b8] sm:$0xf]
    %v5829 = vld [vmem:[%s5 + $0x4bc] sm:$0xf]
    %v5830 = vld [vmem:[%s5 + $0x4c0] sm:$0xf]
    %v5831 = vld [vmem:[%s5 + $0x4c4] sm:$0xf]
    %v5832 = vld [vmem:[%s5 + $0x4c8] sm:$0xf]
    %v5833 = vld [vmem:[%s5 + $0x4cc] sm:$0xf]
    %v5834 = vld [vmem:[%s5 + $0x4d0] sm:$0xf]
    %v5835 = vld [vmem:[%s5 + $0x4d4] sm:$0xf]
    %v5836 = vld [vmem:[%s5 + $0x4d8] sm:$0xf]
    %v5837 = vld [vmem:[%s5 + $0x4dc] sm:$0xf]
    %v5838 = vld [vmem:[%s5 + $0x4e0] sm:$0xf]
    %v5839 = vld [vmem:[%s5 + $0x4e4] sm:$0xf]
    %v5840 = vld [vmem:[%s5 + $0x4e8] sm:$0xf]
    %v5841 = vld [vmem:[%s5 + $0x4ec] sm:$0xf]
    %v5842 = vld [vmem:[%s5 + $0x4f0] sm:$0xf]
    %v5843 = vld [vmem:[%s5 + $0x4f4] sm:$0xf]
    %v5844 = vld [vmem:[%s5 + $0x4f8] sm:$0xf]
    %v5845 = vld [vmem:[%s5 + $0x4fc] sm:$0xf]
    %v5846 = vld [vmem:[%s5 + $0x500] sm:$0xf]
    %v5847 = vld [vmem:[%s5 + $0x504] sm:$0xf]
    %v5848 = vld [vmem:[%s5 + $0x508] sm:$0xf]
    %v5849 = vld [vmem:[%s5 + $0x50c] sm:$0xf]
    %v5850 = vld [vmem:[%s5 + $0x510] sm:$0xf]
    %v5851 = vld [vmem:[%s5 + $0x514] sm:$0xf]
    %v5852 = vld [vmem:[%s5 + $0x518] sm:$0xf]
    %v5853 = vld [vmem:[%s5 + $0x51c] sm:$0xf]
    %v5854 = vld [vmem:[%s5 + $0x520] sm:$0xf]
    %v5855 = vld [vmem:[%s5 + $0x524] sm:$0xf]
    %v5856 = vld [vmem:[%s5 + $0x528] sm:$0xf]
    %v5857 = vld [vmem:[%s5 + $0x52c] sm:$0xf]
    %v5858 = vld [vmem:[%s5 + $0x530] sm:$0xf]
    %v5859 = vld [vmem:[%s5 + $0x534] sm:$0xf]
    %v5860 = vld [vmem:[%s5 + $0x538] sm:$0xf]
    %v5861 = vld [vmem:[%s5 + $0x53c] sm:$0xf]
    %v5862 = vld [vmem:[%s5 + $0x540] sm:$0xf]
    %v5863 = vld [vmem:[%s5 + $0x544] sm:$0xf]
    %v5864 = vld [vmem:[%s5 + $0x548] sm:$0xf]
    %v5865 = vld [vmem:[%s5 + $0x54c] sm:$0xf]
    %v5866 = vld [vmem:[%s5 + $0x550] sm:$0xf]
    %v5867 = vld [vmem:[%s5 + $0x554] sm:$0xf]
    %v5868 = vld [vmem:[%s5 + $0x558] sm:$0xf]
    %v5869 = vld [vmem:[%s5 + $0x55c] sm:$0xf]
    %v5870 = vld [vmem:[%s5 + $0x560] sm:$0xf]
    %v5871 = vld [vmem:[%s5 + $0x564] sm:$0xf]
    %v5872 = vld [vmem:[%s5 + $0x568] sm:$0xf]
    %v5873 = vld [vmem:[%s5 + $0x56c] sm:$0xf]
    %v5874 = vld [vmem:[%s5 + $0x570] sm:$0xf]
    %v5875 = vld [vmem:[%s5 + $0x574] sm:$0xf]
    %v5876 = vld [vmem:[%s5 + $0x578] sm:$0xf]
    %v5877 = vld [vmem:[%s5 + $0x57c] sm:$0xf]
    %v5878 = vld [vmem:[%s5 + $0x580] sm:$0xf]
    %v5879 = vld [vmem:[%s5 + $0x584] sm:$0xf]
    %v5880 = vld [vmem:[%s5 + $0x588] sm:$0xf]
    %v5881 = vld [vmem:[%s5 + $0x58c] sm:$0xf]
    %v5882 = vld [vmem:[%s5 + $0x590] sm:$0xf]
    %v5883 = vld [vmem:[%s5 + $0x594] sm:$0xf]
    %v5884 = vld [vmem:[%s5 + $0x598] sm:$0xf]
    %v5885 = vld [vmem:[%s5 + $0x59c] sm:$0xf]
    %v5886 = vld [vmem:[%s5 + $0x5a0] sm:$0xf]
    %v5887 = vld [vmem:[%s5 + $0x5a4] sm:$0xf]
    %v5888 = vld [vmem:[%s5 + $0x5a8] sm:$0xf]
    %v5889 = vld [vmem:[%s5 + $0x5ac] sm:$0xf]
    %v5890 = vld [vmem:[%s5 + $0x5b0] sm:$0xf]
    %v5891 = vld [vmem:[%s5 + $0x5b4] sm:$0xf]
    %v5892 = vld [vmem:[%s5 + $0x5b8] sm:$0xf]
    %v5893 = vld [vmem:[%s5 + $0x5bc] sm:$0xf]
    %v5894 = vld [vmem:[%s5 + $0x5c0] sm:$0xf]
    %v5895 = vld [vmem:[%s5 + $0x5c4] sm:$0xf]
    %v5896 = vld [vmem:[%s5 + $0x5c8] sm:$0xf]
    %v5897 = vld [vmem:[%s5 + $0x5cc] sm:$0xf]
    %v5898 = vld [vmem:[%s5 + $0x5d0] sm:$0xf]
    %v5899 = vld [vmem:[%s5 + $0x5d4] sm:$0xf]
    %v5900 = vld [vmem:[%s5 + $0x5d8] sm:$0xf]
    %v5901 = vld [vmem:[%s5 + $0x5dc] sm:$0xf]
    %v5902 = vld [vmem:[%s5 + $0x5e0] sm:$0xf]
    %v5903 = vld [vmem:[%s5 + $0x5e4] sm:$0xf]
    %v5904 = vld [vmem:[%s5 + $0x5e8] sm:$0xf]
    %v5905 = vld [vmem:[%s5 + $0x5ec] sm:$0xf]
    %v5906 = vld [vmem:[%s5 + $0x5f0] sm:$0xf]
    %v5907 = vld [vmem:[%s5 + $0x5f4] sm:$0xf]
    %v5908 = vld [vmem:[%s5 + $0x5f8] sm:$0xf]
    %v5909 = vld [vmem:[%s5 + $0x5fc] sm:$0xf]
    %v5910 = vld [vmem:[%s5 + $0x600] sm:$0xf]
    %v5911 = vld [vmem:[%s5 + $0x604] sm:$0xf]
    %v5912 = vld [vmem:[%s5 + $0x608] sm:$0xf]
    %v5913 = vld [vmem:[%s5 + $0x60c] sm:$0xf]
    %v5914 = vld [vmem:[%s5 + $0x610] sm:$0xf]
    %v5915 = vld [vmem:[%s5 + $0x614] sm:$0xf]
    %v5916 = vld [vmem:[%s5 + $0x618] sm:$0xf]
    %v5917 = vld [vmem:[%s5 + $0x61c] sm:$0xf]
    %v5918 = vld [vmem:[%s5 + $0x620] sm:$0xf]
    %v5919 = vld [vmem:[%s5 + $0x624] sm:$0xf]
    %v5920 = vld [vmem:[%s5 + $0x628] sm:$0xf]
    %v5921 = vld [vmem:[%s5 + $0x62c] sm:$0xf]
    %v5922 = vld [vmem:[%s5 + $0x630] sm:$0xf]
    %v5923 = vld [vmem:[%s5 + $0x634] sm:$0xf]
    %v5924 = vld [vmem:[%s5 + $0x638] sm:$0xf]
    %v5925 = vld [vmem:[%s5 + $0x63c] sm:$0xf]
    %v5926 = vld [vmem:[%s5 + $0x640] sm:$0xf]
    %v5927 = vld [vmem:[%s5 + $0x644] sm:$0xf]
    %v5928 = vld [vmem:[%s5 + $0x648] sm:$0xf]
    %v5929 = vld [vmem:[%s5 + $0x64c] sm:$0xf]
    %v5930 = vld [vmem:[%s5 + $0x650] sm:$0xf]
    %v5931 = vld [vmem:[%s5 + $0x654] sm:$0xf]
    %v5932 = vld [vmem:[%s5 + $0x658] sm:$0xf]
    %v5933 = vld [vmem:[%s5 + $0x65c] sm:$0xf]
    %v5934 = vld [vmem:[%s5 + $0x660] sm:$0xf]
    %v5935 = vld [vmem:[%s5 + $0x664] sm:$0xf]
    %v5936 = vld [vmem:[%s5 + $0x668] sm:$0xf]
    %v5937 = vld [vmem:[%s5 + $0x66c] sm:$0xf]
    %v5938 = vld [vmem:[%s5 + $0x670] sm:$0xf]
    %v5939 = vld [vmem:[%s5 + $0x674] sm:$0xf]
    %v5940 = vld [vmem:[%s5 + $0x678] sm:$0xf]
    %v5941 = vld [vmem:[%s5 + $0x67c] sm:$0xf]
    %v5942 = vld [vmem:[%s5 + $0x680] sm:$0xf]
    %v5943 = vld [vmem:[%s5 + $0x684] sm:$0xf]
    %v5944 = vld [vmem:[%s5 + $0x688] sm:$0xf]
    %v5945 = vld [vmem:[%s5 + $0x68c] sm:$0xf]
    %v5946 = vld [vmem:[%s5 + $0x690] sm:$0xf]
    %v5947 = vld [vmem:[%s5 + $0x694] sm:$0xf]
    %v5948 = vld [vmem:[%s5 + $0x698] sm:$0xf]
    %v5949 = vld [vmem:[%s5 + $0x69c] sm:$0xf]
    %v5950 = vld [vmem:[%s5 + $0x6a0] sm:$0xf]
    %v5951 = vld [vmem:[%s5 + $0x6a4] sm:$0xf]
    %v5952 = vld [vmem:[%s5 + $0x6a8] sm:$0xf]
    %v5953 = vld [vmem:[%s5 + $0x6ac] sm:$0xf]
    %v5954 = vld [vmem:[%s5 + $0x6b0] sm:$0xf]
    %v5955 = vld [vmem:[%s5 + $0x6b4] sm:$0xf]
    %v5956 = vld [vmem:[%s5 + $0x6b8] sm:$0xf]
    %v5957 = vld [vmem:[%s5 + $0x6bc] sm:$0xf]
    %v5958 = vld [vmem:[%s5 + $0x6c0] sm:$0xf]
    %v5959 = vld [vmem:[%s5 + $0x6c4] sm:$0xf]
    %v5960 = vld [vmem:[%s5 + $0x6c8] sm:$0xf]
    %v5961 = vld [vmem:[%s5 + $0x6cc] sm:$0xf]
    %v5962 = vld [vmem:[%s5 + $0x6d0] sm:$0xf]
    %v5963 = vld [vmem:[%s5 + $0x6d4] sm:$0xf]
    %v5964 = vld [vmem:[%s5 + $0x6d8] sm:$0xf]
    %v5965 = vld [vmem:[%s5 + $0x6dc] sm:$0xf]
    %v5966 = vld [vmem:[%s5 + $0x6e0] sm:$0xf]
    %v5967 = vld [vmem:[%s5 + $0x6e4] sm:$0xf]
    %v5968 = vld [vmem:[%s5 + $0x6e8] sm:$0xf]
    %v5969 = vld [vmem:[%s5 + $0x6ec] sm:$0xf]
    %v5970 = vld [vmem:[%s5 + $0x6f0] sm:$0xf]
    %v5971 = vld [vmem:[%s5 + $0x6f4] sm:$0xf]
    %v5972 = vld [vmem:[%s5 + $0x6f8] sm:$0xf]
    %v5973 = vld [vmem:[%s5 + $0x6fc] sm:$0xf]
    %v5974 = vld [vmem:[%s5 + $0x700] sm:$0xf]
    %v5975 = vld [vmem:[%s5 + $0x704] sm:$0xf]
    %v5976 = vld [vmem:[%s5 + $0x708] sm:$0xf]
    %v5977 = vld [vmem:[%s5 + $0x70c] sm:$0xf]
    %v5978 = vld [vmem:[%s5 + $0x710] sm:$0xf]
    %v5979 = vld [vmem:[%s5 + $0x714] sm:$0xf]
    %v5980 = vld [vmem:[%s5 + $0x718] sm:$0xf]
    %v5981 = vld [vmem:[%s5 + $0x71c] sm:$0xf]
    %v5982 = vld [vmem:[%s5 + $0x720] sm:$0xf]
    %v5983 = vld [vmem:[%s5 + $0x724] sm:$0xf]
    %v5984 = vld [vmem:[%s5 + $0x728] sm:$0xf]
    %v5985 = vld [vmem:[%s5 + $0x72c] sm:$0xf]
    %v5986 = vld [vmem:[%s5 + $0x730] sm:$0xf]
    %v5987 = vld [vmem:[%s5 + $0x734] sm:$0xf]
    %v5988 = vld [vmem:[%s5 + $0x738] sm:$0xf]
    %v5989 = vld [vmem:[%s5 + $0x73c] sm:$0xf]
    %v5990 = vld [vmem:[%s5 + $0x740] sm:$0xf]
    %v5991 = vld [vmem:[%s5 + $0x744] sm:$0xf]
    %v5992 = vld [vmem:[%s5 + $0x748] sm:$0xf]
    %v5993 = vld [vmem:[%s5 + $0x74c] sm:$0xf]
    %v5994 = vld [vmem:[%s5 + $0x750] sm:$0xf]
    %v5995 = vld [vmem:[%s5 + $0x754] sm:$0xf]
    %v5996 = vld [vmem:[%s5 + $0x758] sm:$0xf]
    %v5997 = vld [vmem:[%s5 + $0x75c] sm:$0xf]
    %v5998 = vld [vmem:[%s5 + $0x760] sm:$0xf]
    %v5999 = vld [vmem:[%s5 + $0x764] sm:$0xf]
    %v6000 = vld [vmem:[%s5 + $0x768] sm:$0xf]
    %v6001 = vld [vmem:[%s5 + $0x76c] sm:$0xf]
    %v6002 = vld [vmem:[%s5 + $0x770] sm:$0xf]
    %v6003 = vld [vmem:[%s5 + $0x774] sm:$0xf]
    %v6004 = vld [vmem:[%s5 + $0x778] sm:$0xf]
    %v6005 = vld [vmem:[%s5 + $0x77c] sm:$0xf]
    %v6006 = vld [vmem:[%s5 + $0x780] sm:$0xf]
    %v6007 = vld [vmem:[%s5 + $0x784] sm:$0xf]
    %v6008 = vld [vmem:[%s5 + $0x788] sm:$0xf]
    %v6009 = vld [vmem:[%s5 + $0x78c] sm:$0xf]
    %v6010 = vld [vmem:[%s5 + $0x790] sm:$0xf]
    %v6011 = vld [vmem:[%s5 + $0x794] sm:$0xf]
    %v6012 = vld [vmem:[%s5 + $0x798] sm:$0xf]
    %v6013 = vld [vmem:[%s5 + $0x79c] sm:$0xf]
    %v6014 = vld [vmem:[%s5 + $0x7a0] sm:$0xf]
    %v6015 = vld [vmem:[%s5 + $0x7a4] sm:$0xf]
    %v6016 = vld [vmem:[%s5 + $0x7a8] sm:$0xf]
    %v6017 = vld [vmem:[%s5 + $0x7ac] sm:$0xf]
    %v6018 = vld [vmem:[%s5 + $0x7b0] sm:$0xf]
    %v6019 = vld [vmem:[%s5 + $0x7b4] sm:$0xf]
    %v6020 = vld [vmem:[%s5 + $0x7b8] sm:$0xf]
    %v6021 = vld [vmem:[%s5 + $0x7bc] sm:$0xf]
    %v6022 = vld [vmem:[%s5 + $0x7c0] sm:$0xf]
    %v6023 = vld [vmem:[%s5 + $0x7c4] sm:$0xf]
    %v6024 = vld [vmem:[%s5 + $0x7c8] sm:$0xf]
    %v6025 = vld [vmem:[%s5 + $0x7cc] sm:$0xf]
    %v6026 = vld [vmem:[%s5 + $0x7d0] sm:$0xf]
    %v6027 = vld [vmem:[%s5 + $0x7d4] sm:$0xf]
    %v6028 = vld [vmem:[%s5 + $0x7d8] sm:$0xf]
    %v6029 = vld [vmem:[%s5 + $0x7dc] sm:$0xf]
    %v6030 = vld [vmem:[%s5 + $0x7e0] sm:$0xf]
    %v6031 = vld [vmem:[%s5 + $0x7e4] sm:$0xf]
    %v6032 = vld [vmem:[%s5 + $0x7e8] sm:$0xf]
    %v6033 = vld [vmem:[%s5 + $0x7ec] sm:$0xf]
    %v6034 = vld [vmem:[%s5 + $0x7f0] sm:$0xf]
    %v6035 = vld [vmem:[%s5 + $0x7f4] sm:$0xf]
    %v6036 = vld [vmem:[%s5 + $0x7f8] sm:$0xf]
    %v6037 = vld [vmem:[%s5 + $0x7fc] sm:$0xf]
    %v6038 = vld [vmem:[%s6] sm:$0x1]
    %v6039 = vld [vmem:[%s6 + $0x1] sm:$0x1]
    %v6040 = vld [vmem:[%s6 + $0x2] sm:$0x1]
    %v6041 = vld [vmem:[%s6 + $0x3] sm:$0x1]
    %v6042 = vld [vmem:[%s6 + $0x4] sm:$0x1]
    %v6043 = vld [vmem:[%s6 + $0x5] sm:$0x1]
    %v6044 = vld [vmem:[%s6 + $0x6] sm:$0x1]
    %v6045 = vld [vmem:[%s6 + $0x7] sm:$0x1]
    %v6046 = vld [vmem:[%s6 + $0x8] sm:$0x1]
    %v6047 = vld [vmem:[%s6 + $0x9] sm:$0x1]
    %v6048 = vld [vmem:[%s6 + $0xa] sm:$0x1]
    %v6049 = vld [vmem:[%s6 + $0xb] sm:$0x1]
    %v6050 = vld [vmem:[%s6 + $0xc] sm:$0x1]
    %v6051 = vld [vmem:[%s6 + $0xd] sm:$0x1]
    %v6052 = vld [vmem:[%s6 + $0xe] sm:$0x1]
    %v6053 = vld [vmem:[%s6 + $0xf] sm:$0x1]
    %v6070 = vlaneseq
    %v6071 = vshrl.u32 %v6070, 7
    %v6072 = vsub.s32 0, %v6071
    %v6073 = vrot.slane %v6038, %v6072
    %v6074 = vlaneseq
    %v6075 = vshrl.u32 %v6074, 7
    %v6076 = vsub.s32 0, %v6075
    %v6077 = vrot.slane %v6039, %v6076
    %v6078 = vlaneseq
    %v6079 = vshrl.u32 %v6078, 7
    %v6080 = vsub.s32 0, %v6079
    %v6081 = vrot.slane %v6040, %v6080
    %v6082 = vlaneseq
    %v6083 = vshrl.u32 %v6082, 7
    %v6084 = vsub.s32 0, %v6083
    %v6085 = vrot.slane %v6041, %v6084
    %v6086 = vlaneseq
    %v6087 = vshrl.u32 %v6086, 7
    %v6088 = vsub.s32 0, %v6087
    %v6089 = vrot.slane %v6042, %v6088
    %v6090 = vlaneseq
    %v6091 = vshrl.u32 %v6090, 7
    %v6092 = vsub.s32 0, %v6091
    %v6093 = vrot.slane %v6043, %v6092
    %v6094 = vlaneseq
    %v6095 = vshrl.u32 %v6094, 7
    %v6096 = vsub.s32 0, %v6095
    %v6097 = vrot.slane %v6044, %v6096
    %v6098 = vlaneseq
    %v6099 = vshrl.u32 %v6098, 7
    %v6100 = vsub.s32 0, %v6099
    %v6101 = vrot.slane %v6045, %v6100
    %v6102 = vlaneseq
    %v6103 = vshrl.u32 %v6102, 7
    %v6104 = vsub.s32 0, %v6103
    %v6105 = vrot.slane %v6046, %v6104
    %v6106 = vlaneseq
    %v6107 = vshrl.u32 %v6106, 7
    %v6108 = vsub.s32 0, %v6107
    %v6109 = vrot.slane %v6047, %v6108
    %v6110 = vlaneseq
    %v6111 = vshrl.u32 %v6110, 7
    %v6112 = vsub.s32 0, %v6111
    %v6113 = vrot.slane %v6048, %v6112
    %v6114 = vlaneseq
    %v6115 = vshrl.u32 %v6114, 7
    %v6116 = vsub.s32 0, %v6115
    %v6117 = vrot.slane %v6049, %v6116
    %v6118 = vlaneseq
    %v6119 = vshrl.u32 %v6118, 7
    %v6120 = vsub.s32 0, %v6119
    %v6121 = vrot.slane %v6050, %v6120
    %v6122 = vlaneseq
    %v6123 = vshrl.u32 %v6122, 7
    %v6124 = vsub.s32 0, %v6123
    %v6125 = vrot.slane %v6051, %v6124
    %v6126 = vlaneseq
    %v6127 = vshrl.u32 %v6126, 7
    %v6128 = vsub.s32 0, %v6127
    %v6129 = vrot.slane %v6052, %v6128
    %v6130 = vlaneseq
    %v6131 = vshrl.u32 %v6130, 7
    %v6132 = vsub.s32 0, %v6131
    %v6133 = vrot.slane %v6053, %v6132
    %v6182 = vunpack.c.l.b16 %v5526
    %v6183 = vunpack.c.l.b16 %v5527
    %v6184 = vunpack.c.l.b16 %v5528
    %v6185 = vunpack.c.l.b16 %v5529
    %v6186 = vunpack.c.l.b16 %v5530
    %v6187 = vunpack.c.l.b16 %v5531
    %v6188 = vunpack.c.l.b16 %v5532
    %v6189 = vunpack.c.l.b16 %v5533
    %v6190 = vunpack.c.l.b16 %v5534
    %v6191 = vunpack.c.l.b16 %v5535
    %v6192 = vunpack.c.l.b16 %v5536
    %v6193 = vunpack.c.l.b16 %v5537
    %v6194 = vunpack.c.l.b16 %v5538
    %v6195 = vunpack.c.l.b16 %v5539
    %v6196 = vunpack.c.l.b16 %v5540
    %v6197 = vunpack.c.l.b16 %v5541
    %v6198 = vunpack.c.l.b16 %v5542
    %v6199 = vunpack.c.l.b16 %v5543
    %v6200 = vunpack.c.l.b16 %v5544
    %v6201 = vunpack.c.l.b16 %v5545
    %v6202 = vunpack.c.l.b16 %v5546
    %v6203 = vunpack.c.l.b16 %v5547
    %v6204 = vunpack.c.l.b16 %v5548
    %v6205 = vunpack.c.l.b16 %v5549
    %v6206 = vunpack.c.l.b16 %v5550
    %v6207 = vunpack.c.l.b16 %v5551
    %v6208 = vunpack.c.l.b16 %v5552
    %v6209 = vunpack.c.l.b16 %v5553
    %v6210 = vunpack.c.l.b16 %v5554
    %v6211 = vunpack.c.l.b16 %v5555
    %v6212 = vunpack.c.l.b16 %v5556
    %v6213 = vunpack.c.l.b16 %v5557
    %v6214 = vpack.c.b16 %v6183, %v6182
    %v6215 = vpack.c.b16 %v6185, %v6184
    %v6216 = vpack.c.b16 %v6187, %v6186
    %v6217 = vpack.c.b16 %v6189, %v6188
    %v6218 = vpack.c.b16 %v6191, %v6190
    %v6219 = vpack.c.b16 %v6193, %v6192
    %v6220 = vpack.c.b16 %v6195, %v6194
    %v6221 = vpack.c.b16 %v6197, %v6196
    %v6222 = vpack.c.b16 %v6199, %v6198
    %v6223 = vpack.c.b16 %v6201, %v6200
    %v6224 = vpack.c.b16 %v6203, %v6202
    %v6225 = vpack.c.b16 %v6205, %v6204
    %v6226 = vpack.c.b16 %v6207, %v6206
    %v6227 = vpack.c.b16 %v6209, %v6208
    %v6228 = vpack.c.b16 %v6211, %v6210
    %v6229 = vpack.c.b16 %v6213, %v6212
    %6246 = vmatprep.subr.bf16.mxu0 0
    %6247 = vmatpush1.bf16.msra.mxu0 %v6221
    %6248 = vmatprep.subr.bf16.mxu0 0
    %6249 = vmatpush1.bf16.msra.mxu0 %v6220
    %6250 = vmatprep.subr.bf16.mxu0 0
    %6251 = vmatpush1.bf16.msra.mxu0 %v6219
    %6252 = vmatprep.subr.bf16.mxu0 0
    %6253 = vmatpush1.bf16.msra.mxu0 %v6218
    %6254 = vmatprep.subr.bf16.mxu0 0
    %6255 = vmatpush1.bf16.msra.mxu0 %v6217
    %6256 = vmatprep.subr.bf16.mxu0 0
    %6257 = vmatpush1.bf16.msra.mxu0 %v6216
    %6258 = vmatprep.subr.bf16.mxu0 0
    %6259 = vmatpush1.bf16.msra.mxu0 %v6215
    %6260 = vmatprep.subr.bf16.mxu0 0
    %6261 = vmatpush1.bf16.msra.mxu0 %v6214
    %6262 = vmatprep.subr.bf16.mxu0 0
    %6263 = vmatpush2.bf16.msra.mxu0 %v6229
    %6264 = vmatprep.subr.bf16.mxu0 0
    %6265 = vmatpush2.bf16.msra.mxu0 %v6228
    %6266 = vmatprep.subr.bf16.mxu0 0
    %6267 = vmatpush2.bf16.msra.mxu0 %v6227
    %6268 = vmatprep.subr.bf16.mxu0 0
    %6269 = vmatpush2.bf16.msra.mxu0 %v6226
    %6270 = vmatprep.subr.bf16.mxu0 0
    %6271 = vmatpush2.bf16.msra.mxu0 %v6225
    %6272 = vmatprep.subr.bf16.mxu0 0
    %6273 = vmatpush2.bf16.msra.mxu0 %v6224
    %6274 = vmatprep.subr.bf16.mxu0 0
    %6275 = vmatpush2.bf16.msra.mxu0 %v6223
    %6276 = vmatprep.subr.bf16.mxu0 0
    %6277 = vmatpush2.bf16.msra.mxu0 %v6222
    %6278 = vmatprep.mubr.bf16.mxu0 %v5495
    %6279 = vmatmul.mubr.bf16.gmra.mxu0 %v5494
    %v6280 = vpop.f32.mrf.mxu0
    %v6281 = vadd.f32 %v6073, %v6280
    %v6282 = vpop.f32.mrf.mxu0
    %v6283 = vpop.f32.mrf.mxu0
    %v6284 = vpop.f32.mrf.mxu0
    %6285 = vdwg.mxu0
    %v6318 = vunpack.c.l.b16 %v5558
    %v6319 = vunpack.c.l.b16 %v5559
    %v6320 = vunpack.c.l.b16 %v5560
    %v6321 = vunpack.c.l.b16 %v5561
    %v6322 = vunpack.c.l.b16 %v5562
    %v6323 = vunpack.c.l.b16 %v5563
    %v6324 = vunpack.c.l.b16 %v5564
    %v6325 = vunpack.c.l.b16 %v5565
    %v6326 = vunpack.c.l.b16 %v5566
    %v6327 = vunpack.c.l.b16 %v5567
    %v6328 = vunpack.c.l.b16 %v5568
    %v6329 = vunpack.c.l.b16 %v5569
    %v6330 = vunpack.c.l.b16 %v5570
    %v6331 = vunpack.c.l.b16 %v5571
    %v6332 = vunpack.c.l.b16 %v5572
    %v6333 = vunpack.c.l.b16 %v5573
    %v6334 = vunpack.c.l.b16 %v5574
    %v6335 = vunpack.c.l.b16 %v5575
    %v6336 = vunpack.c.l.b16 %v5576
    %v6337 = vunpack.c.l.b16 %v5577
    %v6338 = vunpack.c.l.b16 %v5578
    %v6339 = vunpack.c.l.b16 %v5579
    %v6340 = vunpack.c.l.b16 %v5580
    %v6341 = vunpack.c.l.b16 %v5581
    %v6342 = vunpack.c.l.b16 %v5582
    %v6343 = vunpack.c.l.b16 %v5583
    %v6344 = vunpack.c.l.b16 %v5584
    %v6345 = vunpack.c.l.b16 %v5585
    %v6346 = vunpack.c.l.b16 %v5586
    %v6347 = vunpack.c.l.b16 %v5587
    %v6348 = vunpack.c.l.b16 %v5588
    %v6349 = vunpack.c.l.b16 %v5589
    %v6350 = vpack.c.b16 %v6319, %v6318
    %v6351 = vpack.c.b16 %v6321, %v6320
    %v6352 = vpack.c.b16 %v6323, %v6322
    %v6353 = vpack.c.b16 %v6325, %v6324
    %v6354 = vpack.c.b16 %v6327, %v6326
    %v6355 = vpack.c.b16 %v6329, %v6328
    %v6356 = vpack.c.b16 %v6331, %v6330
    %v6357 = vpack.c.b16 %v6333, %v6332
    %v6358 = vpack.c.b16 %v6335, %v6334
    %v6359 = vpack.c.b16 %v6337, %v6336
    %v6360 = vpack.c.b16 %v6339, %v6338
    %v6361 = vpack.c.b16 %v6341, %v6340
    %v6362 = vpack.c.b16 %v6343, %v6342
    %v6363 = vpack.c.b16 %v6345, %v6344
    %v6364 = vpack.c.b16 %v6347, %v6346
    %v6365 = vpack.c.b16 %v6349, %v6348
    %6382 = vmatprep.subr.bf16.mxu0 0
    %6383 = vmatpush1.bf16.msra.mxu0 %v6357
    %6384 = vmatprep.subr.bf16.mxu0 0
    %6385 = vmatpush1.bf16.msra.mxu0 %v6356
    %6386 = vmatprep.subr.bf16.mxu0 0
    %6387 = vmatpush1.bf16.msra.mxu0 %v6355
    %6388 = vmatprep.subr.bf16.mxu0 0
    %6389 = vmatpush1.bf16.msra.mxu0 %v6354
    %6390 = vmatprep.subr.bf16.mxu0 0
    %6391 = vmatpush1.bf16.msra.mxu0 %v6353
    %6392 = vmatprep.subr.bf16.mxu0 0
    %6393 = vmatpush1.bf16.msra.mxu0 %v6352
    %6394 = vmatprep.subr.bf16.mxu0 0
    %6395 = vmatpush1.bf16.msra.mxu0 %v6351
    %6396 = vmatprep.subr.bf16.mxu0 0
    %6397 = vmatpush1.bf16.msra.mxu0 %v6350
    %6398 = vmatprep.subr.bf16.mxu0 0
    %6399 = vmatpush2.bf16.msra.mxu0 %v6365
    %6400 = vmatprep.subr.bf16.mxu0 0
    %6401 = vmatpush2.bf16.msra.mxu0 %v6364
    %6402 = vmatprep.subr.bf16.mxu0 0
    %6403 = vmatpush2.bf16.msra.mxu0 %v6363
    %6404 = vmatprep.subr.bf16.mxu0 0
    %6405 = vmatpush2.bf16.msra.mxu0 %v6362
    %6406 = vmatprep.subr.bf16.mxu0 0
    %6407 = vmatpush2.bf16.msra.mxu0 %v6361
    %6408 = vmatprep.subr.bf16.mxu0 0
    %6409 = vmatpush2.bf16.msra.mxu0 %v6360
    %6410 = vmatprep.subr.bf16.mxu0 0
    %6411 = vmatpush2.bf16.msra.mxu0 %v6359
    %6412 = vmatprep.subr.bf16.mxu0 0
    %6413 = vmatpush2.bf16.msra.mxu0 %v6358
    %6414 = vmatprep.mubr.bf16.mxu0 %v5497
    %6415 = vmatmul.mubr.bf16.gmra.mxu0 %v5496
    %v6416 = vpop.f32.mrf.mxu0
    %v6417 = vadd.f32 %v6077, %v6416
    %v6418 = vpop.f32.mrf.mxu0
    %v6419 = vpop.f32.mrf.mxu0
    %v6420 = vpop.f32.mrf.mxu0
    %6421 = vdwg.mxu0
    %v6454 = vunpack.c.l.b16 %v5590
    %v6455 = vunpack.c.l.b16 %v5591
    %v6456 = vunpack.c.l.b16 %v5592
    %v6457 = vunpack.c.l.b16 %v5593
    %v6458 = vunpack.c.l.b16 %v5594
    %v6459 = vunpack.c.l.b16 %v5595
    %v6460 = vunpack.c.l.b16 %v5596
    %v6461 = vunpack.c.l.b16 %v5597
    %v6462 = vunpack.c.l.b16 %v5598
    %v6463 = vunpack.c.l.b16 %v5599
    %v6464 = vunpack.c.l.b16 %v5600
    %v6465 = vunpack.c.l.b16 %v5601
    %v6466 = vunpack.c.l.b16 %v5602
    %v6467 = vunpack.c.l.b16 %v5603
    %v6468 = vunpack.c.l.b16 %v5604
    %v6469 = vunpack.c.l.b16 %v5605
    %v6470 = vunpack.c.l.b16 %v5606
    %v6471 = vunpack.c.l.b16 %v5607
    %v6472 = vunpack.c.l.b16 %v5608
    %v6473 = vunpack.c.l.b16 %v5609
    %v6474 = vunpack.c.l.b16 %v5610
    %v6475 = vunpack.c.l.b16 %v5611
    %v6476 = vunpack.c.l.b16 %v5612
    %v6477 = vunpack.c.l.b16 %v5613
    %v6478 = vunpack.c.l.b16 %v5614
    %v6479 = vunpack.c.l.b16 %v5615
    %v6480 = vunpack.c.l.b16 %v5616
    %v6481 = vunpack.c.l.b16 %v5617
    %v6482 = vunpack.c.l.b16 %v5618
    %v6483 = vunpack.c.l.b16 %v5619
    %v6484 = vunpack.c.l.b16 %v5620
    %v6485 = vunpack.c.l.b16 %v5621
    %v6486 = vpack.c.b16 %v6455, %v6454
    %v6487 = vpack.c.b16 %v6457, %v6456
    %v6488 = vpack.c.b16 %v6459, %v6458
    %v6489 = vpack.c.b16 %v6461, %v6460
    %v6490 = vpack.c.b16 %v6463, %v6462
    %v6491 = vpack.c.b16 %v6465, %v6464
    %v6492 = vpack.c.b16 %v6467, %v6466
    %v6493 = vpack.c.b16 %v6469, %v6468
    %v6494 = vpack.c.b16 %v6471, %v6470
    %v6495 = vpack.c.b16 %v6473, %v6472
    %v6496 = vpack.c.b16 %v6475, %v6474
    %v6497 = vpack.c.b16 %v6477, %v6476
    %v6498 = vpack.c.b16 %v6479, %v6478
    %v6499 = vpack.c.b16 %v6481, %v6480
    %v6500 = vpack.c.b16 %v6483, %v6482
    %v6501 = vpack.c.b16 %v6485, %v6484
    %6518 = vmatprep.subr.bf16.mxu0 0
    %6519 = vmatpush1.bf16.msra.mxu0 %v6493
    %6520 = vmatprep.subr.bf16.mxu0 0
    %6521 = vmatpush1.bf16.msra.mxu0 %v6492
    %6522 = vmatprep.subr.bf16.mxu0 0
    %6523 = vmatpush1.bf16.msra.mxu0 %v6491
    %6524 = vmatprep.subr.bf16.mxu0 0
    %6525 = vmatpush1.bf16.msra.mxu0 %v6490
    %6526 = vmatprep.subr.bf16.mxu0 0
    %6527 = vmatpush1.bf16.msra.mxu0 %v6489
    %6528 = vmatprep.subr.bf16.mxu0 0
    %6529 = vmatpush1.bf16.msra.mxu0 %v6488
    %6530 = vmatprep.subr.bf16.mxu0 0
    %6531 = vmatpush1.bf16.msra.mxu0 %v6487
    %6532 = vmatprep.subr.bf16.mxu0 0
    %6533 = vmatpush1.bf16.msra.mxu0 %v6486
    %6534 = vmatprep.subr.bf16.mxu0 0
    %6535 = vmatpush2.bf16.msra.mxu0 %v6501
    %6536 = vmatprep.subr.bf16.mxu0 0
    %6537 = vmatpush2.bf16.msra.mxu0 %v6500
    %6538 = vmatprep.subr.bf16.mxu0 0
    %6539 = vmatpush2.bf16.msra.mxu0 %v6499
    %6540 = vmatprep.subr.bf16.mxu0 0
    %6541 = vmatpush2.bf16.msra.mxu0 %v6498
    %6542 = vmatprep.subr.bf16.mxu0 0
    %6543 = vmatpush2.bf16.msra.mxu0 %v6497
    %6544 = vmatprep.subr.bf16.mxu0 0
    %6545 = vmatpush2.bf16.msra.mxu0 %v6496
    %6546 = vmatprep.subr.bf16.mxu0 0
    %6547 = vmatpush2.bf16.msra.mxu0 %v6495
    %6548 = vmatprep.subr.bf16.mxu0 0
    %6549 = vmatpush2.bf16.msra.mxu0 %v6494
    %6550 = vmatprep.mubr.bf16.mxu0 %v5499
    %6551 = vmatmul.mubr.bf16.gmra.mxu0 %v5498
    %v6552 = vpop.f32.mrf.mxu0
    %v6553 = vadd.f32 %v6081, %v6552
    %v6554 = vpop.f32.mrf.mxu0
    %v6555 = vpop.f32.mrf.mxu0
    %v6556 = vpop.f32.mrf.mxu0
    %6557 = vdwg.mxu0
    %v6590 = vunpack.c.l.b16 %v5622
    %v6591 = vunpack.c.l.b16 %v5623
    %v6592 = vunpack.c.l.b16 %v5624
    %v6593 = vunpack.c.l.b16 %v5625
    %v6594 = vunpack.c.l.b16 %v5626
    %v6595 = vunpack.c.l.b16 %v5627
    %v6596 = vunpack.c.l.b16 %v5628
    %v6597 = vunpack.c.l.b16 %v5629
    %v6598 = vunpack.c.l.b16 %v5630
    %v6599 = vunpack.c.l.b16 %v5631
    %v6600 = vunpack.c.l.b16 %v5632
    %v6601 = vunpack.c.l.b16 %v5633
    %v6602 = vunpack.c.l.b16 %v5634
    %v6603 = vunpack.c.l.b16 %v5635
    %v6604 = vunpack.c.l.b16 %v5636
    %v6605 = vunpack.c.l.b16 %v5637
    %v6606 = vunpack.c.l.b16 %v5638
    %v6607 = vunpack.c.l.b16 %v5639
    %v6608 = vunpack.c.l.b16 %v5640
    %v6609 = vunpack.c.l.b16 %v5641
    %v6610 = vunpack.c.l.b16 %v5642
    %v6611 = vunpack.c.l.b16 %v5643
    %v6612 = vunpack.c.l.b16 %v5644
    %v6613 = vunpack.c.l.b16 %v5645
    %v6614 = vunpack.c.l.b16 %v5646
    %v6615 = vunpack.c.l.b16 %v5647
    %v6616 = vunpack.c.l.b16 %v5648
    %v6617 = vunpack.c.l.b16 %v5649
    %v6618 = vunpack.c.l.b16 %v5650
    %v6619 = vunpack.c.l.b16 %v5651
    %v6620 = vunpack.c.l.b16 %v5652
    %v6621 = vunpack.c.l.b16 %v5653
    %v6622 = vpack.c.b16 %v6591, %v6590
    %v6623 = vpack.c.b16 %v6593, %v6592
    %v6624 = vpack.c.b16 %v6595, %v6594
    %v6625 = vpack.c.b16 %v6597, %v6596
    %v6626 = vpack.c.b16 %v6599, %v6598
    %v6627 = vpack.c.b16 %v6601, %v6600
    %v6628 = vpack.c.b16 %v6603, %v6602
    %v6629 = vpack.c.b16 %v6605, %v6604
    %v6630 = vpack.c.b16 %v6607, %v6606
    %v6631 = vpack.c.b16 %v6609, %v6608
    %v6632 = vpack.c.b16 %v6611, %v6610
    %v6633 = vpack.c.b16 %v6613, %v6612
    %v6634 = vpack.c.b16 %v6615, %v6614
    %v6635 = vpack.c.b16 %v6617, %v6616
    %v6636 = vpack.c.b16 %v6619, %v6618
    %v6637 = vpack.c.b16 %v6621, %v6620
    %6654 = vmatprep.subr.bf16.mxu0 0
    %6655 = vmatpush1.bf16.msra.mxu0 %v6629
    %6656 = vmatprep.subr.bf16.mxu0 0
    %6657 = vmatpush1.bf16.msra.mxu0 %v6628
    %6658 = vmatprep.subr.bf16.mxu0 0
    %6659 = vmatpush1.bf16.msra.mxu0 %v6627
    %6660 = vmatprep.subr.bf16.mxu0 0
    %6661 = vmatpush1.bf16.msra.mxu0 %v6626
    %6662 = vmatprep.subr.bf16.mxu0 0
    %6663 = vmatpush1.bf16.msra.mxu0 %v6625
    %6664 = vmatprep.subr.bf16.mxu0 0
    %6665 = vmatpush1.bf16.msra.mxu0 %v6624
    %6666 = vmatprep.subr.bf16.mxu0 0
    %6667 = vmatpush1.bf16.msra.mxu0 %v6623
    %6668 = vmatprep.subr.bf16.mxu0 0
    %6669 = vmatpush1.bf16.msra.mxu0 %v6622
    %6670 = vmatprep.subr.bf16.mxu0 0
    %6671 = vmatpush2.bf16.msra.mxu0 %v6637
    %6672 = vmatprep.subr.bf16.mxu0 0
    %6673 = vmatpush2.bf16.msra.mxu0 %v6636
    %6674 = vmatprep.subr.bf16.mxu0 0
    %6675 = vmatpush2.bf16.msra.mxu0 %v6635
    %6676 = vmatprep.subr.bf16.mxu0 0
    %6677 = vmatpush2.bf16.msra.mxu0 %v6634
    %6678 = vmatprep.subr.bf16.mxu0 0
    %6679 = vmatpush2.bf16.msra.mxu0 %v6633
    %6680 = vmatprep.subr.bf16.mxu0 0
    %6681 = vmatpush2.bf16.msra.mxu0 %v6632
    %6682 = vmatprep.subr.bf16.mxu0 0
    %6683 = vmatpush2.bf16.msra.mxu0 %v6631
    %6684 = vmatprep.subr.bf16.mxu0 0
    %6685 = vmatpush2.bf16.msra.mxu0 %v6630
    %6686 = vmatprep.mubr.bf16.mxu0 %v5501
    %6687 = vmatmul.mubr.bf16.gmra.mxu0 %v5500
    %v6688 = vpop.f32.mrf.mxu0
    %v6689 = vadd.f32 %v6085, %v6688
    %v6690 = vpop.f32.mrf.mxu0
    %v6691 = vpop.f32.mrf.mxu0
    %v6692 = vpop.f32.mrf.mxu0
    %6693 = vdwg.mxu0
    %v6726 = vunpack.c.l.b16 %v5654
    %v6727 = vunpack.c.l.b16 %v5655
    %v6728 = vunpack.c.l.b16 %v5656
    %v6729 = vunpack.c.l.b16 %v5657
    %v6730 = vunpack.c.l.b16 %v5658
    %v6731 = vunpack.c.l.b16 %v5659
    %v6732 = vunpack.c.l.b16 %v5660
    %v6733 = vunpack.c.l.b16 %v5661
    %v6734 = vunpack.c.l.b16 %v5662
    %v6735 = vunpack.c.l.b16 %v5663
    %v6736 = vunpack.c.l.b16 %v5664
    %v6737 = vunpack.c.l.b16 %v5665
    %v6738 = vunpack.c.l.b16 %v5666
    %v6739 = vunpack.c.l.b16 %v5667
    %v6740 = vunpack.c.l.b16 %v5668
    %v6741 = vunpack.c.l.b16 %v5669
    %v6742 = vunpack.c.l.b16 %v5670
    %v6743 = vunpack.c.l.b16 %v5671
    %v6744 = vunpack.c.l.b16 %v5672
    %v6745 = vunpack.c.l.b16 %v5673
    %v6746 = vunpack.c.l.b16 %v5674
    %v6747 = vunpack.c.l.b16 %v5675
    %v6748 = vunpack.c.l.b16 %v5676
    %v6749 = vunpack.c.l.b16 %v5677
    %v6750 = vunpack.c.l.b16 %v5678
    %v6751 = vunpack.c.l.b16 %v5679
    %v6752 = vunpack.c.l.b16 %v5680
    %v6753 = vunpack.c.l.b16 %v5681
    %v6754 = vunpack.c.l.b16 %v5682
    %v6755 = vunpack.c.l.b16 %v5683
    %v6756 = vunpack.c.l.b16 %v5684
    %v6757 = vunpack.c.l.b16 %v5685
    %v6758 = vpack.c.b16 %v6727, %v6726
    %v6759 = vpack.c.b16 %v6729, %v6728
    %v6760 = vpack.c.b16 %v6731, %v6730
    %v6761 = vpack.c.b16 %v6733, %v6732
    %v6762 = vpack.c.b16 %v6735, %v6734
    %v6763 = vpack.c.b16 %v6737, %v6736
    %v6764 = vpack.c.b16 %v6739, %v6738
    %v6765 = vpack.c.b16 %v6741, %v6740
    %v6766 = vpack.c.b16 %v6743, %v6742
    %v6767 = vpack.c.b16 %v6745, %v6744
    %v6768 = vpack.c.b16 %v6747, %v6746
    %v6769 = vpack.c.b16 %v6749, %v6748
    %v6770 = vpack.c.b16 %v6751, %v6750
    %v6771 = vpack.c.b16 %v6753, %v6752
    %v6772 = vpack.c.b16 %v6755, %v6754
    %v6773 = vpack.c.b16 %v6757, %v6756
    %6790 = vmatprep.subr.bf16.mxu0 0
    %6791 = vmatpush1.bf16.msra.mxu0 %v6765
    %6792 = vmatprep.subr.bf16.mxu0 0
    %6793 = vmatpush1.bf16.msra.mxu0 %v6764
    %6794 = vmatprep.subr.bf16.mxu0 0
    %6795 = vmatpush1.bf16.msra.mxu0 %v6763
    %6796 = vmatprep.subr.bf16.mxu0 0
    %6797 = vmatpush1.bf16.msra.mxu0 %v6762
    %6798 = vmatprep.subr.bf16.mxu0 0
    %6799 = vmatpush1.bf16.msra.mxu0 %v6761
    %6800 = vmatprep.subr.bf16.mxu0 0
    %6801 = vmatpush1.bf16.msra.mxu0 %v6760
    %6802 = vmatprep.subr.bf16.mxu0 0
    %6803 = vmatpush1.bf16.msra.mxu0 %v6759
    %6804 = vmatprep.subr.bf16.mxu0 0
    %6805 = vmatpush1.bf16.msra.mxu0 %v6758
    %6806 = vmatprep.subr.bf16.mxu0 0
    %6807 = vmatpush2.bf16.msra.mxu0 %v6773
    %6808 = vmatprep.subr.bf16.mxu0 0
    %6809 = vmatpush2.bf16.msra.mxu0 %v6772
    %6810 = vmatprep.subr.bf16.mxu0 0
    %6811 = vmatpush2.bf16.msra.mxu0 %v6771
    %6812 = vmatprep.subr.bf16.mxu0 0
    %6813 = vmatpush2.bf16.msra.mxu0 %v6770
    %6814 = vmatprep.subr.bf16.mxu0 0
    %6815 = vmatpush2.bf16.msra.mxu0 %v6769
    %6816 = vmatprep.subr.bf16.mxu0 0
    %6817 = vmatpush2.bf16.msra.mxu0 %v6768
    %6818 = vmatprep.subr.bf16.mxu0 0
    %6819 = vmatpush2.bf16.msra.mxu0 %v6767
    %6820 = vmatprep.subr.bf16.mxu0 0
    %6821 = vmatpush2.bf16.msra.mxu0 %v6766
    %6822 = vmatprep.mubr.bf16.mxu0 %v5503
    %6823 = vmatmul.mubr.bf16.gmra.mxu0 %v5502
    %v6824 = vpop.f32.mrf.mxu0
    %v6825 = vadd.f32 %v6089, %v6824
    %v6826 = vpop.f32.mrf.mxu0
    %v6827 = vpop.f32.mrf.mxu0
    %v6828 = vpop.f32.mrf.mxu0
    %6829 = vdwg.mxu0
    %v6862 = vunpack.c.l.b16 %v5686
    %v6863 = vunpack.c.l.b16 %v5687
    %v6864 = vunpack.c.l.b16 %v5688
    %v6865 = vunpack.c.l.b16 %v5689
    %v6866 = vunpack.c.l.b16 %v5690
    %v6867 = vunpack.c.l.b16 %v5691
    %v6868 = vunpack.c.l.b16 %v5692
    %v6869 = vunpack.c.l.b16 %v5693
    %v6870 = vunpack.c.l.b16 %v5694
    %v6871 = vunpack.c.l.b16 %v5695
    %v6872 = vunpack.c.l.b16 %v5696
    %v6873 = vunpack.c.l.b16 %v5697
    %v6874 = vunpack.c.l.b16 %v5698
    %v6875 = vunpack.c.l.b16 %v5699
    %v6876 = vunpack.c.l.b16 %v5700
    %v6877 = vunpack.c.l.b16 %v5701
    %v6878 = vunpack.c.l.b16 %v5702
    %v6879 = vunpack.c.l.b16 %v5703
    %v6880 = vunpack.c.l.b16 %v5704
    %v6881 = vunpack.c.l.b16 %v5705
    %v6882 = vunpack.c.l.b16 %v5706
    %v6883 = vunpack.c.l.b16 %v5707
    %v6884 = vunpack.c.l.b16 %v5708
    %v6885 = vunpack.c.l.b16 %v5709
    %v6886 = vunpack.c.l.b16 %v5710
    %v6887 = vunpack.c.l.b16 %v5711
    %v6888 = vunpack.c.l.b16 %v5712
    %v6889 = vunpack.c.l.b16 %v5713
    %v6890 = vunpack.c.l.b16 %v5714
    %v6891 = vunpack.c.l.b16 %v5715
    %v6892 = vunpack.c.l.b16 %v5716
    %v6893 = vunpack.c.l.b16 %v5717
    %v6894 = vpack.c.b16 %v6863, %v6862
    %v6895 = vpack.c.b16 %v6865, %v6864
    %v6896 = vpack.c.b16 %v6867, %v6866
    %v6897 = vpack.c.b16 %v6869, %v6868
    %v6898 = vpack.c.b16 %v6871, %v6870
    %v6899 = vpack.c.b16 %v6873, %v6872
    %v6900 = vpack.c.b16 %v6875, %v6874
    %v6901 = vpack.c.b16 %v6877, %v6876
    %v6902 = vpack.c.b16 %v6879, %v6878
    %v6903 = vpack.c.b16 %v6881, %v6880
    %v6904 = vpack.c.b16 %v6883, %v6882
    %v6905 = vpack.c.b16 %v6885, %v6884
    %v6906 = vpack.c.b16 %v6887, %v6886
    %v6907 = vpack.c.b16 %v6889, %v6888
    %v6908 = vpack.c.b16 %v6891, %v6890
    %v6909 = vpack.c.b16 %v6893, %v6892
    %6926 = vmatprep.subr.bf16.mxu0 0
    %6927 = vmatpush1.bf16.msra.mxu0 %v6901
    %6928 = vmatprep.subr.bf16.mxu0 0
    %6929 = vmatpush1.bf16.msra.mxu0 %v6900
    %6930 = vmatprep.subr.bf16.mxu0 0
    %6931 = vmatpush1.bf16.msra.mxu0 %v6899
    %6932 = vmatprep.subr.bf16.mxu0 0
    %6933 = vmatpush1.bf16.msra.mxu0 %v6898
    %6934 = vmatprep.subr.bf16.mxu0 0
    %6935 = vmatpush1.bf16.msra.mxu0 %v6897
    %6936 = vmatprep.subr.bf16.mxu0 0
    %6937 = vmatpush1.bf16.msra.mxu0 %v6896
    %6938 = vmatprep.subr.bf16.mxu0 0
    %6939 = vmatpush1.bf16.msra.mxu0 %v6895
    %6940 = vmatprep.subr.bf16.mxu0 0
    %6941 = vmatpush1.bf16.msra.mxu0 %v6894
    %6942 = vmatprep.subr.bf16.mxu0 0
    %6943 = vmatpush2.bf16.msra.mxu0 %v6909
    %6944 = vmatprep.subr.bf16.mxu0 0
    %6945 = vmatpush2.bf16.msra.mxu0 %v6908
    %6946 = vmatprep.subr.bf16.mxu0 0
    %6947 = vmatpush2.bf16.msra.mxu0 %v6907
    %6948 = vmatprep.subr.bf16.mxu0 0
    %6949 = vmatpush2.bf16.msra.mxu0 %v6906
    %6950 = vmatprep.subr.bf16.mxu0 0
    %6951 = vmatpush2.bf16.msra.mxu0 %v6905
    %6952 = vmatprep.subr.bf16.mxu0 0
    %6953 = vmatpush2.bf16.msra.mxu0 %v6904
    %6954 = vmatprep.subr.bf16.mxu0 0
    %6955 = vmatpush2.bf16.msra.mxu0 %v6903
    %6956 = vmatprep.subr.bf16.mxu0 0
    %6957 = vmatpush2.bf16.msra.mxu0 %v6902
    %6958 = vmatprep.mubr.bf16.mxu0 %v5505
    %6959 = vmatmul.mubr.bf16.gmra.mxu0 %v5504
    %v6960 = vpop.f32.mrf.mxu0
    %v6961 = vadd.f32 %v6093, %v6960
    %v6962 = vpop.f32.mrf.mxu0
    %v6963 = vpop.f32.mrf.mxu0
    %v6964 = vpop.f32.mrf.mxu0
    %6965 = vdwg.mxu0
    %v6998 = vunpack.c.l.b16 %v5718
    %v6999 = vunpack.c.l.b16 %v5719
    %v7000 = vunpack.c.l.b16 %v5720
    %v7001 = vunpack.c.l.b16 %v5721
    %v7002 = vunpack.c.l.b16 %v5722
    %v7003 = vunpack.c.l.b16 %v5723
    %v7004 = vunpack.c.l.b16 %v5724
    %v7005 = vunpack.c.l.b16 %v5725
    %v7006 = vunpack.c.l.b16 %v5726
    %v7007 = vunpack.c.l.b16 %v5727
    %v7008 = vunpack.c.l.b16 %v5728
    %v7009 = vunpack.c.l.b16 %v5729
    %v7010 = vunpack.c.l.b16 %v5730
    %v7011 = vunpack.c.l.b16 %v5731
    %v7012 = vunpack.c.l.b16 %v5732
    %v7013 = vunpack.c.l.b16 %v5733
    %v7014 = vunpack.c.l.b16 %v5734
    %v7015 = vunpack.c.l.b16 %v5735
    %v7016 = vunpack.c.l.b16 %v5736
    %v7017 = vunpack.c.l.b16 %v5737
    %v7018 = vunpack.c.l.b16 %v5738
    %v7019 = vunpack.c.l.b16 %v5739
    %v7020 = vunpack.c.l.b16 %v5740
    %v7021 = vunpack.c.l.b16 %v5741
    %v7022 = vunpack.c.l.b16 %v5742
    %v7023 = vunpack.c.l.b16 %v5743
    %v7024 = vunpack.c.l.b16 %v5744
    %v7025 = vunpack.c.l.b16 %v5745
    %v7026 = vunpack.c.l.b16 %v5746
    %v7027 = vunpack.c.l.b16 %v5747
    %v7028 = vunpack.c.l.b16 %v5748
    %v7029 = vunpack.c.l.b16 %v5749
    %v7030 = vpack.c.b16 %v6999, %v6998
    %v7031 = vpack.c.b16 %v7001, %v7000
    %v7032 = vpack.c.b16 %v7003, %v7002
    %v7033 = vpack.c.b16 %v7005, %v7004
    %v7034 = vpack.c.b16 %v7007, %v7006
    %v7035 = vpack.c.b16 %v7009, %v7008
    %v7036 = vpack.c.b16 %v7011, %v7010
    %v7037 = vpack.c.b16 %v7013, %v7012
    %v7038 = vpack.c.b16 %v7015, %v7014
    %v7039 = vpack.c.b16 %v7017, %v7016
    %v7040 = vpack.c.b16 %v7019, %v7018
    %v7041 = vpack.c.b16 %v7021, %v7020
    %v7042 = vpack.c.b16 %v7023, %v7022
    %v7043 = vpack.c.b16 %v7025, %v7024
    %v7044 = vpack.c.b16 %v7027, %v7026
    %v7045 = vpack.c.b16 %v7029, %v7028
    %7062 = vmatprep.subr.bf16.mxu0 0
    %7063 = vmatpush1.bf16.msra.mxu0 %v7037
    %7064 = vmatprep.subr.bf16.mxu0 0
    %7065 = vmatpush1.bf16.msra.mxu0 %v7036
    %7066 = vmatprep.subr.bf16.mxu0 0
    %7067 = vmatpush1.bf16.msra.mxu0 %v7035
    %7068 = vmatprep.subr.bf16.mxu0 0
    %7069 = vmatpush1.bf16.msra.mxu0 %v7034
    %7070 = vmatprep.subr.bf16.mxu0 0
    %7071 = vmatpush1.bf16.msra.mxu0 %v7033
    %7072 = vmatprep.subr.bf16.mxu0 0
    %7073 = vmatpush1.bf16.msra.mxu0 %v7032
    %7074 = vmatprep.subr.bf16.mxu0 0
    %7075 = vmatpush1.bf16.msra.mxu0 %v7031
    %7076 = vmatprep.subr.bf16.mxu0 0
    %7077 = vmatpush1.bf16.msra.mxu0 %v7030
    %7078 = vmatprep.subr.bf16.mxu0 0
    %7079 = vmatpush2.bf16.msra.mxu0 %v7045
    %7080 = vmatprep.subr.bf16.mxu0 0
    %7081 = vmatpush2.bf16.msra.mxu0 %v7044
    %7082 = vmatprep.subr.bf16.mxu0 0
    %7083 = vmatpush2.bf16.msra.mxu0 %v7043
    %7084 = vmatprep.subr.bf16.mxu0 0
    %7085 = vmatpush2.bf16.msra.mxu0 %v7042
    %7086 = vmatprep.subr.bf16.mxu0 0
    %7087 = vmatpush2.bf16.msra.mxu0 %v7041
    %7088 = vmatprep.subr.bf16.mxu0 0
    %7089 = vmatpush2.bf16.msra.mxu0 %v7040
    %7090 = vmatprep.subr.bf16.mxu0 0
    %7091 = vmatpush2.bf16.msra.mxu0 %v7039
    %7092 = vmatprep.subr.bf16.mxu0 0
    %7093 = vmatpush2.bf16.msra.mxu0 %v7038
    %7094 = vmatprep.mubr.bf16.mxu0 %v5507
    %7095 = vmatmul.mubr.bf16.gmra.mxu0 %v5506
    %v7096 = vpop.f32.mrf.mxu0
    %v7097 = vadd.f32 %v6097, %v7096
    %v7098 = vpop.f32.mrf.mxu0
    %v7099 = vpop.f32.mrf.mxu0
    %v7100 = vpop.f32.mrf.mxu0
    %7101 = vdwg.mxu0
    %v7134 = vunpack.c.l.b16 %v5750
    %v7135 = vunpack.c.l.b16 %v5751
    %v7136 = vunpack.c.l.b16 %v5752
    %v7137 = vunpack.c.l.b16 %v5753
    %v7138 = vunpack.c.l.b16 %v5754
    %v7139 = vunpack.c.l.b16 %v5755
    %v7140 = vunpack.c.l.b16 %v5756
    %v7141 = vunpack.c.l.b16 %v5757
    %v7142 = vunpack.c.l.b16 %v5758
    %v7143 = vunpack.c.l.b16 %v5759
    %v7144 = vunpack.c.l.b16 %v5760
    %v7145 = vunpack.c.l.b16 %v5761
    %v7146 = vunpack.c.l.b16 %v5762
    %v7147 = vunpack.c.l.b16 %v5763
    %v7148 = vunpack.c.l.b16 %v5764
    %v7149 = vunpack.c.l.b16 %v5765
    %v7150 = vunpack.c.l.b16 %v5766
    %v7151 = vunpack.c.l.b16 %v5767
    %v7152 = vunpack.c.l.b16 %v5768
    %v7153 = vunpack.c.l.b16 %v5769
    %v7154 = vunpack.c.l.b16 %v5770
    %v7155 = vunpack.c.l.b16 %v5771
    %v7156 = vunpack.c.l.b16 %v5772
    %v7157 = vunpack.c.l.b16 %v5773
    %v7158 = vunpack.c.l.b16 %v5774
    %v7159 = vunpack.c.l.b16 %v5775
    %v7160 = vunpack.c.l.b16 %v5776
    %v7161 = vunpack.c.l.b16 %v5777
    %v7162 = vunpack.c.l.b16 %v5778
    %v7163 = vunpack.c.l.b16 %v5779
    %v7164 = vunpack.c.l.b16 %v5780
    %v7165 = vunpack.c.l.b16 %v5781
    %v7166 = vpack.c.b16 %v7135, %v7134
    %v7167 = vpack.c.b16 %v7137, %v7136
    %v7168 = vpack.c.b16 %v7139, %v7138
    %v7169 = vpack.c.b16 %v7141, %v7140
    %v7170 = vpack.c.b16 %v7143, %v7142
    %v7171 = vpack.c.b16 %v7145, %v7144
    %v7172 = vpack.c.b16 %v7147, %v7146
    %v7173 = vpack.c.b16 %v7149, %v7148
    %v7174 = vpack.c.b16 %v7151, %v7150
    %v7175 = vpack.c.b16 %v7153, %v7152
    %v7176 = vpack.c.b16 %v7155, %v7154
    %v7177 = vpack.c.b16 %v7157, %v7156
    %v7178 = vpack.c.b16 %v7159, %v7158
    %v7179 = vpack.c.b16 %v7161, %v7160
    %v7180 = vpack.c.b16 %v7163, %v7162
    %v7181 = vpack.c.b16 %v7165, %v7164
    %7198 = vmatprep.subr.bf16.mxu0 0
    %7199 = vmatpush1.bf16.msra.mxu0 %v7173
    %7200 = vmatprep.subr.bf16.mxu0 0
    %7201 = vmatpush1.bf16.msra.mxu0 %v7172
    %7202 = vmatprep.subr.bf16.mxu0 0
    %7203 = vmatpush1.bf16.msra.mxu0 %v7171
    %7204 = vmatprep.subr.bf16.mxu0 0
    %7205 = vmatpush1.bf16.msra.mxu0 %v7170
    %7206 = vmatprep.subr.bf16.mxu0 0
    %7207 = vmatpush1.bf16.msra.mxu0 %v7169
    %7208 = vmatprep.subr.bf16.mxu0 0
    %7209 = vmatpush1.bf16.msra.mxu0 %v7168
    %7210 = vmatprep.subr.bf16.mxu0 0
    %7211 = vmatpush1.bf16.msra.mxu0 %v7167
    %7212 = vmatprep.subr.bf16.mxu0 0
    %7213 = vmatpush1.bf16.msra.mxu0 %v7166
    %7214 = vmatprep.subr.bf16.mxu0 0
    %7215 = vmatpush2.bf16.msra.mxu0 %v7181
    %7216 = vmatprep.subr.bf16.mxu0 0
    %7217 = vmatpush2.bf16.msra.mxu0 %v7180
    %7218 = vmatprep.subr.bf16.mxu0 0
    %7219 = vmatpush2.bf16.msra.mxu0 %v7179
    %7220 = vmatprep.subr.bf16.mxu0 0
    %7221 = vmatpush2.bf16.msra.mxu0 %v7178
    %7222 = vmatprep.subr.bf16.mxu0 0
    %7223 = vmatpush2.bf16.msra.mxu0 %v7177
    %7224 = vmatprep.subr.bf16.mxu0 0
    %7225 = vmatpush2.bf16.msra.mxu0 %v7176
    %7226 = vmatprep.subr.bf16.mxu0 0
    %7227 = vmatpush2.bf16.msra.mxu0 %v7175
    %7228 = vmatprep.subr.bf16.mxu0 0
    %7229 = vmatpush2.bf16.msra.mxu0 %v7174
    %7230 = vmatprep.mubr.bf16.mxu0 %v5509
    %7231 = vmatmul.mubr.bf16.gmra.mxu0 %v5508
    %v7232 = vpop.f32.mrf.mxu0
    %v7233 = vadd.f32 %v6101, %v7232
    %v7234 = vpop.f32.mrf.mxu0
    %v7235 = vpop.f32.mrf.mxu0
    %v7236 = vpop.f32.mrf.mxu0
    %7237 = vdwg.mxu0
    %v7270 = vunpack.c.l.b16 %v5782
    %v7271 = vunpack.c.l.b16 %v5783
    %v7272 = vunpack.c.l.b16 %v5784
    %v7273 = vunpack.c.l.b16 %v5785
    %v7274 = vunpack.c.l.b16 %v5786
    %v7275 = vunpack.c.l.b16 %v5787
    %v7276 = vunpack.c.l.b16 %v5788
    %v7277 = vunpack.c.l.b16 %v5789
    %v7278 = vunpack.c.l.b16 %v5790
    %v7279 = vunpack.c.l.b16 %v5791
    %v7280 = vunpack.c.l.b16 %v5792
    %v7281 = vunpack.c.l.b16 %v5793
    %v7282 = vunpack.c.l.b16 %v5794
    %v7283 = vunpack.c.l.b16 %v5795
    %v7284 = vunpack.c.l.b16 %v5796
    %v7285 = vunpack.c.l.b16 %v5797
    %v7286 = vunpack.c.l.b16 %v5798
    %v7287 = vunpack.c.l.b16 %v5799
    %v7288 = vunpack.c.l.b16 %v5800
    %v7289 = vunpack.c.l.b16 %v5801
    %v7290 = vunpack.c.l.b16 %v5802
    %v7291 = vunpack.c.l.b16 %v5803
    %v7292 = vunpack.c.l.b16 %v5804
    %v7293 = vunpack.c.l.b16 %v5805
    %v7294 = vunpack.c.l.b16 %v5806
    %v7295 = vunpack.c.l.b16 %v5807
    %v7296 = vunpack.c.l.b16 %v5808
    %v7297 = vunpack.c.l.b16 %v5809
    %v7298 = vunpack.c.l.b16 %v5810
    %v7299 = vunpack.c.l.b16 %v5811
    %v7300 = vunpack.c.l.b16 %v5812
    %v7301 = vunpack.c.l.b16 %v5813
    %v7302 = vpack.c.b16 %v7271, %v7270
    %v7303 = vpack.c.b16 %v7273, %v7272
    %v7304 = vpack.c.b16 %v7275, %v7274
    %v7305 = vpack.c.b16 %v7277, %v7276
    %v7306 = vpack.c.b16 %v7279, %v7278
    %v7307 = vpack.c.b16 %v7281, %v7280
    %v7308 = vpack.c.b16 %v7283, %v7282
    %v7309 = vpack.c.b16 %v7285, %v7284
    %v7310 = vpack.c.b16 %v7287, %v7286
    %v7311 = vpack.c.b16 %v7289, %v7288
    %v7312 = vpack.c.b16 %v7291, %v7290
    %v7313 = vpack.c.b16 %v7293, %v7292
    %v7314 = vpack.c.b16 %v7295, %v7294
    %v7315 = vpack.c.b16 %v7297, %v7296
    %v7316 = vpack.c.b16 %v7299, %v7298
    %v7317 = vpack.c.b16 %v7301, %v7300
    %7334 = vmatprep.subr.bf16.mxu0 0
    %7335 = vmatpush1.bf16.msra.mxu0 %v7309
    %7336 = vmatprep.subr.bf16.mxu0 0
    %7337 = vmatpush1.bf16.msra.mxu0 %v7308
    %7338 = vmatprep.subr.bf16.mxu0 0
    %7339 = vmatpush1.bf16.msra.mxu0 %v7307
    %7340 = vmatprep.subr.bf16.mxu0 0
    %7341 = vmatpush1.bf16.msra.mxu0 %v7306
    %7342 = vmatprep.subr.bf16.mxu0 0
    %7343 = vmatpush1.bf16.msra.mxu0 %v7305
    %7344 = vmatprep.subr.bf16.mxu0 0
    %7345 = vmatpush1.bf16.msra.mxu0 %v7304
    %7346 = vmatprep.subr.bf16.mxu0 0
    %7347 = vmatpush1.bf16.msra.mxu0 %v7303
    %7348 = vmatprep.subr.bf16.mxu0 0
    %7349 = vmatpush1.bf16.msra.mxu0 %v7302
    %7350 = vmatprep.subr.bf16.mxu0 0
    %7351 = vmatpush2.bf16.msra.mxu0 %v7317
    %7352 = vmatprep.subr.bf16.mxu0 0
    %7353 = vmatpush2.bf16.msra.mxu0 %v7316
    %7354 = vmatprep.subr.bf16.mxu0 0
    %7355 = vmatpush2.bf16.msra.mxu0 %v7315
    %7356 = vmatprep.subr.bf16.mxu0 0
    %7357 = vmatpush2.bf16.msra.mxu0 %v7314
    %7358 = vmatprep.subr.bf16.mxu0 0
    %7359 = vmatpush2.bf16.msra.mxu0 %v7313
    %7360 = vmatprep.subr.bf16.mxu0 0
    %7361 = vmatpush2.bf16.msra.mxu0 %v7312
    %7362 = vmatprep.subr.bf16.mxu0 0
    %7363 = vmatpush2.bf16.msra.mxu0 %v7311
    %7364 = vmatprep.subr.bf16.mxu0 0
    %7365 = vmatpush2.bf16.msra.mxu0 %v7310
    %7366 = vmatprep.mubr.bf16.mxu0 %v5511
    %7367 = vmatmul.mubr.bf16.gmra.mxu0 %v5510
    %v7368 = vpop.f32.mrf.mxu0
    %v7369 = vadd.f32 %v6105, %v7368
    %v7370 = vpop.f32.mrf.mxu0
    %v7371 = vpop.f32.mrf.mxu0
    %v7372 = vpop.f32.mrf.mxu0
    %7373 = vdwg.mxu0
    %v7406 = vunpack.c.l.b16 %v5814
    %v7407 = vunpack.c.l.b16 %v5815
    %v7408 = vunpack.c.l.b16 %v5816
    %v7409 = vunpack.c.l.b16 %v5817
    %v7410 = vunpack.c.l.b16 %v5818
    %v7411 = vunpack.c.l.b16 %v5819
    %v7412 = vunpack.c.l.b16 %v5820
    %v7413 = vunpack.c.l.b16 %v5821
    %v7414 = vunpack.c.l.b16 %v5822
    %v7415 = vunpack.c.l.b16 %v5823
    %v7416 = vunpack.c.l.b16 %v5824
    %v7417 = vunpack.c.l.b16 %v5825
    %v7418 = vunpack.c.l.b16 %v5826
    %v7419 = vunpack.c.l.b16 %v5827
    %v7420 = vunpack.c.l.b16 %v5828
    %v7421 = vunpack.c.l.b16 %v5829
    %v7422 = vunpack.c.l.b16 %v5830
    %v7423 = vunpack.c.l.b16 %v5831
    %v7424 = vunpack.c.l.b16 %v5832
    %v7425 = vunpack.c.l.b16 %v5833
    %v7426 = vunpack.c.l.b16 %v5834
    %v7427 = vunpack.c.l.b16 %v5835
    %v7428 = vunpack.c.l.b16 %v5836
    %v7429 = vunpack.c.l.b16 %v5837
    %v7430 = vunpack.c.l.b16 %v5838
    %v7431 = vunpack.c.l.b16 %v5839
    %v7432 = vunpack.c.l.b16 %v5840
    %v7433 = vunpack.c.l.b16 %v5841
    %v7434 = vunpack.c.l.b16 %v5842
    %v7435 = vunpack.c.l.b16 %v5843
    %v7436 = vunpack.c.l.b16 %v5844
    %v7437 = vunpack.c.l.b16 %v5845
    %v7438 = vpack.c.b16 %v7407, %v7406
    %v7439 = vpack.c.b16 %v7409, %v7408
    %v7440 = vpack.c.b16 %v7411, %v7410
    %v7441 = vpack.c.b16 %v7413, %v7412
    %v7442 = vpack.c.b16 %v7415, %v7414
    %v7443 = vpack.c.b16 %v7417, %v7416
    %v7444 = vpack.c.b16 %v7419, %v7418
    %v7445 = vpack.c.b16 %v7421, %v7420
    %v7446 = vpack.c.b16 %v7423, %v7422
    %v7447 = vpack.c.b16 %v7425, %v7424
    %v7448 = vpack.c.b16 %v7427, %v7426
    %v7449 = vpack.c.b16 %v7429, %v7428
    %v7450 = vpack.c.b16 %v7431, %v7430
    %v7451 = vpack.c.b16 %v7433, %v7432
    %v7452 = vpack.c.b16 %v7435, %v7434
    %v7453 = vpack.c.b16 %v7437, %v7436
    %7470 = vmatprep.subr.bf16.mxu0 0
    %7471 = vmatpush1.bf16.msra.mxu0 %v7445
    %7472 = vmatprep.subr.bf16.mxu0 0
    %7473 = vmatpush1.bf16.msra.mxu0 %v7444
    %7474 = vmatprep.subr.bf16.mxu0 0
    %7475 = vmatpush1.bf16.msra.mxu0 %v7443
    %7476 = vmatprep.subr.bf16.mxu0 0
    %7477 = vmatpush1.bf16.msra.mxu0 %v7442
    %7478 = vmatprep.subr.bf16.mxu0 0
    %7479 = vmatpush1.bf16.msra.mxu0 %v7441
    %7480 = vmatprep.subr.bf16.mxu0 0
    %7481 = vmatpush1.bf16.msra.mxu0 %v7440
    %7482 = vmatprep.subr.bf16.mxu0 0
    %7483 = vmatpush1.bf16.msra.mxu0 %v7439
    %7484 = vmatprep.subr.bf16.mxu0 0
    %7485 = vmatpush1.bf16.msra.mxu0 %v7438
    %7486 = vmatprep.subr.bf16.mxu0 0
    %7487 = vmatpush2.bf16.msra.mxu0 %v7453
    %7488 = vmatprep.subr.bf16.mxu0 0
    %7489 = vmatpush2.bf16.msra.mxu0 %v7452
    %7490 = vmatprep.subr.bf16.mxu0 0
    %7491 = vmatpush2.bf16.msra.mxu0 %v7451
    %7492 = vmatprep.subr.bf16.mxu0 0
    %7493 = vmatpush2.bf16.msra.mxu0 %v7450
    %7494 = vmatprep.subr.bf16.mxu0 0
    %7495 = vmatpush2.bf16.msra.mxu0 %v7449
    %7496 = vmatprep.subr.bf16.mxu0 0
    %7497 = vmatpush2.bf16.msra.mxu0 %v7448
    %7498 = vmatprep.subr.bf16.mxu0 0
    %7499 = vmatpush2.bf16.msra.mxu0 %v7447
    %7500 = vmatprep.subr.bf16.mxu0 0
    %7501 = vmatpush2.bf16.msra.mxu0 %v7446
    %7502 = vmatprep.mubr.bf16.mxu0 %v5513
    %7503 = vmatmul.mubr.bf16.gmra.mxu0 %v5512
    %v7504 = vpop.f32.mrf.mxu0
    %v7505 = vadd.f32 %v6109, %v7504
    %v7506 = vpop.f32.mrf.mxu0
    %v7507 = vpop.f32.mrf.mxu0
    %v7508 = vpop.f32.mrf.mxu0
    %7509 = vdwg.mxu0
    %v7542 = vunpack.c.l.b16 %v5846
    %v7543 = vunpack.c.l.b16 %v5847
    %v7544 = vunpack.c.l.b16 %v5848
    %v7545 = vunpack.c.l.b16 %v5849
    %v7546 = vunpack.c.l.b16 %v5850
    %v7547 = vunpack.c.l.b16 %v5851
    %v7548 = vunpack.c.l.b16 %v5852
    %v7549 = vunpack.c.l.b16 %v5853
    %v7550 = vunpack.c.l.b16 %v5854
    %v7551 = vunpack.c.l.b16 %v5855
    %v7552 = vunpack.c.l.b16 %v5856
    %v7553 = vunpack.c.l.b16 %v5857
    %v7554 = vunpack.c.l.b16 %v5858
    %v7555 = vunpack.c.l.b16 %v5859
    %v7556 = vunpack.c.l.b16 %v5860
    %v7557 = vunpack.c.l.b16 %v5861
    %v7558 = vunpack.c.l.b16 %v5862
    %v7559 = vunpack.c.l.b16 %v5863
    %v7560 = vunpack.c.l.b16 %v5864
    %v7561 = vunpack.c.l.b16 %v5865
    %v7562 = vunpack.c.l.b16 %v5866
    %v7563 = vunpack.c.l.b16 %v5867
    %v7564 = vunpack.c.l.b16 %v5868
    %v7565 = vunpack.c.l.b16 %v5869
    %v7566 = vunpack.c.l.b16 %v5870
    %v7567 = vunpack.c.l.b16 %v5871
    %v7568 = vunpack.c.l.b16 %v5872
    %v7569 = vunpack.c.l.b16 %v5873
    %v7570 = vunpack.c.l.b16 %v5874
    %v7571 = vunpack.c.l.b16 %v5875
    %v7572 = vunpack.c.l.b16 %v5876
    %v7573 = vunpack.c.l.b16 %v5877
    %v7574 = vpack.c.b16 %v7543, %v7542
    %v7575 = vpack.c.b16 %v7545, %v7544
    %v7576 = vpack.c.b16 %v7547, %v7546
    %v7577 = vpack.c.b16 %v7549, %v7548
    %v7578 = vpack.c.b16 %v7551, %v7550
    %v7579 = vpack.c.b16 %v7553, %v7552
    %v7580 = vpack.c.b16 %v7555, %v7554
    %v7581 = vpack.c.b16 %v7557, %v7556
    %v7582 = vpack.c.b16 %v7559, %v7558
    %v7583 = vpack.c.b16 %v7561, %v7560
    %v7584 = vpack.c.b16 %v7563, %v7562
    %v7585 = vpack.c.b16 %v7565, %v7564
    %v7586 = vpack.c.b16 %v7567, %v7566
    %v7587 = vpack.c.b16 %v7569, %v7568
    %v7588 = vpack.c.b16 %v7571, %v7570
    %v7589 = vpack.c.b16 %v7573, %v7572
    %7606 = vmatprep.subr.bf16.mxu0 0
    %7607 = vmatpush1.bf16.msra.mxu0 %v7581
    %7608 = vmatprep.subr.bf16.mxu0 0
    %7609 = vmatpush1.bf16.msra.mxu0 %v7580
    %7610 = vmatprep.subr.bf16.mxu0 0
    %7611 = vmatpush1.bf16.msra.mxu0 %v7579
    %7612 = vmatprep.subr.bf16.mxu0 0
    %7613 = vmatpush1.bf16.msra.mxu0 %v7578
    %7614 = vmatprep.subr.bf16.mxu0 0
    %7615 = vmatpush1.bf16.msra.mxu0 %v7577
    %7616 = vmatprep.subr.bf16.mxu0 0
    %7617 = vmatpush1.bf16.msra.mxu0 %v7576
    %7618 = vmatprep.subr.bf16.mxu0 0
    %7619 = vmatpush1.bf16.msra.mxu0 %v7575
    %7620 = vmatprep.subr.bf16.mxu0 0
    %7621 = vmatpush1.bf16.msra.mxu0 %v7574
    %7622 = vmatprep.subr.bf16.mxu0 0
    %7623 = vmatpush2.bf16.msra.mxu0 %v7589
    %7624 = vmatprep.subr.bf16.mxu0 0
    %7625 = vmatpush2.bf16.msra.mxu0 %v7588
    %7626 = vmatprep.subr.bf16.mxu0 0
    %7627 = vmatpush2.bf16.msra.mxu0 %v7587
    %7628 = vmatprep.subr.bf16.mxu0 0
    %7629 = vmatpush2.bf16.msra.mxu0 %v7586
    %7630 = vmatprep.subr.bf16.mxu0 0
    %7631 = vmatpush2.bf16.msra.mxu0 %v7585
    %7632 = vmatprep.subr.bf16.mxu0 0
    %7633 = vmatpush2.bf16.msra.mxu0 %v7584
    %7634 = vmatprep.subr.bf16.mxu0 0
    %7635 = vmatpush2.bf16.msra.mxu0 %v7583
    %7636 = vmatprep.subr.bf16.mxu0 0
    %7637 = vmatpush2.bf16.msra.mxu0 %v7582
    %7638 = vmatprep.mubr.bf16.mxu0 %v5515
    %7639 = vmatmul.mubr.bf16.gmra.mxu0 %v5514
    %v7640 = vpop.f32.mrf.mxu0
    %v7641 = vadd.f32 %v6113, %v7640
    %v7642 = vpop.f32.mrf.mxu0
    %v7643 = vpop.f32.mrf.mxu0
    %v7644 = vpop.f32.mrf.mxu0
    %7645 = vdwg.mxu0
    %v7678 = vunpack.c.l.b16 %v5878
    %v7679 = vunpack.c.l.b16 %v5879
    %v7680 = vunpack.c.l.b16 %v5880
    %v7681 = vunpack.c.l.b16 %v5881
    %v7682 = vunpack.c.l.b16 %v5882
    %v7683 = vunpack.c.l.b16 %v5883
    %v7684 = vunpack.c.l.b16 %v5884
    %v7685 = vunpack.c.l.b16 %v5885
    %v7686 = vunpack.c.l.b16 %v5886
    %v7687 = vunpack.c.l.b16 %v5887
    %v7688 = vunpack.c.l.b16 %v5888
    %v7689 = vunpack.c.l.b16 %v5889
    %v7690 = vunpack.c.l.b16 %v5890
    %v7691 = vunpack.c.l.b16 %v5891
    %v7692 = vunpack.c.l.b16 %v5892
    %v7693 = vunpack.c.l.b16 %v5893
    %v7694 = vunpack.c.l.b16 %v5894
    %v7695 = vunpack.c.l.b16 %v5895
    %v7696 = vunpack.c.l.b16 %v5896
    %v7697 = vunpack.c.l.b16 %v5897
    %v7698 = vunpack.c.l.b16 %v5898
    %v7699 = vunpack.c.l.b16 %v5899
    %v7700 = vunpack.c.l.b16 %v5900
    %v7701 = vunpack.c.l.b16 %v5901
    %v7702 = vunpack.c.l.b16 %v5902
    %v7703 = vunpack.c.l.b16 %v5903
    %v7704 = vunpack.c.l.b16 %v5904
    %v7705 = vunpack.c.l.b16 %v5905
    %v7706 = vunpack.c.l.b16 %v5906
    %v7707 = vunpack.c.l.b16 %v5907
    %v7708 = vunpack.c.l.b16 %v5908
    %v7709 = vunpack.c.l.b16 %v5909
    %v7710 = vpack.c.b16 %v7679, %v7678
    %v7711 = vpack.c.b16 %v7681, %v7680
    %v7712 = vpack.c.b16 %v7683, %v7682
    %v7713 = vpack.c.b16 %v7685, %v7684
    %v7714 = vpack.c.b16 %v7687, %v7686
    %v7715 = vpack.c.b16 %v7689, %v7688
    %v7716 = vpack.c.b16 %v7691, %v7690
    %v7717 = vpack.c.b16 %v7693, %v7692
    %v7718 = vpack.c.b16 %v7695, %v7694
    %v7719 = vpack.c.b16 %v7697, %v7696
    %v7720 = vpack.c.b16 %v7699, %v7698
    %v7721 = vpack.c.b16 %v7701, %v7700
    %v7722 = vpack.c.b16 %v7703, %v7702
    %v7723 = vpack.c.b16 %v7705, %v7704
    %v7724 = vpack.c.b16 %v7707, %v7706
    %v7725 = vpack.c.b16 %v7709, %v7708
    %7742 = vmatprep.subr.bf16.mxu0 0
    %7743 = vmatpush1.bf16.msra.mxu0 %v7717
    %7744 = vmatprep.subr.bf16.mxu0 0
    %7745 = vmatpush1.bf16.msra.mxu0 %v7716
    %7746 = vmatprep.subr.bf16.mxu0 0
    %7747 = vmatpush1.bf16.msra.mxu0 %v7715
    %7748 = vmatprep.subr.bf16.mxu0 0
    %7749 = vmatpush1.bf16.msra.mxu0 %v7714
    %7750 = vmatprep.subr.bf16.mxu0 0
    %7751 = vmatpush1.bf16.msra.mxu0 %v7713
    %7752 = vmatprep.subr.bf16.mxu0 0
    %7753 = vmatpush1.bf16.msra.mxu0 %v7712
    %7754 = vmatprep.subr.bf16.mxu0 0
    %7755 = vmatpush1.bf16.msra.mxu0 %v7711
    %7756 = vmatprep.subr.bf16.mxu0 0
    %7757 = vmatpush1.bf16.msra.mxu0 %v7710
    %7758 = vmatprep.subr.bf16.mxu0 0
    %7759 = vmatpush2.bf16.msra.mxu0 %v7725
    %7760 = vmatprep.subr.bf16.mxu0 0
    %7761 = vmatpush2.bf16.msra.mxu0 %v7724
    %7762 = vmatprep.subr.bf16.mxu0 0
    %7763 = vmatpush2.bf16.msra.mxu0 %v7723
    %7764 = vmatprep.subr.bf16.mxu0 0
    %7765 = vmatpush2.bf16.msra.mxu0 %v7722
    %7766 = vmatprep.subr.bf16.mxu0 0
    %7767 = vmatpush2.bf16.msra.mxu0 %v7721
    %7768 = vmatprep.subr.bf16.mxu0 0
    %7769 = vmatpush2.bf16.msra.mxu0 %v7720
    %7770 = vmatprep.subr.bf16.mxu0 0
    %7771 = vmatpush2.bf16.msra.mxu0 %v7719
    %7772 = vmatprep.subr.bf16.mxu0 0
    %7773 = vmatpush2.bf16.msra.mxu0 %v7718
    %7774 = vmatprep.mubr.bf16.mxu0 %v5517
    %7775 = vmatmul.mubr.bf16.gmra.mxu0 %v5516
    %v7776 = vpop.f32.mrf.mxu0
    %v7777 = vadd.f32 %v6117, %v7776
    %v7778 = vpop.f32.mrf.mxu0
    %v7779 = vpop.f32.mrf.mxu0
    %v7780 = vpop.f32.mrf.mxu0
    %7781 = vdwg.mxu0
    %v7814 = vunpack.c.l.b16 %v5910
    %v7815 = vunpack.c.l.b16 %v5911
    %v7816 = vunpack.c.l.b16 %v5912
    %v7817 = vunpack.c.l.b16 %v5913
    %v7818 = vunpack.c.l.b16 %v5914
    %v7819 = vunpack.c.l.b16 %v5915
    %v7820 = vunpack.c.l.b16 %v5916
    %v7821 = vunpack.c.l.b16 %v5917
    %v7822 = vunpack.c.l.b16 %v5918
    %v7823 = vunpack.c.l.b16 %v5919
    %v7824 = vunpack.c.l.b16 %v5920
    %v7825 = vunpack.c.l.b16 %v5921
    %v7826 = vunpack.c.l.b16 %v5922
    %v7827 = vunpack.c.l.b16 %v5923
    %v7828 = vunpack.c.l.b16 %v5924
    %v7829 = vunpack.c.l.b16 %v5925
    %v7830 = vunpack.c.l.b16 %v5926
    %v7831 = vunpack.c.l.b16 %v5927
    %v7832 = vunpack.c.l.b16 %v5928
    %v7833 = vunpack.c.l.b16 %v5929
    %v7834 = vunpack.c.l.b16 %v5930
    %v7835 = vunpack.c.l.b16 %v5931
    %v7836 = vunpack.c.l.b16 %v5932
    %v7837 = vunpack.c.l.b16 %v5933
    %v7838 = vunpack.c.l.b16 %v5934
    %v7839 = vunpack.c.l.b16 %v5935
    %v7840 = vunpack.c.l.b16 %v5936
    %v7841 = vunpack.c.l.b16 %v5937
    %v7842 = vunpack.c.l.b16 %v5938
    %v7843 = vunpack.c.l.b16 %v5939
    %v7844 = vunpack.c.l.b16 %v5940
    %v7845 = vunpack.c.l.b16 %v5941
    %v7846 = vpack.c.b16 %v7815, %v7814
    %v7847 = vpack.c.b16 %v7817, %v7816
    %v7848 = vpack.c.b16 %v7819, %v7818
    %v7849 = vpack.c.b16 %v7821, %v7820
    %v7850 = vpack.c.b16 %v7823, %v7822
    %v7851 = vpack.c.b16 %v7825, %v7824
    %v7852 = vpack.c.b16 %v7827, %v7826
    %v7853 = vpack.c.b16 %v7829, %v7828
    %v7854 = vpack.c.b16 %v7831, %v7830
    %v7855 = vpack.c.b16 %v7833, %v7832
    %v7856 = vpack.c.b16 %v7835, %v7834
    %v7857 = vpack.c.b16 %v7837, %v7836
    %v7858 = vpack.c.b16 %v7839, %v7838
    %v7859 = vpack.c.b16 %v7841, %v7840
    %v7860 = vpack.c.b16 %v7843, %v7842
    %v7861 = vpack.c.b16 %v7845, %v7844
    %7878 = vmatprep.subr.bf16.mxu0 0
    %7879 = vmatpush1.bf16.msra.mxu0 %v7853
    %7880 = vmatprep.subr.bf16.mxu0 0
    %7881 = vmatpush1.bf16.msra.mxu0 %v7852
    %7882 = vmatprep.subr.bf16.mxu0 0
    %7883 = vmatpush1.bf16.msra.mxu0 %v7851
    %7884 = vmatprep.subr.bf16.mxu0 0
    %7885 = vmatpush1.bf16.msra.mxu0 %v7850
    %7886 = vmatprep.subr.bf16.mxu0 0
    %7887 = vmatpush1.bf16.msra.mxu0 %v7849
    %7888 = vmatprep.subr.bf16.mxu0 0
    %7889 = vmatpush1.bf16.msra.mxu0 %v7848
    %7890 = vmatprep.subr.bf16.mxu0 0
    %7891 = vmatpush1.bf16.msra.mxu0 %v7847
    %7892 = vmatprep.subr.bf16.mxu0 0
    %7893 = vmatpush1.bf16.msra.mxu0 %v7846
    %7894 = vmatprep.subr.bf16.mxu0 0
    %7895 = vmatpush2.bf16.msra.mxu0 %v7861
    %7896 = vmatprep.subr.bf16.mxu0 0
    %7897 = vmatpush2.bf16.msra.mxu0 %v7860
    %7898 = vmatprep.subr.bf16.mxu0 0
    %7899 = vmatpush2.bf16.msra.mxu0 %v7859
    %7900 = vmatprep.subr.bf16.mxu0 0
    %7901 = vmatpush2.bf16.msra.mxu0 %v7858
    %7902 = vmatprep.subr.bf16.mxu0 0
    %7903 = vmatpush2.bf16.msra.mxu0 %v7857
    %7904 = vmatprep.subr.bf16.mxu0 0
    %7905 = vmatpush2.bf16.msra.mxu0 %v7856
    %7906 = vmatprep.subr.bf16.mxu0 0
    %7907 = vmatpush2.bf16.msra.mxu0 %v7855
    %7908 = vmatprep.subr.bf16.mxu0 0
    %7909 = vmatpush2.bf16.msra.mxu0 %v7854
    %7910 = vmatprep.mubr.bf16.mxu0 %v5519
    %7911 = vmatmul.mubr.bf16.gmra.mxu0 %v5518
    %v7912 = vpop.f32.mrf.mxu0
    %v7913 = vadd.f32 %v6121, %v7912
    %v7914 = vpop.f32.mrf.mxu0
    %v7915 = vpop.f32.mrf.mxu0
    %v7916 = vpop.f32.mrf.mxu0
    %7917 = vdwg.mxu0
    %v7950 = vunpack.c.l.b16 %v5942
    %v7951 = vunpack.c.l.b16 %v5943
    %v7952 = vunpack.c.l.b16 %v5944
    %v7953 = vunpack.c.l.b16 %v5945
    %v7954 = vunpack.c.l.b16 %v5946
    %v7955 = vunpack.c.l.b16 %v5947
    %v7956 = vunpack.c.l.b16 %v5948
    %v7957 = vunpack.c.l.b16 %v5949
    %v7958 = vunpack.c.l.b16 %v5950
    %v7959 = vunpack.c.l.b16 %v5951
    %v7960 = vunpack.c.l.b16 %v5952
    %v7961 = vunpack.c.l.b16 %v5953
    %v7962 = vunpack.c.l.b16 %v5954
    %v7963 = vunpack.c.l.b16 %v5955
    %v7964 = vunpack.c.l.b16 %v5956
    %v7965 = vunpack.c.l.b16 %v5957
    %v7966 = vunpack.c.l.b16 %v5958
    %v7967 = vunpack.c.l.b16 %v5959
    %v7968 = vunpack.c.l.b16 %v5960
    %v7969 = vunpack.c.l.b16 %v5961
    %v7970 = vunpack.c.l.b16 %v5962
    %v7971 = vunpack.c.l.b16 %v5963
    %v7972 = vunpack.c.l.b16 %v5964
    %v7973 = vunpack.c.l.b16 %v5965
    %v7974 = vunpack.c.l.b16 %v5966
    %v7975 = vunpack.c.l.b16 %v5967
    %v7976 = vunpack.c.l.b16 %v5968
    %v7977 = vunpack.c.l.b16 %v5969
    %v7978 = vunpack.c.l.b16 %v5970
    %v7979 = vunpack.c.l.b16 %v5971
    %v7980 = vunpack.c.l.b16 %v5972
    %v7981 = vunpack.c.l.b16 %v5973
    %v7982 = vpack.c.b16 %v7951, %v7950
    %v7983 = vpack.c.b16 %v7953, %v7952
    %v7984 = vpack.c.b16 %v7955, %v7954
    %v7985 = vpack.c.b16 %v7957, %v7956
    %v7986 = vpack.c.b16 %v7959, %v7958
    %v7987 = vpack.c.b16 %v7961, %v7960
    %v7988 = vpack.c.b16 %v7963, %v7962
    %v7989 = vpack.c.b16 %v7965, %v7964
    %v7990 = vpack.c.b16 %v7967, %v7966
    %v7991 = vpack.c.b16 %v7969, %v7968
    %v7992 = vpack.c.b16 %v7971, %v7970
    %v7993 = vpack.c.b16 %v7973, %v7972
    %v7994 = vpack.c.b16 %v7975, %v7974
    %v7995 = vpack.c.b16 %v7977, %v7976
    %v7996 = vpack.c.b16 %v7979, %v7978
    %v7997 = vpack.c.b16 %v7981, %v7980
    %8014 = vmatprep.subr.bf16.mxu0 0
    %8015 = vmatpush1.bf16.msra.mxu0 %v7989
    %8016 = vmatprep.subr.bf16.mxu0 0
    %8017 = vmatpush1.bf16.msra.mxu0 %v7988
    %8018 = vmatprep.subr.bf16.mxu0 0
    %8019 = vmatpush1.bf16.msra.mxu0 %v7987
    %8020 = vmatprep.subr.bf16.mxu0 0
    %8021 = vmatpush1.bf16.msra.mxu0 %v7986
    %8022 = vmatprep.subr.bf16.mxu0 0
    %8023 = vmatpush1.bf16.msra.mxu0 %v7985
    %8024 = vmatprep.subr.bf16.mxu0 0
    %8025 = vmatpush1.bf16.msra.mxu0 %v7984
    %8026 = vmatprep.subr.bf16.mxu0 0
    %8027 = vmatpush1.bf16.msra.mxu0 %v7983
    %8028 = vmatprep.subr.bf16.mxu0 0
    %8029 = vmatpush1.bf16.msra.mxu0 %v7982
    %8030 = vmatprep.subr.bf16.mxu0 0
    %8031 = vmatpush2.bf16.msra.mxu0 %v7997
    %8032 = vmatprep.subr.bf16.mxu0 0
    %8033 = vmatpush2.bf16.msra.mxu0 %v7996
    %8034 = vmatprep.subr.bf16.mxu0 0
    %8035 = vmatpush2.bf16.msra.mxu0 %v7995
    %8036 = vmatprep.subr.bf16.mxu0 0
    %8037 = vmatpush2.bf16.msra.mxu0 %v7994
    %8038 = vmatprep.subr.bf16.mxu0 0
    %8039 = vmatpush2.bf16.msra.mxu0 %v7993
    %8040 = vmatprep.subr.bf16.mxu0 0
    %8041 = vmatpush2.bf16.msra.mxu0 %v7992
    %8042 = vmatprep.subr.bf16.mxu0 0
    %8043 = vmatpush2.bf16.msra.mxu0 %v7991
    %8044 = vmatprep.subr.bf16.mxu0 0
    %8045 = vmatpush2.bf16.msra.mxu0 %v7990
    %8046 = vmatprep.mubr.bf16.mxu0 %v5521
    %8047 = vmatmul.mubr.bf16.gmra.mxu0 %v5520
    %v8048 = vpop.f32.mrf.mxu0
    %v8049 = vadd.f32 %v6125, %v8048
    %v8050 = vpop.f32.mrf.mxu0
    %v8051 = vpop.f32.mrf.mxu0
    %v8052 = vpop.f32.mrf.mxu0
    %8053 = vdwg.mxu0
    %v8086 = vunpack.c.l.b16 %v5974
    %v8087 = vunpack.c.l.b16 %v5975
    %v8088 = vunpack.c.l.b16 %v5976
    %v8089 = vunpack.c.l.b16 %v5977
    %v8090 = vunpack.c.l.b16 %v5978
    %v8091 = vunpack.c.l.b16 %v5979
    %v8092 = vunpack.c.l.b16 %v5980
    %v8093 = vunpack.c.l.b16 %v5981
    %v8094 = vunpack.c.l.b16 %v5982
    %v8095 = vunpack.c.l.b16 %v5983
    %v8096 = vunpack.c.l.b16 %v5984
    %v8097 = vunpack.c.l.b16 %v5985
    %v8098 = vunpack.c.l.b16 %v5986
    %v8099 = vunpack.c.l.b16 %v5987
    %v8100 = vunpack.c.l.b16 %v5988
    %v8101 = vunpack.c.l.b16 %v5989
    %v8102 = vunpack.c.l.b16 %v5990
    %v8103 = vunpack.c.l.b16 %v5991
    %v8104 = vunpack.c.l.b16 %v5992
    %v8105 = vunpack.c.l.b16 %v5993
    %v8106 = vunpack.c.l.b16 %v5994
    %v8107 = vunpack.c.l.b16 %v5995
    %v8108 = vunpack.c.l.b16 %v5996
    %v8109 = vunpack.c.l.b16 %v5997
    %v8110 = vunpack.c.l.b16 %v5998
    %v8111 = vunpack.c.l.b16 %v5999
    %v8112 = vunpack.c.l.b16 %v6000
    %v8113 = vunpack.c.l.b16 %v6001
    %v8114 = vunpack.c.l.b16 %v6002
    %v8115 = vunpack.c.l.b16 %v6003
    %v8116 = vunpack.c.l.b16 %v6004
    %v8117 = vunpack.c.l.b16 %v6005
    %v8118 = vpack.c.b16 %v8087, %v8086
    %v8119 = vpack.c.b16 %v8089, %v8088
    %v8120 = vpack.c.b16 %v8091, %v8090
    %v8121 = vpack.c.b16 %v8093, %v8092
    %v8122 = vpack.c.b16 %v8095, %v8094
    %v8123 = vpack.c.b16 %v8097, %v8096
    %v8124 = vpack.c.b16 %v8099, %v8098
    %v8125 = vpack.c.b16 %v8101, %v8100
    %v8126 = vpack.c.b16 %v8103, %v8102
    %v8127 = vpack.c.b16 %v8105, %v8104
    %v8128 = vpack.c.b16 %v8107, %v8106
    %v8129 = vpack.c.b16 %v8109, %v8108
    %v8130 = vpack.c.b16 %v8111, %v8110
    %v8131 = vpack.c.b16 %v8113, %v8112
    %v8132 = vpack.c.b16 %v8115, %v8114
    %v8133 = vpack.c.b16 %v8117, %v8116
    %8150 = vmatprep.subr.bf16.mxu0 0
    %8151 = vmatpush1.bf16.msra.mxu0 %v8125
    %8152 = vmatprep.subr.bf16.mxu0 0
    %8153 = vmatpush1.bf16.msra.mxu0 %v8124
    %8154 = vmatprep.subr.bf16.mxu0 0
    %8155 = vmatpush1.bf16.msra.mxu0 %v8123
    %8156 = vmatprep.subr.bf16.mxu0 0
    %8157 = vmatpush1.bf16.msra.mxu0 %v8122
    %8158 = vmatprep.subr.bf16.mxu0 0
    %8159 = vmatpush1.bf16.msra.mxu0 %v8121
    %8160 = vmatprep.subr.bf16.mxu0 0
    %8161 = vmatpush1.bf16.msra.mxu0 %v8120
    %8162 = vmatprep.subr.bf16.mxu0 0
    %8163 = vmatpush1.bf16.msra.mxu0 %v8119
    %8164 = vmatprep.subr.bf16.mxu0 0
    %8165 = vmatpush1.bf16.msra.mxu0 %v8118
    %8166 = vmatprep.subr.bf16.mxu0 0
    %8167 = vmatpush2.bf16.msra.mxu0 %v8133
    %8168 = vmatprep.subr.bf16.mxu0 0
    %8169 = vmatpush2.bf16.msra.mxu0 %v8132
    %8170 = vmatprep.subr.bf16.mxu0 0
    %8171 = vmatpush2.bf16.msra.mxu0 %v8131
    %8172 = vmatprep.subr.bf16.mxu0 0
    %8173 = vmatpush2.bf16.msra.mxu0 %v8130
    %8174 = vmatprep.subr.bf16.mxu0 0
    %8175 = vmatpush2.bf16.msra.mxu0 %v8129
    %8176 = vmatprep.subr.bf16.mxu0 0
    %8177 = vmatpush2.bf16.msra.mxu0 %v8128
    %8178 = vmatprep.subr.bf16.mxu0 0
    %8179 = vmatpush2.bf16.msra.mxu0 %v8127
    %8180 = vmatprep.subr.bf16.mxu0 0
    %8181 = vmatpush2.bf16.msra.mxu0 %v8126
    %8182 = vmatprep.mubr.bf16.mxu0 %v5523
    %8183 = vmatmul.mubr.bf16.gmra.mxu0 %v5522
    %v8184 = vpop.f32.mrf.mxu0
    %v8185 = vadd.f32 %v6129, %v8184
    %v8186 = vpop.f32.mrf.mxu0
    %v8187 = vpop.f32.mrf.mxu0
    %v8188 = vpop.f32.mrf.mxu0
    %8189 = vdwg.mxu0
    %v8222 = vunpack.c.l.b16 %v6006
    %v8223 = vunpack.c.l.b16 %v6007
    %v8224 = vunpack.c.l.b16 %v6008
    %v8225 = vunpack.c.l.b16 %v6009
    %v8226 = vunpack.c.l.b16 %v6010
    %v8227 = vunpack.c.l.b16 %v6011
    %v8228 = vunpack.c.l.b16 %v6012
    %v8229 = vunpack.c.l.b16 %v6013
    %v8230 = vunpack.c.l.b16 %v6014
    %v8231 = vunpack.c.l.b16 %v6015
    %v8232 = vunpack.c.l.b16 %v6016
    %v8233 = vunpack.c.l.b16 %v6017
    %v8234 = vunpack.c.l.b16 %v6018
    %v8235 = vunpack.c.l.b16 %v6019
    %v8236 = vunpack.c.l.b16 %v6020
    %v8237 = vunpack.c.l.b16 %v6021
    %v8238 = vunpack.c.l.b16 %v6022
    %v8239 = vunpack.c.l.b16 %v6023
    %v8240 = vunpack.c.l.b16 %v6024
    %v8241 = vunpack.c.l.b16 %v6025
    %v8242 = vunpack.c.l.b16 %v6026
    %v8243 = vunpack.c.l.b16 %v6027
    %v8244 = vunpack.c.l.b16 %v6028
    %v8245 = vunpack.c.l.b16 %v6029
    %v8246 = vunpack.c.l.b16 %v6030
    %v8247 = vunpack.c.l.b16 %v6031
    %v8248 = vunpack.c.l.b16 %v6032
    %v8249 = vunpack.c.l.b16 %v6033
    %v8250 = vunpack.c.l.b16 %v6034
    %v8251 = vunpack.c.l.b16 %v6035
    %v8252 = vunpack.c.l.b16 %v6036
    %v8253 = vunpack.c.l.b16 %v6037
    %v8254 = vpack.c.b16 %v8223, %v8222
    %v8255 = vpack.c.b16 %v8225, %v8224
    %v8256 = vpack.c.b16 %v8227, %v8226
    %v8257 = vpack.c.b16 %v8229, %v8228
    %v8258 = vpack.c.b16 %v8231, %v8230
    %v8259 = vpack.c.b16 %v8233, %v8232
    %v8260 = vpack.c.b16 %v8235, %v8234
    %v8261 = vpack.c.b16 %v8237, %v8236
    %v8262 = vpack.c.b16 %v8239, %v8238
    %v8263 = vpack.c.b16 %v8241, %v8240
    %v8264 = vpack.c.b16 %v8243, %v8242
    %v8265 = vpack.c.b16 %v8245, %v8244
    %v8266 = vpack.c.b16 %v8247, %v8246
    %v8267 = vpack.c.b16 %v8249, %v8248
    %v8268 = vpack.c.b16 %v8251, %v8250
    %v8269 = vpack.c.b16 %v8253, %v8252
    %8286 = vmatprep.subr.bf16.mxu0 0
    %8287 = vmatpush1.bf16.msra.mxu0 %v8261
    %8288 = vmatprep.subr.bf16.mxu0 0
    %8289 = vmatpush1.bf16.msra.mxu0 %v8260
    %8290 = vmatprep.subr.bf16.mxu0 0
    %8291 = vmatpush1.bf16.msra.mxu0 %v8259
    %8292 = vmatprep.subr.bf16.mxu0 0
    %8293 = vmatpush1.bf16.msra.mxu0 %v8258
    %8294 = vmatprep.subr.bf16.mxu0 0
    %8295 = vmatpush1.bf16.msra.mxu0 %v8257
    %8296 = vmatprep.subr.bf16.mxu0 0
    %8297 = vmatpush1.bf16.msra.mxu0 %v8256
    %8298 = vmatprep.subr.bf16.mxu0 0
    %8299 = vmatpush1.bf16.msra.mxu0 %v8255
    %8300 = vmatprep.subr.bf16.mxu0 0
    %8301 = vmatpush1.bf16.msra.mxu0 %v8254
    %8302 = vmatprep.subr.bf16.mxu0 0
    %8303 = vmatpush2.bf16.msra.mxu0 %v8269
    %8304 = vmatprep.subr.bf16.mxu0 0
    %8305 = vmatpush2.bf16.msra.mxu0 %v8268
    %8306 = vmatprep.subr.bf16.mxu0 0
    %8307 = vmatpush2.bf16.msra.mxu0 %v8267
    %8308 = vmatprep.subr.bf16.mxu0 0
    %8309 = vmatpush2.bf16.msra.mxu0 %v8266
    %8310 = vmatprep.subr.bf16.mxu0 0
    %8311 = vmatpush2.bf16.msra.mxu0 %v8265
    %8312 = vmatprep.subr.bf16.mxu0 0
    %8313 = vmatpush2.bf16.msra.mxu0 %v8264
    %8314 = vmatprep.subr.bf16.mxu0 0
    %8315 = vmatpush2.bf16.msra.mxu0 %v8263
    %8316 = vmatprep.subr.bf16.mxu0 0
    %8317 = vmatpush2.bf16.msra.mxu0 %v8262
    %8318 = vmatprep.mubr.bf16.mxu0 %v5525
    %8319 = vmatmul.mubr.bf16.gmra.mxu0 %v5524
    %v8320 = vpop.f32.mrf.mxu0
    %v8321 = vadd.f32 %v6133, %v8320
    %v8322 = vpop.f32.mrf.mxu0
    %v8323 = vpop.f32.mrf.mxu0
    %v8324 = vpop.f32.mrf.mxu0
    %8325 = vdwg.mxu0
    %8327 = vset.pattern.permute.xlu0 4
    %8328 = vperm.xlu0 %8327, %v6281
    %v8329 = vpop.permute.xlu0 %8328
    %8332 = vset.pattern.permute.xlu0 4
    %8333 = vperm.xlu0 %8332, %v6417
    %v8334 = vpop.permute.xlu0 %8333
    %8337 = vset.pattern.permute.xlu0 4
    %8338 = vperm.xlu0 %8337, %v6553
    %v8339 = vpop.permute.xlu0 %8338
    %8342 = vset.pattern.permute.xlu0 4
    %8343 = vperm.xlu0 %8342, %v6689
    %v8344 = vpop.permute.xlu0 %8343
    %8347 = vset.pattern.permute.xlu0 4
    %8348 = vperm.xlu0 %8347, %v6825
    %v8349 = vpop.permute.xlu0 %8348
    %8352 = vset.pattern.permute.xlu0 4
    %8353 = vperm.xlu0 %8352, %v6961
    %v8354 = vpop.permute.xlu0 %8353
    %8357 = vset.pattern.permute.xlu0 4
    %8358 = vperm.xlu0 %8357, %v7097
    %v8359 = vpop.permute.xlu0 %8358
    %8362 = vset.pattern.permute.xlu0 4
    %8363 = vperm.xlu0 %8362, %v7233
    %v8364 = vpop.permute.xlu0 %8363
    %8367 = vset.pattern.permute.xlu0 4
    %8368 = vperm.xlu0 %8367, %v7369
    %v8369 = vpop.permute.xlu0 %8368
    %8372 = vset.pattern.permute.xlu0 4
    %8373 = vperm.xlu0 %8372, %v7505
    %v8374 = vpop.permute.xlu0 %8373
    %8377 = vset.pattern.permute.xlu0 4
    %8378 = vperm.xlu0 %8377, %v7641
    %v8379 = vpop.permute.xlu0 %8378
    %8382 = vset.pattern.permute.xlu0 4
    %8383 = vperm.xlu0 %8382, %v7777
    %v8384 = vpop.permute.xlu0 %8383
    %8387 = vset.pattern.permute.xlu0 4
    %8388 = vperm.xlu0 %8387, %v7913
    %v8389 = vpop.permute.xlu0 %8388
    %8392 = vset.pattern.permute.xlu0 4
    %8393 = vperm.xlu0 %8392, %v8049
    %v8394 = vpop.permute.xlu0 %8393
    %8397 = vset.pattern.permute.xlu0 4
    %8398 = vperm.xlu0 %8397, %v8185
    %v8399 = vpop.permute.xlu0 %8398
    %8402 = vset.pattern.permute.xlu0 4
    %8403 = vperm.xlu0 %8402, %v8321
    %v8404 = vpop.permute.xlu0 %8403
    %v8406 = vadd.f32 %v8329, %v6281
    %v8407 = vadd.f32 %v8334, %v6417
    %v8408 = vadd.f32 %v8339, %v6553
    %v8409 = vadd.f32 %v8344, %v6689
    %v8410 = vadd.f32 %v8349, %v6825
    %v8411 = vadd.f32 %v8354, %v6961
    %v8412 = vadd.f32 %v8359, %v7097
    %v8413 = vadd.f32 %v8364, %v7233
    %v8414 = vadd.f32 %v8369, %v7369
    %v8415 = vadd.f32 %v8374, %v7505
    %v8416 = vadd.f32 %v8379, %v7641
    %v8417 = vadd.f32 %v8384, %v7777
    %v8418 = vadd.f32 %v8389, %v7913
    %v8419 = vadd.f32 %v8394, %v8049
    %v8420 = vadd.f32 %v8399, %v8185
    %v8421 = vadd.f32 %v8404, %v8321
    %vm8422 = vcmask 31744
    %v8423 = vsel %vm8422, %v6281, 0.0
    %8424 = vadd.xlane.f32.xlu0 %v8423
    %v8425 = vpop.xlane.xlu0 %8424
    %v8426 = vsel %vm8422, %v6417, 0.0
    %8427 = vadd.xlane.f32.xlu0 %v8426
    %v8428 = vpop.xlane.xlu0 %8427
    %v8429 = vsel %vm8422, %v6553, 0.0
    %8430 = vadd.xlane.f32.xlu0 %v8429
    %v8431 = vpop.xlane.xlu0 %8430
    %v8432 = vsel %vm8422, %v6689, 0.0
    %8433 = vadd.xlane.f32.xlu0 %v8432
    %v8434 = vpop.xlane.xlu0 %8433
    %v8435 = vsel %vm8422, %v6825, 0.0
    %8436 = vadd.xlane.f32.xlu0 %v8435
    %v8437 = vpop.xlane.xlu0 %8436
    %v8438 = vsel %vm8422, %v6961, 0.0
    %8439 = vadd.xlane.f32.xlu0 %v8438
    %v8440 = vpop.xlane.xlu0 %8439
    %v8441 = vsel %vm8422, %v7097, 0.0
    %8442 = vadd.xlane.f32.xlu0 %v8441
    %v8443 = vpop.xlane.xlu0 %8442
    %v8444 = vsel %vm8422, %v7233, 0.0
    %8445 = vadd.xlane.f32.xlu0 %v8444
    %v8446 = vpop.xlane.xlu0 %8445
    %v8447 = vsel %vm8422, %v7369, 0.0
    %8448 = vadd.xlane.f32.xlu0 %v8447
    %v8449 = vpop.xlane.xlu0 %8448
    %v8450 = vsel %vm8422, %v7505, 0.0
    %8451 = vadd.xlane.f32.xlu0 %v8450
    %v8452 = vpop.xlane.xlu0 %8451
    %v8453 = vsel %vm8422, %v7641, 0.0
    %8454 = vadd.xlane.f32.xlu0 %v8453
    %v8455 = vpop.xlane.xlu0 %8454
    %v8456 = vsel %vm8422, %v7777, 0.0
    %8457 = vadd.xlane.f32.xlu0 %v8456
    %v8458 = vpop.xlane.xlu0 %8457
    %v8459 = vsel %vm8422, %v7913, 0.0
    %8460 = vadd.xlane.f32.xlu0 %v8459
    %v8461 = vpop.xlane.xlu0 %8460
    %v8462 = vsel %vm8422, %v8049, 0.0
    %8463 = vadd.xlane.f32.xlu0 %v8462
    %v8464 = vpop.xlane.xlu0 %8463
    %v8465 = vsel %vm8422, %v8185, 0.0
    %8466 = vadd.xlane.f32.xlu0 %v8465
    %v8467 = vpop.xlane.xlu0 %8466
    %v8468 = vsel %vm8422, %v8321, 0.0
    %8469 = vadd.xlane.f32.xlu0 %v8468
    %v8470 = vpop.xlane.xlu0 %8469
    %v8471 = vrcp.pop 4.0
    %v8472 = vmul.f32 %v8425, %v8471
    %v8473 = vmul.f32 %v8428, %v8471
    %v8474 = vmul.f32 %v8431, %v8471
    %v8475 = vmul.f32 %v8434, %v8471
    %v8476 = vmul.f32 %v8437, %v8471
    %v8477 = vmul.f32 %v8440, %v8471
    %v8478 = vmul.f32 %v8443, %v8471
    %v8479 = vmul.f32 %v8446, %v8471
    %v8480 = vmul.f32 %v8449, %v8471
    %v8481 = vmul.f32 %v8452, %v8471
    %v8482 = vmul.f32 %v8455, %v8471
    %v8483 = vmul.f32 %v8458, %v8471
    %v8484 = vmul.f32 %v8461, %v8471
    %v8485 = vmul.f32 %v8464, %v8471
    %v8486 = vmul.f32 %v8467, %v8471
    %v8487 = vmul.f32 %v8470, %v8471
    %v8488 = vsub.f32 %v8406, %v8472
    %v8489 = vsub.f32 %v8407, %v8473
    %v8490 = vsub.f32 %v8408, %v8474
    %v8491 = vsub.f32 %v8409, %v8475
    %v8492 = vsub.f32 %v8410, %v8476
    %v8493 = vsub.f32 %v8411, %v8477
    %v8494 = vsub.f32 %v8412, %v8478
    %v8495 = vsub.f32 %v8413, %v8479
    %v8496 = vsub.f32 %v8414, %v8480
    %v8497 = vsub.f32 %v8415, %v8481
    %v8498 = vsub.f32 %v8416, %v8482
    %v8499 = vsub.f32 %v8417, %v8483
    %v8500 = vsub.f32 %v8418, %v8484
    %v8501 = vsub.f32 %v8419, %v8485
    %v8502 = vsub.f32 %v8420, %v8486
    %v8503 = vsub.f32 %v8421, %v8487
    %8504 = vst.msk [vmem:[%s14] sm:$0xff] %vm8422, %v8488
    %8505 = vst.msk [vmem:[%s14 + $0x8] sm:$0xff] %vm8422, %v8489
    %8506 = vst.msk [vmem:[%s14 + $0x10] sm:$0xff] %vm8422, %v8490
    %8507 = vst.msk [vmem:[%s14 + $0x18] sm:$0xff] %vm8422, %v8491
    %8508 = vst.msk [vmem:[%s14 + $0x20] sm:$0xff] %vm8422, %v8492
    %8509 = vst.msk [vmem:[%s14 + $0x28] sm:$0xff] %vm8422, %v8493
    %8510 = vst.msk [vmem:[%s14 + $0x30] sm:$0xff] %vm8422, %v8494
    %8511 = vst.msk [vmem:[%s14 + $0x38] sm:$0xff] %vm8422, %v8495
    %8512 = vst.msk [vmem:[%s14 + $0x40] sm:$0xff] %vm8422, %v8496
    %8513 = vst.msk [vmem:[%s14 + $0x48] sm:$0xff] %vm8422, %v8497
    %8514 = vst.msk [vmem:[%s14 + $0x50] sm:$0xff] %vm8422, %v8498
    %8515 = vst.msk [vmem:[%s14 + $0x58] sm:$0xff] %vm8422, %v8499
    %8516 = vst.msk [vmem:[%s14 + $0x60] sm:$0xff] %vm8422, %v8500
    %8517 = vst.msk [vmem:[%s14 + $0x68] sm:$0xff] %vm8422, %v8501
    %8518 = vst.msk [vmem:[%s14 + $0x70] sm:$0xff] %vm8422, %v8502
    %8519 = vst.msk [vmem:[%s14 + $0x78] sm:$0xff] %vm8422, %v8503
    %p8520 = scmp.eq.s32.totalorder 0, 0
    // Predicated region
    $region98: #{discrete_actor_critic_forward.1} parent=1 // pred_check
      %p8521 = pneg %p8520
    $region99: #{discrete_actor_critic_forward.1} parent=1 // pred_check_branch
      %8523 = sbr.rel (%p8521) target = $region101
    $region100: #{discrete_actor_critic_forward.1} parent=1 // pred_region
      %v8524 = vld [vmem:[%s7] sm:$0xf]
      %v8525 = vld [vmem:[#allocation10] sm:$0xff]
      %v8526 = vld [vmem:[#allocation10 + $0x8] sm:$0xff]
      %v8527 = vld [vmem:[#allocation10 + $0x10] sm:$0xff]
      %v8528 = vld [vmem:[#allocation10 + $0x18] sm:$0xff]
      %v8529 = vld [vmem:[#allocation12] sm:$0x3]
      %v8531 = vlaneseq
      %v8532 = vshrl.u32 %v8531, 7
      %v8533 = vsub.s32 0, %v8532
      %v8534 = vrot.slane %v8529, %v8533
      %v8535 = vlaneseq
      %v8536 = vshrl.u32 %v8535, 7
      %v8537 = vsub.s32 1, %v8536
      %v8538 = vrot.slane %v8529, %v8537
      %v8545 = vunpack.c.l.b16 %v8525
      %v8546 = vunpack.c.h.b16 %v8525
      %v8547 = vunpack.c.l.b16 %v8526
      %v8548 = vunpack.c.h.b16 %v8526
      %v8549 = vunpack.c.l.b16 %v8527
      %v8550 = vunpack.c.h.b16 %v8527
      %v8551 = vunpack.c.l.b16 %v8528
      %v8552 = vunpack.c.h.b16 %v8528
      %v8553 = vpack.c.b16 %v8547, %v8545
      %v8554 = vpack.c.b16 %v8548, %v8546
      %v8555 = vpack.c.b16 %v8551, %v8549
      %v8556 = vpack.c.b16 %v8552, %v8550
      %v8562 = vsel %vm473, %v8524, 0
      %8564 = vmatprep.subr.bf16.mxu0 0
      %8565 = vmatpush1.bf16.msra.mxu0 0
      %8566 = vmatprep.subr.bf16.mxu0 0
      %8567 = vmatpush1.bf16.msra.mxu0 0
      %8568 = vmatprep.subr.bf16.mxu0 0
      %8569 = vmatpush1.bf16.msra.mxu0 0
      %8570 = vmatprep.subr.bf16.mxu0 0
      %8571 = vmatpush1.bf16.msra.mxu0 0
      %8572 = vmatprep.subr.bf16.mxu0 0
      %8573 = vmatpush1.bf16.msra.mxu0 0
      %8574 = vmatprep.subr.bf16.mxu0 0
      %8575 = vmatpush1.bf16.msra.mxu0 0
      %8576 = vmatprep.subr.bf16.mxu0 %v8556
      %8577 = vmatpush1.bf16.msra.mxu0 %v8555
      %8578 = vmatprep.subr.bf16.mxu0 %v8554
      %8579 = vmatpush1.bf16.msra.mxu0 %v8553
      %8580 = vmatprep.subr.bf16.mxu0 0
      %8581 = vmatpush2.bf16.msra.mxu0 0
      %8582 = vmatprep.subr.bf16.mxu0 0
      %8583 = vmatpush2.bf16.msra.mxu0 0
      %8584 = vmatprep.subr.bf16.mxu0 0
      %8585 = vmatpush2.bf16.msra.mxu0 0
      %8586 = vmatprep.subr.bf16.mxu0 0
      %8587 = vmatpush2.bf16.msra.mxu0 0
      %8588 = vmatprep.subr.bf16.mxu0 0
      %8589 = vmatpush2.bf16.msra.mxu0 0
      %8590 = vmatprep.subr.bf16.mxu0 0
      %8591 = vmatpush2.bf16.msra.mxu0 0
      %8592 = vmatprep.subr.bf16.mxu0 0
      %8593 = vmatpush2.bf16.msra.mxu0 0
      %8594 = vmatprep.subr.bf16.mxu0 0
      %8595 = vmatpush2.bf16.msra.mxu0 0
      %8596 = vmatprep.mubr.bf16.mxu0 0
      %8597 = vmatmul.mubr.bf16.gmra.mxu0 %v8562
      %v8598 = vpop.f32.mrf.mxu0
      %v8599 = vadd.f32 %v8534, %v8598
      %v8600 = vpop.f32.mrf.mxu0
      %v8601 = vadd.f32 %v8538, %v8600
      %v8602 = vpop.f32.mrf.mxu0
      %v8603 = vpop.f32.mrf.mxu0
      %8604 = vdwg.mxu0
      %v8605 = vmax.f32 %v8599, 0.0
      %v8606 = vmax.f32 %v8601, 0.0
      %v8607 = vpack.c.bf16 %v8605, %v8605
      %v8608 = vpack.c.bf16 %v8606, %v8606
      %v8609 = vld [vmem:[#allocation13] sm:$0xff]
      %v8610 = vld [vmem:[#allocation13 + $0x8] sm:$0xff]
      %v8611 = vld [vmem:[#allocation13 + $0x10] sm:$0xff]
      %v8612 = vld [vmem:[#allocation13 + $0x18] sm:$0xff]
      %v8613 = vld [vmem:[#allocation13 + $0x20] sm:$0xff]
      %v8614 = vld [vmem:[#allocation13 + $0x28] sm:$0xff]
      %v8615 = vld [vmem:[#allocation13 + $0x30] sm:$0xff]
      %v8616 = vld [vmem:[#allocation13 + $0x38] sm:$0xff]
      %v8617 = vld [vmem:[#allocation13 + $0x40] sm:$0xff]
      %v8618 = vld [vmem:[#allocation13 + $0x48] sm:$0xff]
      %v8619 = vld [vmem:[#allocation13 + $0x50] sm:$0xff]
      %v8620 = vld [vmem:[#allocation13 + $0x58] sm:$0xff]
      %v8621 = vld [vmem:[#allocation13 + $0x60] sm:$0xff]
      %v8622 = vld [vmem:[#allocation13 + $0x68] sm:$0xff]
      %v8623 = vld [vmem:[#allocation13 + $0x70] sm:$0xff]
      %v8624 = vld [vmem:[#allocation13 + $0x78] sm:$0xff]
      %v8625 = vld [vmem:[#allocation13 + $0x80] sm:$0xff]
      %v8626 = vld [vmem:[#allocation13 + $0x88] sm:$0xff]
      %v8627 = vld [vmem:[#allocation13 + $0x90] sm:$0xff]
      %v8628 = vld [vmem:[#allocation13 + $0x98] sm:$0xff]
      %v8629 = vld [vmem:[#allocation13 + $0xa0] sm:$0xff]
      %v8630 = vld [vmem:[#allocation13 + $0xa8] sm:$0xff]
      %v8631 = vld [vmem:[#allocation13 + $0xb0] sm:$0xff]
      %v8632 = vld [vmem:[#allocation13 + $0xb8] sm:$0xff]
      %v8633 = vld [vmem:[#allocation13 + $0xc0] sm:$0xff]
      %v8634 = vld [vmem:[#allocation13 + $0xc8] sm:$0xff]
      %v8635 = vld [vmem:[#allocation13 + $0xd0] sm:$0xff]
      %v8636 = vld [vmem:[#allocation13 + $0xd8] sm:$0xff]
      %v8637 = vld [vmem:[#allocation13 + $0xe0] sm:$0xff]
      %v8638 = vld [vmem:[#allocation13 + $0xe8] sm:$0xff]
      %v8639 = vld [vmem:[#allocation13 + $0xf0] sm:$0xff]
      %v8640 = vld [vmem:[#allocation13 + $0xf8] sm:$0xff]
      %v8641 = vld [vmem:[#allocation15] sm:$0x3]
      %v8643 = vlaneseq
      %v8644 = vshrl.u32 %v8643, 7
      %v8645 = vsub.s32 0, %v8644
      %v8646 = vrot.slane %v8641, %v8645
      %v8647 = vlaneseq
      %v8648 = vshrl.u32 %v8647, 7
      %v8649 = vsub.s32 1, %v8648
      %v8650 = vrot.slane %v8641, %v8649
      %v8685 = vunpack.c.l.b16 %v8609
      %v8686 = vunpack.c.h.b16 %v8609
      %v8687 = vunpack.c.l.b16 %v8610
      %v8688 = vunpack.c.h.b16 %v8610
      %v8689 = vunpack.c.l.b16 %v8611
      %v8690 = vunpack.c.h.b16 %v8611
      %v8691 = vunpack.c.l.b16 %v8612
      %v8692 = vunpack.c.h.b16 %v8612
      %v8693 = vunpack.c.l.b16 %v8613
      %v8694 = vunpack.c.h.b16 %v8613
      %v8695 = vunpack.c.l.b16 %v8614
      %v8696 = vunpack.c.h.b16 %v8614
      %v8697 = vunpack.c.l.b16 %v8615
      %v8698 = vunpack.c.h.b16 %v8615
      %v8699 = vunpack.c.l.b16 %v8616
      %v8700 = vunpack.c.h.b16 %v8616
      %v8701 = vunpack.c.l.b16 %v8617
      %v8702 = vunpack.c.h.b16 %v8617
      %v8703 = vunpack.c.l.b16 %v8618
      %v8704 = vunpack.c.h.b16 %v8618
      %v8705 = vunpack.c.l.b16 %v8619
      %v8706 = vunpack.c.h.b16 %v8619
      %v8707 = vunpack.c.l.b16 %v8620
      %v8708 = vunpack.c.h.b16 %v8620
      %v8709 = vunpack.c.l.b16 %v8621
      %v8710 = vunpack.c.h.b16 %v8621
      %v8711 = vunpack.c.l.b16 %v8622
      %v8712 = vunpack.c.h.b16 %v8622
      %v8713 = vunpack.c.l.b16 %v8623
      %v8714 = vunpack.c.h.b16 %v8623
      %v8715 = vunpack.c.l.b16 %v8624
      %v8716 = vunpack.c.h.b16 %v8624
      %v8717 = vunpack.c.l.b16 %v8625
      %v8718 = vunpack.c.h.b16 %v8625
      %v8719 = vunpack.c.l.b16 %v8626
      %v8720 = vunpack.c.h.b16 %v8626
      %v8721 = vunpack.c.l.b16 %v8627
      %v8722 = vunpack.c.h.b16 %v8627
      %v8723 = vunpack.c.l.b16 %v8628
      %v8724 = vunpack.c.h.b16 %v8628
      %v8725 = vunpack.c.l.b16 %v8629
      %v8726 = vunpack.c.h.b16 %v8629
      %v8727 = vunpack.c.l.b16 %v8630
      %v8728 = vunpack.c.h.b16 %v8630
      %v8729 = vunpack.c.l.b16 %v8631
      %v8730 = vunpack.c.h.b16 %v8631
      %v8731 = vunpack.c.l.b16 %v8632
      %v8732 = vunpack.c.h.b16 %v8632
      %v8733 = vunpack.c.l.b16 %v8633
      %v8734 = vunpack.c.h.b16 %v8633
      %v8735 = vunpack.c.l.b16 %v8634
      %v8736 = vunpack.c.h.b16 %v8634
      %v8737 = vunpack.c.l.b16 %v8635
      %v8738 = vunpack.c.h.b16 %v8635
      %v8739 = vunpack.c.l.b16 %v8636
      %v8740 = vunpack.c.h.b16 %v8636
      %v8741 = vunpack.c.l.b16 %v8637
      %v8742 = vunpack.c.h.b16 %v8637
      %v8743 = vunpack.c.l.b16 %v8638
      %v8744 = vunpack.c.h.b16 %v8638
      %v8745 = vunpack.c.l.b16 %v8639
      %v8746 = vunpack.c.h.b16 %v8639
      %v8747 = vunpack.c.l.b16 %v8640
      %v8748 = vunpack.c.h.b16 %v8640
      %v8749 = vpack.c.b16 %v8687, %v8685
      %v8750 = vpack.c.b16 %v8688, %v8686
      %v8751 = vpack.c.b16 %v8691, %v8689
      %v8752 = vpack.c.b16 %v8692, %v8690
      %v8753 = vpack.c.b16 %v8695, %v8693
      %v8754 = vpack.c.b16 %v8696, %v8694
      %v8755 = vpack.c.b16 %v8699, %v8697
      %v8756 = vpack.c.b16 %v8700, %v8698
      %v8757 = vpack.c.b16 %v8703, %v8701
      %v8758 = vpack.c.b16 %v8704, %v8702
      %v8759 = vpack.c.b16 %v8707, %v8705
      %v8760 = vpack.c.b16 %v8708, %v8706
      %v8761 = vpack.c.b16 %v8711, %v8709
      %v8762 = vpack.c.b16 %v8712, %v8710
      %v8763 = vpack.c.b16 %v8715, %v8713
      %v8764 = vpack.c.b16 %v8716, %v8714
      %v8765 = vpack.c.b16 %v8719, %v8717
      %v8766 = vpack.c.b16 %v8720, %v8718
      %v8767 = vpack.c.b16 %v8723, %v8721
      %v8768 = vpack.c.b16 %v8724, %v8722
      %v8769 = vpack.c.b16 %v8727, %v8725
      %v8770 = vpack.c.b16 %v8728, %v8726
      %v8771 = vpack.c.b16 %v8731, %v8729
      %v8772 = vpack.c.b16 %v8732, %v8730
      %v8773 = vpack.c.b16 %v8735, %v8733
      %v8774 = vpack.c.b16 %v8736, %v8734
      %v8775 = vpack.c.b16 %v8739, %v8737
      %v8776 = vpack.c.b16 %v8740, %v8738
      %v8777 = vpack.c.b16 %v8743, %v8741
      %v8778 = vpack.c.b16 %v8744, %v8742
      %v8779 = vpack.c.b16 %v8747, %v8745
      %v8780 = vpack.c.b16 %v8748, %v8746
      %8813 = vmatprep.subr.bf16.mxu0 %v8764
      %8814 = vmatpush1.bf16.msra.mxu0 %v8763
      %8815 = vmatprep.subr.bf16.mxu0 %v8762
      %8816 = vmatpush1.bf16.msra.mxu0 %v8761
      %8817 = vmatprep.subr.bf16.mxu0 %v8760
      %8818 = vmatpush1.bf16.msra.mxu0 %v8759
      %8819 = vmatprep.subr.bf16.mxu0 %v8758
      %8820 = vmatpush1.bf16.msra.mxu0 %v8757
      %8821 = vmatprep.subr.bf16.mxu0 %v8756
      %8822 = vmatpush1.bf16.msra.mxu0 %v8755
      %8823 = vmatprep.subr.bf16.mxu0 %v8754
      %8824 = vmatpush1.bf16.msra.mxu0 %v8753
      %8825 = vmatprep.subr.bf16.mxu0 %v8752
      %8826 = vmatpush1.bf16.msra.mxu0 %v8751
      %8827 = vmatprep.subr.bf16.mxu0 %v8750
      %8828 = vmatpush1.bf16.msra.mxu0 %v8749
      %8829 = vmatprep.subr.bf16.mxu0 %v8780
      %8830 = vmatpush2.bf16.msra.mxu0 %v8779
      %8831 = vmatprep.subr.bf16.mxu0 %v8778
      %8832 = vmatpush2.bf16.msra.mxu0 %v8777
      %8833 = vmatprep.subr.bf16.mxu0 %v8776
      %8834 = vmatpush2.bf16.msra.mxu0 %v8775
      %8835 = vmatprep.subr.bf16.mxu0 %v8774
      %8836 = vmatpush2.bf16.msra.mxu0 %v8773
      %8837 = vmatprep.subr.bf16.mxu0 %v8772
      %8838 = vmatpush2.bf16.msra.mxu0 %v8771
      %8839 = vmatprep.subr.bf16.mxu0 %v8770
      %8840 = vmatpush2.bf16.msra.mxu0 %v8769
      %8841 = vmatprep.subr.bf16.mxu0 %v8768
      %8842 = vmatpush2.bf16.msra.mxu0 %v8767
      %8843 = vmatprep.subr.bf16.mxu0 %v8766
      %8844 = vmatpush2.bf16.msra.mxu0 %v8765
      %8845 = vmatprep.mubr.bf16.mxu0 %v8608
      %8846 = vmatmul.mubr.bf16.gmra.mxu0 %v8607
      %v8847 = vpop.f32.mrf.mxu0
      %v8848 = vadd.f32 %v8646, %v8847
      %v8849 = vpop.f32.mrf.mxu0
      %v8850 = vadd.f32 %v8650, %v8849
      %v8851 = vpop.f32.mrf.mxu0
      %v8852 = vpop.f32.mrf.mxu0
      %8853 = vdwg.mxu0
      %v8854 = vmax.f32 %v8848, 0.0
      %v8855 = vmax.f32 %v8850, 0.0
      %v8856 = vpack.c.bf16 %v8854, %v8854
      %v8857 = vpack.c.bf16 %v8855, %v8855
      %v8858 = vld [vmem:[%s12] sm:$0xf]
      %v8859 = vld [vmem:[%s12 + $0x4] sm:$0xf]
      %v8860 = vld [vmem:[%s12 + $0x8] sm:$0xf]
      %v8861 = vld [vmem:[%s12 + $0xc] sm:$0xf]
      %v8862 = vld [vmem:[%s12 + $0x10] sm:$0xf]
      %v8863 = vld [vmem:[%s12 + $0x14] sm:$0xf]
      %v8864 = vld [vmem:[%s12 + $0x18] sm:$0xf]
      %v8865 = vld [vmem:[%s12 + $0x1c] sm:$0xf]
      %v8866 = vld [vmem:[%s12 + $0x20] sm:$0xf]
      %v8867 = vld [vmem:[%s12 + $0x24] sm:$0xf]
      %v8868 = vld [vmem:[%s12 + $0x28] sm:$0xf]
      %v8869 = vld [vmem:[%s12 + $0x2c] sm:$0xf]
      %v8870 = vld [vmem:[%s12 + $0x30] sm:$0xf]
      %v8871 = vld [vmem:[%s12 + $0x34] sm:$0xf]
      %v8872 = vld [vmem:[%s12 + $0x38] sm:$0xf]
      %v8873 = vld [vmem:[%s12 + $0x3c] sm:$0xf]
      %v8874 = vld [vmem:[%s12 + $0x40] sm:$0xf]
      %v8875 = vld [vmem:[%s12 + $0x44] sm:$0xf]
      %v8876 = vld [vmem:[%s12 + $0x48] sm:$0xf]
      %v8877 = vld [vmem:[%s12 + $0x4c] sm:$0xf]
      %v8878 = vld [vmem:[%s12 + $0x50] sm:$0xf]
      %v8879 = vld [vmem:[%s12 + $0x54] sm:$0xf]
      %v8880 = vld [vmem:[%s12 + $0x58] sm:$0xf]
      %v8881 = vld [vmem:[%s12 + $0x5c] sm:$0xf]
      %v8882 = vld [vmem:[%s12 + $0x60] sm:$0xf]
      %v8883 = vld [vmem:[%s12 + $0x64] sm:$0xf]
      %v8884 = vld [vmem:[%s12 + $0x68] sm:$0xf]
      %v8885 = vld [vmem:[%s12 + $0x6c] sm:$0xf]
      %v8886 = vld [vmem:[%s12 + $0x70] sm:$0xf]
      %v8887 = vld [vmem:[%s12 + $0x74] sm:$0xf]
      %v8888 = vld [vmem:[%s12 + $0x78] sm:$0xf]
      %v8889 = vld [vmem:[%s12 + $0x7c] sm:$0xf]
      %v8890 = vld [vmem:[#allocation16] sm:$0x1]
      %v8892 = vlaneseq
      %v8893 = vshrl.u32 %v8892, 7
      %v8894 = vsub.s32 0, %v8893
      %v8895 = vrot.slane %v8890, %v8894
      %v8929 = vunpack.c.l.b16 %v8858
      %v8930 = vunpack.c.l.b16 %v8859
      %v8931 = vunpack.c.l.b16 %v8860
      %v8932 = vunpack.c.l.b16 %v8861
      %v8933 = vunpack.c.l.b16 %v8862
      %v8934 = vunpack.c.l.b16 %v8863
      %v8935 = vunpack.c.l.b16 %v8864
      %v8936 = vunpack.c.l.b16 %v8865
      %v8937 = vunpack.c.l.b16 %v8866
      %v8938 = vunpack.c.l.b16 %v8867
      %v8939 = vunpack.c.l.b16 %v8868
      %v8940 = vunpack.c.l.b16 %v8869
      %v8941 = vunpack.c.l.b16 %v8870
      %v8942 = vunpack.c.l.b16 %v8871
      %v8943 = vunpack.c.l.b16 %v8872
      %v8944 = vunpack.c.l.b16 %v8873
      %v8945 = vunpack.c.l.b16 %v8874
      %v8946 = vunpack.c.l.b16 %v8875
      %v8947 = vunpack.c.l.b16 %v8876
      %v8948 = vunpack.c.l.b16 %v8877
      %v8949 = vunpack.c.l.b16 %v8878
      %v8950 = vunpack.c.l.b16 %v8879
      %v8951 = vunpack.c.l.b16 %v8880
      %v8952 = vunpack.c.l.b16 %v8881
      %v8953 = vunpack.c.l.b16 %v8882
      %v8954 = vunpack.c.l.b16 %v8883
      %v8955 = vunpack.c.l.b16 %v8884
      %v8956 = vunpack.c.l.b16 %v8885
      %v8957 = vunpack.c.l.b16 %v8886
      %v8958 = vunpack.c.l.b16 %v8887
      %v8959 = vunpack.c.l.b16 %v8888
      %v8960 = vunpack.c.l.b16 %v8889
      %v8961 = vpack.c.b16 %v8930, %v8929
      %v8962 = vpack.c.b16 %v8932, %v8931
      %v8963 = vpack.c.b16 %v8934, %v8933
      %v8964 = vpack.c.b16 %v8936, %v8935
      %v8965 = vpack.c.b16 %v8938, %v8937
      %v8966 = vpack.c.b16 %v8940, %v8939
      %v8967 = vpack.c.b16 %v8942, %v8941
      %v8968 = vpack.c.b16 %v8944, %v8943
      %v8969 = vpack.c.b16 %v8946, %v8945
      %v8970 = vpack.c.b16 %v8948, %v8947
      %v8971 = vpack.c.b16 %v8950, %v8949
      %v8972 = vpack.c.b16 %v8952, %v8951
      %v8973 = vpack.c.b16 %v8954, %v8953
      %v8974 = vpack.c.b16 %v8956, %v8955
      %v8975 = vpack.c.b16 %v8958, %v8957
      %v8976 = vpack.c.b16 %v8960, %v8959
      %8993 = vmatprep.subr.bf16.mxu0 0
      %8994 = vmatpush1.bf16.msra.mxu0 %v8968
      %8995 = vmatprep.subr.bf16.mxu0 0
      %8996 = vmatpush1.bf16.msra.mxu0 %v8967
      %8997 = vmatprep.subr.bf16.mxu0 0
      %8998 = vmatpush1.bf16.msra.mxu0 %v8966
      %8999 = vmatprep.subr.bf16.mxu0 0
      %9000 = vmatpush1.bf16.msra.mxu0 %v8965
      %9001 = vmatprep.subr.bf16.mxu0 0
      %9002 = vmatpush1.bf16.msra.mxu0 %v8964
      %9003 = vmatprep.subr.bf16.mxu0 0
      %9004 = vmatpush1.bf16.msra.mxu0 %v8963
      %9005 = vmatprep.subr.bf16.mxu0 0
      %9006 = vmatpush1.bf16.msra.mxu0 %v8962
      %9007 = vmatprep.subr.bf16.mxu0 0
      %9008 = vmatpush1.bf16.msra.mxu0 %v8961
      %9009 = vmatprep.subr.bf16.mxu0 0
      %9010 = vmatpush2.bf16.msra.mxu0 %v8976
      %9011 = vmatprep.subr.bf16.mxu0 0
      %9012 = vmatpush2.bf16.msra.mxu0 %v8975
      %9013 = vmatprep.subr.bf16.mxu0 0
      %9014 = vmatpush2.bf16.msra.mxu0 %v8974
      %9015 = vmatprep.subr.bf16.mxu0 0
      %9016 = vmatpush2.bf16.msra.mxu0 %v8973
      %9017 = vmatprep.subr.bf16.mxu0 0
      %9018 = vmatpush2.bf16.msra.mxu0 %v8972
      %9019 = vmatprep.subr.bf16.mxu0 0
      %9020 = vmatpush2.bf16.msra.mxu0 %v8971
      %9021 = vmatprep.subr.bf16.mxu0 0
      %9022 = vmatpush2.bf16.msra.mxu0 %v8970
      %9023 = vmatprep.subr.bf16.mxu0 0
      %9024 = vmatpush2.bf16.msra.mxu0 %v8969
      %9025 = vmatprep.mubr.bf16.mxu0 %v8857
      %9026 = vmatmul.mubr.bf16.gmra.mxu0 %v8856
      %v9027 = vpop.f32.mrf.mxu0
      %v9028 = vadd.f32 %v8895, %v9027
      %v9029 = vpop.f32.mrf.mxu0
      %v9030 = vpop.f32.mrf.mxu0
      %v9031 = vpop.f32.mrf.mxu0
      %9032 = vdwg.mxu0
      %v9033 = vsel %vm8422, %v9028, -inf
      %9034 = vmax.xlane.f32.xlu0 %v9033
      %v9035 = vpop.xlane.xlu0 %9034
      %v9036 = vsub.f32 %v9028, %v9035
      %v9037 = vmul.f32 %v9036, 1.442695
      %v9038 = vpow.pop %v9037
      %v9039 = vsel %vm8422, %v9038, 0.0
      %9040 = vadd.xlane.f32.xlu0 %v9039
      %v9041 = vpop.xlane.xlu0 %9040
      %v9042 = vlog2.pop %v9041
      %v9043 = vmul.f32 %v9042, 0.6931472
      %v9044 = vsub.f32 %v9036, %v9043
      %9045 = vst.msk [vmem:[%s16] sm:$0xff] %vm8422, %v9044
      %v9046 = vmul.f32 %v9044, 1.442695
      %v9047 = vpow.pop %v9046
      %9048 = vst.msk [vmem:[%s15] sm:$0xff] %vm8422, %v9047
    $region101: #{discrete_actor_critic_forward.1} parent=1 // pred_fallthru
      _
    // Predicated region
    $region102: #{discrete_actor_critic_forward.1} parent=1 // pred_check
      _
    $region103: #{discrete_actor_critic_forward.1} parent=1 // pred_check_branch
      %9050 = sbr.rel (0) target = $region105
    $region104: #{discrete_actor_critic_forward.1} parent=1 // pred_region
      _
    $region105: #{discrete_actor_critic_forward.1} parent=1 // pred_fallthru
      _
    // Predicated region
    $region106: #{discrete_actor_critic_forward.1} parent=1 // pred_check
      _
    $region107: #{discrete_actor_critic_forward.1} parent=1 // pred_check_branch
      %9052 = sbr.rel (0) target = $region109
    $region108: #{discrete_actor_critic_forward.1} parent=1 // pred_region
      _
    $region109: #{discrete_actor_critic_forward.1} parent=1 // pred_fallthru
      _
    // Predicated region
    $region110: #{discrete_actor_critic_forward.1} parent=1 // pred_check
      _
    $region111: #{discrete_actor_critic_forward.1} parent=1 // pred_check_branch
      %9054 = sbr.rel (0) target = $region113
    $region112: #{discrete_actor_critic_forward.1} parent=1 // pred_region
      _
    $region113: #{discrete_actor_critic_forward.1} parent=1 // pred_fallthru
      _
    // Predicated region
    $region114: #{discrete_actor_critic_forward.1} parent=1 // pred_check
      _
    $region115: #{discrete_actor_critic_forward.1} parent=1 // pred_check_branch
      %9056 = sbr.rel (0) target = $region117
    $region116: #{discrete_actor_critic_forward.1} parent=1 // pred_region
      _
    $region117: #{discrete_actor_critic_forward.1} parent=1 // pred_fallthru
      _
    // Predicated region
    $region118: #{discrete_actor_critic_forward.1} parent=1 // pred_check
      _
    $region119: #{discrete_actor_critic_forward.1} parent=1 // pred_check_branch
      %9058 = sbr.rel (0) target = $region121
    $region120: #{discrete_actor_critic_forward.1} parent=1 // pred_region
      _
    $region121: #{discrete_actor_critic_forward.1} parent=1 // pred_fallthru
      _
    // Predicated region
    $region122: #{discrete_actor_critic_forward.1} parent=1 // pred_check
      _
    $region123: #{discrete_actor_critic_forward.1} parent=1 // pred_check_branch
      %9060 = sbr.rel (0) target = $region125
    $region124: #{discrete_actor_critic_forward.1} parent=1 // pred_region
      _
    $region125: #{discrete_actor_critic_forward.1} parent=1 // pred_fallthru
      _
    %9061 = vsyncpa [#allocation3], 1
    %9062 = vsyncpa [#allocation5], 1
    %9063 = vsyncpa [#allocation8], 1
    %9064 = vsyncpa [#allocation11], 1
    %9065 = vsyncpa [#allocation14], 1
    %9066 = vsyncpa [#allocation17], 1

</llo_original>
